<compile_context>
chip_gen: v5e
topology: v5e:2x2
jax: 0.10.0
libtpu: 0.0.40
codegen_flags: <defaults>
</compile_context>

<pallas_src>
import functools
import math

import numpy as np
import jax
import jax.numpy as jnp
from jax.experimental import pallas as pl
from jax.experimental.pallas import tpu as pltpu

# ----------------------------------------------------------------------------------
# Module constants (mirroring Q_generator.py)
# ----------------------------------------------------------------------------------
IMAGE_SIZE = 28
N_C_QUBITS = 1
N_GENERATORS = 8
N_A_QUBITS = 1
N_QUBITS = math.ceil(math.log(IMAGE_SIZE ** 2 // N_GENERATORS, 2)) + N_A_QUBITS + N_C_QUBITS  # 9
Q_DEPTH = 6
N_DATA = N_QUBITS - N_C_QUBITS                      # 8 simulated data qubits (wires 1..8)
PIXELS_PER_PATCH = IMAGE_SIZE ** 2 // N_GENERATORS  # 98
DIM_HALF = 16                                       # 4 row qubits x 4 col qubits
DIM_PACK = DIM_HALF * N_GENERATORS                  # 128: generators interleaved into rows/lanes


# ----------------------------------------------------------------------------------
# Constant 16x16 matrices (label-controlled X's + in-half CNOT chain) and the exact
# 0/1 epilogue compaction masks.  Built once at import time with numpy.
# ----------------------------------------------------------------------------------
def _np_embed_half(gate2, pos):
    # gate on qubit `pos` (MSB-first) of a 4-qubit half
    return np.kron(np.eye(2 ** pos), np.kron(gate2, np.eye(2 ** (3 - pos))))


def _np_cnot_half(ctrl_pos, tgt_pos):
    m = np.zeros((DIM_HALF, DIM_HALF), dtype=np.float64)
    for i in range(DIM_HALF):
        j = i ^ (1 << (3 - tgt_pos)) if (i >> (3 - ctrl_pos)) & 1 else i
        m[j, i] = 1.0
    return m


def _np_ent_half(lam):
    # Chronological: X^lam(q0), CNOT(q0,q1), X^lam(q1), CNOT(q1,q2), X^lam(q2),
    # CNOT(q2,q3), X^lam(q3)   (matrices compose right-to-left).
    x = np.array([[0.0, 1.0], [1.0, 0.0]]) if lam else np.eye(2)
    e0, e1, e2, e3 = (_np_embed_half(x, p) for p in range(4))
    c01, c12, c23 = _np_cnot_half(0, 1), _np_cnot_half(1, 2), _np_cnot_half(2, 3)
    return e3 @ c23 @ e2 @ c12 @ e1 @ c01 @ e0


_ENT_HALF = np.stack([_np_ent_half(0), _np_ent_half(1)]).astype(np.float32)  # (2, 16, 16)

# Epilogue compaction masks (batch-invariant, exact 0/1):
#   OUT[g, 16*r + c] = probs[r*8+g, c*8+g],  r < 8  (wire 1 == 0).
_ri = np.arange(DIM_PACK)[:, None]
_ci = np.arange(DIM_PACK)[None, :]
_GATHER_C = ((_ri >> 3) == (_ci & 15)).astype(np.float32)            # lane compaction (picks c)
_MATCH_R = ((_ri >> 3) == (_ci >> 4)).astype(np.float32)             # keep rows with r == out>>4
_PICK_G = (((_ci & 7) == _ri) & (_ri < N_GENERATORS)).astype(np.float32)  # row g sums its rows
_EPI_MASKS = np.stack([_GATHER_C, _MATCH_R, _PICK_G]).astype(np.float32)  # (3, 128, 128)


# ----------------------------------------------------------------------------------
# Operand construction (pure JAX, traced under the same jit as the kernel call).
# ----------------------------------------------------------------------------------
def _kron4(g0, g1, g2, g3):
    out = jnp.einsum('...ab,...cd,...ef,...gh->...acegbdfh', g0, g1, g2, g3)
    return out.reshape(out.shape[:-8] + (DIM_HALF, DIM_HALF))


def _kron4_vec(v0, v1, v2, v3):
    out = jnp.einsum('...a,...c,...e,...g->...aceg', v0, v1, v2, v3)
    return out.reshape(out.shape[:-4] + (DIM_HALF,))


def _build_operands(label, x, q_params, op_dtype):
    """Pack the whole circuit into two lane-dense operand arrays."""
    B = x.shape[0]
    eye8 = jnp.eye(N_GENERATORS, dtype=jnp.float32)

    # ---- per-generator Rot layers -> interleaved block-diagonal 128x128 operators ----
    w = q_params.astype(jnp.float32)                              # (G, L, 8, 3)
    phi, theta, omega = w[..., 0], w[..., 1], w[..., 2]
    c, s = jnp.cos(theta * 0.5), jnp.sin(theta * 0.5)
    g00 = jnp.exp(-0.5j * (phi + omega)) * c
    g01 = -jnp.exp(0.5j * (phi - omega)) * s
    g10 = jnp.exp(-0.5j * (phi - omega)) * s
    g11 = jnp.exp(0.5j * (phi + omega)) * c
    gates = jnp.stack([jnp.stack([g00, g01], -1), jnp.stack([g10, g11], -1)], -2)  # (G,L,8,2,2)

    rot_row = _kron4(gates[:, :, 0], gates[:, :, 1], gates[:, :, 2], gates[:, :, 3])   # (G,L,16,16)
    rot_colT = jnp.swapaxes(
        _kron4(gates[:, :, 4], gates[:, :, 5], gates[:, :, 6], gates[:, :, 7]), -1, -2)

    # Big[a*8+g, b*8+h] = block_g[a, b] * delta(g, h)
    big_l = jnp.einsum('glab,gh->lagbh', rot_row, eye8).reshape(Q_DEPTH, DIM_PACK, DIM_PACK)
    big_r = jnp.einsum('glab,gh->lagbh', rot_colT, eye8).reshape(Q_DEPTH, DIM_PACK, DIM_PACK)
    rot_ops = jnp.stack(
        [big_l.real, big_l.imag, big_r.real, big_r.imag], axis=1).astype(op_dtype)  # (L,4,128,128)

    # ---- per-sample operators: RY product state + in-half entangling chains ----
    half = x.astype(jnp.float32) * 0.5
    amp = jnp.stack([jnp.cos(half), jnp.sin(half)], axis=-1)                  # (B, 8, 2)
    row_amp = _kron4_vec(amp[:, 0], amp[:, 1], amp[:, 2], amp[:, 3])          # (B, 16)
    col_amp = _kron4_vec(amp[:, 4], amp[:, 5], amp[:, 6], amp[:, 7])          # (B, 16)
    s0 = row_amp[:, :, None] * col_amp[:, None, :]                            # (B, 16, 16)

    ent = jnp.asarray(_ENT_HALF)
    m_ent = jnp.where((label == 1)[:, None, None], ent[1][None], ent[0][None])  # (B,16,16)

    def expand(mat):                                                          # (B,16,16)->(B,128,128)
        return jnp.einsum('bij,gh->bigjh', mat, eye8).reshape(B, DIM_PACK, DIM_PACK)

    smp_ops = jnp.stack(
        [expand(s0), expand(m_ent), expand(jnp.swapaxes(m_ent, 1, 2))], axis=1).astype(op_dtype)
    return rot_ops, smp_ops                                                   # (B,3,128,128)


# ----------------------------------------------------------------------------------
# Pallas kernel: one grid step = Bt samples; all 8 generators packed into 128 lanes;
# complex multiplies use 256-wide stacked operands (full v6e/v7x MXU width).
# ----------------------------------------------------------------------------------
def _qgen_kernel(rot_ref, epi_ref, smp_ref, out_ref, *, bt, precision):
    f32 = jnp.float32
    D = DIM_PACK
    HALF = D // 2                      # 64: lane/sublane XOR distance for cross-CNOT MSB flips

    def mm(a, b):
        return jnp.dot(a, b, preferred_element_type=f32, precision=precision)

    def mm_exact(a, b):                # exact 0/1 compaction masks -> keep f32-exact
        return jnp.dot(a, b, preferred_element_type=f32,
                       precision=jax.lax.Precision.HIGHEST)

    # Cross-CNOT control masks, hoisted out of all loops (built from rank-reduced iotas).
    row_bit = (jax.lax.broadcasted_iota(jnp.int32, (D, 1), 0) >> 3) & 1   # row LSB (wire 4)
    col_bit = (jax.lax.broadcasted_iota(jnp.int32, (1, D), 1) >> 3) & 1   # col LSB (wire 8)
    row_ctrl = jnp.broadcast_to(row_bit, (D, D)) == 1
    col_ctrl = jnp.broadcast_to(col_bit, (D, D)) == 1

    # Batch-invariant stacked Rot operators (loaded + concatenated once per grid step):
    #   lcat = [L_re; L_im]  (256,128)      rcat = [R_re | R_im]  (128,256)
    lcat = [jnp.concatenate([rot_ref[l, 0], rot_ref[l, 1]], axis=0).astype(f32)
            for l in range(Q_DEPTH)]
    rcat = [jnp.concatenate([rot_ref[l, 2], rot_ref[l, 3]], axis=1).astype(f32)
            for l in range(Q_DEPTH)]

    # Per-sample state (f32) and per-sample real entangler operators.
    s_re = [smp_ref[bi, 0].astype(f32) for bi in range(bt)]   # RY product state (real)
    s_im = [jnp.zeros((D, D), f32) for _ in range(bt)]
    e_row = [smp_ref[bi, 1].astype(f32) for bi in range(bt)]  # in-half entangler, row half
    e_colT = [smp_ref[bi, 2].astype(f32) for bi in range(bt)]  # in-half entangler, col half (pre-T)

    # Q_DEPTH circuit layers; samples interleaved inside each layer so their independent
    # matmul chains overlap in the MXU pipeline.
    for l in range(Q_DEPTH):
        lc, rc = lcat[l], rcat[l]
        for bi in range(bt):
            sr, si = s_re[bi], s_im[bi]

            # Rot layer on the row qubits: complex left-multiply as ONE 256-wide matmul
            #   [L_re; L_im] @ [S_re | S_im]  -> quadrants recombined with 2 VPU ops.
            p = mm(lc, jnp.concatenate([sr, si], axis=1))          # (256, 256)
            sr = p[:D, :D] - p[D:, D:]
            si = p[:D, D:] + p[D:, :D]

            # Rot layer on the col qubits: complex right-multiply, same stacked trick.
            p = mm(jnp.concatenate([sr, si], axis=0), rc)          # (256, 256)
            sr = p[:D, :D] - p[D:, D:]
            si = p[:D, D:] + p[D:, :D]

            # Label-controlled X's + CNOT chain inside the row half (real operator),
            # applied to [S_re | S_im] as one 128x128x256 matmul.
            sc = mm(e_row[bi], jnp.concatenate([sr, si], axis=1))  # (128, 256)
            sr, si = sc[:, :D], sc[:, D:]

            # Cross CNOT: row LSB (wire 4) controls col MSB (wire 5)  == lane XOR 64.
            sr = jnp.where(row_ctrl, pltpu.roll(sr, HALF, axis=1), sr)
            si = jnp.where(row_ctrl, pltpu.roll(si, HALF, axis=1), si)

            # Label-controlled X's + CNOT chain inside the col half (real, pre-transposed),
            # applied to [S_re ; S_im] as one 256x128x128 matmul.
            sv = mm(jnp.concatenate([sr, si], axis=0), e_colT[bi])  # (256, 128)
            sr, si = sv[:D], sv[D:]

            # Cross CNOT: col LSB (wire 8) controls row MSB (wire 1)  == sublane XOR 64.
            sr = jnp.where(col_ctrl, pltpu.roll(sr, HALF, axis=0), sr)
            si = jnp.where(col_ctrl, pltpu.roll(si, HALF, axis=0), si)

            s_re[bi], s_im[bi] = sr, si

    # Epilogue: per sample, compact each generator's 128 "wire-1 == 0" probabilities into
    # one lane-dense (8, 128) tile:  OUT[g, 16*r + c] = probs[r*8+g, c*8+g],  r < 8.
    gather_c, match_r = epi_ref[0], epi_ref[1]
    pick_g = epi_ref[2][:N_GENERATORS]                             # (8, 128)
    for bi in range(bt):
        probs = s_re[bi] * s_re[bi] + s_im[bi] * s_im[bi]          # (128,128); g-block-diagonal
        pr = mm_exact(probs, gather_c) * match_r
        patches = mm_exact(pick_g, pr)                             # (8, 128)
        # partial_measure: the /sum(probs) cancels algebraically; pg = top / max(top).
        top = jnp.max(patches, axis=1, keepdims=True)
        if precision is None:
            out_ref[bi] = patches * pl.reciprocal(top, approx=True)
        else:  # strict/validation path: exact reciprocal
            out_ref[bi] = patches / top


@functools.partial(jax.jit, static_argnames=("precision", "block_batch"))
def patch_quantum_generator_forward(label, x, q_params, precision=None, block_batch=4):
    """Forward pass of PatchQuantumGenerator.  Returns (B, 784) float32.

    precision=None -> fast path (bf16 operands, DEFAULT MXU precision, approx recip).
    precision=jax.lax.Precision.HIGHEST (or HIGH) -> high-accuracy path (f32 operands).
    """
    B = x.shape[0]
    # Samples per grid step: amortize per-step overhead and fill the MXU pipeline, while
    # keeping >= 2 grid steps when possible so "parallel" semantics feed both v7x cores.
    bt = max(1, min(int(block_batch), B // 2)) if B > 1 else 1
    n_steps = -(-B // bt)
    b_pad = n_steps * bt
    if b_pad != B:
        pad = b_pad - B
        x = jnp.concatenate([x, jnp.zeros((pad, N_DATA), x.dtype)], axis=0)
        label = jnp.concatenate([label, jnp.zeros((pad,), label.dtype)], axis=0)

    op_dtype = jnp.bfloat16 if precision is None else jnp.float32
    rot_ops, smp_ops = _build_operands(label, x, q_params, op_dtype)
    epi = jnp.asarray(_EPI_MASKS)                                  # (3,128,128) exact 0/1, f32

    out = pl.pallas_call(
        functools.partial(_qgen_kernel, bt=bt, precision=precision),
        grid=(n_steps,),
        in_specs=[
            pl.BlockSpec((Q_DEPTH, 4, DIM_PACK, DIM_PACK), lambda b: (0, 0, 0, 0)),
            pl.BlockSpec((3, DIM_PACK, DIM_PACK), lambda b: (0, 0, 0)),
            pl.BlockSpec((bt, 3, DIM_PACK, DIM_PACK), lambda b: (b, 0, 0, 0)),
        ],
        out_specs=pl.BlockSpec((bt, N_GENERATORS, DIM_PACK), lambda b: (b, 0, 0)),
        out_shape=jax.ShapeDtypeStruct((b_pad, N_GENERATORS, DIM_PACK), jnp.float32),
        compiler_params=pltpu.CompilerParams(dimension_semantics=("parallel",)),
    )(rot_ops, epi, smp_ops)

    # (B_pad, 8, 128) -> drop padding, keep first 98 probabilities of each patch -> (B, 784).
    # Columns g*98:(g+1)*98 hold generator g's patch, matching torch.cat along dim 1.
    return out[:B, :, :PIXELS_PER_PATCH].reshape(B, N_GENERATORS * PIXELS_PER_PATCH)


# ----------------------------------------------------------------------------------
# Independent numpy reference (full 9-qubit statevector) for verification.
# ----------------------------------------------------------------------------------
def _ry(theta):
    c, s = np.cos(theta / 2.0), np.sin(theta / 2.0)
    return np.array([[c, -s], [s, c]], dtype=np.float64)


def _rot(phi, theta, omega):
    # qml.Rot(phi, theta, omega) = RZ(omega) RY(theta) RZ(phi)
    c, s = np.cos(theta / 2.0), np.sin(theta / 2.0)
    return np.array(
        [[np.exp(-1j * (phi + omega) / 2.0) * c, -np.exp(1j * (phi - omega) / 2.0) * s],
         [np.exp(-1j * (phi - omega) / 2.0) * s, np.exp(1j * (phi + omega) / 2.0) * c]],
        dtype=np.complex128)


def _apply_1q(psi, u, wire, n=N_QUBITS):
    t = psi.reshape((2 ** wire, 2, 2 ** (n - wire - 1)))
    return np.einsum("ab,xby->xay", u, t).reshape(-1)


def _apply_cnot(psi, ctrl, tgt, n=N_QUBITS):
    idx = np.arange(2 ** n)
    cbit = (idx >> (n - 1 - ctrl)) & 1
    src = np.where(cbit == 1, idx ^ (1 << (n - 1 - tgt)), idx)
    return psi[src]


def _reference_forward(label, x, q_params):
    B = x.shape[0]
    out = np.zeros((B, N_GENERATORS * PIXELS_PER_PATCH), dtype=np.float64)
    pauli_x = np.array([[0.0, 1.0], [1.0, 0.0]], dtype=np.complex128)
    for g in range(N_GENERATORS):
        w = np.asarray(q_params[g], dtype=np.float64)
        for b in range(B):
            psi = np.zeros(2 ** N_QUBITS, dtype=np.complex128)
            psi[0] = 1.0
            if int(label[b]) == 1:
                psi = _apply_1q(psi, pauli_x, 0)
            for i in range(N_DATA):
                psi = _apply_1q(psi, _ry(float(x[b, i])).astype(np.complex128), i + 1)
            for l in range(Q_DEPTH):
                for y in range(N_DATA):
                    psi = _apply_1q(psi, _rot(*w[l, y]), y + 1)
                for y in range(N_DATA - 1):
                    psi = _apply_cnot(psi, 0, y + 1)
                    psi = _apply_cnot(psi, y + 1, y + 2)
                psi = _apply_cnot(psi, 0, N_QUBITS - 1)
                psi = _apply_cnot(psi, N_QUBITS - 1, 1)
            probs_full = np.abs(psi) ** 2
            probs = probs_full.reshape(2, -1).sum(axis=0)       # marginal over wire 0
            pg0 = probs[: 2 ** (N_QUBITS - N_A_QUBITS - N_C_QUBITS)] / probs.sum()
            pg = pg0 / pg0.max()
            out[b, g * PIXELS_PER_PATCH:(g + 1) * PIXELS_PER_PATCH] = pg[:PIXELS_PER_PATCH]
    return out


if __name__ == "__main__":
    key = jax.random.PRNGKey(0)
    k_w, k_x, k_x2 = jax.random.split(key, 3)
    # q_delta * torch.rand((q_depth, n_qubits - n_c_qubits, 3)) per generator, q_delta=1
    q_params = jax.random.uniform(k_w, (N_GENERATORS, Q_DEPTH, N_DATA, 3), dtype=jnp.float32)

    # ---- production fast path: bf16 operands, DEFAULT MXU precision, Bt=1, grid=(2,) ----
    B = 2
    x = jax.random.uniform(k_x, (B, N_DATA), dtype=jnp.float32) * (math.pi / 2)
    label = jnp.array([0, 1], dtype=jnp.int32)
    out_fast = jax.block_until_ready(patch_quantum_generator_forward(label, x, q_params))
    assert out_fast.shape == (B, IMAGE_SIZE ** 2), out_fast.shape
    ref = _reference_forward(np.asarray(label), np.asarray(x), np.asarray(q_params))
    # bf16-product fast path only needs GAN-generator accuracy; loose sanity check.
    np.testing.assert_allclose(np.asarray(out_fast), ref, rtol=2.5e-1, atol=5e-2)

    # ---- strict validation: f32 operands + Precision.HIGHEST + exact reciprocal, and the
    #      multi-sample-per-step path (B=5 -> Bt=2, grid=(3,), one padded sample). ----
    B2 = 5
    x2 = jax.random.uniform(k_x2, (B2, N_DATA), dtype=jnp.float32) * (math.pi / 2)
    label2 = jnp.array([0, 1, 1, 0, 1], dtype=jnp.int32)
    out_hi = jax.block_until_ready(
        patch_quantum_generator_forward(label2, x2, q_params,
                                        precision=jax.lax.Precision.HIGHEST))
    ref2 = _reference_forward(np.asarray(label2), np.asarray(x2), np.asarray(q_params))
    np.testing.assert_allclose(np.asarray(out_hi), ref2, rtol=5e-2, atol=5e-3)

    print("KERNEL_OK")
</pallas_src>

<mosaic_0001>
module attributes {stable_mosaic.version = 11 : i64} {
  func.func @_qgen_kernel(%arg0: i32, %arg1: memref<6x4x128x128xbf16, #tpu.memory_space<vmem>>, %arg2: memref<3x128x128xf32, #tpu.memory_space<vmem>>, %arg3: memref<1x3x128x128xbf16, #tpu.memory_space<vmem>>, %arg4: memref<1x8x128xf32, #tpu.memory_space<vmem>>) attributes {dimension_semantics = [#tpu.dimension_semantics<parallel>], iteration_bounds = array<i64: 2>, scalar_prefetch = 0 : i64, scratch_operands = 0 : i64, tpu.core_type = #tpu.core_type<tc>, window_params = [{pipeline_mode = #tpu.pipeline_mode<synchronous>, transform_indices = @transform_0, window_bounds = array<i64: 6, 4, 128, 128>}, {pipeline_mode = #tpu.pipeline_mode<synchronous>, transform_indices = @transform_1, window_bounds = array<i64: 3, 128, 128>}, {transform_indices = @transform_2, window_bounds = array<i64: 1, 3, 128, 128>}, {transform_indices = @transform_3, window_bounds = array<i64: 1, 8, 128>}]} {
    %0 = tpu.iota {dimensions = array<i32: 0>} : vector<128x1xi32>
    %c3_i32 = arith.constant 3 : i32
    %1 = vector.broadcast %c3_i32 : i32 to vector<128x1xi32>
    %2 = arith.shrsi %0, %1 : vector<128x1xi32>
    %c1_i32 = arith.constant 1 : i32
    %3 = vector.broadcast %c1_i32 : i32 to vector<128x1xi32>
    %4 = arith.andi %2, %3 : vector<128x1xi32>
    %5 = tpu.iota {dimensions = array<i32: 1>} : vector<1x128xi32>
    %c3_i32_0 = arith.constant 3 : i32
    %6 = vector.broadcast %c3_i32_0 : i32 to vector<1x128xi32>
    %7 = arith.shrsi %5, %6 : vector<1x128xi32>
    %c1_i32_1 = arith.constant 1 : i32
    %8 = vector.broadcast %c1_i32_1 : i32 to vector<1x128xi32>
    %9 = arith.andi %7, %8 : vector<1x128xi32>
    %10 = vector.shape_cast %4 : vector<128x1xi32> to vector<128x1xi32>
    %11 = vector.broadcast %10 : vector<128x1xi32> to vector<128x128xi32>
    %c1_i32_2 = arith.constant 1 : i32
    %12 = vector.broadcast %c1_i32_2 : i32 to vector<128x128xi32>
    %13 = arith.cmpi eq, %11, %12 : vector<128x128xi32>
    %14 = vector.shape_cast %9 : vector<1x128xi32> to vector<1x128xi32>
    %15 = vector.broadcast %14 : vector<1x128xi32> to vector<128x128xi32>
    %c1_i32_3 = arith.constant 1 : i32
    %16 = vector.broadcast %c1_i32_3 : i32 to vector<128x128xi32>
    %17 = arith.cmpi eq, %15, %16 : vector<128x128xi32>
    %c0 = arith.constant 0 : index
    %c0_4 = arith.constant 0 : index
    %c0_5 = arith.constant 0 : index
    %c0_6 = arith.constant 0 : index
    %18 = vector.load %arg1[%c0, %c0_4, %c0_5, %c0_6] : memref<6x4x128x128xbf16, #tpu.memory_space<vmem>>, vector<1x1x128x128xbf16>
    %19 = vector.shape_cast %18 : vector<1x1x128x128xbf16> to vector<128x128xbf16>
    %c0_7 = arith.constant 0 : index
    %c1 = arith.constant 1 : index
    %c0_8 = arith.constant 0 : index
    %c0_9 = arith.constant 0 : index
    %20 = vector.load %arg1[%c0_7, %c1, %c0_8, %c0_9] : memref<6x4x128x128xbf16, #tpu.memory_space<vmem>>, vector<1x1x128x128xbf16>
    %21 = vector.shape_cast %20 : vector<1x1x128x128xbf16> to vector<128x128xbf16>
    %22 = tpu.concatenate %19, %21 in 0 : vector<128x128xbf16>, vector<128x128xbf16> -> vector<256x128xbf16>
    %23 = arith.extf %22 : vector<256x128xbf16> to vector<256x128xf32>
    %c1_10 = arith.constant 1 : index
    %c0_11 = arith.constant 0 : index
    %c0_12 = arith.constant 0 : index
    %c0_13 = arith.constant 0 : index
    %24 = vector.load %arg1[%c1_10, %c0_11, %c0_12, %c0_13] : memref<6x4x128x128xbf16, #tpu.memory_space<vmem>>, vector<1x1x128x128xbf16>
    %25 = vector.shape_cast %24 : vector<1x1x128x128xbf16> to vector<128x128xbf16>
    %c1_14 = arith.constant 1 : index
    %c1_15 = arith.constant 1 : index
    %c0_16 = arith.constant 0 : index
    %c0_17 = arith.constant 0 : index
    %26 = vector.load %arg1[%c1_14, %c1_15, %c0_16, %c0_17] : memref<6x4x128x128xbf16, #tpu.memory_space<vmem>>, vector<1x1x128x128xbf16>
    %27 = vector.shape_cast %26 : vector<1x1x128x128xbf16> to vector<128x128xbf16>
    %28 = tpu.concatenate %25, %27 in 0 : vector<128x128xbf16>, vector<128x128xbf16> -> vector<256x128xbf16>
    %29 = arith.extf %28 : vector<256x128xbf16> to vector<256x128xf32>
    %c2 = arith.constant 2 : index
    %c0_18 = arith.constant 0 : index
    %c0_19 = arith.constant 0 : index
    %c0_20 = arith.constant 0 : index
    %30 = vector.load %arg1[%c2, %c0_18, %c0_19, %c0_20] : memref<6x4x128x128xbf16, #tpu.memory_space<vmem>>, vector<1x1x128x128xbf16>
    %31 = vector.shape_cast %30 : vector<1x1x128x128xbf16> to vector<128x128xbf16>
    %c2_21 = arith.constant 2 : index
    %c1_22 = arith.constant 1 : index
    %c0_23 = arith.constant 0 : index
    %c0_24 = arith.constant 0 : index
    %32 = vector.load %arg1[%c2_21, %c1_22, %c0_23, %c0_24] : memref<6x4x128x128xbf16, #tpu.memory_space<vmem>>, vector<1x1x128x128xbf16>
    %33 = vector.shape_cast %32 : vector<1x1x128x128xbf16> to vector<128x128xbf16>
    %34 = tpu.concatenate %31, %33 in 0 : vector<128x128xbf16>, vector<128x128xbf16> -> vector<256x128xbf16>
    %35 = arith.extf %34 : vector<256x128xbf16> to vector<256x128xf32>
    %c3 = arith.constant 3 : index
    %c0_25 = arith.constant 0 : index
    %c0_26 = arith.constant 0 : index
    %c0_27 = arith.constant 0 : index
    %36 = vector.load %arg1[%c3, %c0_25, %c0_26, %c0_27] : memref<6x4x128x128xbf16, #tpu.memory_space<vmem>>, vector<1x1x128x128xbf16>
    %37 = vector.shape_cast %36 : vector<1x1x128x128xbf16> to vector<128x128xbf16>
    %c3_28 = arith.constant 3 : index
    %c1_29 = arith.constant 1 : index
    %c0_30 = arith.constant 0 : index
    %c0_31 = arith.constant 0 : index
    %38 = vector.load %arg1[%c3_28, %c1_29, %c0_30, %c0_31] : memref<6x4x128x128xbf16, #tpu.memory_space<vmem>>, vector<1x1x128x128xbf16>
    %39 = vector.shape_cast %38 : vector<1x1x128x128xbf16> to vector<128x128xbf16>
    %40 = tpu.concatenate %37, %39 in 0 : vector<128x128xbf16>, vector<128x128xbf16> -> vector<256x128xbf16>
    %41 = arith.extf %40 : vector<256x128xbf16> to vector<256x128xf32>
    %c4 = arith.constant 4 : index
    %c0_32 = arith.constant 0 : index
    %c0_33 = arith.constant 0 : index
    %c0_34 = arith.constant 0 : index
    %42 = vector.load %arg1[%c4, %c0_32, %c0_33, %c0_34] : memref<6x4x128x128xbf16, #tpu.memory_space<vmem>>, vector<1x1x128x128xbf16>
    %43 = vector.shape_cast %42 : vector<1x1x128x128xbf16> to vector<128x128xbf16>
    %c4_35 = arith.constant 4 : index
    %c1_36 = arith.constant 1 : index
    %c0_37 = arith.constant 0 : index
    %c0_38 = arith.constant 0 : index
    %44 = vector.load %arg1[%c4_35, %c1_36, %c0_37, %c0_38] : memref<6x4x128x128xbf16, #tpu.memory_space<vmem>>, vector<1x1x128x128xbf16>
    %45 = vector.shape_cast %44 : vector<1x1x128x128xbf16> to vector<128x128xbf16>
    %46 = tpu.concatenate %43, %45 in 0 : vector<128x128xbf16>, vector<128x128xbf16> -> vector<256x128xbf16>
    %47 = arith.extf %46 : vector<256x128xbf16> to vector<256x128xf32>
    %c5 = arith.constant 5 : index
    %c0_39 = arith.constant 0 : index
    %c0_40 = arith.constant 0 : index
    %c0_41 = arith.constant 0 : index
    %48 = vector.load %arg1[%c5, %c0_39, %c0_40, %c0_41] : memref<6x4x128x128xbf16, #tpu.memory_space<vmem>>, vector<1x1x128x128xbf16>
    %49 = vector.shape_cast %48 : vector<1x1x128x128xbf16> to vector<128x128xbf16>
    %c5_42 = arith.constant 5 : index
    %c1_43 = arith.constant 1 : index
    %c0_44 = arith.constant 0 : index
    %c0_45 = arith.constant 0 : index
    %50 = vector.load %arg1[%c5_42, %c1_43, %c0_44, %c0_45] : memref<6x4x128x128xbf16, #tpu.memory_space<vmem>>, vector<1x1x128x128xbf16>
    %51 = vector.shape_cast %50 : vector<1x1x128x128xbf16> to vector<128x128xbf16>
    %52 = tpu.concatenate %49, %51 in 0 : vector<128x128xbf16>, vector<128x128xbf16> -> vector<256x128xbf16>
    %53 = arith.extf %52 : vector<256x128xbf16> to vector<256x128xf32>
    %c0_46 = arith.constant 0 : index
    %c2_47 = arith.constant 2 : index
    %c0_48 = arith.constant 0 : index
    %c0_49 = arith.constant 0 : index
    %54 = vector.load %arg1[%c0_46, %c2_47, %c0_48, %c0_49] : memref<6x4x128x128xbf16, #tpu.memory_space<vmem>>, vector<1x1x128x128xbf16>
    %55 = vector.shape_cast %54 : vector<1x1x128x128xbf16> to vector<128x128xbf16>
    %c0_50 = arith.constant 0 : index
    %c3_51 = arith.constant 3 : index
    %c0_52 = arith.constant 0 : index
    %c0_53 = arith.constant 0 : index
    %56 = vector.load %arg1[%c0_50, %c3_51, %c0_52, %c0_53] : memref<6x4x128x128xbf16, #tpu.memory_space<vmem>>, vector<1x1x128x128xbf16>
    %57 = vector.shape_cast %56 : vector<1x1x128x128xbf16> to vector<128x128xbf16>
    %58 = tpu.concatenate %55, %57 in 1 : vector<128x128xbf16>, vector<128x128xbf16> -> vector<128x256xbf16>
    %59 = arith.extf %58 : vector<128x256xbf16> to vector<128x256xf32>
    %c1_54 = arith.constant 1 : index
    %c2_55 = arith.constant 2 : index
    %c0_56 = arith.constant 0 : index
    %c0_57 = arith.constant 0 : index
    %60 = vector.load %arg1[%c1_54, %c2_55, %c0_56, %c0_57] : memref<6x4x128x128xbf16, #tpu.memory_space<vmem>>, vector<1x1x128x128xbf16>
    %61 = vector.shape_cast %60 : vector<1x1x128x128xbf16> to vector<128x128xbf16>
    %c1_58 = arith.constant 1 : index
    %c3_59 = arith.constant 3 : index
    %c0_60 = arith.constant 0 : index
    %c0_61 = arith.constant 0 : index
    %62 = vector.load %arg1[%c1_58, %c3_59, %c0_60, %c0_61] : memref<6x4x128x128xbf16, #tpu.memory_space<vmem>>, vector<1x1x128x128xbf16>
    %63 = vector.shape_cast %62 : vector<1x1x128x128xbf16> to vector<128x128xbf16>
    %64 = tpu.concatenate %61, %63 in 1 : vector<128x128xbf16>, vector<128x128xbf16> -> vector<128x256xbf16>
    %65 = arith.extf %64 : vector<128x256xbf16> to vector<128x256xf32>
    %c2_62 = arith.constant 2 : index
    %c2_63 = arith.constant 2 : index
    %c0_64 = arith.constant 0 : index
    %c0_65 = arith.constant 0 : index
    %66 = vector.load %arg1[%c2_62, %c2_63, %c0_64, %c0_65] : memref<6x4x128x128xbf16, #tpu.memory_space<vmem>>, vector<1x1x128x128xbf16>
    %67 = vector.shape_cast %66 : vector<1x1x128x128xbf16> to vector<128x128xbf16>
    %c2_66 = arith.constant 2 : index
    %c3_67 = arith.constant 3 : index
    %c0_68 = arith.constant 0 : index
    %c0_69 = arith.constant 0 : index
    %68 = vector.load %arg1[%c2_66, %c3_67, %c0_68, %c0_69] : memref<6x4x128x128xbf16, #tpu.memory_space<vmem>>, vector<1x1x128x128xbf16>
    %69 = vector.shape_cast %68 : vector<1x1x128x128xbf16> to vector<128x128xbf16>
    %70 = tpu.concatenate %67, %69 in 1 : vector<128x128xbf16>, vector<128x128xbf16> -> vector<128x256xbf16>
    %71 = arith.extf %70 : vector<128x256xbf16> to vector<128x256xf32>
    %c3_70 = arith.constant 3 : index
    %c2_71 = arith.constant 2 : index
    %c0_72 = arith.constant 0 : index
    %c0_73 = arith.constant 0 : index
    %72 = vector.load %arg1[%c3_70, %c2_71, %c0_72, %c0_73] : memref<6x4x128x128xbf16, #tpu.memory_space<vmem>>, vector<1x1x128x128xbf16>
    %73 = vector.shape_cast %72 : vector<1x1x128x128xbf16> to vector<128x128xbf16>
    %c3_74 = arith.constant 3 : index
    %c3_75 = arith.constant 3 : index
    %c0_76 = arith.constant 0 : index
    %c0_77 = arith.constant 0 : index
    %74 = vector.load %arg1[%c3_74, %c3_75, %c0_76, %c0_77] : memref<6x4x128x128xbf16, #tpu.memory_space<vmem>>, vector<1x1x128x128xbf16>
    %75 = vector.shape_cast %74 : vector<1x1x128x128xbf16> to vector<128x128xbf16>
    %76 = tpu.concatenate %73, %75 in 1 : vector<128x128xbf16>, vector<128x128xbf16> -> vector<128x256xbf16>
    %77 = arith.extf %76 : vector<128x256xbf16> to vector<128x256xf32>
    %c4_78 = arith.constant 4 : index
    %c2_79 = arith.constant 2 : index
    %c0_80 = arith.constant 0 : index
    %c0_81 = arith.constant 0 : index
    %78 = vector.load %arg1[%c4_78, %c2_79, %c0_80, %c0_81] : memref<6x4x128x128xbf16, #tpu.memory_space<vmem>>, vector<1x1x128x128xbf16>
    %79 = vector.shape_cast %78 : vector<1x1x128x128xbf16> to vector<128x128xbf16>
    %c4_82 = arith.constant 4 : index
    %c3_83 = arith.constant 3 : index
    %c0_84 = arith.constant 0 : index
    %c0_85 = arith.constant 0 : index
    %80 = vector.load %arg1[%c4_82, %c3_83, %c0_84, %c0_85] : memref<6x4x128x128xbf16, #tpu.memory_space<vmem>>, vector<1x1x128x128xbf16>
    %81 = vector.shape_cast %80 : vector<1x1x128x128xbf16> to vector<128x128xbf16>
    %82 = tpu.concatenate %79, %81 in 1 : vector<128x128xbf16>, vector<128x128xbf16> -> vector<128x256xbf16>
    %83 = arith.extf %82 : vector<128x256xbf16> to vector<128x256xf32>
    %c5_86 = arith.constant 5 : index
    %c2_87 = arith.constant 2 : index
    %c0_88 = arith.constant 0 : index
    %c0_89 = arith.constant 0 : index
    %84 = vector.load %arg1[%c5_86, %c2_87, %c0_88, %c0_89] : memref<6x4x128x128xbf16, #tpu.memory_space<vmem>>, vector<1x1x128x128xbf16>
    %85 = vector.shape_cast %84 : vector<1x1x128x128xbf16> to vector<128x128xbf16>
    %c5_90 = arith.constant 5 : index
    %c3_91 = arith.constant 3 : index
    %c0_92 = arith.constant 0 : index
    %c0_93 = arith.constant 0 : index
    %86 = vector.load %arg1[%c5_90, %c3_91, %c0_92, %c0_93] : memref<6x4x128x128xbf16, #tpu.memory_space<vmem>>, vector<1x1x128x128xbf16>
    %87 = vector.shape_cast %86 : vector<1x1x128x128xbf16> to vector<128x128xbf16>
    %88 = tpu.concatenate %85, %87 in 1 : vector<128x128xbf16>, vector<128x128xbf16> -> vector<128x256xbf16>
    %89 = arith.extf %88 : vector<128x256xbf16> to vector<128x256xf32>
    %c0_94 = arith.constant 0 : index
    %c0_95 = arith.constant 0 : index
    %c0_96 = arith.constant 0 : index
    %c0_97 = arith.constant 0 : index
    %90 = vector.load %arg3[%c0_94, %c0_95, %c0_96, %c0_97] : memref<1x3x128x128xbf16, #tpu.memory_space<vmem>>, vector<1x1x128x128xbf16>
    %91 = vector.shape_cast %90 : vector<1x1x128x128xbf16> to vector<128x128xbf16>
    %92 = arith.extf %91 : vector<128x128xbf16> to vector<128x128xf32>
    %cst = arith.constant 0.000000e+00 : f32
    %93 = vector.broadcast %cst : f32 to vector<128x128xf32>
    %c0_98 = arith.constant 0 : index
    %c1_99 = arith.constant 1 : index
    %c0_100 = arith.constant 0 : index
    %c0_101 = arith.constant 0 : index
    %94 = vector.load %arg3[%c0_98, %c1_99, %c0_100, %c0_101] : memref<1x3x128x128xbf16, #tpu.memory_space<vmem>>, vector<1x1x128x128xbf16>
    %95 = vector.shape_cast %94 : vector<1x1x128x128xbf16> to vector<128x128xbf16>
    %96 = arith.extf %95 : vector<128x128xbf16> to vector<128x128xf32>
    %c0_102 = arith.constant 0 : index
    %c2_103 = arith.constant 2 : index
    %c0_104 = arith.constant 0 : index
    %c0_105 = arith.constant 0 : index
    %97 = vector.load %arg3[%c0_102, %c2_103, %c0_104, %c0_105] : memref<1x3x128x128xbf16, #tpu.memory_space<vmem>>, vector<1x1x128x128xbf16>
    %98 = vector.shape_cast %97 : vector<1x1x128x128xbf16> to vector<128x128xbf16>
    %99 = arith.extf %98 : vector<128x128xbf16> to vector<128x128xf32>
    %100 = tpu.concatenate %92, %93 in 1 : vector<128x128xf32>, vector<128x128xf32> -> vector<128x256xf32>
    %cst_106 = arith.constant dense<0.000000e+00> : vector<256x256xf32>
    %101 = tpu.matmul %23, %100, %cst_106 {dimension_numbers = #tpu.dot_dimension_numbers<[1], [0], [0], [1], [0, 0, 1, 1], [], []>} : vector<256x128xf32>, vector<128x256xf32>, vector<256x256xf32> -> vector<256x256xf32>
    %102 = vector.extract_strided_slice %101 {offsets = [0, 0], sizes = [128, 128], strides = [1, 1]} : vector<256x256xf32> to vector<128x128xf32>
    %103 = vector.extract_strided_slice %101 {offsets = [128, 128], sizes = [128, 128], strides = [1, 1]} : vector<256x256xf32> to vector<128x128xf32>
    %104 = arith.subf %102, %103 : vector<128x128xf32>
    %105 = vector.extract_strided_slice %101 {offsets = [0, 128], sizes = [128, 128], strides = [1, 1]} : vector<256x256xf32> to vector<128x128xf32>
    %106 = vector.extract_strided_slice %101 {offsets = [128, 0], sizes = [128, 128], strides = [1, 1]} : vector<256x256xf32> to vector<128x128xf32>
    %107 = arith.addf %105, %106 : vector<128x128xf32>
    %108 = tpu.concatenate %104, %107 in 0 : vector<128x128xf32>, vector<128x128xf32> -> vector<256x128xf32>
    %cst_107 = arith.constant dense<0.000000e+00> : vector<256x256xf32>
    %109 = tpu.matmul %108, %59, %cst_107 {dimension_numbers = #tpu.dot_dimension_numbers<[1], [0], [0], [1], [0, 0, 1, 1], [], []>} : vector<256x128xf32>, vector<128x256xf32>, vector<256x256xf32> -> vector<256x256xf32>
    %110 = vector.extract_strided_slice %109 {offsets = [0, 0], sizes = [128, 128], strides = [1, 1]} : vector<256x256xf32> to vector<128x128xf32>
    %111 = vector.extract_strided_slice %109 {offsets = [128, 128], sizes = [128, 128], strides = [1, 1]} : vector<256x256xf32> to vector<128x128xf32>
    %112 = arith.subf %110, %111 : vector<128x128xf32>
    %113 = vector.extract_strided_slice %109 {offsets = [0, 128], sizes = [128, 128], strides = [1, 1]} : vector<256x256xf32> to vector<128x128xf32>
    %114 = vector.extract_strided_slice %109 {offsets = [128, 0], sizes = [128, 128], strides = [1, 1]} : vector<256x256xf32> to vector<128x128xf32>
    %115 = arith.addf %113, %114 : vector<128x128xf32>
    %116 = tpu.concatenate %112, %115 in 1 : vector<128x128xf32>, vector<128x128xf32> -> vector<128x256xf32>
    %cst_108 = arith.constant dense<0.000000e+00> : vector<128x256xf32>
    %117 = tpu.matmul %96, %116, %cst_108 {dimension_numbers = #tpu.dot_dimension_numbers<[1], [0], [0], [1], [0, 0, 1, 1], [], []>} : vector<128x128xf32>, vector<128x256xf32>, vector<128x256xf32> -> vector<128x256xf32>
    %118 = vector.extract_strided_slice %117 {offsets = [0, 0], sizes = [128, 128], strides = [1, 1]} : vector<128x256xf32> to vector<128x128xf32>
    %119 = vector.extract_strided_slice %117 {offsets = [0, 128], sizes = [128, 128], strides = [1, 1]} : vector<128x256xf32> to vector<128x128xf32>
    %c64_i32 = arith.constant 64 : i32
    %120 = tpu.dynamic_rotate %118 by %c64_i32 dim 1 : vector<128x128xf32>, i32 -> vector<128x128xf32>
    %121 = arith.select %13, %120, %118 : vector<128x128xi1>, vector<128x128xf32>
    %c64_i32_109 = arith.constant 64 : i32
    %122 = tpu.dynamic_rotate %119 by %c64_i32_109 dim 1 : vector<128x128xf32>, i32 -> vector<128x128xf32>
    %123 = arith.select %13, %122, %119 : vector<128x128xi1>, vector<128x128xf32>
    %124 = tpu.concatenate %121, %123 in 0 : vector<128x128xf32>, vector<128x128xf32> -> vector<256x128xf32>
    %cst_110 = arith.constant dense<0.000000e+00> : vector<256x128xf32>
    %125 = tpu.matmul %124, %99, %cst_110 {dimension_numbers = #tpu.dot_dimension_numbers<[1], [0], [0], [1], [0, 0, 1, 1], [], []>} : vector<256x128xf32>, vector<128x128xf32>, vector<256x128xf32> -> vector<256x128xf32>
    %126 = vector.extract_strided_slice %125 {offsets = [0, 0], sizes = [128, 128], strides = [1, 1]} : vector<256x128xf32> to vector<128x128xf32>
    %127 = vector.extract_strided_slice %125 {offsets = [128, 0], sizes = [128, 128], strides = [1, 1]} : vector<256x128xf32> to vector<128x128xf32>
    %c64_i32_111 = arith.constant 64 : i32
    %128 = tpu.dynamic_rotate %126 by %c64_i32_111 dim 0 : vector<128x128xf32>, i32 -> vector<128x128xf32>
    %129 = arith.select %17, %128, %126 : vector<128x128xi1>, vector<128x128xf32>
    %c64_i32_112 = arith.constant 64 : i32
    %130 = tpu.dynamic_rotate %127 by %c64_i32_112 dim 0 : vector<128x128xf32>, i32 -> vector<128x128xf32>
    %131 = arith.select %17, %130, %127 : vector<128x128xi1>, vector<128x128xf32>
    %132 = tpu.concatenate %129, %131 in 1 : vector<128x128xf32>, vector<128x128xf32> -> vector<128x256xf32>
    %cst_113 = arith.constant dense<0.000000e+00> : vector<256x256xf32>
    %133 = tpu.matmul %29, %132, %cst_113 {dimension_numbers = #tpu.dot_dimension_numbers<[1], [0], [0], [1], [0, 0, 1, 1], [], []>} : vector<256x128xf32>, vector<128x256xf32>, vector<256x256xf32> -> vector<256x256xf32>
    %134 = vector.extract_strided_slice %133 {offsets = [0, 0], sizes = [128, 128], strides = [1, 1]} : vector<256x256xf32> to vector<128x128xf32>
    %135 = vector.extract_strided_slice %133 {offsets = [128, 128], sizes = [128, 128], strides = [1, 1]} : vector<256x256xf32> to vector<128x128xf32>
    %136 = arith.subf %134, %135 : vector<128x128xf32>
    %137 = vector.extract_strided_slice %133 {offsets = [0, 128], sizes = [128, 128], strides = [1, 1]} : vector<256x256xf32> to vector<128x128xf32>
    %138 = vector.extract_strided_slice %133 {offsets = [128, 0], sizes = [128, 128], strides = [1, 1]} : vector<256x256xf32> to vector<128x128xf32>
    %139 = arith.addf %137, %138 : vector<128x128xf32>
    %140 = tpu.concatenate %136, %139 in 0 : vector<128x128xf32>, vector<128x128xf32> -> vector<256x128xf32>
    %cst_114 = arith.constant dense<0.000000e+00> : vector<256x256xf32>
    %141 = tpu.matmul %140, %65, %cst_114 {dimension_numbers = #tpu.dot_dimension_numbers<[1], [0], [0], [1], [0, 0, 1, 1], [], []>} : vector<256x128xf32>, vector<128x256xf32>, vector<256x256xf32> -> vector<256x256xf32>
    %142 = vector.extract_strided_slice %141 {offsets = [0, 0], sizes = [128, 128], strides = [1, 1]} : vector<256x256xf32> to vector<128x128xf32>
    %143 = vector.extract_strided_slice %141 {offsets = [128, 128], sizes = [128, 128], strides = [1, 1]} : vector<256x256xf32> to vector<128x128xf32>
    %144 = arith.subf %142, %143 : vector<128x128xf32>
    %145 = vector.extract_strided_slice %141 {offsets = [0, 128], sizes = [128, 128], strides = [1, 1]} : vector<256x256xf32> to vector<128x128xf32>
    %146 = vector.extract_strided_slice %141 {offsets = [128, 0], sizes = [128, 128], strides = [1, 1]} : vector<256x256xf32> to vector<128x128xf32>
    %147 = arith.addf %145, %146 : vector<128x128xf32>
    %148 = tpu.concatenate %144, %147 in 1 : vector<128x128xf32>, vector<128x128xf32> -> vector<128x256xf32>
    %cst_115 = arith.constant dense<0.000000e+00> : vector<128x256xf32>
    %149 = tpu.matmul %96, %148, %cst_115 {dimension_numbers = #tpu.dot_dimension_numbers<[1], [0], [0], [1], [0, 0, 1, 1], [], []>} : vector<128x128xf32>, vector<128x256xf32>, vector<128x256xf32> -> vector<128x256xf32>
    %150 = vector.extract_strided_slice %149 {offsets = [0, 0], sizes = [128, 128], strides = [1, 1]} : vector<128x256xf32> to vector<128x128xf32>
    %151 = vector.extract_strided_slice %149 {offsets = [0, 128], sizes = [128, 128], strides = [1, 1]} : vector<128x256xf32> to vector<128x128xf32>
    %c64_i32_116 = arith.constant 64 : i32
    %152 = tpu.dynamic_rotate %150 by %c64_i32_116 dim 1 : vector<128x128xf32>, i32 -> vector<128x128xf32>
    %153 = arith.select %13, %152, %150 : vector<128x128xi1>, vector<128x128xf32>
    %c64_i32_117 = arith.constant 64 : i32
    %154 = tpu.dynamic_rotate %151 by %c64_i32_117 dim 1 : vector<128x128xf32>, i32 -> vector<128x128xf32>
    %155 = arith.select %13, %154, %151 : vector<128x128xi1>, vector<128x128xf32>
    %156 = tpu.concatenate %153, %155 in 0 : vector<128x128xf32>, vector<128x128xf32> -> vector<256x128xf32>
    %cst_118 = arith.constant dense<0.000000e+00> : vector<256x128xf32>
    %157 = tpu.matmul %156, %99, %cst_118 {dimension_numbers = #tpu.dot_dimension_numbers<[1], [0], [0], [1], [0, 0, 1, 1], [], []>} : vector<256x128xf32>, vector<128x128xf32>, vector<256x128xf32> -> vector<256x128xf32>
    %158 = vector.extract_strided_slice %157 {offsets = [0, 0], sizes = [128, 128], strides = [1, 1]} : vector<256x128xf32> to vector<128x128xf32>
    %159 = vector.extract_strided_slice %157 {offsets = [128, 0], sizes = [128, 128], strides = [1, 1]} : vector<256x128xf32> to vector<128x128xf32>
    %c64_i32_119 = arith.constant 64 : i32
    %160 = tpu.dynamic_rotate %158 by %c64_i32_119 dim 0 : vector<128x128xf32>, i32 -> vector<128x128xf32>
    %161 = arith.select %17, %160, %158 : vector<128x128xi1>, vector<128x128xf32>
    %c64_i32_120 = arith.constant 64 : i32
    %162 = tpu.dynamic_rotate %159 by %c64_i32_120 dim 0 : vector<128x128xf32>, i32 -> vector<128x128xf32>
    %163 = arith.select %17, %162, %159 : vector<128x128xi1>, vector<128x128xf32>
    %164 = tpu.concatenate %161, %163 in 1 : vector<128x128xf32>, vector<128x128xf32> -> vector<128x256xf32>
    %cst_121 = arith.constant dense<0.000000e+00> : vector<256x256xf32>
    %165 = tpu.matmul %35, %164, %cst_121 {dimension_numbers = #tpu.dot_dimension_numbers<[1], [0], [0], [1], [0, 0, 1, 1], [], []>} : vector<256x128xf32>, vector<128x256xf32>, vector<256x256xf32> -> vector<256x256xf32>
    %166 = vector.extract_strided_slice %165 {offsets = [0, 0], sizes = [128, 128], strides = [1, 1]} : vector<256x256xf32> to vector<128x128xf32>
    %167 = vector.extract_strided_slice %165 {offsets = [128, 128], sizes = [128, 128], strides = [1, 1]} : vector<256x256xf32> to vector<128x128xf32>
    %168 = arith.subf %166, %167 : vector<128x128xf32>
    %169 = vector.extract_strided_slice %165 {offsets = [0, 128], sizes = [128, 128], strides = [1, 1]} : vector<256x256xf32> to vector<128x128xf32>
    %170 = vector.extract_strided_slice %165 {offsets = [128, 0], sizes = [128, 128], strides = [1, 1]} : vector<256x256xf32> to vector<128x128xf32>
    %171 = arith.addf %169, %170 : vector<128x128xf32>
    %172 = tpu.concatenate %168, %171 in 0 : vector<128x128xf32>, vector<128x128xf32> -> vector<256x128xf32>
    %cst_122 = arith.constant dense<0.000000e+00> : vector<256x256xf32>
    %173 = tpu.matmul %172, %71, %cst_122 {dimension_numbers = #tpu.dot_dimension_numbers<[1], [0], [0], [1], [0, 0, 1, 1], [], []>} : vector<256x128xf32>, vector<128x256xf32>, vector<256x256xf32> -> vector<256x256xf32>
    %174 = vector.extract_strided_slice %173 {offsets = [0, 0], sizes = [128, 128], strides = [1, 1]} : vector<256x256xf32> to vector<128x128xf32>
    %175 = vector.extract_strided_slice %173 {offsets = [128, 128], sizes = [128, 128], strides = [1, 1]} : vector<256x256xf32> to vector<128x128xf32>
    %176 = arith.subf %174, %175 : vector<128x128xf32>
    %177 = vector.extract_strided_slice %173 {offsets = [0, 128], sizes = [128, 128], strides = [1, 1]} : vector<256x256xf32> to vector<128x128xf32>
    %178 = vector.extract_strided_slice %173 {offsets = [128, 0], sizes = [128, 128], strides = [1, 1]} : vector<256x256xf32> to vector<128x128xf32>
    %179 = arith.addf %177, %178 : vector<128x128xf32>
    %180 = tpu.concatenate %176, %179 in 1 : vector<128x128xf32>, vector<128x128xf32> -> vector<128x256xf32>
    %cst_123 = arith.constant dense<0.000000e+00> : vector<128x256xf32>
    %181 = tpu.matmul %96, %180, %cst_123 {dimension_numbers = #tpu.dot_dimension_numbers<[1], [0], [0], [1], [0, 0, 1, 1], [], []>} : vector<128x128xf32>, vector<128x256xf32>, vector<128x256xf32> -> vector<128x256xf32>
    %182 = vector.extract_strided_slice %181 {offsets = [0, 0], sizes = [128, 128], strides = [1, 1]} : vector<128x256xf32> to vector<128x128xf32>
    %183 = vector.extract_strided_slice %181 {offsets = [0, 128], sizes = [128, 128], strides = [1, 1]} : vector<128x256xf32> to vector<128x128xf32>
    %c64_i32_124 = arith.constant 64 : i32
    %184 = tpu.dynamic_rotate %182 by %c64_i32_124 dim 1 : vector<128x128xf32>, i32 -> vector<128x128xf32>
    %185 = arith.select %13, %184, %182 : vector<128x128xi1>, vector<128x128xf32>
    %c64_i32_125 = arith.constant 64 : i32
    %186 = tpu.dynamic_rotate %183 by %c64_i32_125 dim 1 : vector<128x128xf32>, i32 -> vector<128x128xf32>
    %187 = arith.select %13, %186, %183 : vector<128x128xi1>, vector<128x128xf32>
    %188 = tpu.concatenate %185, %187 in 0 : vector<128x128xf32>, vector<128x128xf32> -> vector<256x128xf32>
    %cst_126 = arith.constant dense<0.000000e+00> : vector<256x128xf32>
    %189 = tpu.matmul %188, %99, %cst_126 {dimension_numbers = #tpu.dot_dimension_numbers<[1], [0], [0], [1], [0, 0, 1, 1], [], []>} : vector<256x128xf32>, vector<128x128xf32>, vector<256x128xf32> -> vector<256x128xf32>
    %190 = vector.extract_strided_slice %189 {offsets = [0, 0], sizes = [128, 128], strides = [1, 1]} : vector<256x128xf32> to vector<128x128xf32>
    %191 = vector.extract_strided_slice %189 {offsets = [128, 0], sizes = [128, 128], strides = [1, 1]} : vector<256x128xf32> to vector<128x128xf32>
    %c64_i32_127 = arith.constant 64 : i32
    %192 = tpu.dynamic_rotate %190 by %c64_i32_127 dim 0 : vector<128x128xf32>, i32 -> vector<128x128xf32>
    %193 = arith.select %17, %192, %190 : vector<128x128xi1>, vector<128x128xf32>
    %c64_i32_128 = arith.constant 64 : i32
    %194 = tpu.dynamic_rotate %191 by %c64_i32_128 dim 0 : vector<128x128xf32>, i32 -> vector<128x128xf32>
    %195 = arith.select %17, %194, %191 : vector<128x128xi1>, vector<128x128xf32>
    %196 = tpu.concatenate %193, %195 in 1 : vector<128x128xf32>, vector<128x128xf32> -> vector<128x256xf32>
    %cst_129 = arith.constant dense<0.000000e+00> : vector<256x256xf32>
    %197 = tpu.matmul %41, %196, %cst_129 {dimension_numbers = #tpu.dot_dimension_numbers<[1], [0], [0], [1], [0, 0, 1, 1], [], []>} : vector<256x128xf32>, vector<128x256xf32>, vector<256x256xf32> -> vector<256x256xf32>
    %198 = vector.extract_strided_slice %197 {offsets = [0, 0], sizes = [128, 128], strides = [1, 1]} : vector<256x256xf32> to vector<128x128xf32>
    %199 = vector.extract_strided_slice %197 {offsets = [128, 128], sizes = [128, 128], strides = [1, 1]} : vector<256x256xf32> to vector<128x128xf32>
    %200 = arith.subf %198, %199 : vector<128x128xf32>
    %201 = vector.extract_strided_slice %197 {offsets = [0, 128], sizes = [128, 128], strides = [1, 1]} : vector<256x256xf32> to vector<128x128xf32>
    %202 = vector.extract_strided_slice %197 {offsets = [128, 0], sizes = [128, 128], strides = [1, 1]} : vector<256x256xf32> to vector<128x128xf32>
    %203 = arith.addf %201, %202 : vector<128x128xf32>
    %204 = tpu.concatenate %200, %203 in 0 : vector<128x128xf32>, vector<128x128xf32> -> vector<256x128xf32>
    %cst_130 = arith.constant dense<0.000000e+00> : vector<256x256xf32>
    %205 = tpu.matmul %204, %77, %cst_130 {dimension_numbers = #tpu.dot_dimension_numbers<[1], [0], [0], [1], [0, 0, 1, 1], [], []>} : vector<256x128xf32>, vector<128x256xf32>, vector<256x256xf32> -> vector<256x256xf32>
    %206 = vector.extract_strided_slice %205 {offsets = [0, 0], sizes = [128, 128], strides = [1, 1]} : vector<256x256xf32> to vector<128x128xf32>
    %207 = vector.extract_strided_slice %205 {offsets = [128, 128], sizes = [128, 128], strides = [1, 1]} : vector<256x256xf32> to vector<128x128xf32>
    %208 = arith.subf %206, %207 : vector<128x128xf32>
    %209 = vector.extract_strided_slice %205 {offsets = [0, 128], sizes = [128, 128], strides = [1, 1]} : vector<256x256xf32> to vector<128x128xf32>
    %210 = vector.extract_strided_slice %205 {offsets = [128, 0], sizes = [128, 128], strides = [1, 1]} : vector<256x256xf32> to vector<128x128xf32>
    %211 = arith.addf %209, %210 : vector<128x128xf32>
    %212 = tpu.concatenate %208, %211 in 1 : vector<128x128xf32>, vector<128x128xf32> -> vector<128x256xf32>
    %cst_131 = arith.constant dense<0.000000e+00> : vector<128x256xf32>
    %213 = tpu.matmul %96, %212, %cst_131 {dimension_numbers = #tpu.dot_dimension_numbers<[1], [0], [0], [1], [0, 0, 1, 1], [], []>} : vector<128x128xf32>, vector<128x256xf32>, vector<128x256xf32> -> vector<128x256xf32>
    %214 = vector.extract_strided_slice %213 {offsets = [0, 0], sizes = [128, 128], strides = [1, 1]} : vector<128x256xf32> to vector<128x128xf32>
    %215 = vector.extract_strided_slice %213 {offsets = [0, 128], sizes = [128, 128], strides = [1, 1]} : vector<128x256xf32> to vector<128x128xf32>
    %c64_i32_132 = arith.constant 64 : i32
    %216 = tpu.dynamic_rotate %214 by %c64_i32_132 dim 1 : vector<128x128xf32>, i32 -> vector<128x128xf32>
    %217 = arith.select %13, %216, %214 : vector<128x128xi1>, vector<128x128xf32>
    %c64_i32_133 = arith.constant 64 : i32
    %218 = tpu.dynamic_rotate %215 by %c64_i32_133 dim 1 : vector<128x128xf32>, i32 -> vector<128x128xf32>
    %219 = arith.select %13, %218, %215 : vector<128x128xi1>, vector<128x128xf32>
    %220 = tpu.concatenate %217, %219 in 0 : vector<128x128xf32>, vector<128x128xf32> -> vector<256x128xf32>
    %cst_134 = arith.constant dense<0.000000e+00> : vector<256x128xf32>
    %221 = tpu.matmul %220, %99, %cst_134 {dimension_numbers = #tpu.dot_dimension_numbers<[1], [0], [0], [1], [0, 0, 1, 1], [], []>} : vector<256x128xf32>, vector<128x128xf32>, vector<256x128xf32> -> vector<256x128xf32>
    %222 = vector.extract_strided_slice %221 {offsets = [0, 0], sizes = [128, 128], strides = [1, 1]} : vector<256x128xf32> to vector<128x128xf32>
    %223 = vector.extract_strided_slice %221 {offsets = [128, 0], sizes = [128, 128], strides = [1, 1]} : vector<256x128xf32> to vector<128x128xf32>
    %c64_i32_135 = arith.constant 64 : i32
    %224 = tpu.dynamic_rotate %222 by %c64_i32_135 dim 0 : vector<128x128xf32>, i32 -> vector<128x128xf32>
    %225 = arith.select %17, %224, %222 : vector<128x128xi1>, vector<128x128xf32>
    %c64_i32_136 = arith.constant 64 : i32
    %226 = tpu.dynamic_rotate %223 by %c64_i32_136 dim 0 : vector<128x128xf32>, i32 -> vector<128x128xf32>
    %227 = arith.select %17, %226, %223 : vector<128x128xi1>, vector<128x128xf32>
    %228 = tpu.concatenate %225, %227 in 1 : vector<128x128xf32>, vector<128x128xf32> -> vector<128x256xf32>
    %cst_137 = arith.constant dense<0.000000e+00> : vector<256x256xf32>
    %229 = tpu.matmul %47, %228, %cst_137 {dimension_numbers = #tpu.dot_dimension_numbers<[1], [0], [0], [1], [0, 0, 1, 1], [], []>} : vector<256x128xf32>, vector<128x256xf32>, vector<256x256xf32> -> vector<256x256xf32>
    %230 = vector.extract_strided_slice %229 {offsets = [0, 0], sizes = [128, 128], strides = [1, 1]} : vector<256x256xf32> to vector<128x128xf32>
    %231 = vector.extract_strided_slice %229 {offsets = [128, 128], sizes = [128, 128], strides = [1, 1]} : vector<256x256xf32> to vector<128x128xf32>
    %232 = arith.subf %230, %231 : vector<128x128xf32>
    %233 = vector.extract_strided_slice %229 {offsets = [0, 128], sizes = [128, 128], strides = [1, 1]} : vector<256x256xf32> to vector<128x128xf32>
    %234 = vector.extract_strided_slice %229 {offsets = [128, 0], sizes = [128, 128], strides = [1, 1]} : vector<256x256xf32> to vector<128x128xf32>
    %235 = arith.addf %233, %234 : vector<128x128xf32>
    %236 = tpu.concatenate %232, %235 in 0 : vector<128x128xf32>, vector<128x128xf32> -> vector<256x128xf32>
    %cst_138 = arith.constant dense<0.000000e+00> : vector<256x256xf32>
    %237 = tpu.matmul %236, %83, %cst_138 {dimension_numbers = #tpu.dot_dimension_numbers<[1], [0], [0], [1], [0, 0, 1, 1], [], []>} : vector<256x128xf32>, vector<128x256xf32>, vector<256x256xf32> -> vector<256x256xf32>
    %238 = vector.extract_strided_slice %237 {offsets = [0, 0], sizes = [128, 128], strides = [1, 1]} : vector<256x256xf32> to vector<128x128xf32>
    %239 = vector.extract_strided_slice %237 {offsets = [128, 128], sizes = [128, 128], strides = [1, 1]} : vector<256x256xf32> to vector<128x128xf32>
    %240 = arith.subf %238, %239 : vector<128x128xf32>
    %241 = vector.extract_strided_slice %237 {offsets = [0, 128], sizes = [128, 128], strides = [1, 1]} : vector<256x256xf32> to vector<128x128xf32>
    %242 = vector.extract_strided_slice %237 {offsets = [128, 0], sizes = [128, 128], strides = [1, 1]} : vector<256x256xf32> to vector<128x128xf32>
    %243 = arith.addf %241, %242 : vector<128x128xf32>
    %244 = tpu.concatenate %240, %243 in 1 : vector<128x128xf32>, vector<128x128xf32> -> vector<128x256xf32>
    %cst_139 = arith.constant dense<0.000000e+00> : vector<128x256xf32>
    %245 = tpu.matmul %96, %244, %cst_139 {dimension_numbers = #tpu.dot_dimension_numbers<[1], [0], [0], [1], [0, 0, 1, 1], [], []>} : vector<128x128xf32>, vector<128x256xf32>, vector<128x256xf32> -> vector<128x256xf32>
    %246 = vector.extract_strided_slice %245 {offsets = [0, 0], sizes = [128, 128], strides = [1, 1]} : vector<128x256xf32> to vector<128x128xf32>
    %247 = vector.extract_strided_slice %245 {offsets = [0, 128], sizes = [128, 128], strides = [1, 1]} : vector<128x256xf32> to vector<128x128xf32>
    %c64_i32_140 = arith.constant 64 : i32
    %248 = tpu.dynamic_rotate %246 by %c64_i32_140 dim 1 : vector<128x128xf32>, i32 -> vector<128x128xf32>
    %249 = arith.select %13, %248, %246 : vector<128x128xi1>, vector<128x128xf32>
    %c64_i32_141 = arith.constant 64 : i32
    %250 = tpu.dynamic_rotate %247 by %c64_i32_141 dim 1 : vector<128x128xf32>, i32 -> vector<128x128xf32>
    %251 = arith.select %13, %250, %247 : vector<128x128xi1>, vector<128x128xf32>
    %252 = tpu.concatenate %249, %251 in 0 : vector<128x128xf32>, vector<128x128xf32> -> vector<256x128xf32>
    %cst_142 = arith.constant dense<0.000000e+00> : vector<256x128xf32>
    %253 = tpu.matmul %252, %99, %cst_142 {dimension_numbers = #tpu.dot_dimension_numbers<[1], [0], [0], [1], [0, 0, 1, 1], [], []>} : vector<256x128xf32>, vector<128x128xf32>, vector<256x128xf32> -> vector<256x128xf32>
    %254 = vector.extract_strided_slice %253 {offsets = [0, 0], sizes = [128, 128], strides = [1, 1]} : vector<256x128xf32> to vector<128x128xf32>
    %255 = vector.extract_strided_slice %253 {offsets = [128, 0], sizes = [128, 128], strides = [1, 1]} : vector<256x128xf32> to vector<128x128xf32>
    %c64_i32_143 = arith.constant 64 : i32
    %256 = tpu.dynamic_rotate %254 by %c64_i32_143 dim 0 : vector<128x128xf32>, i32 -> vector<128x128xf32>
    %257 = arith.select %17, %256, %254 : vector<128x128xi1>, vector<128x128xf32>
    %c64_i32_144 = arith.constant 64 : i32
    %258 = tpu.dynamic_rotate %255 by %c64_i32_144 dim 0 : vector<128x128xf32>, i32 -> vector<128x128xf32>
    %259 = arith.select %17, %258, %255 : vector<128x128xi1>, vector<128x128xf32>
    %260 = tpu.concatenate %257, %259 in 1 : vector<128x128xf32>, vector<128x128xf32> -> vector<128x256xf32>
    %cst_145 = arith.constant dense<0.000000e+00> : vector<256x256xf32>
    %261 = tpu.matmul %53, %260, %cst_145 {dimension_numbers = #tpu.dot_dimension_numbers<[1], [0], [0], [1], [0, 0, 1, 1], [], []>} : vector<256x128xf32>, vector<128x256xf32>, vector<256x256xf32> -> vector<256x256xf32>
    %262 = vector.extract_strided_slice %261 {offsets = [0, 0], sizes = [128, 128], strides = [1, 1]} : vector<256x256xf32> to vector<128x128xf32>
    %263 = vector.extract_strided_slice %261 {offsets = [128, 128], sizes = [128, 128], strides = [1, 1]} : vector<256x256xf32> to vector<128x128xf32>
    %264 = arith.subf %262, %263 : vector<128x128xf32>
    %265 = vector.extract_strided_slice %261 {offsets = [0, 128], sizes = [128, 128], strides = [1, 1]} : vector<256x256xf32> to vector<128x128xf32>
    %266 = vector.extract_strided_slice %261 {offsets = [128, 0], sizes = [128, 128], strides = [1, 1]} : vector<256x256xf32> to vector<128x128xf32>
    %267 = arith.addf %265, %266 : vector<128x128xf32>
    %268 = tpu.concatenate %264, %267 in 0 : vector<128x128xf32>, vector<128x128xf32> -> vector<256x128xf32>
    %cst_146 = arith.constant dense<0.000000e+00> : vector<256x256xf32>
    %269 = tpu.matmul %268, %89, %cst_146 {dimension_numbers = #tpu.dot_dimension_numbers<[1], [0], [0], [1], [0, 0, 1, 1], [], []>} : vector<256x128xf32>, vector<128x256xf32>, vector<256x256xf32> -> vector<256x256xf32>
    %270 = vector.extract_strided_slice %269 {offsets = [0, 0], sizes = [128, 128], strides = [1, 1]} : vector<256x256xf32> to vector<128x128xf32>
    %271 = vector.extract_strided_slice %269 {offsets = [128, 128], sizes = [128, 128], strides = [1, 1]} : vector<256x256xf32> to vector<128x128xf32>
    %272 = arith.subf %270, %271 : vector<128x128xf32>
    %273 = vector.extract_strided_slice %269 {offsets = [0, 128], sizes = [128, 128], strides = [1, 1]} : vector<256x256xf32> to vector<128x128xf32>
    %274 = vector.extract_strided_slice %269 {offsets = [128, 0], sizes = [128, 128], strides = [1, 1]} : vector<256x256xf32> to vector<128x128xf32>
    %275 = arith.addf %273, %274 : vector<128x128xf32>
    %276 = tpu.concatenate %272, %275 in 1 : vector<128x128xf32>, vector<128x128xf32> -> vector<128x256xf32>
    %cst_147 = arith.constant dense<0.000000e+00> : vector<128x256xf32>
    %277 = tpu.matmul %96, %276, %cst_147 {dimension_numbers = #tpu.dot_dimension_numbers<[1], [0], [0], [1], [0, 0, 1, 1], [], []>} : vector<128x128xf32>, vector<128x256xf32>, vector<128x256xf32> -> vector<128x256xf32>
    %278 = vector.extract_strided_slice %277 {offsets = [0, 0], sizes = [128, 128], strides = [1, 1]} : vector<128x256xf32> to vector<128x128xf32>
    %279 = vector.extract_strided_slice %277 {offsets = [0, 128], sizes = [128, 128], strides = [1, 1]} : vector<128x256xf32> to vector<128x128xf32>
    %c64_i32_148 = arith.constant 64 : i32
    %280 = tpu.dynamic_rotate %278 by %c64_i32_148 dim 1 : vector<128x128xf32>, i32 -> vector<128x128xf32>
    %281 = arith.select %13, %280, %278 : vector<128x128xi1>, vector<128x128xf32>
    %c64_i32_149 = arith.constant 64 : i32
    %282 = tpu.dynamic_rotate %279 by %c64_i32_149 dim 1 : vector<128x128xf32>, i32 -> vector<128x128xf32>
    %283 = arith.select %13, %282, %279 : vector<128x128xi1>, vector<128x128xf32>
    %284 = tpu.concatenate %281, %283 in 0 : vector<128x128xf32>, vector<128x128xf32> -> vector<256x128xf32>
    %cst_150 = arith.constant dense<0.000000e+00> : vector<256x128xf32>
    %285 = tpu.matmul %284, %99, %cst_150 {dimension_numbers = #tpu.dot_dimension_numbers<[1], [0], [0], [1], [0, 0, 1, 1], [], []>} : vector<256x128xf32>, vector<128x128xf32>, vector<256x128xf32> -> vector<256x128xf32>
    %286 = vector.extract_strided_slice %285 {offsets = [0, 0], sizes = [128, 128], strides = [1, 1]} : vector<256x128xf32> to vector<128x128xf32>
    %287 = vector.extract_strided_slice %285 {offsets = [128, 0], sizes = [128, 128], strides = [1, 1]} : vector<256x128xf32> to vector<128x128xf32>
    %c64_i32_151 = arith.constant 64 : i32
    %288 = tpu.dynamic_rotate %286 by %c64_i32_151 dim 0 : vector<128x128xf32>, i32 -> vector<128x128xf32>
    %289 = arith.select %17, %288, %286 : vector<128x128xi1>, vector<128x128xf32>
    %c64_i32_152 = arith.constant 64 : i32
    %290 = tpu.dynamic_rotate %287 by %c64_i32_152 dim 0 : vector<128x128xf32>, i32 -> vector<128x128xf32>
    %291 = arith.select %17, %290, %287 : vector<128x128xi1>, vector<128x128xf32>
    %c0_153 = arith.constant 0 : index
    %c0_154 = arith.constant 0 : index
    %c0_155 = arith.constant 0 : index
    %292 = vector.load %arg2[%c0_153, %c0_154, %c0_155] : memref<3x128x128xf32, #tpu.memory_space<vmem>>, vector<1x128x128xf32>
    %293 = vector.shape_cast %292 : vector<1x128x128xf32> to vector<128x128xf32>
    %c1_156 = arith.constant 1 : index
    %c0_157 = arith.constant 0 : index
    %c0_158 = arith.constant 0 : index
    %294 = vector.load %arg2[%c1_156, %c0_157, %c0_158] : memref<3x128x128xf32, #tpu.memory_space<vmem>>, vector<1x128x128xf32>
    %295 = vector.shape_cast %294 : vector<1x128x128xf32> to vector<128x128xf32>
    %c2_159 = arith.constant 2 : index
    %c0_160 = arith.constant 0 : index
    %c0_161 = arith.constant 0 : index
    %296 = vector.load %arg2[%c2_159, %c0_160, %c0_161] : memref<3x128x128xf32, #tpu.memory_space<vmem>>, vector<1x128x128xf32>
    %297 = vector.shape_cast %296 : vector<1x128x128xf32> to vector<128x128xf32>
    %298 = vector.extract_strided_slice %297 {offsets = [0, 0], sizes = [8, 128], strides = [1, 1]} : vector<128x128xf32> to vector<8x128xf32>
    %299 = arith.mulf %289, %289 : vector<128x128xf32>
    %300 = arith.mulf %291, %291 : vector<128x128xf32>
    %301 = arith.addf %299, %300 : vector<128x128xf32>
    %cst_162 = arith.constant dense<0.000000e+00> : vector<128x128xf32>
    %302 = tpu.matmul %301, %293, %cst_162 {dimension_numbers = #tpu.dot_dimension_numbers<[1], [0], [0], [1], [0, 0, 1, 1], [], []>, precision = #tpu.contract_precision<fp32>} : vector<128x128xf32>, vector<128x128xf32>, vector<128x128xf32> -> vector<128x128xf32>
    %303 = arith.mulf %302, %295 : vector<128x128xf32>
    %cst_163 = arith.constant dense<0.000000e+00> : vector<8x128xf32>
    %304 = tpu.matmul %298, %303, %cst_163 {dimension_numbers = #tpu.dot_dimension_numbers<[1], [0], [0], [1], [0, 0, 1, 1], [], []>, precision = #tpu.contract_precision<fp32>} : vector<8x128xf32>, vector<128x128xf32>, vector<8x128xf32> -> vector<8x128xf32>
    %cst_164 = arith.constant dense<0xFF800000> : vector<8xf32>
    %305 = vector.multi_reduction <maximumf>, %304, %cst_164 [1] : vector<8x128xf32> to vector<8xf32>
    %306 = vector.shape_cast %305 : vector<8xf32> to vector<8x1xf32>
    %307 = tpu.reciprocal %306 {approx = true} : vector<8x1xf32> -> vector<8x1xf32>
    %308 = vector.broadcast %307 : vector<8x1xf32> to vector<8x128xf32>
    %309 = arith.mulf %304, %308 : vector<8x128xf32>
    %c0_165 = arith.constant 0 : index
    %c0_166 = arith.constant 0 : index
    %c0_167 = arith.constant 0 : index
    %310 = vector.load %arg4[%c0_165, %c0_166, %c0_167] : memref<1x8x128xf32, #tpu.memory_space<vmem>>, vector<1x8x128xf32>
    %311 = vector.shape_cast %310 : vector<1x8x128xf32> to vector<8x128xf32>
    %312 = vector.shape_cast %309 : vector<8x128xf32> to vector<1x8x128xf32>
    tpu.vector_store %arg4[%c0_165, %c0_166, %c0_167], %312 {strides = array<i32>} : memref<1x8x128xf32, #tpu.memory_space<vmem>>, vector<1x8x128xf32>,
    return
  }
  func.func @transform_0(%arg0: i32) -> (i32, i32, i32, i32) {
    %c0_i32 = arith.constant 0 : i32
    %c0_i32_0 = arith.constant 0 : i32
    %c0_i32_1 = arith.constant 0 : i32
    %c0_i32_2 = arith.constant 0 : i32
    %c0_i32_3 = arith.constant 0 : i32
    return %c0_i32, %c0_i32_0, %c0_i32_1, %c0_i32_2 : i32, i32, i32, i32
  }
  func.func @transform_1(%arg0: i32) -> (i32, i32, i32) {
    %c0_i32 = arith.constant 0 : i32
    %c0_i32_0 = arith.constant 0 : i32
    %c0_i32_1 = arith.constant 0 : i32
    %c0_i32_2 = arith.constant 0 : i32
    return %c0_i32, %c0_i32_0, %c0_i32_1 : i32, i32, i32
  }
  func.func @transform_2(%arg0: i32) -> (i32, i32, i32, i32) {
    %c0_i32 = arith.constant 0 : i32
    %c0_i32_0 = arith.constant 0 : i32
    %c0_i32_1 = arith.constant 0 : i32
    %c0_i32_2 = arith.constant 0 : i32
    return %arg0, %c0_i32, %c0_i32_0, %c0_i32_1 : i32, i32, i32, i32
  }
  func.func @transform_3(%arg0: i32) -> (i32, i32, i32) {
    %c0_i32 = arith.constant 0 : i32
    %c0_i32_0 = arith.constant 0 : i32
    %c0_i32_1 = arith.constant 0 : i32
    return %arg0, %c0_i32, %c0_i32_0 : i32, i32, i32
  }
}

</mosaic_0001>

<llo_original>
// kernel: mul.30
$region0: #{mul.30}
  %s0 = inlined_call_operand.vmem [shape: f32[2,2,2,2,2], index: 0, kind: input, shape index: {}]
  %s1 = inlined_call_operand.vmem [shape: f32[2,16], index: 1, kind: output, shape index: {}]
  $region1: #{mul.30} parent=0
    #allocation0 [shape = 'u8[4096]{0}', space=vmem, size = 0x1000, scoped, tag = 'scoped mem for output reshape']
    #allocation1 [shape = 'u8[32768]{0}', space=vmem, size = 0x8000, scoped, tag = 'scoped mem for input reshape']
    %s3 = ssub.s32 4, 1
    %s4 = scalar_lea.vmem %s0, 14
    %v5 = vld [vmem:[%s4] sm:%s3]
    %s6 = scalar_lea.vmem [#allocation1], 56
    %7 = vst [vmem:[%s6] sm:%s3] %v5
    %s8 = scalar_lea.vmem %s0, 12
    %v9 = vld [vmem:[%s8] sm:%s3]
    %s10 = scalar_lea.vmem [#allocation1], 48
    %11 = vst [vmem:[%s10] sm:%s3] %v9
    %s12 = scalar_lea.vmem %s0, 10
    %v13 = vld [vmem:[%s12] sm:%s3]
    %s14 = scalar_lea.vmem [#allocation1], 40
    %15 = vst [vmem:[%s14] sm:%s3] %v13
    %s16 = scalar_lea.vmem %s0, 8
    %v17 = vld [vmem:[%s16] sm:%s3]
    %s18 = scalar_lea.vmem [#allocation1], 32
    %19 = vst [vmem:[%s18] sm:%s3] %v17
    %s20 = scalar_lea.vmem %s0, 6
    %v21 = vld [vmem:[%s20] sm:%s3]
    %s22 = scalar_lea.vmem [#allocation1], 24
    %23 = vst [vmem:[%s22] sm:%s3] %v21
    %s24 = scalar_lea.vmem %s0, 4
    %v25 = vld [vmem:[%s24] sm:%s3]
    %s26 = scalar_lea.vmem [#allocation1], 16
    %27 = vst [vmem:[%s26] sm:%s3] %v25
    %s28 = scalar_lea.vmem %s0, 2
    %v29 = vld [vmem:[%s28] sm:%s3]
    %s30 = scalar_lea.vmem [#allocation1], 8
    %31 = vst [vmem:[%s30] sm:%s3] %v29
    %v32 = vld [vmem:[%s0] sm:%s3]
    %33 = vst [vmem:[#allocation1] sm:%s3] %v32
    %v34 = vld [vmem:[#allocation1] sm:$0x1]
    %s35 = scalar_lea.vmem [#allocation1], 31
    %v36 = vld [vmem:[%s35] sm:$0x2]
    %vm37 = vcmask 1041409
    %v38 = vsel %vm37, %v36, %v34
    %vm39 = vcmask 15360
    %40 = vst.msk [vmem:[#allocation0] sm:$0x3] %vm39, %v38
    %s41 = scalar_lea.vmem [#allocation1], 25
    %v42 = vld [vmem:[%s41] sm:$0x1]
    %s43 = scalar_lea.vmem [#allocation1], 56
    %v44 = vld [vmem:[%s43] sm:$0x2]
    %vm45 = vcmask 1041409
    %v46 = vsel %vm45, %v44, %v42
    %47 = vrot.lane.b32.xlu0 %v46, 14
    %v48 = vpop.permute.xlu0 %47
    %vm49 = vcmask 130160
    %50 = vst.msk [vmem:[#allocation0] sm:$0x3] %vm49, %v48
    %s51 = scalar_lea.vmem [#allocation1], 24
    %v52 = vld [vmem:[%s51] sm:$0x1]
    %s53 = scalar_lea.vmem [#allocation1], 55
    %v54 = vld [vmem:[%s53] sm:$0x2]
    %vm55 = vcmask 1041409
    %v56 = vsel %vm55, %v54, %v52
    %57 = vrot.lane.b32.xlu0 %v56, 12
    %v58 = vpop.permute.xlu0 %57
    %vm59 = vcmask 113760
    %60 = vst.msk [vmem:[#allocation0] sm:$0x3] %vm59, %v58
    %s61 = scalar_lea.vmem [#allocation1], 17
    %v62 = vld [vmem:[%s61] sm:$0x1]
    %s63 = scalar_lea.vmem [#allocation1], 48
    %v64 = vld [vmem:[%s63] sm:$0x2]
    %vm65 = vcmask 1041409
    %v66 = vsel %vm65, %v64, %v62
    %67 = vrot.lane.b32.xlu0 %v66, 10
    %v68 = vpop.permute.xlu0 %67
    %vm69 = vcmask 97360
    %70 = vst.msk [vmem:[#allocation0] sm:$0x3] %vm69, %v68
    %s71 = scalar_lea.vmem [#allocation1], 16
    %v72 = vld [vmem:[%s71] sm:$0x1]
    %s73 = scalar_lea.vmem [#allocation1], 47
    %v74 = vld [vmem:[%s73] sm:$0x2]
    %vm75 = vcmask 1041409
    %v76 = vsel %vm75, %v74, %v72
    %77 = vrot.lane.b32.xlu0 %v76, 8
    %v78 = vpop.permute.xlu0 %77
    %vm79 = vcmask 80960
    %80 = vst.msk [vmem:[#allocation0] sm:$0x3] %vm79, %v78
    %s81 = scalar_lea.vmem [#allocation1], 9
    %v82 = vld [vmem:[%s81] sm:$0x1]
    %s83 = scalar_lea.vmem [#allocation1], 40
    %v84 = vld [vmem:[%s83] sm:$0x2]
    %vm85 = vcmask 1041409
    %v86 = vsel %vm85, %v84, %v82
    %87 = vrot.lane.b32.xlu0 %v86, 6
    %v88 = vpop.permute.xlu0 %87
    %vm89 = vcmask 64560
    %90 = vst.msk [vmem:[#allocation0] sm:$0x3] %vm89, %v88
    %s91 = scalar_lea.vmem [#allocation1], 8
    %v92 = vld [vmem:[%s91] sm:$0x1]
    %s93 = scalar_lea.vmem [#allocation1], 39
    %v94 = vld [vmem:[%s93] sm:$0x2]
    %vm95 = vcmask 1041409
    %v96 = vsel %vm95, %v94, %v92
    %97 = vrot.lane.b32.xlu0 %v96, 4
    %v98 = vpop.permute.xlu0 %97
    %vm99 = vcmask 48160
    %100 = vst.msk [vmem:[#allocation0] sm:$0x3] %vm99, %v98
    %s101 = scalar_lea.vmem [#allocation1], 1
    %v102 = vld [vmem:[%s101] sm:$0x1]
    %s103 = scalar_lea.vmem [#allocation1], 32
    %v104 = vld [vmem:[%s103] sm:$0x2]
    %vm105 = vcmask 1041409
    %v106 = vsel %vm105, %v104, %v102
    %107 = vrot.lane.b32.xlu0 %v106, 2
    %v108 = vpop.permute.xlu0 %107
    %vm109 = vcmask 31760
    %110 = vst.msk [vmem:[#allocation0] sm:$0x3] %vm109, %v108
    %s112 = ssub.s32 4, 1
    %v113 = vld [vmem:[#allocation0] sm:%s112]
    %s115 = ssub.s32 4, 1
    %116 = vst [vmem:[%s1] sm:%s115] %v113

// kernel: patch_quantum_generator_forward.1
$region0: #{patch_quantum_generator_forward.1}
  #allocation0 [shape = 'u32[]', space=smem, size = 0x4, offset = 0x4, fixed_abs, tag = 'smem constant byte address 0x4 - core index']
  #allocation1 [shape = 'u32[72,128]{1,0:T(1,128)}', space=vmem, size = 0x9000, scoped, tag = 'internal scratch']
  %s0 = inlined_call_operand.vmem [shape: bf16[6,4,128,128], index: 0, kind: input, shape index: {}]
  %s1 = inlined_call_operand.vmem [shape: f32[3,128,128], index: 1, kind: input, shape index: {}]
  %s2 = inlined_call_operand.vmem [shape: bf16[2,3,128,128], index: 2, kind: input, shape index: {}]
  %s3 = inlined_call_operand.vmem [shape: f32[2,8,128], index: 3, kind: output, shape index: {}]
  %s4 = sld [smem:[#allocation0]]
  $region45: #{patch_quantum_generator_forward.1} parent=0
    _
  %s6 = ssub.s32 1, %s4
  %s7 = scalar_select 0, %s6, %s4
  loop: start=0, step=1, limit=4
  $region2: #{patch_quantum_generator_forward.1} parent=0 // loop_pre_header
    _
  $region3: #{patch_quantum_generator_forward.1} parent=0 // loop_header
    %s9 = sphi 0, %s13
    %p10 = scmp.ge.s32.totalorder %s9, 4
    %s17 = sphi 0, %s17
    %s19 = sphi 0, %s17
    %s20 = sphi 0, %s19
    %s34 = sphi 0, %s20
    %s38 = sphi 0, %s38
    %s40 = sphi 0, %s38
    %s41 = sphi 0, %s40
    %s55 = sphi 0, %s41
    %s61 = sphi 0, %s63
    %s64 = sphi 0, %s61
    %s65 = sphi 0, %s64
    %s81 = sphi 0, %s65
    %s87 = sphi 0, %s89
    %s90 = sphi 0, %s87
    %s91 = sphi 0, %s90
    %s107 = sphi 0, %s91
  $region4: #{patch_quantum_generator_forward.1} parent=0 // loop_header_branch
    %12 = sbr.rel (%p10) target = $region8
  $region5: #{patch_quantum_generator_forward.1} parent=0 // loop_body
    %s14 = ssub.s32 %s9, 1
    %s15 = ssub.s32 %s9, 2
    %s16 = sadd.s32 %s9, 1
    %s18 = sadd.s32 %s17, 1
    %p21 = scmp.eq.s32.totalorder %s9, 1
    %p22 = scmp.ne.s32.totalorder %s17, %s19
    %p23 = scmp.eq.s32.totalorder %s9, 0
    %p24 = por %p22, %p23
    %p25 = scmp.ne.s32.totalorder %s17, %s19
    %p26 = scmp.eq.s32.totalorder %s14, 1
    %p27 = por %p25, %p26
    %p28 = scmp.ne.s32.totalorder %s19, %s20
    %p29 = scmp.eq.s32.totalorder %s14, 0
    %p30 = por %p28, %p29
    %p31 = scmp.ne.s32.totalorder %s19, %s20
    %p32 = scmp.eq.s32.totalorder %s15, 1
    %p33 = por %p31, %p32
    %p35 = scmp.ne.s32.totalorder %s20, %s34
    %p36 = scmp.eq.s32.totalorder %s15, 0
    %p37 = por %p35, %p36
    %s39 = sadd.s32 %s38, 1
    %p42 = scmp.eq.s32.totalorder %s9, 1
    %p43 = scmp.ne.s32.totalorder %s38, %s40
    %p44 = scmp.eq.s32.totalorder %s9, 0
    %p45 = por %p43, %p44
    %p46 = scmp.ne.s32.totalorder %s38, %s40
    %p47 = scmp.eq.s32.totalorder %s14, 1
    %p48 = por %p46, %p47
    %p49 = scmp.ne.s32.totalorder %s40, %s41
    %p50 = scmp.eq.s32.totalorder %s14, 0
    %p51 = por %p49, %p50
    %p52 = scmp.ne.s32.totalorder %s40, %s41
    %p53 = scmp.eq.s32.totalorder %s15, 1
    %p54 = por %p52, %p53
    %p56 = scmp.ne.s32.totalorder %s41, %s55
    %p57 = scmp.eq.s32.totalorder %s15, 0
    %p58 = por %p56, %p57
    %s59 = ssub.s32 %s9, %s16
    %p60 = scmp.eq.s32.totalorder %s59, 0
    %s62 = sadd.s32 %s61, 1
    %s63 = scalar_select %p60, %s61, %s62
    %p66 = pneg %p60
    %p67 = scmp.eq.s32.totalorder %s9, 1
    %p68 = por %p66, %p67
    %p69 = scmp.ne.s32.totalorder %s61, %s64
    %p70 = scmp.eq.s32.totalorder %s9, 0
    %p71 = por %p69, %p70
    %p72 = scmp.ne.s32.totalorder %s61, %s64
    %p73 = scmp.eq.s32.totalorder %s14, 1
    %p74 = por %p72, %p73
    %p75 = scmp.ne.s32.totalorder %s64, %s65
    %p76 = scmp.eq.s32.totalorder %s14, 0
    %p77 = por %p75, %p76
    %p78 = scmp.ne.s32.totalorder %s64, %s65
    %p79 = scmp.eq.s32.totalorder %s15, 1
    %p80 = por %p78, %p79
    %p82 = scmp.ne.s32.totalorder %s65, %s81
    %p83 = scmp.eq.s32.totalorder %s15, 0
    %p84 = por %p82, %p83
    %s85 = ssub.s32 %s9, %s16
    %p86 = scmp.eq.s32.totalorder %s85, 0
    %s88 = sadd.s32 %s87, 1
    %s89 = scalar_select %p86, %s87, %s88
    %p92 = pneg %p86
    %p93 = scmp.eq.s32.totalorder %s9, 1
    %p94 = por %p92, %p93
    %p95 = scmp.ne.s32.totalorder %s87, %s90
    %p96 = scmp.eq.s32.totalorder %s9, 0
    %p97 = por %p95, %p96
    %p98 = scmp.ne.s32.totalorder %s87, %s90
    %p99 = scmp.eq.s32.totalorder %s14, 1
    %p100 = por %p98, %p99
    %p101 = scmp.ne.s32.totalorder %s90, %s91
    %p102 = scmp.eq.s32.totalorder %s14, 0
    %p103 = por %p101, %p102
    %p104 = scmp.ne.s32.totalorder %s90, %s91
    %p105 = scmp.eq.s32.totalorder %s15, 1
    %p106 = por %p104, %p105
    %p108 = scmp.ne.s32.totalorder %s91, %s107
    %p109 = scmp.eq.s32.totalorder %s15, 0
    %p110 = por %p108, %p109
    %p111 = scmp.le.s32.totalorder 1, %s9
    %p112 = scmp.lt.s32.totalorder %s9, 3
    %p113 = pnand %p111, %p112
    %p114 = pneg %p113
    // Predicated region
    $region9: #{patch_quantum_generator_forward.1} parent=5 // pred_check
      _
    $region10: #{patch_quantum_generator_forward.1} parent=5 // pred_check_branch
      %116 = sbr.rel (%p113) target = $region12
    $region11: #{patch_quantum_generator_forward.1} parent=5 // pred_region
      %s117 = ssub.s32 %s9, 1
      // Predicated region
      $region13: #{patch_quantum_generator_forward.1} parent=11 // pred_check
        %p118 = pneg %p30
      $region14: #{patch_quantum_generator_forward.1} parent=11 // pred_check_branch
        %120 = sbr.rel (%p118) target = $region16
      $region15: #{patch_quantum_generator_forward.1} parent=11 // pred_region
        _
      $region16: #{patch_quantum_generator_forward.1} parent=11 // pred_fallthru
        _
      // Predicated region
      $region17: #{patch_quantum_generator_forward.1} parent=11 // pred_check
        %p121 = pneg %p51
      $region18: #{patch_quantum_generator_forward.1} parent=11 // pred_check_branch
        %123 = sbr.rel (%p121) target = $region20
      $region19: #{patch_quantum_generator_forward.1} parent=11 // pred_region
        _
      $region20: #{patch_quantum_generator_forward.1} parent=11 // pred_fallthru
        _
    $region12: #{patch_quantum_generator_forward.1} parent=5 // pred_fallthru
      _
    %p124 = scmp.lt.s32.totalorder %s9, 2
    // Predicated region
    $region21: #{patch_quantum_generator_forward.1} parent=5 // pred_check
      %p125 = pneg %p124
    $region22: #{patch_quantum_generator_forward.1} parent=5 // pred_check_branch
      %127 = sbr.rel (%p125) target = $region24
    $region23: #{patch_quantum_generator_forward.1} parent=5 // pred_region
      // Predicated region
      $region25: #{patch_quantum_generator_forward.1} parent=23 // pred_check
        %p128 = pneg %p71
      $region26: #{patch_quantum_generator_forward.1} parent=23 // pred_check_branch
        %130 = sbr.rel (%p128) target = $region28
      $region27: #{patch_quantum_generator_forward.1} parent=23 // pred_region
        %p131 = scmp.lt.s32.totalorder %s9, 1
        %s132 = scalar_select %p131, %s9, 1
        %s133 = smul.addr %s132, 48
        %s134 = smul.addr %s133, 4
        %s135 = scalar_lea.vmem %s2, %s134
      $region28: #{patch_quantum_generator_forward.1} parent=23 // pred_fallthru
        _
    $region24: #{patch_quantum_generator_forward.1} parent=5 // pred_fallthru
      _
    %p136 = scmp.le.s32.totalorder 1, %s9
    %p137 = scmp.lt.s32.totalorder %s9, 3
    %p138 = pnand %p136, %p137
    %p139 = pneg %p138
    // Predicated region
    $region29: #{patch_quantum_generator_forward.1} parent=5 // pred_check
      _
    $region30: #{patch_quantum_generator_forward.1} parent=5 // pred_check_branch
      %141 = sbr.rel (%p138) target = $region32
    $region31: #{patch_quantum_generator_forward.1} parent=5 // pred_region
      %s142 = ssub.s32 %s9, 1
      %p143 = pneg %p30
      %p144 = pneg %p27
      %p145 = pneg %p51
      %p146 = pneg %p48
      %p147 = scmp.lt.s32.totalorder %s14, 1
      %s148 = scalar_select %p147, %s14, 1
      %s149 = smul.addr %s148, 48
      %s150 = smul.addr %s149, 4
      %s151 = scalar_lea.vmem %s2, %s150
      %p152 = pneg %p77
      %p153 = pneg %p74
      %p154 = pneg %p103
      %p155 = pneg %p100
      %p156 = scmp.lt.s32.totalorder %s14, 1
      %s157 = scalar_select %p156, %s14, 1
      %s158 = smul.addr %s157, 8
      %s159 = scalar_lea.vmem %s3, %s158
      %p160 = scmp.lt.s32.totalorder %s14, 1
      %s161 = scalar_select %p160, %s14, 1
      %s162 = smul.addr %s161, 48
      %s163 = smul.addr %s162, 4
      %s164 = scalar_lea.vmem %s2, %s163
      %p165 = scmp.lt.s32.totalorder %s14, 1
      %s166 = scalar_select %p165, %s14, 1
      %s167 = smul.addr %s166, 8
      %s168 = scalar_lea.vmem %s3, %s167
      %v169 = vlaneseq
      %v170 = vshrl.u32 %v169, 7
      %v171 = vadd.s32 %v170, 8
      %v172 = vadd.s32 %v170, 16
      %v173 = vadd.s32 %v170, 24
      %v174 = vadd.s32 %v170, 32
      %v175 = vadd.s32 %v170, 40
      %v176 = vadd.s32 %v170, 48
      %v177 = vadd.s32 %v170, 56
      %v178 = vadd.s32 %v170, 64
      %v179 = vadd.s32 %v170, 72
      %v180 = vadd.s32 %v170, 80
      %v181 = vadd.s32 %v170, 88
      %v182 = vadd.s32 %v170, 96
      %v183 = vadd.s32 %v170, 104
      %v184 = vadd.s32 %v170, 112
      %v185 = vadd.s32 %v170, 120
      %v186 = vshra.s32 %v170, 3
      %v187 = vshra.s32 %v171, 3
      %v188 = vshra.s32 %v172, 3
      %v189 = vshra.s32 %v173, 3
      %v190 = vshra.s32 %v174, 3
      %v191 = vshra.s32 %v175, 3
      %v192 = vshra.s32 %v176, 3
      %v193 = vshra.s32 %v177, 3
      %v194 = vshra.s32 %v178, 3
      %v195 = vshra.s32 %v179, 3
      %v196 = vshra.s32 %v180, 3
      %v197 = vshra.s32 %v181, 3
      %v198 = vshra.s32 %v182, 3
      %v199 = vshra.s32 %v183, 3
      %v200 = vshra.s32 %v184, 3
      %v201 = vshra.s32 %v185, 3
      %v202 = vand.u32 %v186, 1
      %v203 = vand.u32 %v187, 1
      %v204 = vand.u32 %v188, 1
      %v205 = vand.u32 %v189, 1
      %v206 = vand.u32 %v190, 1
      %v207 = vand.u32 %v191, 1
      %v208 = vand.u32 %v192, 1
      %v209 = vand.u32 %v193, 1
      %v210 = vand.u32 %v194, 1
      %v211 = vand.u32 %v195, 1
      %v212 = vand.u32 %v196, 1
      %v213 = vand.u32 %v197, 1
      %v214 = vand.u32 %v198, 1
      %v215 = vand.u32 %v199, 1
      %v216 = vand.u32 %v200, 1
      %v217 = vand.u32 %v201, 1
      %v218 = vlaneseq
      %v219 = vand.u32 %v218, 127
      %v220 = vshra.s32 %v219, 3
      %v221 = vand.u32 %v220, 1
      %vm222 = vcmp.eq.s32.totalorder %v202, 1
      %vm223 = vcmp.eq.s32.totalorder %v203, 1
      %vm224 = vcmp.eq.s32.totalorder %v204, 1
      %vm225 = vcmp.eq.s32.totalorder %v205, 1
      %vm226 = vcmp.eq.s32.totalorder %v206, 1
      %vm227 = vcmp.eq.s32.totalorder %v207, 1
      %vm228 = vcmp.eq.s32.totalorder %v208, 1
      %vm229 = vcmp.eq.s32.totalorder %v209, 1
      %vm230 = vcmp.eq.s32.totalorder %v210, 1
      %vm231 = vcmp.eq.s32.totalorder %v211, 1
      %vm232 = vcmp.eq.s32.totalorder %v212, 1
      %vm233 = vcmp.eq.s32.totalorder %v213, 1
      %vm234 = vcmp.eq.s32.totalorder %v214, 1
      %vm235 = vcmp.eq.s32.totalorder %v215, 1
      %vm236 = vcmp.eq.s32.totalorder %v216, 1
      %vm237 = vcmp.eq.s32.totalorder %v217, 1
      %vm238 = vcmp.eq.s32.totalorder %v221, 1
      %v239 = vld [vmem:[%s0] sm:$0xf]
      %v240 = vld [vmem:[%s0 + $0x4] sm:$0xf]
      %v241 = vld [vmem:[%s0 + $0x8] sm:$0xf]
      %v242 = vld [vmem:[%s0 + $0xc] sm:$0xf]
      %v243 = vld [vmem:[%s0 + $0x10] sm:$0xf]
      %v244 = vld [vmem:[%s0 + $0x14] sm:$0xf]
      %v245 = vld [vmem:[%s0 + $0x18] sm:$0xf]
      %v246 = vld [vmem:[%s0 + $0x1c] sm:$0xf]
      %v247 = vld [vmem:[%s0 + $0x20] sm:$0xf]
      %v248 = vld [vmem:[%s0 + $0x24] sm:$0xf]
      %v249 = vld [vmem:[%s0 + $0x28] sm:$0xf]
      %v250 = vld [vmem:[%s0 + $0x2c] sm:$0xf]
      %v251 = vld [vmem:[%s0 + $0x30] sm:$0xf]
      %v252 = vld [vmem:[%s0 + $0x34] sm:$0xf]
      %v253 = vld [vmem:[%s0 + $0x38] sm:$0xf]
      %v254 = vld [vmem:[%s0 + $0x3c] sm:$0xf]
      %s255 = scalar_lea.vmem %s0, 64
      %v256 = vld [vmem:[%s255] sm:$0xf]
      %v257 = vld [vmem:[%s255 + $0x4] sm:$0xf]
      %v258 = vld [vmem:[%s255 + $0x8] sm:$0xf]
      %v259 = vld [vmem:[%s255 + $0xc] sm:$0xf]
      %v260 = vld [vmem:[%s255 + $0x10] sm:$0xf]
      %v261 = vld [vmem:[%s255 + $0x14] sm:$0xf]
      %v262 = vld [vmem:[%s255 + $0x18] sm:$0xf]
      %v263 = vld [vmem:[%s255 + $0x1c] sm:$0xf]
      %v264 = vld [vmem:[%s255 + $0x20] sm:$0xf]
      %v265 = vld [vmem:[%s255 + $0x24] sm:$0xf]
      %v266 = vld [vmem:[%s255 + $0x28] sm:$0xf]
      %v267 = vld [vmem:[%s255 + $0x2c] sm:$0xf]
      %v268 = vld [vmem:[%s255 + $0x30] sm:$0xf]
      %v269 = vld [vmem:[%s255 + $0x34] sm:$0xf]
      %v270 = vld [vmem:[%s255 + $0x38] sm:$0xf]
      %v271 = vld [vmem:[%s255 + $0x3c] sm:$0xf]
      %v288 = vunpack.c.l.b16 %v239
      %v289 = vunpack.c.l.b16 %v240
      %v290 = vunpack.c.l.b16 %v241
      %v291 = vunpack.c.l.b16 %v242
      %v292 = vunpack.c.l.b16 %v243
      %v293 = vunpack.c.l.b16 %v244
      %v294 = vunpack.c.l.b16 %v245
      %v295 = vunpack.c.l.b16 %v246
      %v296 = vunpack.c.l.b16 %v247
      %v297 = vunpack.c.l.b16 %v248
      %v298 = vunpack.c.l.b16 %v249
      %v299 = vunpack.c.l.b16 %v250
      %v300 = vunpack.c.l.b16 %v251
      %v301 = vunpack.c.l.b16 %v252
      %v302 = vunpack.c.l.b16 %v253
      %v303 = vunpack.c.l.b16 %v254
      %v304 = vpack.c.b16 %v289, %v288
      %v305 = vpack.c.b16 %v291, %v290
      %v306 = vpack.c.b16 %v293, %v292
      %v307 = vpack.c.b16 %v295, %v294
      %v308 = vpack.c.b16 %v297, %v296
      %v309 = vpack.c.b16 %v299, %v298
      %v310 = vpack.c.b16 %v301, %v300
      %v311 = vpack.c.b16 %v303, %v302
      %v336 = vunpack.c.l.b16 %v256
      %v337 = vunpack.c.l.b16 %v257
      %v338 = vunpack.c.l.b16 %v258
      %v339 = vunpack.c.l.b16 %v259
      %v340 = vunpack.c.l.b16 %v260
      %v341 = vunpack.c.l.b16 %v261
      %v342 = vunpack.c.l.b16 %v262
      %v343 = vunpack.c.l.b16 %v263
      %v344 = vunpack.c.l.b16 %v264
      %v345 = vunpack.c.l.b16 %v265
      %v346 = vunpack.c.l.b16 %v266
      %v347 = vunpack.c.l.b16 %v267
      %v348 = vunpack.c.l.b16 %v268
      %v349 = vunpack.c.l.b16 %v269
      %v350 = vunpack.c.l.b16 %v270
      %v351 = vunpack.c.l.b16 %v271
      %v352 = vpack.c.b16 %v337, %v336
      %v353 = vpack.c.b16 %v339, %v338
      %v354 = vpack.c.b16 %v341, %v340
      %v355 = vpack.c.b16 %v343, %v342
      %v356 = vpack.c.b16 %v345, %v344
      %v357 = vpack.c.b16 %v347, %v346
      %v358 = vpack.c.b16 %v349, %v348
      %v359 = vpack.c.b16 %v351, %v350
      %v368 = vunpack.c.l.bf16 %v304
      %v369 = vunpack.c.h.bf16 %v304
      %v370 = vunpack.c.l.bf16 %v305
      %v371 = vunpack.c.h.bf16 %v305
      %v372 = vunpack.c.l.bf16 %v306
      %v373 = vunpack.c.h.bf16 %v306
      %v374 = vunpack.c.l.bf16 %v307
      %v375 = vunpack.c.h.bf16 %v307
      %v376 = vunpack.c.l.bf16 %v308
      %v377 = vunpack.c.h.bf16 %v308
      %v378 = vunpack.c.l.bf16 %v309
      %v379 = vunpack.c.h.bf16 %v309
      %v380 = vunpack.c.l.bf16 %v310
      %v381 = vunpack.c.h.bf16 %v310
      %v382 = vunpack.c.l.bf16 %v311
      %v383 = vunpack.c.h.bf16 %v311
      %v384 = vunpack.c.l.bf16 %v352
      %v385 = vunpack.c.h.bf16 %v352
      %v386 = vunpack.c.l.bf16 %v353
      %v387 = vunpack.c.h.bf16 %v353
      %v388 = vunpack.c.l.bf16 %v354
      %v389 = vunpack.c.h.bf16 %v354
      %v390 = vunpack.c.l.bf16 %v355
      %v391 = vunpack.c.h.bf16 %v355
      %v392 = vunpack.c.l.bf16 %v356
      %v393 = vunpack.c.h.bf16 %v356
      %v394 = vunpack.c.l.bf16 %v357
      %v395 = vunpack.c.h.bf16 %v357
      %v396 = vunpack.c.l.bf16 %v358
      %v397 = vunpack.c.h.bf16 %v358
      %v398 = vunpack.c.l.bf16 %v359
      %v399 = vunpack.c.h.bf16 %v359
      %s400 = scalar_lea.vmem %s0, 256
      %v401 = vld [vmem:[%s400] sm:$0xf]
      %v402 = vld [vmem:[%s400 + $0x4] sm:$0xf]
      %v403 = vld [vmem:[%s400 + $0x8] sm:$0xf]
      %v404 = vld [vmem:[%s400 + $0xc] sm:$0xf]
      %v405 = vld [vmem:[%s400 + $0x10] sm:$0xf]
      %v406 = vld [vmem:[%s400 + $0x14] sm:$0xf]
      %v407 = vld [vmem:[%s400 + $0x18] sm:$0xf]
      %v408 = vld [vmem:[%s400 + $0x1c] sm:$0xf]
      %v409 = vld [vmem:[%s400 + $0x20] sm:$0xf]
      %v410 = vld [vmem:[%s400 + $0x24] sm:$0xf]
      %v411 = vld [vmem:[%s400 + $0x28] sm:$0xf]
      %v412 = vld [vmem:[%s400 + $0x2c] sm:$0xf]
      %v413 = vld [vmem:[%s400 + $0x30] sm:$0xf]
      %v414 = vld [vmem:[%s400 + $0x34] sm:$0xf]
      %v415 = vld [vmem:[%s400 + $0x38] sm:$0xf]
      %v416 = vld [vmem:[%s400 + $0x3c] sm:$0xf]
      %s417 = scalar_lea.vmem %s0, 320
      %v418 = vld [vmem:[%s417] sm:$0xf]
      %v419 = vld [vmem:[%s417 + $0x4] sm:$0xf]
      %v420 = vld [vmem:[%s417 + $0x8] sm:$0xf]
      %v421 = vld [vmem:[%s417 + $0xc] sm:$0xf]
      %v422 = vld [vmem:[%s417 + $0x10] sm:$0xf]
      %v423 = vld [vmem:[%s417 + $0x14] sm:$0xf]
      %v424 = vld [vmem:[%s417 + $0x18] sm:$0xf]
      %v425 = vld [vmem:[%s417 + $0x1c] sm:$0xf]
      %v426 = vld [vmem:[%s417 + $0x20] sm:$0xf]
      %v427 = vld [vmem:[%s417 + $0x24] sm:$0xf]
      %v428 = vld [vmem:[%s417 + $0x28] sm:$0xf]
      %v429 = vld [vmem:[%s417 + $0x2c] sm:$0xf]
      %v430 = vld [vmem:[%s417 + $0x30] sm:$0xf]
      %v431 = vld [vmem:[%s417 + $0x34] sm:$0xf]
      %v432 = vld [vmem:[%s417 + $0x38] sm:$0xf]
      %v433 = vld [vmem:[%s417 + $0x3c] sm:$0xf]
      %v450 = vunpack.c.l.b16 %v401
      %v451 = vunpack.c.l.b16 %v402
      %v452 = vunpack.c.l.b16 %v403
      %v453 = vunpack.c.l.b16 %v404
      %v454 = vunpack.c.l.b16 %v405
      %v455 = vunpack.c.l.b16 %v406
      %v456 = vunpack.c.l.b16 %v407
      %v457 = vunpack.c.l.b16 %v408
      %v458 = vunpack.c.l.b16 %v409
      %v459 = vunpack.c.l.b16 %v410
      %v460 = vunpack.c.l.b16 %v411
      %v461 = vunpack.c.l.b16 %v412
      %v462 = vunpack.c.l.b16 %v413
      %v463 = vunpack.c.l.b16 %v414
      %v464 = vunpack.c.l.b16 %v415
      %v465 = vunpack.c.l.b16 %v416
      %v466 = vpack.c.b16 %v451, %v450
      %v467 = vpack.c.b16 %v453, %v452
      %v468 = vpack.c.b16 %v455, %v454
      %v469 = vpack.c.b16 %v457, %v456
      %v470 = vpack.c.b16 %v459, %v458
      %v471 = vpack.c.b16 %v461, %v460
      %v472 = vpack.c.b16 %v463, %v462
      %v473 = vpack.c.b16 %v465, %v464
      %v498 = vunpack.c.l.b16 %v418
      %v499 = vunpack.c.l.b16 %v419
      %v500 = vunpack.c.l.b16 %v420
      %v501 = vunpack.c.l.b16 %v421
      %v502 = vunpack.c.l.b16 %v422
      %v503 = vunpack.c.l.b16 %v423
      %v504 = vunpack.c.l.b16 %v424
      %v505 = vunpack.c.l.b16 %v425
      %v506 = vunpack.c.l.b16 %v426
      %v507 = vunpack.c.l.b16 %v427
      %v508 = vunpack.c.l.b16 %v428
      %v509 = vunpack.c.l.b16 %v429
      %v510 = vunpack.c.l.b16 %v430
      %v511 = vunpack.c.l.b16 %v431
      %v512 = vunpack.c.l.b16 %v432
      %v513 = vunpack.c.l.b16 %v433
      %v514 = vpack.c.b16 %v499, %v498
      %v515 = vpack.c.b16 %v501, %v500
      %v516 = vpack.c.b16 %v503, %v502
      %v517 = vpack.c.b16 %v505, %v504
      %v518 = vpack.c.b16 %v507, %v506
      %v519 = vpack.c.b16 %v509, %v508
      %v520 = vpack.c.b16 %v511, %v510
      %v521 = vpack.c.b16 %v513, %v512
      %v530 = vunpack.c.l.bf16 %v466
      %v531 = vunpack.c.h.bf16 %v466
      %v532 = vunpack.c.l.bf16 %v467
      %v533 = vunpack.c.h.bf16 %v467
      %v534 = vunpack.c.l.bf16 %v468
      %v535 = vunpack.c.h.bf16 %v468
      %v536 = vunpack.c.l.bf16 %v469
      %v537 = vunpack.c.h.bf16 %v469
      %v538 = vunpack.c.l.bf16 %v470
      %v539 = vunpack.c.h.bf16 %v470
      %v540 = vunpack.c.l.bf16 %v471
      %v541 = vunpack.c.h.bf16 %v471
      %v542 = vunpack.c.l.bf16 %v472
      %v543 = vunpack.c.h.bf16 %v472
      %v544 = vunpack.c.l.bf16 %v473
      %v545 = vunpack.c.h.bf16 %v473
      %v546 = vunpack.c.l.bf16 %v514
      %v547 = vunpack.c.h.bf16 %v514
      %v548 = vunpack.c.l.bf16 %v515
      %v549 = vunpack.c.h.bf16 %v515
      %v550 = vunpack.c.l.bf16 %v516
      %v551 = vunpack.c.h.bf16 %v516
      %v552 = vunpack.c.l.bf16 %v517
      %v553 = vunpack.c.h.bf16 %v517
      %v554 = vunpack.c.l.bf16 %v518
      %v555 = vunpack.c.h.bf16 %v518
      %v556 = vunpack.c.l.bf16 %v519
      %v557 = vunpack.c.h.bf16 %v519
      %v558 = vunpack.c.l.bf16 %v520
      %v559 = vunpack.c.h.bf16 %v520
      %v560 = vunpack.c.l.bf16 %v521
      %v561 = vunpack.c.h.bf16 %v521
      %s562 = scalar_lea.vmem %s0, 512
      %v563 = vld [vmem:[%s562] sm:$0xf]
      %v564 = vld [vmem:[%s562 + $0x4] sm:$0xf]
      %v565 = vld [vmem:[%s562 + $0x8] sm:$0xf]
      %v566 = vld [vmem:[%s562 + $0xc] sm:$0xf]
      %v567 = vld [vmem:[%s562 + $0x10] sm:$0xf]
      %v568 = vld [vmem:[%s562 + $0x14] sm:$0xf]
      %v569 = vld [vmem:[%s562 + $0x18] sm:$0xf]
      %v570 = vld [vmem:[%s562 + $0x1c] sm:$0xf]
      %v571 = vld [vmem:[%s562 + $0x20] sm:$0xf]
      %v572 = vld [vmem:[%s562 + $0x24] sm:$0xf]
      %v573 = vld [vmem:[%s562 + $0x28] sm:$0xf]
      %v574 = vld [vmem:[%s562 + $0x2c] sm:$0xf]
      %v575 = vld [vmem:[%s562 + $0x30] sm:$0xf]
      %v576 = vld [vmem:[%s562 + $0x34] sm:$0xf]
      %v577 = vld [vmem:[%s562 + $0x38] sm:$0xf]
      %v578 = vld [vmem:[%s562 + $0x3c] sm:$0xf]
      %s579 = scalar_lea.vmem %s0, 576
      %v580 = vld [vmem:[%s579] sm:$0xf]
      %v581 = vld [vmem:[%s579 + $0x4] sm:$0xf]
      %v582 = vld [vmem:[%s579 + $0x8] sm:$0xf]
      %v583 = vld [vmem:[%s579 + $0xc] sm:$0xf]
      %v584 = vld [vmem:[%s579 + $0x10] sm:$0xf]
      %v585 = vld [vmem:[%s579 + $0x14] sm:$0xf]
      %v586 = vld [vmem:[%s579 + $0x18] sm:$0xf]
      %v587 = vld [vmem:[%s579 + $0x1c] sm:$0xf]
      %v588 = vld [vmem:[%s579 + $0x20] sm:$0xf]
      %v589 = vld [vmem:[%s579 + $0x24] sm:$0xf]
      %v590 = vld [vmem:[%s579 + $0x28] sm:$0xf]
      %v591 = vld [vmem:[%s579 + $0x2c] sm:$0xf]
      %v592 = vld [vmem:[%s579 + $0x30] sm:$0xf]
      %v593 = vld [vmem:[%s579 + $0x34] sm:$0xf]
      %v594 = vld [vmem:[%s579 + $0x38] sm:$0xf]
      %v595 = vld [vmem:[%s579 + $0x3c] sm:$0xf]
      %v612 = vunpack.c.l.b16 %v563
      %v613 = vunpack.c.l.b16 %v564
      %v614 = vunpack.c.l.b16 %v565
      %v615 = vunpack.c.l.b16 %v566
      %v616 = vunpack.c.l.b16 %v567
      %v617 = vunpack.c.l.b16 %v568
      %v618 = vunpack.c.l.b16 %v569
      %v619 = vunpack.c.l.b16 %v570
      %v620 = vunpack.c.l.b16 %v571
      %v621 = vunpack.c.l.b16 %v572
      %v622 = vunpack.c.l.b16 %v573
      %v623 = vunpack.c.l.b16 %v574
      %v624 = vunpack.c.l.b16 %v575
      %v625 = vunpack.c.l.b16 %v576
      %v626 = vunpack.c.l.b16 %v577
      %v627 = vunpack.c.l.b16 %v578
      %v628 = vpack.c.b16 %v613, %v612
      %v629 = vpack.c.b16 %v615, %v614
      %v630 = vpack.c.b16 %v617, %v616
      %v631 = vpack.c.b16 %v619, %v618
      %v632 = vpack.c.b16 %v621, %v620
      %v633 = vpack.c.b16 %v623, %v622
      %v634 = vpack.c.b16 %v625, %v624
      %v635 = vpack.c.b16 %v627, %v626
      %v660 = vunpack.c.l.b16 %v580
      %v661 = vunpack.c.l.b16 %v581
      %v662 = vunpack.c.l.b16 %v582
      %v663 = vunpack.c.l.b16 %v583
      %v664 = vunpack.c.l.b16 %v584
      %v665 = vunpack.c.l.b16 %v585
      %v666 = vunpack.c.l.b16 %v586
      %v667 = vunpack.c.l.b16 %v587
      %v668 = vunpack.c.l.b16 %v588
      %v669 = vunpack.c.l.b16 %v589
      %v670 = vunpack.c.l.b16 %v590
      %v671 = vunpack.c.l.b16 %v591
      %v672 = vunpack.c.l.b16 %v592
      %v673 = vunpack.c.l.b16 %v593
      %v674 = vunpack.c.l.b16 %v594
      %v675 = vunpack.c.l.b16 %v595
      %v676 = vpack.c.b16 %v661, %v660
      %v677 = vpack.c.b16 %v663, %v662
      %v678 = vpack.c.b16 %v665, %v664
      %v679 = vpack.c.b16 %v667, %v666
      %v680 = vpack.c.b16 %v669, %v668
      %v681 = vpack.c.b16 %v671, %v670
      %v682 = vpack.c.b16 %v673, %v672
      %v683 = vpack.c.b16 %v675, %v674
      %v692 = vunpack.c.l.bf16 %v628
      %v693 = vunpack.c.h.bf16 %v628
      %v694 = vunpack.c.l.bf16 %v629
      %v695 = vunpack.c.h.bf16 %v629
      %v696 = vunpack.c.l.bf16 %v630
      %v697 = vunpack.c.h.bf16 %v630
      %v698 = vunpack.c.l.bf16 %v631
      %v699 = vunpack.c.h.bf16 %v631
      %v700 = vunpack.c.l.bf16 %v632
      %v701 = vunpack.c.h.bf16 %v632
      %v702 = vunpack.c.l.bf16 %v633
      %v703 = vunpack.c.h.bf16 %v633
      %v704 = vunpack.c.l.bf16 %v634
      %v705 = vunpack.c.h.bf16 %v634
      %v706 = vunpack.c.l.bf16 %v635
      %v707 = vunpack.c.h.bf16 %v635
      %v708 = vunpack.c.l.bf16 %v676
      %v709 = vunpack.c.h.bf16 %v676
      %v710 = vunpack.c.l.bf16 %v677
      %v711 = vunpack.c.h.bf16 %v677
      %v712 = vunpack.c.l.bf16 %v678
      %v713 = vunpack.c.h.bf16 %v678
      %v714 = vunpack.c.l.bf16 %v679
      %v715 = vunpack.c.h.bf16 %v679
      %v716 = vunpack.c.l.bf16 %v680
      %v717 = vunpack.c.h.bf16 %v680
      %v718 = vunpack.c.l.bf16 %v681
      %v719 = vunpack.c.h.bf16 %v681
      %v720 = vunpack.c.l.bf16 %v682
      %v721 = vunpack.c.h.bf16 %v682
      %v722 = vunpack.c.l.bf16 %v683
      %v723 = vunpack.c.h.bf16 %v683
      %s724 = scalar_lea.vmem %s0, 768
      %v725 = vld [vmem:[%s724] sm:$0xf]
      %v726 = vld [vmem:[%s724 + $0x4] sm:$0xf]
      %v727 = vld [vmem:[%s724 + $0x8] sm:$0xf]
      %v728 = vld [vmem:[%s724 + $0xc] sm:$0xf]
      %v729 = vld [vmem:[%s724 + $0x10] sm:$0xf]
      %v730 = vld [vmem:[%s724 + $0x14] sm:$0xf]
      %v731 = vld [vmem:[%s724 + $0x18] sm:$0xf]
      %v732 = vld [vmem:[%s724 + $0x1c] sm:$0xf]
      %v733 = vld [vmem:[%s724 + $0x20] sm:$0xf]
      %v734 = vld [vmem:[%s724 + $0x24] sm:$0xf]
      %v735 = vld [vmem:[%s724 + $0x28] sm:$0xf]
      %v736 = vld [vmem:[%s724 + $0x2c] sm:$0xf]
      %v737 = vld [vmem:[%s724 + $0x30] sm:$0xf]
      %v738 = vld [vmem:[%s724 + $0x34] sm:$0xf]
      %v739 = vld [vmem:[%s724 + $0x38] sm:$0xf]
      %v740 = vld [vmem:[%s724 + $0x3c] sm:$0xf]
      %s741 = scalar_lea.vmem %s0, 832
      %v742 = vld [vmem:[%s741] sm:$0xf]
      %v743 = vld [vmem:[%s741 + $0x4] sm:$0xf]
      %v744 = vld [vmem:[%s741 + $0x8] sm:$0xf]
      %v745 = vld [vmem:[%s741 + $0xc] sm:$0xf]
      %v746 = vld [vmem:[%s741 + $0x10] sm:$0xf]
      %v747 = vld [vmem:[%s741 + $0x14] sm:$0xf]
      %v748 = vld [vmem:[%s741 + $0x18] sm:$0xf]
      %v749 = vld [vmem:[%s741 + $0x1c] sm:$0xf]
      %v750 = vld [vmem:[%s741 + $0x20] sm:$0xf]
      %v751 = vld [vmem:[%s741 + $0x24] sm:$0xf]
      %v752 = vld [vmem:[%s741 + $0x28] sm:$0xf]
      %v753 = vld [vmem:[%s741 + $0x2c] sm:$0xf]
      %v754 = vld [vmem:[%s741 + $0x30] sm:$0xf]
      %v755 = vld [vmem:[%s741 + $0x34] sm:$0xf]
      %v756 = vld [vmem:[%s741 + $0x38] sm:$0xf]
      %v757 = vld [vmem:[%s741 + $0x3c] sm:$0xf]
      %v774 = vunpack.c.l.b16 %v725
      %v775 = vunpack.c.l.b16 %v726
      %v776 = vunpack.c.l.b16 %v727
      %v777 = vunpack.c.l.b16 %v728
      %v778 = vunpack.c.l.b16 %v729
      %v779 = vunpack.c.l.b16 %v730
      %v780 = vunpack.c.l.b16 %v731
      %v781 = vunpack.c.l.b16 %v732
      %v782 = vunpack.c.l.b16 %v733
      %v783 = vunpack.c.l.b16 %v734
      %v784 = vunpack.c.l.b16 %v735
      %v785 = vunpack.c.l.b16 %v736
      %v786 = vunpack.c.l.b16 %v737
      %v787 = vunpack.c.l.b16 %v738
      %v788 = vunpack.c.l.b16 %v739
      %v789 = vunpack.c.l.b16 %v740
      %v790 = vpack.c.b16 %v775, %v774
      %v791 = vpack.c.b16 %v777, %v776
      %v792 = vpack.c.b16 %v779, %v778
      %v793 = vpack.c.b16 %v781, %v780
      %v794 = vpack.c.b16 %v783, %v782
      %v795 = vpack.c.b16 %v785, %v784
      %v796 = vpack.c.b16 %v787, %v786
      %v797 = vpack.c.b16 %v789, %v788
      %v822 = vunpack.c.l.b16 %v742
      %v823 = vunpack.c.l.b16 %v743
      %v824 = vunpack.c.l.b16 %v744
      %v825 = vunpack.c.l.b16 %v745
      %v826 = vunpack.c.l.b16 %v746
      %v827 = vunpack.c.l.b16 %v747
      %v828 = vunpack.c.l.b16 %v748
      %v829 = vunpack.c.l.b16 %v749
      %v830 = vunpack.c.l.b16 %v750
      %v831 = vunpack.c.l.b16 %v751
      %v832 = vunpack.c.l.b16 %v752
      %v833 = vunpack.c.l.b16 %v753
      %v834 = vunpack.c.l.b16 %v754
      %v835 = vunpack.c.l.b16 %v755
      %v836 = vunpack.c.l.b16 %v756
      %v837 = vunpack.c.l.b16 %v757
      %v838 = vpack.c.b16 %v823, %v822
      %v839 = vpack.c.b16 %v825, %v824
      %v840 = vpack.c.b16 %v827, %v826
      %v841 = vpack.c.b16 %v829, %v828
      %v842 = vpack.c.b16 %v831, %v830
      %v843 = vpack.c.b16 %v833, %v832
      %v844 = vpack.c.b16 %v835, %v834
      %v845 = vpack.c.b16 %v837, %v836
      %v854 = vunpack.c.l.bf16 %v790
      %v855 = vunpack.c.h.bf16 %v790
      %v856 = vunpack.c.l.bf16 %v791
      %v857 = vunpack.c.h.bf16 %v791
      %v858 = vunpack.c.l.bf16 %v792
      %v859 = vunpack.c.h.bf16 %v792
      %v860 = vunpack.c.l.bf16 %v793
      %v861 = vunpack.c.h.bf16 %v793
      %v862 = vunpack.c.l.bf16 %v794
      %v863 = vunpack.c.h.bf16 %v794
      %v864 = vunpack.c.l.bf16 %v795
      %v865 = vunpack.c.h.bf16 %v795
      %v866 = vunpack.c.l.bf16 %v796
      %v867 = vunpack.c.h.bf16 %v796
      %v868 = vunpack.c.l.bf16 %v797
      %v869 = vunpack.c.h.bf16 %v797
      %v870 = vunpack.c.l.bf16 %v838
      %v871 = vunpack.c.h.bf16 %v838
      %v872 = vunpack.c.l.bf16 %v839
      %v873 = vunpack.c.h.bf16 %v839
      %v874 = vunpack.c.l.bf16 %v840
      %v875 = vunpack.c.h.bf16 %v840
      %v876 = vunpack.c.l.bf16 %v841
      %v877 = vunpack.c.h.bf16 %v841
      %v878 = vunpack.c.l.bf16 %v842
      %v879 = vunpack.c.h.bf16 %v842
      %v880 = vunpack.c.l.bf16 %v843
      %v881 = vunpack.c.h.bf16 %v843
      %v882 = vunpack.c.l.bf16 %v844
      %v883 = vunpack.c.h.bf16 %v844
      %v884 = vunpack.c.l.bf16 %v845
      %v885 = vunpack.c.h.bf16 %v845
      %s886 = scalar_lea.vmem %s0, 1024
      %v887 = vld [vmem:[%s886] sm:$0xf]
      %v888 = vld [vmem:[%s886 + $0x4] sm:$0xf]
      %v889 = vld [vmem:[%s886 + $0x8] sm:$0xf]
      %v890 = vld [vmem:[%s886 + $0xc] sm:$0xf]
      %v891 = vld [vmem:[%s886 + $0x10] sm:$0xf]
      %v892 = vld [vmem:[%s886 + $0x14] sm:$0xf]
      %v893 = vld [vmem:[%s886 + $0x18] sm:$0xf]
      %v894 = vld [vmem:[%s886 + $0x1c] sm:$0xf]
      %v895 = vld [vmem:[%s886 + $0x20] sm:$0xf]
      %v896 = vld [vmem:[%s886 + $0x24] sm:$0xf]
      %v897 = vld [vmem:[%s886 + $0x28] sm:$0xf]
      %v898 = vld [vmem:[%s886 + $0x2c] sm:$0xf]
      %v899 = vld [vmem:[%s886 + $0x30] sm:$0xf]
      %v900 = vld [vmem:[%s886 + $0x34] sm:$0xf]
      %v901 = vld [vmem:[%s886 + $0x38] sm:$0xf]
      %v902 = vld [vmem:[%s886 + $0x3c] sm:$0xf]
      %s903 = scalar_lea.vmem %s0, 1088
      %v904 = vld [vmem:[%s903] sm:$0xf]
      %v905 = vld [vmem:[%s903 + $0x4] sm:$0xf]
      %v906 = vld [vmem:[%s903 + $0x8] sm:$0xf]
      %v907 = vld [vmem:[%s903 + $0xc] sm:$0xf]
      %v908 = vld [vmem:[%s903 + $0x10] sm:$0xf]
      %v909 = vld [vmem:[%s903 + $0x14] sm:$0xf]
      %v910 = vld [vmem:[%s903 + $0x18] sm:$0xf]
      %v911 = vld [vmem:[%s903 + $0x1c] sm:$0xf]
      %v912 = vld [vmem:[%s903 + $0x20] sm:$0xf]
      %v913 = vld [vmem:[%s903 + $0x24] sm:$0xf]
      %v914 = vld [vmem:[%s903 + $0x28] sm:$0xf]
      %v915 = vld [vmem:[%s903 + $0x2c] sm:$0xf]
      %v916 = vld [vmem:[%s903 + $0x30] sm:$0xf]
      %v917 = vld [vmem:[%s903 + $0x34] sm:$0xf]
      %v918 = vld [vmem:[%s903 + $0x38] sm:$0xf]
      %v919 = vld [vmem:[%s903 + $0x3c] sm:$0xf]
      %v936 = vunpack.c.l.b16 %v887
      %v937 = vunpack.c.l.b16 %v888
      %v938 = vunpack.c.l.b16 %v889
      %v939 = vunpack.c.l.b16 %v890
      %v940 = vunpack.c.l.b16 %v891
      %v941 = vunpack.c.l.b16 %v892
      %v942 = vunpack.c.l.b16 %v893
      %v943 = vunpack.c.l.b16 %v894
      %v944 = vunpack.c.l.b16 %v895
      %v945 = vunpack.c.l.b16 %v896
      %v946 = vunpack.c.l.b16 %v897
      %v947 = vunpack.c.l.b16 %v898
      %v948 = vunpack.c.l.b16 %v899
      %v949 = vunpack.c.l.b16 %v900
      %v950 = vunpack.c.l.b16 %v901
      %v951 = vunpack.c.l.b16 %v902
      %v952 = vpack.c.b16 %v937, %v936
      %v953 = vpack.c.b16 %v939, %v938
      %v954 = vpack.c.b16 %v941, %v940
      %v955 = vpack.c.b16 %v943, %v942
      %v956 = vpack.c.b16 %v945, %v944
      %v957 = vpack.c.b16 %v947, %v946
      %v958 = vpack.c.b16 %v949, %v948
      %v959 = vpack.c.b16 %v951, %v950
      %v984 = vunpack.c.l.b16 %v904
      %v985 = vunpack.c.l.b16 %v905
      %v986 = vunpack.c.l.b16 %v906
      %v987 = vunpack.c.l.b16 %v907
      %v988 = vunpack.c.l.b16 %v908
      %v989 = vunpack.c.l.b16 %v909
      %v990 = vunpack.c.l.b16 %v910
      %v991 = vunpack.c.l.b16 %v911
      %v992 = vunpack.c.l.b16 %v912
      %v993 = vunpack.c.l.b16 %v913
      %v994 = vunpack.c.l.b16 %v914
      %v995 = vunpack.c.l.b16 %v915
      %v996 = vunpack.c.l.b16 %v916
      %v997 = vunpack.c.l.b16 %v917
      %v998 = vunpack.c.l.b16 %v918
      %v999 = vunpack.c.l.b16 %v919
      %v1000 = vpack.c.b16 %v985, %v984
      %v1001 = vpack.c.b16 %v987, %v986
      %v1002 = vpack.c.b16 %v989, %v988
      %v1003 = vpack.c.b16 %v991, %v990
      %v1004 = vpack.c.b16 %v993, %v992
      %v1005 = vpack.c.b16 %v995, %v994
      %v1006 = vpack.c.b16 %v997, %v996
      %v1007 = vpack.c.b16 %v999, %v998
      %v1016 = vunpack.c.l.bf16 %v952
      %v1017 = vunpack.c.h.bf16 %v952
      %v1018 = vunpack.c.l.bf16 %v953
      %v1019 = vunpack.c.h.bf16 %v953
      %v1020 = vunpack.c.l.bf16 %v954
      %v1021 = vunpack.c.h.bf16 %v954
      %v1022 = vunpack.c.l.bf16 %v955
      %v1023 = vunpack.c.h.bf16 %v955
      %v1024 = vunpack.c.l.bf16 %v956
      %v1025 = vunpack.c.h.bf16 %v956
      %v1026 = vunpack.c.l.bf16 %v957
      %v1027 = vunpack.c.h.bf16 %v957
      %v1028 = vunpack.c.l.bf16 %v958
      %v1029 = vunpack.c.h.bf16 %v958
      %v1030 = vunpack.c.l.bf16 %v959
      %v1031 = vunpack.c.h.bf16 %v959
      %v1032 = vunpack.c.l.bf16 %v1000
      %v1033 = vunpack.c.h.bf16 %v1000
      %v1034 = vunpack.c.l.bf16 %v1001
      %v1035 = vunpack.c.h.bf16 %v1001
      %v1036 = vunpack.c.l.bf16 %v1002
      %v1037 = vunpack.c.h.bf16 %v1002
      %v1038 = vunpack.c.l.bf16 %v1003
      %v1039 = vunpack.c.h.bf16 %v1003
      %v1040 = vunpack.c.l.bf16 %v1004
      %v1041 = vunpack.c.h.bf16 %v1004
      %v1042 = vunpack.c.l.bf16 %v1005
      %v1043 = vunpack.c.h.bf16 %v1005
      %v1044 = vunpack.c.l.bf16 %v1006
      %v1045 = vunpack.c.h.bf16 %v1006
      %v1046 = vunpack.c.l.bf16 %v1007
      %v1047 = vunpack.c.h.bf16 %v1007
      %s1048 = scalar_lea.vmem %s0, 1280
      %v1049 = vld [vmem:[%s1048] sm:$0xf]
      %v1050 = vld [vmem:[%s1048 + $0x4] sm:$0xf]
      %v1051 = vld [vmem:[%s1048 + $0x8] sm:$0xf]
      %v1052 = vld [vmem:[%s1048 + $0xc] sm:$0xf]
      %v1053 = vld [vmem:[%s1048 + $0x10] sm:$0xf]
      %v1054 = vld [vmem:[%s1048 + $0x14] sm:$0xf]
      %v1055 = vld [vmem:[%s1048 + $0x18] sm:$0xf]
      %v1056 = vld [vmem:[%s1048 + $0x1c] sm:$0xf]
      %v1057 = vld [vmem:[%s1048 + $0x20] sm:$0xf]
      %v1058 = vld [vmem:[%s1048 + $0x24] sm:$0xf]
      %v1059 = vld [vmem:[%s1048 + $0x28] sm:$0xf]
      %v1060 = vld [vmem:[%s1048 + $0x2c] sm:$0xf]
      %v1061 = vld [vmem:[%s1048 + $0x30] sm:$0xf]
      %v1062 = vld [vmem:[%s1048 + $0x34] sm:$0xf]
      %v1063 = vld [vmem:[%s1048 + $0x38] sm:$0xf]
      %v1064 = vld [vmem:[%s1048 + $0x3c] sm:$0xf]
      %s1065 = scalar_lea.vmem %s0, 1344
      %v1066 = vld [vmem:[%s1065] sm:$0xf]
      %v1067 = vld [vmem:[%s1065 + $0x4] sm:$0xf]
      %v1068 = vld [vmem:[%s1065 + $0x8] sm:$0xf]
      %v1069 = vld [vmem:[%s1065 + $0xc] sm:$0xf]
      %v1070 = vld [vmem:[%s1065 + $0x10] sm:$0xf]
      %v1071 = vld [vmem:[%s1065 + $0x14] sm:$0xf]
      %v1072 = vld [vmem:[%s1065 + $0x18] sm:$0xf]
      %v1073 = vld [vmem:[%s1065 + $0x1c] sm:$0xf]
      %v1074 = vld [vmem:[%s1065 + $0x20] sm:$0xf]
      %v1075 = vld [vmem:[%s1065 + $0x24] sm:$0xf]
      %v1076 = vld [vmem:[%s1065 + $0x28] sm:$0xf]
      %v1077 = vld [vmem:[%s1065 + $0x2c] sm:$0xf]
      %v1078 = vld [vmem:[%s1065 + $0x30] sm:$0xf]
      %v1079 = vld [vmem:[%s1065 + $0x34] sm:$0xf]
      %v1080 = vld [vmem:[%s1065 + $0x38] sm:$0xf]
      %v1081 = vld [vmem:[%s1065 + $0x3c] sm:$0xf]
      %v1098 = vunpack.c.l.b16 %v1049
      %v1099 = vunpack.c.l.b16 %v1050
      %v1100 = vunpack.c.l.b16 %v1051
      %v1101 = vunpack.c.l.b16 %v1052
      %v1102 = vunpack.c.l.b16 %v1053
      %v1103 = vunpack.c.l.b16 %v1054
      %v1104 = vunpack.c.l.b16 %v1055
      %v1105 = vunpack.c.l.b16 %v1056
      %v1106 = vunpack.c.l.b16 %v1057
      %v1107 = vunpack.c.l.b16 %v1058
      %v1108 = vunpack.c.l.b16 %v1059
      %v1109 = vunpack.c.l.b16 %v1060
      %v1110 = vunpack.c.l.b16 %v1061
      %v1111 = vunpack.c.l.b16 %v1062
      %v1112 = vunpack.c.l.b16 %v1063
      %v1113 = vunpack.c.l.b16 %v1064
      %v1114 = vpack.c.b16 %v1099, %v1098
      %v1115 = vpack.c.b16 %v1101, %v1100
      %v1116 = vpack.c.b16 %v1103, %v1102
      %v1117 = vpack.c.b16 %v1105, %v1104
      %v1118 = vpack.c.b16 %v1107, %v1106
      %v1119 = vpack.c.b16 %v1109, %v1108
      %v1120 = vpack.c.b16 %v1111, %v1110
      %v1121 = vpack.c.b16 %v1113, %v1112
      %v1146 = vunpack.c.l.b16 %v1066
      %v1147 = vunpack.c.l.b16 %v1067
      %v1148 = vunpack.c.l.b16 %v1068
      %v1149 = vunpack.c.l.b16 %v1069
      %v1150 = vunpack.c.l.b16 %v1070
      %v1151 = vunpack.c.l.b16 %v1071
      %v1152 = vunpack.c.l.b16 %v1072
      %v1153 = vunpack.c.l.b16 %v1073
      %v1154 = vunpack.c.l.b16 %v1074
      %v1155 = vunpack.c.l.b16 %v1075
      %v1156 = vunpack.c.l.b16 %v1076
      %v1157 = vunpack.c.l.b16 %v1077
      %v1158 = vunpack.c.l.b16 %v1078
      %v1159 = vunpack.c.l.b16 %v1079
      %v1160 = vunpack.c.l.b16 %v1080
      %v1161 = vunpack.c.l.b16 %v1081
      %v1162 = vpack.c.b16 %v1147, %v1146
      %v1163 = vpack.c.b16 %v1149, %v1148
      %v1164 = vpack.c.b16 %v1151, %v1150
      %v1165 = vpack.c.b16 %v1153, %v1152
      %v1166 = vpack.c.b16 %v1155, %v1154
      %v1167 = vpack.c.b16 %v1157, %v1156
      %v1168 = vpack.c.b16 %v1159, %v1158
      %v1169 = vpack.c.b16 %v1161, %v1160
      %v1178 = vunpack.c.l.bf16 %v1114
      %v1179 = vunpack.c.h.bf16 %v1114
      %v1180 = vunpack.c.l.bf16 %v1115
      %v1181 = vunpack.c.h.bf16 %v1115
      %v1182 = vunpack.c.l.bf16 %v1116
      %v1183 = vunpack.c.h.bf16 %v1116
      %v1184 = vunpack.c.l.bf16 %v1117
      %v1185 = vunpack.c.h.bf16 %v1117
      %v1186 = vunpack.c.l.bf16 %v1118
      %v1187 = vunpack.c.h.bf16 %v1118
      %v1188 = vunpack.c.l.bf16 %v1119
      %v1189 = vunpack.c.h.bf16 %v1119
      %v1190 = vunpack.c.l.bf16 %v1120
      %v1191 = vunpack.c.h.bf16 %v1120
      %v1192 = vunpack.c.l.bf16 %v1121
      %v1193 = vunpack.c.h.bf16 %v1121
      %v1194 = vunpack.c.l.bf16 %v1162
      %v1195 = vunpack.c.h.bf16 %v1162
      %v1196 = vunpack.c.l.bf16 %v1163
      %v1197 = vunpack.c.h.bf16 %v1163
      %v1198 = vunpack.c.l.bf16 %v1164
      %v1199 = vunpack.c.h.bf16 %v1164
      %v1200 = vunpack.c.l.bf16 %v1165
      %v1201 = vunpack.c.h.bf16 %v1165
      %v1202 = vunpack.c.l.bf16 %v1166
      %v1203 = vunpack.c.h.bf16 %v1166
      %v1204 = vunpack.c.l.bf16 %v1167
      %v1205 = vunpack.c.h.bf16 %v1167
      %v1206 = vunpack.c.l.bf16 %v1168
      %v1207 = vunpack.c.h.bf16 %v1168
      %v1208 = vunpack.c.l.bf16 %v1169
      %v1209 = vunpack.c.h.bf16 %v1169
      %s1210 = scalar_lea.vmem %s0, 128
      %v1211 = vld [vmem:[%s1210] sm:$0xf]
      %v1212 = vld [vmem:[%s1210 + $0x4] sm:$0xf]
      %v1213 = vld [vmem:[%s1210 + $0x8] sm:$0xf]
      %v1214 = vld [vmem:[%s1210 + $0xc] sm:$0xf]
      %v1215 = vld [vmem:[%s1210 + $0x10] sm:$0xf]
      %v1216 = vld [vmem:[%s1210 + $0x14] sm:$0xf]
      %v1217 = vld [vmem:[%s1210 + $0x18] sm:$0xf]
      %v1218 = vld [vmem:[%s1210 + $0x1c] sm:$0xf]
      %v1219 = vld [vmem:[%s1210 + $0x20] sm:$0xf]
      %v1220 = vld [vmem:[%s1210 + $0x24] sm:$0xf]
      %v1221 = vld [vmem:[%s1210 + $0x28] sm:$0xf]
      %v1222 = vld [vmem:[%s1210 + $0x2c] sm:$0xf]
      %v1223 = vld [vmem:[%s1210 + $0x30] sm:$0xf]
      %v1224 = vld [vmem:[%s1210 + $0x34] sm:$0xf]
      %v1225 = vld [vmem:[%s1210 + $0x38] sm:$0xf]
      %v1226 = vld [vmem:[%s1210 + $0x3c] sm:$0xf]
      %s1227 = scalar_lea.vmem %s0, 192
      %v1228 = vld [vmem:[%s1227] sm:$0xf]
      %v1229 = vld [vmem:[%s1227 + $0x4] sm:$0xf]
      %v1230 = vld [vmem:[%s1227 + $0x8] sm:$0xf]
      %v1231 = vld [vmem:[%s1227 + $0xc] sm:$0xf]
      %v1232 = vld [vmem:[%s1227 + $0x10] sm:$0xf]
      %v1233 = vld [vmem:[%s1227 + $0x14] sm:$0xf]
      %v1234 = vld [vmem:[%s1227 + $0x18] sm:$0xf]
      %v1235 = vld [vmem:[%s1227 + $0x1c] sm:$0xf]
      %v1236 = vld [vmem:[%s1227 + $0x20] sm:$0xf]
      %v1237 = vld [vmem:[%s1227 + $0x24] sm:$0xf]
      %v1238 = vld [vmem:[%s1227 + $0x28] sm:$0xf]
      %v1239 = vld [vmem:[%s1227 + $0x2c] sm:$0xf]
      %v1240 = vld [vmem:[%s1227 + $0x30] sm:$0xf]
      %v1241 = vld [vmem:[%s1227 + $0x34] sm:$0xf]
      %v1242 = vld [vmem:[%s1227 + $0x38] sm:$0xf]
      %v1243 = vld [vmem:[%s1227 + $0x3c] sm:$0xf]
      %v1260 = vunpack.c.l.b16 %v1211
      %v1261 = vunpack.c.l.b16 %v1212
      %v1262 = vunpack.c.l.b16 %v1213
      %v1263 = vunpack.c.l.b16 %v1214
      %v1264 = vunpack.c.l.b16 %v1215
      %v1265 = vunpack.c.l.b16 %v1216
      %v1266 = vunpack.c.l.b16 %v1217
      %v1267 = vunpack.c.l.b16 %v1218
      %v1268 = vunpack.c.l.b16 %v1219
      %v1269 = vunpack.c.l.b16 %v1220
      %v1270 = vunpack.c.l.b16 %v1221
      %v1271 = vunpack.c.l.b16 %v1222
      %v1272 = vunpack.c.l.b16 %v1223
      %v1273 = vunpack.c.l.b16 %v1224
      %v1274 = vunpack.c.l.b16 %v1225
      %v1275 = vunpack.c.l.b16 %v1226
      %v1276 = vpack.c.b16 %v1261, %v1260
      %v1277 = vpack.c.b16 %v1263, %v1262
      %v1278 = vpack.c.b16 %v1265, %v1264
      %v1279 = vpack.c.b16 %v1267, %v1266
      %v1280 = vpack.c.b16 %v1269, %v1268
      %v1281 = vpack.c.b16 %v1271, %v1270
      %v1282 = vpack.c.b16 %v1273, %v1272
      %v1283 = vpack.c.b16 %v1275, %v1274
      %v1308 = vunpack.c.l.b16 %v1228
      %v1309 = vunpack.c.l.b16 %v1229
      %v1310 = vunpack.c.l.b16 %v1230
      %v1311 = vunpack.c.l.b16 %v1231
      %v1312 = vunpack.c.l.b16 %v1232
      %v1313 = vunpack.c.l.b16 %v1233
      %v1314 = vunpack.c.l.b16 %v1234
      %v1315 = vunpack.c.l.b16 %v1235
      %v1316 = vunpack.c.l.b16 %v1236
      %v1317 = vunpack.c.l.b16 %v1237
      %v1318 = vunpack.c.l.b16 %v1238
      %v1319 = vunpack.c.l.b16 %v1239
      %v1320 = vunpack.c.l.b16 %v1240
      %v1321 = vunpack.c.l.b16 %v1241
      %v1322 = vunpack.c.l.b16 %v1242
      %v1323 = vunpack.c.l.b16 %v1243
      %v1324 = vpack.c.b16 %v1309, %v1308
      %v1325 = vpack.c.b16 %v1311, %v1310
      %v1326 = vpack.c.b16 %v1313, %v1312
      %v1327 = vpack.c.b16 %v1315, %v1314
      %v1328 = vpack.c.b16 %v1317, %v1316
      %v1329 = vpack.c.b16 %v1319, %v1318
      %v1330 = vpack.c.b16 %v1321, %v1320
      %v1331 = vpack.c.b16 %v1323, %v1322
      %v1340 = vunpack.c.l.bf16 %v1276
      %v1341 = vunpack.c.l.bf16 %v1324
      %v1342 = vunpack.c.h.bf16 %v1276
      %v1343 = vunpack.c.h.bf16 %v1324
      %v1344 = vunpack.c.l.bf16 %v1277
      %v1345 = vunpack.c.l.bf16 %v1325
      %v1346 = vunpack.c.h.bf16 %v1277
      %v1347 = vunpack.c.h.bf16 %v1325
      %v1348 = vunpack.c.l.bf16 %v1278
      %v1349 = vunpack.c.l.bf16 %v1326
      %v1350 = vunpack.c.h.bf16 %v1278
      %v1351 = vunpack.c.h.bf16 %v1326
      %v1352 = vunpack.c.l.bf16 %v1279
      %v1353 = vunpack.c.l.bf16 %v1327
      %v1354 = vunpack.c.h.bf16 %v1279
      %v1355 = vunpack.c.h.bf16 %v1327
      %v1356 = vunpack.c.l.bf16 %v1280
      %v1357 = vunpack.c.l.bf16 %v1328
      %v1358 = vunpack.c.h.bf16 %v1280
      %v1359 = vunpack.c.h.bf16 %v1328
      %v1360 = vunpack.c.l.bf16 %v1281
      %v1361 = vunpack.c.l.bf16 %v1329
      %v1362 = vunpack.c.h.bf16 %v1281
      %v1363 = vunpack.c.h.bf16 %v1329
      %v1364 = vunpack.c.l.bf16 %v1282
      %v1365 = vunpack.c.l.bf16 %v1330
      %v1366 = vunpack.c.h.bf16 %v1282
      %v1367 = vunpack.c.h.bf16 %v1330
      %v1368 = vunpack.c.l.bf16 %v1283
      %v1369 = vunpack.c.l.bf16 %v1331
      %v1370 = vunpack.c.h.bf16 %v1283
      %v1371 = vunpack.c.h.bf16 %v1331
      %s1372 = scalar_lea.vmem %s0, 384
      %v1373 = vld [vmem:[%s1372] sm:$0xf]
      %v1374 = vld [vmem:[%s1372 + $0x4] sm:$0xf]
      %v1375 = vld [vmem:[%s1372 + $0x8] sm:$0xf]
      %v1376 = vld [vmem:[%s1372 + $0xc] sm:$0xf]
      %v1377 = vld [vmem:[%s1372 + $0x10] sm:$0xf]
      %v1378 = vld [vmem:[%s1372 + $0x14] sm:$0xf]
      %v1379 = vld [vmem:[%s1372 + $0x18] sm:$0xf]
      %v1380 = vld [vmem:[%s1372 + $0x1c] sm:$0xf]
      %v1381 = vld [vmem:[%s1372 + $0x20] sm:$0xf]
      %v1382 = vld [vmem:[%s1372 + $0x24] sm:$0xf]
      %v1383 = vld [vmem:[%s1372 + $0x28] sm:$0xf]
      %v1384 = vld [vmem:[%s1372 + $0x2c] sm:$0xf]
      %v1385 = vld [vmem:[%s1372 + $0x30] sm:$0xf]
      %v1386 = vld [vmem:[%s1372 + $0x34] sm:$0xf]
      %v1387 = vld [vmem:[%s1372 + $0x38] sm:$0xf]
      %v1388 = vld [vmem:[%s1372 + $0x3c] sm:$0xf]
      %s1389 = scalar_lea.vmem %s0, 448
      %v1390 = vld [vmem:[%s1389] sm:$0xf]
      %v1391 = vld [vmem:[%s1389 + $0x4] sm:$0xf]
      %v1392 = vld [vmem:[%s1389 + $0x8] sm:$0xf]
      %v1393 = vld [vmem:[%s1389 + $0xc] sm:$0xf]
      %v1394 = vld [vmem:[%s1389 + $0x10] sm:$0xf]
      %v1395 = vld [vmem:[%s1389 + $0x14] sm:$0xf]
      %v1396 = vld [vmem:[%s1389 + $0x18] sm:$0xf]
      %v1397 = vld [vmem:[%s1389 + $0x1c] sm:$0xf]
      %v1398 = vld [vmem:[%s1389 + $0x20] sm:$0xf]
      %v1399 = vld [vmem:[%s1389 + $0x24] sm:$0xf]
      %v1400 = vld [vmem:[%s1389 + $0x28] sm:$0xf]
      %v1401 = vld [vmem:[%s1389 + $0x2c] sm:$0xf]
      %v1402 = vld [vmem:[%s1389 + $0x30] sm:$0xf]
      %v1403 = vld [vmem:[%s1389 + $0x34] sm:$0xf]
      %v1404 = vld [vmem:[%s1389 + $0x38] sm:$0xf]
      %v1405 = vld [vmem:[%s1389 + $0x3c] sm:$0xf]
      %v1422 = vunpack.c.l.b16 %v1373
      %v1423 = vunpack.c.l.b16 %v1374
      %v1424 = vunpack.c.l.b16 %v1375
      %v1425 = vunpack.c.l.b16 %v1376
      %v1426 = vunpack.c.l.b16 %v1377
      %v1427 = vunpack.c.l.b16 %v1378
      %v1428 = vunpack.c.l.b16 %v1379
      %v1429 = vunpack.c.l.b16 %v1380
      %v1430 = vunpack.c.l.b16 %v1381
      %v1431 = vunpack.c.l.b16 %v1382
      %v1432 = vunpack.c.l.b16 %v1383
      %v1433 = vunpack.c.l.b16 %v1384
      %v1434 = vunpack.c.l.b16 %v1385
      %v1435 = vunpack.c.l.b16 %v1386
      %v1436 = vunpack.c.l.b16 %v1387
      %v1437 = vunpack.c.l.b16 %v1388
      %v1438 = vpack.c.b16 %v1423, %v1422
      %v1439 = vpack.c.b16 %v1425, %v1424
      %v1440 = vpack.c.b16 %v1427, %v1426
      %v1441 = vpack.c.b16 %v1429, %v1428
      %v1442 = vpack.c.b16 %v1431, %v1430
      %v1443 = vpack.c.b16 %v1433, %v1432
      %v1444 = vpack.c.b16 %v1435, %v1434
      %v1445 = vpack.c.b16 %v1437, %v1436
      %v1470 = vunpack.c.l.b16 %v1390
      %v1471 = vunpack.c.l.b16 %v1391
      %v1472 = vunpack.c.l.b16 %v1392
      %v1473 = vunpack.c.l.b16 %v1393
      %v1474 = vunpack.c.l.b16 %v1394
      %v1475 = vunpack.c.l.b16 %v1395
      %v1476 = vunpack.c.l.b16 %v1396
      %v1477 = vunpack.c.l.b16 %v1397
      %v1478 = vunpack.c.l.b16 %v1398
      %v1479 = vunpack.c.l.b16 %v1399
      %v1480 = vunpack.c.l.b16 %v1400
      %v1481 = vunpack.c.l.b16 %v1401
      %v1482 = vunpack.c.l.b16 %v1402
      %v1483 = vunpack.c.l.b16 %v1403
      %v1484 = vunpack.c.l.b16 %v1404
      %v1485 = vunpack.c.l.b16 %v1405
      %v1486 = vpack.c.b16 %v1471, %v1470
      %v1487 = vpack.c.b16 %v1473, %v1472
      %v1488 = vpack.c.b16 %v1475, %v1474
      %v1489 = vpack.c.b16 %v1477, %v1476
      %v1490 = vpack.c.b16 %v1479, %v1478
      %v1491 = vpack.c.b16 %v1481, %v1480
      %v1492 = vpack.c.b16 %v1483, %v1482
      %v1493 = vpack.c.b16 %v1485, %v1484
      %v1502 = vunpack.c.l.bf16 %v1438
      %v1503 = vunpack.c.l.bf16 %v1486
      %v1504 = vunpack.c.h.bf16 %v1438
      %v1505 = vunpack.c.h.bf16 %v1486
      %v1506 = vunpack.c.l.bf16 %v1439
      %v1507 = vunpack.c.l.bf16 %v1487
      %v1508 = vunpack.c.h.bf16 %v1439
      %v1509 = vunpack.c.h.bf16 %v1487
      %v1510 = vunpack.c.l.bf16 %v1440
      %v1511 = vunpack.c.l.bf16 %v1488
      %v1512 = vunpack.c.h.bf16 %v1440
      %v1513 = vunpack.c.h.bf16 %v1488
      %v1514 = vunpack.c.l.bf16 %v1441
      %v1515 = vunpack.c.l.bf16 %v1489
      %v1516 = vunpack.c.h.bf16 %v1441
      %v1517 = vunpack.c.h.bf16 %v1489
      %v1518 = vunpack.c.l.bf16 %v1442
      %v1519 = vunpack.c.l.bf16 %v1490
      %v1520 = vunpack.c.h.bf16 %v1442
      %v1521 = vunpack.c.h.bf16 %v1490
      %v1522 = vunpack.c.l.bf16 %v1443
      %v1523 = vunpack.c.l.bf16 %v1491
      %v1524 = vunpack.c.h.bf16 %v1443
      %v1525 = vunpack.c.h.bf16 %v1491
      %v1526 = vunpack.c.l.bf16 %v1444
      %v1527 = vunpack.c.l.bf16 %v1492
      %v1528 = vunpack.c.h.bf16 %v1444
      %v1529 = vunpack.c.h.bf16 %v1492
      %v1530 = vunpack.c.l.bf16 %v1445
      %v1531 = vunpack.c.l.bf16 %v1493
      %v1532 = vunpack.c.h.bf16 %v1445
      %v1533 = vunpack.c.h.bf16 %v1493
      %s1534 = scalar_lea.vmem %s0, 640
      %v1535 = vld [vmem:[%s1534] sm:$0xf]
      %v1536 = vld [vmem:[%s1534 + $0x4] sm:$0xf]
      %v1537 = vld [vmem:[%s1534 + $0x8] sm:$0xf]
      %v1538 = vld [vmem:[%s1534 + $0xc] sm:$0xf]
      %v1539 = vld [vmem:[%s1534 + $0x10] sm:$0xf]
      %v1540 = vld [vmem:[%s1534 + $0x14] sm:$0xf]
      %v1541 = vld [vmem:[%s1534 + $0x18] sm:$0xf]
      %v1542 = vld [vmem:[%s1534 + $0x1c] sm:$0xf]
      %v1543 = vld [vmem:[%s1534 + $0x20] sm:$0xf]
      %v1544 = vld [vmem:[%s1534 + $0x24] sm:$0xf]
      %v1545 = vld [vmem:[%s1534 + $0x28] sm:$0xf]
      %v1546 = vld [vmem:[%s1534 + $0x2c] sm:$0xf]
      %v1547 = vld [vmem:[%s1534 + $0x30] sm:$0xf]
      %v1548 = vld [vmem:[%s1534 + $0x34] sm:$0xf]
      %v1549 = vld [vmem:[%s1534 + $0x38] sm:$0xf]
      %v1550 = vld [vmem:[%s1534 + $0x3c] sm:$0xf]
      %s1551 = scalar_lea.vmem %s0, 704
      %v1552 = vld [vmem:[%s1551] sm:$0xf]
      %v1553 = vld [vmem:[%s1551 + $0x4] sm:$0xf]
      %v1554 = vld [vmem:[%s1551 + $0x8] sm:$0xf]
      %v1555 = vld [vmem:[%s1551 + $0xc] sm:$0xf]
      %v1556 = vld [vmem:[%s1551 + $0x10] sm:$0xf]
      %v1557 = vld [vmem:[%s1551 + $0x14] sm:$0xf]
      %v1558 = vld [vmem:[%s1551 + $0x18] sm:$0xf]
      %v1559 = vld [vmem:[%s1551 + $0x1c] sm:$0xf]
      %v1560 = vld [vmem:[%s1551 + $0x20] sm:$0xf]
      %v1561 = vld [vmem:[%s1551 + $0x24] sm:$0xf]
      %v1562 = vld [vmem:[%s1551 + $0x28] sm:$0xf]
      %v1563 = vld [vmem:[%s1551 + $0x2c] sm:$0xf]
      %v1564 = vld [vmem:[%s1551 + $0x30] sm:$0xf]
      %v1565 = vld [vmem:[%s1551 + $0x34] sm:$0xf]
      %v1566 = vld [vmem:[%s1551 + $0x38] sm:$0xf]
      %v1567 = vld [vmem:[%s1551 + $0x3c] sm:$0xf]
      %v1584 = vunpack.c.l.b16 %v1535
      %v1585 = vunpack.c.l.b16 %v1536
      %v1586 = vunpack.c.l.b16 %v1537
      %v1587 = vunpack.c.l.b16 %v1538
      %v1588 = vunpack.c.l.b16 %v1539
      %v1589 = vunpack.c.l.b16 %v1540
      %v1590 = vunpack.c.l.b16 %v1541
      %v1591 = vunpack.c.l.b16 %v1542
      %v1592 = vunpack.c.l.b16 %v1543
      %v1593 = vunpack.c.l.b16 %v1544
      %v1594 = vunpack.c.l.b16 %v1545
      %v1595 = vunpack.c.l.b16 %v1546
      %v1596 = vunpack.c.l.b16 %v1547
      %v1597 = vunpack.c.l.b16 %v1548
      %v1598 = vunpack.c.l.b16 %v1549
      %v1599 = vunpack.c.l.b16 %v1550
      %v1600 = vpack.c.b16 %v1585, %v1584
      %v1601 = vpack.c.b16 %v1587, %v1586
      %v1602 = vpack.c.b16 %v1589, %v1588
      %v1603 = vpack.c.b16 %v1591, %v1590
      %v1604 = vpack.c.b16 %v1593, %v1592
      %v1605 = vpack.c.b16 %v1595, %v1594
      %v1606 = vpack.c.b16 %v1597, %v1596
      %v1607 = vpack.c.b16 %v1599, %v1598
      %v1632 = vunpack.c.l.b16 %v1552
      %v1633 = vunpack.c.l.b16 %v1553
      %v1634 = vunpack.c.l.b16 %v1554
      %v1635 = vunpack.c.l.b16 %v1555
      %v1636 = vunpack.c.l.b16 %v1556
      %v1637 = vunpack.c.l.b16 %v1557
      %v1638 = vunpack.c.l.b16 %v1558
      %v1639 = vunpack.c.l.b16 %v1559
      %v1640 = vunpack.c.l.b16 %v1560
      %v1641 = vunpack.c.l.b16 %v1561
      %v1642 = vunpack.c.l.b16 %v1562
      %v1643 = vunpack.c.l.b16 %v1563
      %v1644 = vunpack.c.l.b16 %v1564
      %v1645 = vunpack.c.l.b16 %v1565
      %v1646 = vunpack.c.l.b16 %v1566
      %v1647 = vunpack.c.l.b16 %v1567
      %v1648 = vpack.c.b16 %v1633, %v1632
      %v1649 = vpack.c.b16 %v1635, %v1634
      %v1650 = vpack.c.b16 %v1637, %v1636
      %v1651 = vpack.c.b16 %v1639, %v1638
      %v1652 = vpack.c.b16 %v1641, %v1640
      %v1653 = vpack.c.b16 %v1643, %v1642
      %v1654 = vpack.c.b16 %v1645, %v1644
      %v1655 = vpack.c.b16 %v1647, %v1646
      %v1664 = vunpack.c.l.bf16 %v1600
      %v1665 = vunpack.c.l.bf16 %v1648
      %v1666 = vunpack.c.h.bf16 %v1600
      %v1667 = vunpack.c.h.bf16 %v1648
      %v1668 = vunpack.c.l.bf16 %v1601
      %v1669 = vunpack.c.l.bf16 %v1649
      %v1670 = vunpack.c.h.bf16 %v1601
      %v1671 = vunpack.c.h.bf16 %v1649
      %v1672 = vunpack.c.l.bf16 %v1602
      %v1673 = vunpack.c.l.bf16 %v1650
      %v1674 = vunpack.c.h.bf16 %v1602
      %v1675 = vunpack.c.h.bf16 %v1650
      %v1676 = vunpack.c.l.bf16 %v1603
      %v1677 = vunpack.c.l.bf16 %v1651
      %v1678 = vunpack.c.h.bf16 %v1603
      %v1679 = vunpack.c.h.bf16 %v1651
      %v1680 = vunpack.c.l.bf16 %v1604
      %v1681 = vunpack.c.l.bf16 %v1652
      %v1682 = vunpack.c.h.bf16 %v1604
      %v1683 = vunpack.c.h.bf16 %v1652
      %v1684 = vunpack.c.l.bf16 %v1605
      %v1685 = vunpack.c.l.bf16 %v1653
      %v1686 = vunpack.c.h.bf16 %v1605
      %v1687 = vunpack.c.h.bf16 %v1653
      %v1688 = vunpack.c.l.bf16 %v1606
      %v1689 = vunpack.c.l.bf16 %v1654
      %v1690 = vunpack.c.h.bf16 %v1606
      %v1691 = vunpack.c.h.bf16 %v1654
      %v1692 = vunpack.c.l.bf16 %v1607
      %v1693 = vunpack.c.l.bf16 %v1655
      %v1694 = vunpack.c.h.bf16 %v1607
      %v1695 = vunpack.c.h.bf16 %v1655
      %s1696 = scalar_lea.vmem %s0, 896
      %v1697 = vld [vmem:[%s1696] sm:$0xf]
      %v1698 = vld [vmem:[%s1696 + $0x4] sm:$0xf]
      %v1699 = vld [vmem:[%s1696 + $0x8] sm:$0xf]
      %v1700 = vld [vmem:[%s1696 + $0xc] sm:$0xf]
      %v1701 = vld [vmem:[%s1696 + $0x10] sm:$0xf]
      %v1702 = vld [vmem:[%s1696 + $0x14] sm:$0xf]
      %v1703 = vld [vmem:[%s1696 + $0x18] sm:$0xf]
      %v1704 = vld [vmem:[%s1696 + $0x1c] sm:$0xf]
      %v1705 = vld [vmem:[%s1696 + $0x20] sm:$0xf]
      %v1706 = vld [vmem:[%s1696 + $0x24] sm:$0xf]
      %v1707 = vld [vmem:[%s1696 + $0x28] sm:$0xf]
      %v1708 = vld [vmem:[%s1696 + $0x2c] sm:$0xf]
      %v1709 = vld [vmem:[%s1696 + $0x30] sm:$0xf]
      %v1710 = vld [vmem:[%s1696 + $0x34] sm:$0xf]
      %v1711 = vld [vmem:[%s1696 + $0x38] sm:$0xf]
      %v1712 = vld [vmem:[%s1696 + $0x3c] sm:$0xf]
      %s1713 = scalar_lea.vmem %s0, 960
      %v1714 = vld [vmem:[%s1713] sm:$0xf]
      %v1715 = vld [vmem:[%s1713 + $0x4] sm:$0xf]
      %v1716 = vld [vmem:[%s1713 + $0x8] sm:$0xf]
      %v1717 = vld [vmem:[%s1713 + $0xc] sm:$0xf]
      %v1718 = vld [vmem:[%s1713 + $0x10] sm:$0xf]
      %v1719 = vld [vmem:[%s1713 + $0x14] sm:$0xf]
      %v1720 = vld [vmem:[%s1713 + $0x18] sm:$0xf]
      %v1721 = vld [vmem:[%s1713 + $0x1c] sm:$0xf]
      %v1722 = vld [vmem:[%s1713 + $0x20] sm:$0xf]
      %v1723 = vld [vmem:[%s1713 + $0x24] sm:$0xf]
      %v1724 = vld [vmem:[%s1713 + $0x28] sm:$0xf]
      %v1725 = vld [vmem:[%s1713 + $0x2c] sm:$0xf]
      %v1726 = vld [vmem:[%s1713 + $0x30] sm:$0xf]
      %v1727 = vld [vmem:[%s1713 + $0x34] sm:$0xf]
      %v1728 = vld [vmem:[%s1713 + $0x38] sm:$0xf]
      %v1729 = vld [vmem:[%s1713 + $0x3c] sm:$0xf]
      %v1746 = vunpack.c.l.b16 %v1697
      %v1747 = vunpack.c.l.b16 %v1698
      %v1748 = vunpack.c.l.b16 %v1699
      %v1749 = vunpack.c.l.b16 %v1700
      %v1750 = vunpack.c.l.b16 %v1701
      %v1751 = vunpack.c.l.b16 %v1702
      %v1752 = vunpack.c.l.b16 %v1703
      %v1753 = vunpack.c.l.b16 %v1704
      %v1754 = vunpack.c.l.b16 %v1705
      %v1755 = vunpack.c.l.b16 %v1706
      %v1756 = vunpack.c.l.b16 %v1707
      %v1757 = vunpack.c.l.b16 %v1708
      %v1758 = vunpack.c.l.b16 %v1709
      %v1759 = vunpack.c.l.b16 %v1710
      %v1760 = vunpack.c.l.b16 %v1711
      %v1761 = vunpack.c.l.b16 %v1712
      %v1762 = vpack.c.b16 %v1747, %v1746
      %v1763 = vpack.c.b16 %v1749, %v1748
      %v1764 = vpack.c.b16 %v1751, %v1750
      %v1765 = vpack.c.b16 %v1753, %v1752
      %v1766 = vpack.c.b16 %v1755, %v1754
      %v1767 = vpack.c.b16 %v1757, %v1756
      %v1768 = vpack.c.b16 %v1759, %v1758
      %v1769 = vpack.c.b16 %v1761, %v1760
      %v1794 = vunpack.c.l.b16 %v1714
      %v1795 = vunpack.c.l.b16 %v1715
      %v1796 = vunpack.c.l.b16 %v1716
      %v1797 = vunpack.c.l.b16 %v1717
      %v1798 = vunpack.c.l.b16 %v1718
      %v1799 = vunpack.c.l.b16 %v1719
      %v1800 = vunpack.c.l.b16 %v1720
      %v1801 = vunpack.c.l.b16 %v1721
      %v1802 = vunpack.c.l.b16 %v1722
      %v1803 = vunpack.c.l.b16 %v1723
      %v1804 = vunpack.c.l.b16 %v1724
      %v1805 = vunpack.c.l.b16 %v1725
      %v1806 = vunpack.c.l.b16 %v1726
      %v1807 = vunpack.c.l.b16 %v1727
      %v1808 = vunpack.c.l.b16 %v1728
      %v1809 = vunpack.c.l.b16 %v1729
      %v1810 = vpack.c.b16 %v1795, %v1794
      %v1811 = vpack.c.b16 %v1797, %v1796
      %v1812 = vpack.c.b16 %v1799, %v1798
      %v1813 = vpack.c.b16 %v1801, %v1800
      %v1814 = vpack.c.b16 %v1803, %v1802
      %v1815 = vpack.c.b16 %v1805, %v1804
      %v1816 = vpack.c.b16 %v1807, %v1806
      %v1817 = vpack.c.b16 %v1809, %v1808
      %v1826 = vunpack.c.l.bf16 %v1762
      %v1827 = vunpack.c.l.bf16 %v1810
      %v1828 = vunpack.c.h.bf16 %v1762
      %v1829 = vunpack.c.h.bf16 %v1810
      %v1830 = vunpack.c.l.bf16 %v1763
      %v1831 = vunpack.c.l.bf16 %v1811
      %v1832 = vunpack.c.h.bf16 %v1763
      %v1833 = vunpack.c.h.bf16 %v1811
      %v1834 = vunpack.c.l.bf16 %v1764
      %v1835 = vunpack.c.l.bf16 %v1812
      %v1836 = vunpack.c.h.bf16 %v1764
      %v1837 = vunpack.c.h.bf16 %v1812
      %v1838 = vunpack.c.l.bf16 %v1765
      %v1839 = vunpack.c.l.bf16 %v1813
      %v1840 = vunpack.c.h.bf16 %v1765
      %v1841 = vunpack.c.h.bf16 %v1813
      %v1842 = vunpack.c.l.bf16 %v1766
      %v1843 = vunpack.c.l.bf16 %v1814
      %v1844 = vunpack.c.h.bf16 %v1766
      %v1845 = vunpack.c.h.bf16 %v1814
      %v1846 = vunpack.c.l.bf16 %v1767
      %v1847 = vunpack.c.l.bf16 %v1815
      %v1848 = vunpack.c.h.bf16 %v1767
      %v1849 = vunpack.c.h.bf16 %v1815
      %v1850 = vunpack.c.l.bf16 %v1768
      %v1851 = vunpack.c.l.bf16 %v1816
      %v1852 = vunpack.c.h.bf16 %v1768
      %v1853 = vunpack.c.h.bf16 %v1816
      %v1854 = vunpack.c.l.bf16 %v1769
      %v1855 = vunpack.c.l.bf16 %v1817
      %v1856 = vunpack.c.h.bf16 %v1769
      %v1857 = vunpack.c.h.bf16 %v1817
      %s1858 = scalar_lea.vmem %s0, 1152
      %v1859 = vld [vmem:[%s1858] sm:$0xf]
      %v1860 = vld [vmem:[%s1858 + $0x4] sm:$0xf]
      %v1861 = vld [vmem:[%s1858 + $0x8] sm:$0xf]
      %v1862 = vld [vmem:[%s1858 + $0xc] sm:$0xf]
      %v1863 = vld [vmem:[%s1858 + $0x10] sm:$0xf]
      %v1864 = vld [vmem:[%s1858 + $0x14] sm:$0xf]
      %v1865 = vld [vmem:[%s1858 + $0x18] sm:$0xf]
      %v1866 = vld [vmem:[%s1858 + $0x1c] sm:$0xf]
      %v1867 = vld [vmem:[%s1858 + $0x20] sm:$0xf]
      %v1868 = vld [vmem:[%s1858 + $0x24] sm:$0xf]
      %v1869 = vld [vmem:[%s1858 + $0x28] sm:$0xf]
      %v1870 = vld [vmem:[%s1858 + $0x2c] sm:$0xf]
      %v1871 = vld [vmem:[%s1858 + $0x30] sm:$0xf]
      %v1872 = vld [vmem:[%s1858 + $0x34] sm:$0xf]
      %v1873 = vld [vmem:[%s1858 + $0x38] sm:$0xf]
      %v1874 = vld [vmem:[%s1858 + $0x3c] sm:$0xf]
      %s1875 = scalar_lea.vmem %s0, 1216
      %v1876 = vld [vmem:[%s1875] sm:$0xf]
      %v1877 = vld [vmem:[%s1875 + $0x4] sm:$0xf]
      %v1878 = vld [vmem:[%s1875 + $0x8] sm:$0xf]
      %v1879 = vld [vmem:[%s1875 + $0xc] sm:$0xf]
      %v1880 = vld [vmem:[%s1875 + $0x10] sm:$0xf]
      %v1881 = vld [vmem:[%s1875 + $0x14] sm:$0xf]
      %v1882 = vld [vmem:[%s1875 + $0x18] sm:$0xf]
      %v1883 = vld [vmem:[%s1875 + $0x1c] sm:$0xf]
      %v1884 = vld [vmem:[%s1875 + $0x20] sm:$0xf]
      %v1885 = vld [vmem:[%s1875 + $0x24] sm:$0xf]
      %v1886 = vld [vmem:[%s1875 + $0x28] sm:$0xf]
      %v1887 = vld [vmem:[%s1875 + $0x2c] sm:$0xf]
      %v1888 = vld [vmem:[%s1875 + $0x30] sm:$0xf]
      %v1889 = vld [vmem:[%s1875 + $0x34] sm:$0xf]
      %v1890 = vld [vmem:[%s1875 + $0x38] sm:$0xf]
      %v1891 = vld [vmem:[%s1875 + $0x3c] sm:$0xf]
      %v1908 = vunpack.c.l.b16 %v1859
      %v1909 = vunpack.c.l.b16 %v1860
      %v1910 = vunpack.c.l.b16 %v1861
      %v1911 = vunpack.c.l.b16 %v1862
      %v1912 = vunpack.c.l.b16 %v1863
      %v1913 = vunpack.c.l.b16 %v1864
      %v1914 = vunpack.c.l.b16 %v1865
      %v1915 = vunpack.c.l.b16 %v1866
      %v1916 = vunpack.c.l.b16 %v1867
      %v1917 = vunpack.c.l.b16 %v1868
      %v1918 = vunpack.c.l.b16 %v1869
      %v1919 = vunpack.c.l.b16 %v1870
      %v1920 = vunpack.c.l.b16 %v1871
      %v1921 = vunpack.c.l.b16 %v1872
      %v1922 = vunpack.c.l.b16 %v1873
      %v1923 = vunpack.c.l.b16 %v1874
      %v1924 = vpack.c.b16 %v1909, %v1908
      %v1925 = vpack.c.b16 %v1911, %v1910
      %v1926 = vpack.c.b16 %v1913, %v1912
      %v1927 = vpack.c.b16 %v1915, %v1914
      %v1928 = vpack.c.b16 %v1917, %v1916
      %v1929 = vpack.c.b16 %v1919, %v1918
      %v1930 = vpack.c.b16 %v1921, %v1920
      %v1931 = vpack.c.b16 %v1923, %v1922
      %v1956 = vunpack.c.l.b16 %v1876
      %v1957 = vunpack.c.l.b16 %v1877
      %v1958 = vunpack.c.l.b16 %v1878
      %v1959 = vunpack.c.l.b16 %v1879
      %v1960 = vunpack.c.l.b16 %v1880
      %v1961 = vunpack.c.l.b16 %v1881
      %v1962 = vunpack.c.l.b16 %v1882
      %v1963 = vunpack.c.l.b16 %v1883
      %v1964 = vunpack.c.l.b16 %v1884
      %v1965 = vunpack.c.l.b16 %v1885
      %v1966 = vunpack.c.l.b16 %v1886
      %v1967 = vunpack.c.l.b16 %v1887
      %v1968 = vunpack.c.l.b16 %v1888
      %v1969 = vunpack.c.l.b16 %v1889
      %v1970 = vunpack.c.l.b16 %v1890
      %v1971 = vunpack.c.l.b16 %v1891
      %v1972 = vpack.c.b16 %v1957, %v1956
      %v1973 = vpack.c.b16 %v1959, %v1958
      %v1974 = vpack.c.b16 %v1961, %v1960
      %v1975 = vpack.c.b16 %v1963, %v1962
      %v1976 = vpack.c.b16 %v1965, %v1964
      %v1977 = vpack.c.b16 %v1967, %v1966
      %v1978 = vpack.c.b16 %v1969, %v1968
      %v1979 = vpack.c.b16 %v1971, %v1970
      %v1988 = vunpack.c.l.bf16 %v1924
      %v1989 = vunpack.c.l.bf16 %v1972
      %v1990 = vunpack.c.h.bf16 %v1924
      %v1991 = vunpack.c.h.bf16 %v1972
      %v1992 = vunpack.c.l.bf16 %v1925
      %v1993 = vunpack.c.l.bf16 %v1973
      %v1994 = vunpack.c.h.bf16 %v1925
      %v1995 = vunpack.c.h.bf16 %v1973
      %v1996 = vunpack.c.l.bf16 %v1926
      %v1997 = vunpack.c.l.bf16 %v1974
      %v1998 = vunpack.c.h.bf16 %v1926
      %v1999 = vunpack.c.h.bf16 %v1974
      %v2000 = vunpack.c.l.bf16 %v1927
      %v2001 = vunpack.c.l.bf16 %v1975
      %v2002 = vunpack.c.h.bf16 %v1927
      %v2003 = vunpack.c.h.bf16 %v1975
      %v2004 = vunpack.c.l.bf16 %v1928
      %v2005 = vunpack.c.l.bf16 %v1976
      %v2006 = vunpack.c.h.bf16 %v1928
      %v2007 = vunpack.c.h.bf16 %v1976
      %v2008 = vunpack.c.l.bf16 %v1929
      %v2009 = vunpack.c.l.bf16 %v1977
      %v2010 = vunpack.c.h.bf16 %v1929
      %v2011 = vunpack.c.h.bf16 %v1977
      %v2012 = vunpack.c.l.bf16 %v1930
      %v2013 = vunpack.c.l.bf16 %v1978
      %v2014 = vunpack.c.h.bf16 %v1930
      %v2015 = vunpack.c.h.bf16 %v1978
      %v2016 = vunpack.c.l.bf16 %v1931
      %v2017 = vunpack.c.l.bf16 %v1979
      %v2018 = vunpack.c.h.bf16 %v1931
      %v2019 = vunpack.c.h.bf16 %v1979
      %s2020 = scalar_lea.vmem %s0, 1408
      %v2021 = vld [vmem:[%s2020] sm:$0xf]
      %v2022 = vld [vmem:[%s2020 + $0x4] sm:$0xf]
      %v2023 = vld [vmem:[%s2020 + $0x8] sm:$0xf]
      %v2024 = vld [vmem:[%s2020 + $0xc] sm:$0xf]
      %v2025 = vld [vmem:[%s2020 + $0x10] sm:$0xf]
      %v2026 = vld [vmem:[%s2020 + $0x14] sm:$0xf]
      %v2027 = vld [vmem:[%s2020 + $0x18] sm:$0xf]
      %v2028 = vld [vmem:[%s2020 + $0x1c] sm:$0xf]
      %v2029 = vld [vmem:[%s2020 + $0x20] sm:$0xf]
      %v2030 = vld [vmem:[%s2020 + $0x24] sm:$0xf]
      %v2031 = vld [vmem:[%s2020 + $0x28] sm:$0xf]
      %v2032 = vld [vmem:[%s2020 + $0x2c] sm:$0xf]
      %v2033 = vld [vmem:[%s2020 + $0x30] sm:$0xf]
      %v2034 = vld [vmem:[%s2020 + $0x34] sm:$0xf]
      %v2035 = vld [vmem:[%s2020 + $0x38] sm:$0xf]
      %v2036 = vld [vmem:[%s2020 + $0x3c] sm:$0xf]
      %s2037 = scalar_lea.vmem %s0, 1472
      %v2038 = vld [vmem:[%s2037] sm:$0xf]
      %v2039 = vld [vmem:[%s2037 + $0x4] sm:$0xf]
      %v2040 = vld [vmem:[%s2037 + $0x8] sm:$0xf]
      %v2041 = vld [vmem:[%s2037 + $0xc] sm:$0xf]
      %v2042 = vld [vmem:[%s2037 + $0x10] sm:$0xf]
      %v2043 = vld [vmem:[%s2037 + $0x14] sm:$0xf]
      %v2044 = vld [vmem:[%s2037 + $0x18] sm:$0xf]
      %v2045 = vld [vmem:[%s2037 + $0x1c] sm:$0xf]
      %v2046 = vld [vmem:[%s2037 + $0x20] sm:$0xf]
      %v2047 = vld [vmem:[%s2037 + $0x24] sm:$0xf]
      %v2048 = vld [vmem:[%s2037 + $0x28] sm:$0xf]
      %v2049 = vld [vmem:[%s2037 + $0x2c] sm:$0xf]
      %v2050 = vld [vmem:[%s2037 + $0x30] sm:$0xf]
      %v2051 = vld [vmem:[%s2037 + $0x34] sm:$0xf]
      %v2052 = vld [vmem:[%s2037 + $0x38] sm:$0xf]
      %v2053 = vld [vmem:[%s2037 + $0x3c] sm:$0xf]
      %v2070 = vunpack.c.l.b16 %v2021
      %v2071 = vunpack.c.l.b16 %v2022
      %v2072 = vunpack.c.l.b16 %v2023
      %v2073 = vunpack.c.l.b16 %v2024
      %v2074 = vunpack.c.l.b16 %v2025
      %v2075 = vunpack.c.l.b16 %v2026
      %v2076 = vunpack.c.l.b16 %v2027
      %v2077 = vunpack.c.l.b16 %v2028
      %v2078 = vunpack.c.l.b16 %v2029
      %v2079 = vunpack.c.l.b16 %v2030
      %v2080 = vunpack.c.l.b16 %v2031
      %v2081 = vunpack.c.l.b16 %v2032
      %v2082 = vunpack.c.l.b16 %v2033
      %v2083 = vunpack.c.l.b16 %v2034
      %v2084 = vunpack.c.l.b16 %v2035
      %v2085 = vunpack.c.l.b16 %v2036
      %v2086 = vpack.c.b16 %v2071, %v2070
      %v2087 = vpack.c.b16 %v2073, %v2072
      %v2088 = vpack.c.b16 %v2075, %v2074
      %v2089 = vpack.c.b16 %v2077, %v2076
      %v2090 = vpack.c.b16 %v2079, %v2078
      %v2091 = vpack.c.b16 %v2081, %v2080
      %v2092 = vpack.c.b16 %v2083, %v2082
      %v2093 = vpack.c.b16 %v2085, %v2084
      %v2118 = vunpack.c.l.b16 %v2038
      %v2119 = vunpack.c.l.b16 %v2039
      %v2120 = vunpack.c.l.b16 %v2040
      %v2121 = vunpack.c.l.b16 %v2041
      %v2122 = vunpack.c.l.b16 %v2042
      %v2123 = vunpack.c.l.b16 %v2043
      %v2124 = vunpack.c.l.b16 %v2044
      %v2125 = vunpack.c.l.b16 %v2045
      %v2126 = vunpack.c.l.b16 %v2046
      %v2127 = vunpack.c.l.b16 %v2047
      %v2128 = vunpack.c.l.b16 %v2048
      %v2129 = vunpack.c.l.b16 %v2049
      %v2130 = vunpack.c.l.b16 %v2050
      %v2131 = vunpack.c.l.b16 %v2051
      %v2132 = vunpack.c.l.b16 %v2052
      %v2133 = vunpack.c.l.b16 %v2053
      %v2134 = vpack.c.b16 %v2119, %v2118
      %v2135 = vpack.c.b16 %v2121, %v2120
      %v2136 = vpack.c.b16 %v2123, %v2122
      %v2137 = vpack.c.b16 %v2125, %v2124
      %v2138 = vpack.c.b16 %v2127, %v2126
      %v2139 = vpack.c.b16 %v2129, %v2128
      %v2140 = vpack.c.b16 %v2131, %v2130
      %v2141 = vpack.c.b16 %v2133, %v2132
      %v2150 = vunpack.c.l.bf16 %v2086
      %v2151 = vunpack.c.l.bf16 %v2134
      %v2152 = vunpack.c.h.bf16 %v2086
      %v2153 = vunpack.c.h.bf16 %v2134
      %v2154 = vunpack.c.l.bf16 %v2087
      %v2155 = vunpack.c.l.bf16 %v2135
      %v2156 = vunpack.c.h.bf16 %v2087
      %v2157 = vunpack.c.h.bf16 %v2135
      %v2158 = vunpack.c.l.bf16 %v2088
      %v2159 = vunpack.c.l.bf16 %v2136
      %v2160 = vunpack.c.h.bf16 %v2088
      %v2161 = vunpack.c.h.bf16 %v2136
      %v2162 = vunpack.c.l.bf16 %v2089
      %v2163 = vunpack.c.l.bf16 %v2137
      %v2164 = vunpack.c.h.bf16 %v2089
      %v2165 = vunpack.c.h.bf16 %v2137
      %v2166 = vunpack.c.l.bf16 %v2090
      %v2167 = vunpack.c.l.bf16 %v2138
      %v2168 = vunpack.c.h.bf16 %v2090
      %v2169 = vunpack.c.h.bf16 %v2138
      %v2170 = vunpack.c.l.bf16 %v2091
      %v2171 = vunpack.c.l.bf16 %v2139
      %v2172 = vunpack.c.h.bf16 %v2091
      %v2173 = vunpack.c.h.bf16 %v2139
      %v2174 = vunpack.c.l.bf16 %v2092
      %v2175 = vunpack.c.l.bf16 %v2140
      %v2176 = vunpack.c.h.bf16 %v2092
      %v2177 = vunpack.c.h.bf16 %v2140
      %v2178 = vunpack.c.l.bf16 %v2093
      %v2179 = vunpack.c.l.bf16 %v2141
      %v2180 = vunpack.c.h.bf16 %v2093
      %v2181 = vunpack.c.h.bf16 %v2141
      %v2182 = vld [vmem:[%s164] sm:$0xf]
      %v2183 = vld [vmem:[%s164 + $0x4] sm:$0xf]
      %v2184 = vld [vmem:[%s164 + $0x8] sm:$0xf]
      %v2185 = vld [vmem:[%s164 + $0xc] sm:$0xf]
      %v2186 = vld [vmem:[%s164 + $0x10] sm:$0xf]
      %v2187 = vld [vmem:[%s164 + $0x14] sm:$0xf]
      %v2188 = vld [vmem:[%s164 + $0x18] sm:$0xf]
      %v2189 = vld [vmem:[%s164 + $0x1c] sm:$0xf]
      %v2190 = vld [vmem:[%s164 + $0x20] sm:$0xf]
      %v2191 = vld [vmem:[%s164 + $0x24] sm:$0xf]
      %v2192 = vld [vmem:[%s164 + $0x28] sm:$0xf]
      %v2193 = vld [vmem:[%s164 + $0x2c] sm:$0xf]
      %v2194 = vld [vmem:[%s164 + $0x30] sm:$0xf]
      %v2195 = vld [vmem:[%s164 + $0x34] sm:$0xf]
      %v2196 = vld [vmem:[%s164 + $0x38] sm:$0xf]
      %v2197 = vld [vmem:[%s164 + $0x3c] sm:$0xf]
      %v2198 = vunpack.c.l.bf16 %v2182
      %v2199 = vunpack.c.l.bf16 %v2183
      %v2200 = vunpack.c.l.bf16 %v2184
      %v2201 = vunpack.c.l.bf16 %v2185
      %v2202 = vunpack.c.l.bf16 %v2186
      %v2203 = vunpack.c.l.bf16 %v2187
      %v2204 = vunpack.c.l.bf16 %v2188
      %v2205 = vunpack.c.l.bf16 %v2189
      %v2206 = vunpack.c.l.bf16 %v2190
      %v2207 = vunpack.c.l.bf16 %v2191
      %v2208 = vunpack.c.l.bf16 %v2192
      %v2209 = vunpack.c.l.bf16 %v2193
      %v2210 = vunpack.c.l.bf16 %v2194
      %v2211 = vunpack.c.l.bf16 %v2195
      %v2212 = vunpack.c.l.bf16 %v2196
      %v2213 = vunpack.c.l.bf16 %v2197
      %s2214 = scalar_lea.vmem %s164, 64
      %v2215 = vld [vmem:[%s2214] sm:$0xf]
      %v2216 = vld [vmem:[%s2214 + $0x4] sm:$0xf]
      %v2217 = vld [vmem:[%s2214 + $0x8] sm:$0xf]
      %v2218 = vld [vmem:[%s2214 + $0xc] sm:$0xf]
      %v2219 = vld [vmem:[%s2214 + $0x10] sm:$0xf]
      %v2220 = vld [vmem:[%s2214 + $0x14] sm:$0xf]
      %v2221 = vld [vmem:[%s2214 + $0x18] sm:$0xf]
      %v2222 = vld [vmem:[%s2214 + $0x1c] sm:$0xf]
      %v2223 = vld [vmem:[%s2214 + $0x20] sm:$0xf]
      %v2224 = vld [vmem:[%s2214 + $0x24] sm:$0xf]
      %v2225 = vld [vmem:[%s2214 + $0x28] sm:$0xf]
      %v2226 = vld [vmem:[%s2214 + $0x2c] sm:$0xf]
      %v2227 = vld [vmem:[%s2214 + $0x30] sm:$0xf]
      %v2228 = vld [vmem:[%s2214 + $0x34] sm:$0xf]
      %v2229 = vld [vmem:[%s2214 + $0x38] sm:$0xf]
      %v2230 = vld [vmem:[%s2214 + $0x3c] sm:$0xf]
      %v2231 = vunpack.c.l.bf16 %v2215
      %v2232 = vunpack.c.l.bf16 %v2216
      %v2233 = vunpack.c.l.bf16 %v2217
      %v2234 = vunpack.c.l.bf16 %v2218
      %v2235 = vunpack.c.l.bf16 %v2219
      %v2236 = vunpack.c.l.bf16 %v2220
      %v2237 = vunpack.c.l.bf16 %v2221
      %v2238 = vunpack.c.l.bf16 %v2222
      %v2239 = vunpack.c.l.bf16 %v2223
      %v2240 = vunpack.c.l.bf16 %v2224
      %v2241 = vunpack.c.l.bf16 %v2225
      %v2242 = vunpack.c.l.bf16 %v2226
      %v2243 = vunpack.c.l.bf16 %v2227
      %v2244 = vunpack.c.l.bf16 %v2228
      %v2245 = vunpack.c.l.bf16 %v2229
      %v2246 = vunpack.c.l.bf16 %v2230
      %s2247 = scalar_lea.vmem %s164, 128
      %v2248 = vld [vmem:[%s2247] sm:$0xf]
      %v2249 = vld [vmem:[%s2247 + $0x4] sm:$0xf]
      %v2250 = vld [vmem:[%s2247 + $0x8] sm:$0xf]
      %v2251 = vld [vmem:[%s2247 + $0xc] sm:$0xf]
      %v2252 = vld [vmem:[%s2247 + $0x10] sm:$0xf]
      %v2253 = vld [vmem:[%s2247 + $0x14] sm:$0xf]
      %v2254 = vld [vmem:[%s2247 + $0x18] sm:$0xf]
      %v2255 = vld [vmem:[%s2247 + $0x1c] sm:$0xf]
      %v2256 = vld [vmem:[%s2247 + $0x20] sm:$0xf]
      %v2257 = vld [vmem:[%s2247 + $0x24] sm:$0xf]
      %v2258 = vld [vmem:[%s2247 + $0x28] sm:$0xf]
      %v2259 = vld [vmem:[%s2247 + $0x2c] sm:$0xf]
      %v2260 = vld [vmem:[%s2247 + $0x30] sm:$0xf]
      %v2261 = vld [vmem:[%s2247 + $0x34] sm:$0xf]
      %v2262 = vld [vmem:[%s2247 + $0x38] sm:$0xf]
      %v2263 = vld [vmem:[%s2247 + $0x3c] sm:$0xf]
      %v2264 = vunpack.c.l.bf16 %v2248
      %v2265 = vunpack.c.l.bf16 %v2249
      %v2266 = vunpack.c.l.bf16 %v2250
      %v2267 = vunpack.c.l.bf16 %v2251
      %v2268 = vunpack.c.l.bf16 %v2252
      %v2269 = vunpack.c.l.bf16 %v2253
      %v2270 = vunpack.c.l.bf16 %v2254
      %v2271 = vunpack.c.l.bf16 %v2255
      %v2272 = vunpack.c.l.bf16 %v2256
      %v2273 = vunpack.c.l.bf16 %v2257
      %v2274 = vunpack.c.l.bf16 %v2258
      %v2275 = vunpack.c.l.bf16 %v2259
      %v2276 = vunpack.c.l.bf16 %v2260
      %v2277 = vunpack.c.l.bf16 %v2261
      %v2278 = vunpack.c.l.bf16 %v2262
      %v2279 = vunpack.c.l.bf16 %v2263
      %2280 = vmatpush.msra.mxu0 %v2213
      %2281 = vmatpush.msra.mxu0 %v2212
      %2282 = vmatpush.msra.mxu0 %v2211
      %2283 = vmatpush.msra.mxu0 %v2210
      %2284 = vmatpush.msra.mxu0 %v2209
      %2285 = vmatpush.msra.mxu0 %v2208
      %2286 = vmatpush.msra.mxu0 %v2207
      %2287 = vmatpush.msra.mxu0 %v2206
      %2288 = vmatpush.msra.mxu0 %v2205
      %2289 = vmatpush.msra.mxu0 %v2204
      %2290 = vmatpush.msra.mxu0 %v2203
      %2291 = vmatpush.msra.mxu0 %v2202
      %2292 = vmatpush.msra.mxu0 %v2201
      %2293 = vmatpush.msra.mxu0 %v2200
      %2294 = vmatpush.msra.mxu0 %v2199
      %2295 = vmatpush.msra.mxu0 %v2198
      %2296 = vmatmul.f32.gmra.mxu0 %v368
      %v2297 = vpop.f32.mrf.mxu0
      %v2298 = vadd.f32 0.0, %v2297
      %2299 = vmatmul.f32.gmra.mxu0 %v369
      %v2300 = vpop.f32.mrf.mxu0
      %v2301 = vadd.f32 0.0, %v2300
      %2302 = vmatmul.f32.gmra.mxu0 %v370
      %v2303 = vpop.f32.mrf.mxu0
      %v2304 = vadd.f32 0.0, %v2303
      %2305 = vmatmul.f32.gmra.mxu0 %v371
      %v2306 = vpop.f32.mrf.mxu0
      %v2307 = vadd.f32 0.0, %v2306
      %2308 = vmatmul.f32.gmra.mxu0 %v372
      %v2309 = vpop.f32.mrf.mxu0
      %v2310 = vadd.f32 0.0, %v2309
      %2311 = vmatmul.f32.gmra.mxu0 %v373
      %v2312 = vpop.f32.mrf.mxu0
      %v2313 = vadd.f32 0.0, %v2312
      %2314 = vmatmul.f32.gmra.mxu0 %v374
      %v2315 = vpop.f32.mrf.mxu0
      %v2316 = vadd.f32 0.0, %v2315
      %2317 = vmatmul.f32.gmra.mxu0 %v375
      %v2318 = vpop.f32.mrf.mxu0
      %v2319 = vadd.f32 0.0, %v2318
      %2320 = vmatmul.f32.gmra.mxu0 %v376
      %v2321 = vpop.f32.mrf.mxu0
      %v2322 = vadd.f32 0.0, %v2321
      %2323 = vmatmul.f32.gmra.mxu0 %v377
      %v2324 = vpop.f32.mrf.mxu0
      %v2325 = vadd.f32 0.0, %v2324
      %2326 = vmatmul.f32.gmra.mxu0 %v378
      %v2327 = vpop.f32.mrf.mxu0
      %v2328 = vadd.f32 0.0, %v2327
      %2329 = vmatmul.f32.gmra.mxu0 %v379
      %v2330 = vpop.f32.mrf.mxu0
      %v2331 = vadd.f32 0.0, %v2330
      %2332 = vmatmul.f32.gmra.mxu0 %v380
      %v2333 = vpop.f32.mrf.mxu0
      %v2334 = vadd.f32 0.0, %v2333
      %2335 = vmatmul.f32.gmra.mxu0 %v381
      %v2336 = vpop.f32.mrf.mxu0
      %v2337 = vadd.f32 0.0, %v2336
      %2338 = vmatmul.f32.gmra.mxu0 %v382
      %v2339 = vpop.f32.mrf.mxu0
      %v2340 = vadd.f32 0.0, %v2339
      %2341 = vmatmul.f32.gmra.mxu0 %v383
      %v2342 = vpop.f32.mrf.mxu0
      %v2343 = vadd.f32 0.0, %v2342
      %2344 = vmatmul.f32.gmra.mxu0 %v384
      %v2345 = vpop.f32.mrf.mxu0
      %v2346 = vadd.f32 0.0, %v2345
      %2347 = vmatmul.f32.gmra.mxu0 %v385
      %v2348 = vpop.f32.mrf.mxu0
      %v2349 = vadd.f32 0.0, %v2348
      %2350 = vmatmul.f32.gmra.mxu0 %v386
      %v2351 = vpop.f32.mrf.mxu0
      %v2352 = vadd.f32 0.0, %v2351
      %2353 = vmatmul.f32.gmra.mxu0 %v387
      %v2354 = vpop.f32.mrf.mxu0
      %v2355 = vadd.f32 0.0, %v2354
      %2356 = vmatmul.f32.gmra.mxu0 %v388
      %v2357 = vpop.f32.mrf.mxu0
      %v2358 = vadd.f32 0.0, %v2357
      %2359 = vmatmul.f32.gmra.mxu0 %v389
      %v2360 = vpop.f32.mrf.mxu0
      %v2361 = vadd.f32 0.0, %v2360
      %2362 = vmatmul.f32.gmra.mxu0 %v390
      %v2363 = vpop.f32.mrf.mxu0
      %v2364 = vadd.f32 0.0, %v2363
      %2365 = vmatmul.f32.gmra.mxu0 %v391
      %v2366 = vpop.f32.mrf.mxu0
      %v2367 = vadd.f32 0.0, %v2366
      %2368 = vmatmul.f32.gmra.mxu0 %v392
      %v2369 = vpop.f32.mrf.mxu0
      %v2370 = vadd.f32 0.0, %v2369
      %2371 = vmatmul.f32.gmra.mxu0 %v393
      %v2372 = vpop.f32.mrf.mxu0
      %v2373 = vadd.f32 0.0, %v2372
      %2374 = vmatmul.f32.gmra.mxu0 %v394
      %v2375 = vpop.f32.mrf.mxu0
      %v2376 = vadd.f32 0.0, %v2375
      %2377 = vmatmul.f32.gmra.mxu0 %v395
      %v2378 = vpop.f32.mrf.mxu0
      %v2379 = vadd.f32 0.0, %v2378
      %2380 = vmatmul.f32.gmra.mxu0 %v396
      %v2381 = vpop.f32.mrf.mxu0
      %v2382 = vadd.f32 0.0, %v2381
      %2383 = vmatmul.f32.gmra.mxu0 %v397
      %v2384 = vpop.f32.mrf.mxu0
      %v2385 = vadd.f32 0.0, %v2384
      %2386 = vmatmul.f32.gmra.mxu0 %v398
      %v2387 = vpop.f32.mrf.mxu0
      %v2388 = vadd.f32 0.0, %v2387
      %2389 = vmatmul.f32.gmra.mxu0 %v399
      %v2390 = vpop.f32.mrf.mxu0
      %v2391 = vadd.f32 0.0, %v2390
      %2392 = vdwg.mxu0
      %2393 = vmatpush.msra.mxu0 0.0
      %2394 = vmatpush.msra.mxu0 0.0
      %2395 = vmatpush.msra.mxu0 0.0
      %2396 = vmatpush.msra.mxu0 0.0
      %2397 = vmatpush.msra.mxu0 0.0
      %2398 = vmatpush.msra.mxu0 0.0
      %2399 = vmatpush.msra.mxu0 0.0
      %2400 = vmatpush.msra.mxu0 0.0
      %2401 = vmatpush.msra.mxu0 0.0
      %2402 = vmatpush.msra.mxu0 0.0
      %2403 = vmatpush.msra.mxu0 0.0
      %2404 = vmatpush.msra.mxu0 0.0
      %2405 = vmatpush.msra.mxu0 0.0
      %2406 = vmatpush.msra.mxu0 0.0
      %2407 = vmatpush.msra.mxu0 0.0
      %2408 = vmatpush.msra.mxu0 0.0
      %2409 = vmatmul.f32.gmra.mxu0 %v368
      %v2410 = vpop.f32.mrf.mxu0
      %v2411 = vadd.f32 0.0, %v2410
      %2412 = vmatmul.f32.gmra.mxu0 %v369
      %v2413 = vpop.f32.mrf.mxu0
      %v2414 = vadd.f32 0.0, %v2413
      %2415 = vmatmul.f32.gmra.mxu0 %v370
      %v2416 = vpop.f32.mrf.mxu0
      %v2417 = vadd.f32 0.0, %v2416
      %2418 = vmatmul.f32.gmra.mxu0 %v371
      %v2419 = vpop.f32.mrf.mxu0
      %v2420 = vadd.f32 0.0, %v2419
      %2421 = vmatmul.f32.gmra.mxu0 %v372
      %v2422 = vpop.f32.mrf.mxu0
      %v2423 = vadd.f32 0.0, %v2422
      %2424 = vmatmul.f32.gmra.mxu0 %v373
      %v2425 = vpop.f32.mrf.mxu0
      %v2426 = vadd.f32 0.0, %v2425
      %2427 = vmatmul.f32.gmra.mxu0 %v374
      %v2428 = vpop.f32.mrf.mxu0
      %v2429 = vadd.f32 0.0, %v2428
      %2430 = vmatmul.f32.gmra.mxu0 %v375
      %v2431 = vpop.f32.mrf.mxu0
      %v2432 = vadd.f32 0.0, %v2431
      %2433 = vmatmul.f32.gmra.mxu0 %v376
      %v2434 = vpop.f32.mrf.mxu0
      %v2435 = vadd.f32 0.0, %v2434
      %2436 = vmatmul.f32.gmra.mxu0 %v377
      %v2437 = vpop.f32.mrf.mxu0
      %v2438 = vadd.f32 0.0, %v2437
      %2439 = vmatmul.f32.gmra.mxu0 %v378
      %v2440 = vpop.f32.mrf.mxu0
      %v2441 = vadd.f32 0.0, %v2440
      %2442 = vmatmul.f32.gmra.mxu0 %v379
      %v2443 = vpop.f32.mrf.mxu0
      %v2444 = vadd.f32 0.0, %v2443
      %2445 = vmatmul.f32.gmra.mxu0 %v380
      %v2446 = vpop.f32.mrf.mxu0
      %v2447 = vadd.f32 0.0, %v2446
      %2448 = vmatmul.f32.gmra.mxu0 %v381
      %v2449 = vpop.f32.mrf.mxu0
      %v2450 = vadd.f32 0.0, %v2449
      %2451 = vmatmul.f32.gmra.mxu0 %v382
      %v2452 = vpop.f32.mrf.mxu0
      %v2453 = vadd.f32 0.0, %v2452
      %2454 = vmatmul.f32.gmra.mxu0 %v383
      %v2455 = vpop.f32.mrf.mxu0
      %v2456 = vadd.f32 0.0, %v2455
      %2457 = vmatmul.f32.gmra.mxu0 %v384
      %v2458 = vpop.f32.mrf.mxu0
      %v2459 = vadd.f32 0.0, %v2458
      %2460 = vmatmul.f32.gmra.mxu0 %v385
      %v2461 = vpop.f32.mrf.mxu0
      %v2462 = vadd.f32 0.0, %v2461
      %2463 = vmatmul.f32.gmra.mxu0 %v386
      %v2464 = vpop.f32.mrf.mxu0
      %v2465 = vadd.f32 0.0, %v2464
      %2466 = vmatmul.f32.gmra.mxu0 %v387
      %v2467 = vpop.f32.mrf.mxu0
      %v2468 = vadd.f32 0.0, %v2467
      %2469 = vmatmul.f32.gmra.mxu0 %v388
      %v2470 = vpop.f32.mrf.mxu0
      %v2471 = vadd.f32 0.0, %v2470
      %2472 = vmatmul.f32.gmra.mxu0 %v389
      %v2473 = vpop.f32.mrf.mxu0
      %v2474 = vadd.f32 0.0, %v2473
      %2475 = vmatmul.f32.gmra.mxu0 %v390
      %v2476 = vpop.f32.mrf.mxu0
      %v2477 = vadd.f32 0.0, %v2476
      %2478 = vmatmul.f32.gmra.mxu0 %v391
      %v2479 = vpop.f32.mrf.mxu0
      %v2480 = vadd.f32 0.0, %v2479
      %2481 = vmatmul.f32.gmra.mxu0 %v392
      %v2482 = vpop.f32.mrf.mxu0
      %v2483 = vadd.f32 0.0, %v2482
      %2484 = vmatmul.f32.gmra.mxu0 %v393
      %v2485 = vpop.f32.mrf.mxu0
      %v2486 = vadd.f32 0.0, %v2485
      %2487 = vmatmul.f32.gmra.mxu0 %v394
      %v2488 = vpop.f32.mrf.mxu0
      %v2489 = vadd.f32 0.0, %v2488
      %2490 = vmatmul.f32.gmra.mxu0 %v395
      %v2491 = vpop.f32.mrf.mxu0
      %v2492 = vadd.f32 0.0, %v2491
      %2493 = vmatmul.f32.gmra.mxu0 %v396
      %v2494 = vpop.f32.mrf.mxu0
      %v2495 = vadd.f32 0.0, %v2494
      %2496 = vmatmul.f32.gmra.mxu0 %v397
      %v2497 = vpop.f32.mrf.mxu0
      %v2498 = vadd.f32 0.0, %v2497
      %2499 = vmatmul.f32.gmra.mxu0 %v398
      %v2500 = vpop.f32.mrf.mxu0
      %v2501 = vadd.f32 0.0, %v2500
      %2502 = vmatmul.f32.gmra.mxu0 %v399
      %v2503 = vpop.f32.mrf.mxu0
      %v2504 = vadd.f32 0.0, %v2503
      %2505 = vdwg.mxu0
      %v2506 = vsub.f32 %v2298, %v2459
      %v2507 = vsub.f32 %v2301, %v2462
      %v2508 = vsub.f32 %v2304, %v2465
      %v2509 = vsub.f32 %v2307, %v2468
      %v2510 = vsub.f32 %v2310, %v2471
      %v2511 = vsub.f32 %v2313, %v2474
      %v2512 = vsub.f32 %v2316, %v2477
      %v2513 = vsub.f32 %v2319, %v2480
      %v2514 = vsub.f32 %v2322, %v2483
      %v2515 = vsub.f32 %v2325, %v2486
      %v2516 = vsub.f32 %v2328, %v2489
      %v2517 = vsub.f32 %v2331, %v2492
      %v2518 = vsub.f32 %v2334, %v2495
      %v2519 = vsub.f32 %v2337, %v2498
      %v2520 = vsub.f32 %v2340, %v2501
      %v2521 = vsub.f32 %v2343, %v2504
      %v2522 = vadd.f32 %v2411, %v2346
      %v2523 = vadd.f32 %v2414, %v2349
      %v2524 = vadd.f32 %v2417, %v2352
      %v2525 = vadd.f32 %v2420, %v2355
      %v2526 = vadd.f32 %v2423, %v2358
      %v2527 = vadd.f32 %v2426, %v2361
      %v2528 = vadd.f32 %v2429, %v2364
      %v2529 = vadd.f32 %v2432, %v2367
      %v2530 = vadd.f32 %v2435, %v2370
      %v2531 = vadd.f32 %v2438, %v2373
      %v2532 = vadd.f32 %v2441, %v2376
      %v2533 = vadd.f32 %v2444, %v2379
      %v2534 = vadd.f32 %v2447, %v2382
      %v2535 = vadd.f32 %v2450, %v2385
      %v2536 = vadd.f32 %v2453, %v2388
      %v2537 = vadd.f32 %v2456, %v2391
      %2538 = vmatpush.msra.mxu0 %v1370
      %2539 = vmatpush.msra.mxu0 %v1368
      %2540 = vmatpush.msra.mxu0 %v1366
      %2541 = vmatpush.msra.mxu0 %v1364
      %2542 = vmatpush.msra.mxu0 %v1362
      %2543 = vmatpush.msra.mxu0 %v1360
      %2544 = vmatpush.msra.mxu0 %v1358
      %2545 = vmatpush.msra.mxu0 %v1356
      %2546 = vmatpush.msra.mxu0 %v1354
      %2547 = vmatpush.msra.mxu0 %v1352
      %2548 = vmatpush.msra.mxu0 %v1350
      %2549 = vmatpush.msra.mxu0 %v1348
      %2550 = vmatpush.msra.mxu0 %v1346
      %2551 = vmatpush.msra.mxu0 %v1344
      %2552 = vmatpush.msra.mxu0 %v1342
      %2553 = vmatpush.msra.mxu0 %v1340
      %2554 = vmatmul.f32.gmra.mxu0 %v2506
      %v2555 = vpop.f32.mrf.mxu0
      %v2556 = vadd.f32 0.0, %v2555
      %2557 = vmatmul.f32.gmra.mxu0 %v2507
      %v2558 = vpop.f32.mrf.mxu0
      %v2559 = vadd.f32 0.0, %v2558
      %2560 = vmatmul.f32.gmra.mxu0 %v2508
      %v2561 = vpop.f32.mrf.mxu0
      %v2562 = vadd.f32 0.0, %v2561
      %2563 = vmatmul.f32.gmra.mxu0 %v2509
      %v2564 = vpop.f32.mrf.mxu0
      %v2565 = vadd.f32 0.0, %v2564
      %2566 = vmatmul.f32.gmra.mxu0 %v2510
      %v2567 = vpop.f32.mrf.mxu0
      %v2568 = vadd.f32 0.0, %v2567
      %2569 = vmatmul.f32.gmra.mxu0 %v2511
      %v2570 = vpop.f32.mrf.mxu0
      %v2571 = vadd.f32 0.0, %v2570
      %2572 = vmatmul.f32.gmra.mxu0 %v2512
      %v2573 = vpop.f32.mrf.mxu0
      %v2574 = vadd.f32 0.0, %v2573
      %2575 = vmatmul.f32.gmra.mxu0 %v2513
      %v2576 = vpop.f32.mrf.mxu0
      %v2577 = vadd.f32 0.0, %v2576
      %2578 = vmatmul.f32.gmra.mxu0 %v2514
      %v2579 = vpop.f32.mrf.mxu0
      %v2580 = vadd.f32 0.0, %v2579
      %2581 = vmatmul.f32.gmra.mxu0 %v2515
      %v2582 = vpop.f32.mrf.mxu0
      %v2583 = vadd.f32 0.0, %v2582
      %2584 = vmatmul.f32.gmra.mxu0 %v2516
      %v2585 = vpop.f32.mrf.mxu0
      %v2586 = vadd.f32 0.0, %v2585
      %2587 = vmatmul.f32.gmra.mxu0 %v2517
      %v2588 = vpop.f32.mrf.mxu0
      %v2589 = vadd.f32 0.0, %v2588
      %2590 = vmatmul.f32.gmra.mxu0 %v2518
      %v2591 = vpop.f32.mrf.mxu0
      %v2592 = vadd.f32 0.0, %v2591
      %2593 = vmatmul.f32.gmra.mxu0 %v2519
      %v2594 = vpop.f32.mrf.mxu0
      %v2595 = vadd.f32 0.0, %v2594
      %2596 = vmatmul.f32.gmra.mxu0 %v2520
      %v2597 = vpop.f32.mrf.mxu0
      %v2598 = vadd.f32 0.0, %v2597
      %2599 = vmatmul.f32.gmra.mxu0 %v2521
      %v2600 = vpop.f32.mrf.mxu0
      %v2601 = vadd.f32 0.0, %v2600
      %2602 = vmatmul.f32.gmra.mxu0 %v2522
      %v2603 = vpop.f32.mrf.mxu0
      %v2604 = vadd.f32 0.0, %v2603
      %2605 = vmatmul.f32.gmra.mxu0 %v2523
      %v2606 = vpop.f32.mrf.mxu0
      %v2607 = vadd.f32 0.0, %v2606
      %2608 = vmatmul.f32.gmra.mxu0 %v2524
      %v2609 = vpop.f32.mrf.mxu0
      %v2610 = vadd.f32 0.0, %v2609
      %2611 = vmatmul.f32.gmra.mxu0 %v2525
      %v2612 = vpop.f32.mrf.mxu0
      %v2613 = vadd.f32 0.0, %v2612
      %2614 = vmatmul.f32.gmra.mxu0 %v2526
      %v2615 = vpop.f32.mrf.mxu0
      %v2616 = vadd.f32 0.0, %v2615
      %2617 = vmatmul.f32.gmra.mxu0 %v2527
      %v2618 = vpop.f32.mrf.mxu0
      %v2619 = vadd.f32 0.0, %v2618
      %2620 = vmatmul.f32.gmra.mxu0 %v2528
      %v2621 = vpop.f32.mrf.mxu0
      %v2622 = vadd.f32 0.0, %v2621
      %2623 = vmatmul.f32.gmra.mxu0 %v2529
      %v2624 = vpop.f32.mrf.mxu0
      %v2625 = vadd.f32 0.0, %v2624
      %2626 = vmatmul.f32.gmra.mxu0 %v2530
      %v2627 = vpop.f32.mrf.mxu0
      %v2628 = vadd.f32 0.0, %v2627
      %2629 = vmatmul.f32.gmra.mxu0 %v2531
      %v2630 = vpop.f32.mrf.mxu0
      %v2631 = vadd.f32 0.0, %v2630
      %2632 = vmatmul.f32.gmra.mxu0 %v2532
      %v2633 = vpop.f32.mrf.mxu0
      %v2634 = vadd.f32 0.0, %v2633
      %2635 = vmatmul.f32.gmra.mxu0 %v2533
      %v2636 = vpop.f32.mrf.mxu0
      %v2637 = vadd.f32 0.0, %v2636
      %2638 = vmatmul.f32.gmra.mxu0 %v2534
      %v2639 = vpop.f32.mrf.mxu0
      %v2640 = vadd.f32 0.0, %v2639
      %2641 = vmatmul.f32.gmra.mxu0 %v2535
      %v2642 = vpop.f32.mrf.mxu0
      %v2643 = vadd.f32 0.0, %v2642
      %2644 = vmatmul.f32.gmra.mxu0 %v2536
      %v2645 = vpop.f32.mrf.mxu0
      %v2646 = vadd.f32 0.0, %v2645
      %2647 = vmatmul.f32.gmra.mxu0 %v2537
      %v2648 = vpop.f32.mrf.mxu0
      %v2649 = vadd.f32 0.0, %v2648
      %2650 = vdwg.mxu0
      %2651 = vmatpush.msra.mxu0 %v1371
      %2652 = vmatpush.msra.mxu0 %v1369
      %2653 = vmatpush.msra.mxu0 %v1367
      %2654 = vmatpush.msra.mxu0 %v1365
      %2655 = vmatpush.msra.mxu0 %v1363
      %2656 = vmatpush.msra.mxu0 %v1361
      %2657 = vmatpush.msra.mxu0 %v1359
      %2658 = vmatpush.msra.mxu0 %v1357
      %2659 = vmatpush.msra.mxu0 %v1355
      %2660 = vmatpush.msra.mxu0 %v1353
      %2661 = vmatpush.msra.mxu0 %v1351
      %2662 = vmatpush.msra.mxu0 %v1349
      %2663 = vmatpush.msra.mxu0 %v1347
      %2664 = vmatpush.msra.mxu0 %v1345
      %2665 = vmatpush.msra.mxu0 %v1343
      %2666 = vmatpush.msra.mxu0 %v1341
      %2667 = vmatmul.f32.gmra.mxu0 %v2506
      %v2668 = vpop.f32.mrf.mxu0
      %v2669 = vadd.f32 0.0, %v2668
      %2670 = vmatmul.f32.gmra.mxu0 %v2507
      %v2671 = vpop.f32.mrf.mxu0
      %v2672 = vadd.f32 0.0, %v2671
      %2673 = vmatmul.f32.gmra.mxu0 %v2508
      %v2674 = vpop.f32.mrf.mxu0
      %v2675 = vadd.f32 0.0, %v2674
      %2676 = vmatmul.f32.gmra.mxu0 %v2509
      %v2677 = vpop.f32.mrf.mxu0
      %v2678 = vadd.f32 0.0, %v2677
      %2679 = vmatmul.f32.gmra.mxu0 %v2510
      %v2680 = vpop.f32.mrf.mxu0
      %v2681 = vadd.f32 0.0, %v2680
      %2682 = vmatmul.f32.gmra.mxu0 %v2511
      %v2683 = vpop.f32.mrf.mxu0
      %v2684 = vadd.f32 0.0, %v2683
      %2685 = vmatmul.f32.gmra.mxu0 %v2512
      %v2686 = vpop.f32.mrf.mxu0
      %v2687 = vadd.f32 0.0, %v2686
      %2688 = vmatmul.f32.gmra.mxu0 %v2513
      %v2689 = vpop.f32.mrf.mxu0
      %v2690 = vadd.f32 0.0, %v2689
      %2691 = vmatmul.f32.gmra.mxu0 %v2514
      %v2692 = vpop.f32.mrf.mxu0
      %v2693 = vadd.f32 0.0, %v2692
      %2694 = vmatmul.f32.gmra.mxu0 %v2515
      %v2695 = vpop.f32.mrf.mxu0
      %v2696 = vadd.f32 0.0, %v2695
      %2697 = vmatmul.f32.gmra.mxu0 %v2516
      %v2698 = vpop.f32.mrf.mxu0
      %v2699 = vadd.f32 0.0, %v2698
      %2700 = vmatmul.f32.gmra.mxu0 %v2517
      %v2701 = vpop.f32.mrf.mxu0
      %v2702 = vadd.f32 0.0, %v2701
      %2703 = vmatmul.f32.gmra.mxu0 %v2518
      %v2704 = vpop.f32.mrf.mxu0
      %v2705 = vadd.f32 0.0, %v2704
      %2706 = vmatmul.f32.gmra.mxu0 %v2519
      %v2707 = vpop.f32.mrf.mxu0
      %v2708 = vadd.f32 0.0, %v2707
      %2709 = vmatmul.f32.gmra.mxu0 %v2520
      %v2710 = vpop.f32.mrf.mxu0
      %v2711 = vadd.f32 0.0, %v2710
      %2712 = vmatmul.f32.gmra.mxu0 %v2521
      %v2713 = vpop.f32.mrf.mxu0
      %v2714 = vadd.f32 0.0, %v2713
      %2715 = vmatmul.f32.gmra.mxu0 %v2522
      %v2716 = vpop.f32.mrf.mxu0
      %v2717 = vadd.f32 0.0, %v2716
      %2718 = vmatmul.f32.gmra.mxu0 %v2523
      %v2719 = vpop.f32.mrf.mxu0
      %v2720 = vadd.f32 0.0, %v2719
      %2721 = vmatmul.f32.gmra.mxu0 %v2524
      %v2722 = vpop.f32.mrf.mxu0
      %v2723 = vadd.f32 0.0, %v2722
      %2724 = vmatmul.f32.gmra.mxu0 %v2525
      %v2725 = vpop.f32.mrf.mxu0
      %v2726 = vadd.f32 0.0, %v2725
      %2727 = vmatmul.f32.gmra.mxu0 %v2526
      %v2728 = vpop.f32.mrf.mxu0
      %v2729 = vadd.f32 0.0, %v2728
      %2730 = vmatmul.f32.gmra.mxu0 %v2527
      %v2731 = vpop.f32.mrf.mxu0
      %v2732 = vadd.f32 0.0, %v2731
      %2733 = vmatmul.f32.gmra.mxu0 %v2528
      %v2734 = vpop.f32.mrf.mxu0
      %v2735 = vadd.f32 0.0, %v2734
      %2736 = vmatmul.f32.gmra.mxu0 %v2529
      %v2737 = vpop.f32.mrf.mxu0
      %v2738 = vadd.f32 0.0, %v2737
      %2739 = vmatmul.f32.gmra.mxu0 %v2530
      %v2740 = vpop.f32.mrf.mxu0
      %v2741 = vadd.f32 0.0, %v2740
      %2742 = vmatmul.f32.gmra.mxu0 %v2531
      %v2743 = vpop.f32.mrf.mxu0
      %v2744 = vadd.f32 0.0, %v2743
      %2745 = vmatmul.f32.gmra.mxu0 %v2532
      %v2746 = vpop.f32.mrf.mxu0
      %v2747 = vadd.f32 0.0, %v2746
      %2748 = vmatmul.f32.gmra.mxu0 %v2533
      %v2749 = vpop.f32.mrf.mxu0
      %v2750 = vadd.f32 0.0, %v2749
      %2751 = vmatmul.f32.gmra.mxu0 %v2534
      %v2752 = vpop.f32.mrf.mxu0
      %v2753 = vadd.f32 0.0, %v2752
      %2754 = vmatmul.f32.gmra.mxu0 %v2535
      %v2755 = vpop.f32.mrf.mxu0
      %v2756 = vadd.f32 0.0, %v2755
      %2757 = vmatmul.f32.gmra.mxu0 %v2536
      %v2758 = vpop.f32.mrf.mxu0
      %v2759 = vadd.f32 0.0, %v2758
      %2760 = vmatmul.f32.gmra.mxu0 %v2537
      %v2761 = vpop.f32.mrf.mxu0
      %v2762 = vadd.f32 0.0, %v2761
      %2763 = vdwg.mxu0
      %v2764 = vsub.f32 %v2556, %v2717
      %v2765 = vsub.f32 %v2559, %v2720
      %v2766 = vsub.f32 %v2562, %v2723
      %v2767 = vsub.f32 %v2565, %v2726
      %v2768 = vsub.f32 %v2568, %v2729
      %v2769 = vsub.f32 %v2571, %v2732
      %v2770 = vsub.f32 %v2574, %v2735
      %v2771 = vsub.f32 %v2577, %v2738
      %v2772 = vsub.f32 %v2580, %v2741
      %v2773 = vsub.f32 %v2583, %v2744
      %v2774 = vsub.f32 %v2586, %v2747
      %v2775 = vsub.f32 %v2589, %v2750
      %v2776 = vsub.f32 %v2592, %v2753
      %v2777 = vsub.f32 %v2595, %v2756
      %v2778 = vsub.f32 %v2598, %v2759
      %v2779 = vsub.f32 %v2601, %v2762
      %v2780 = vadd.f32 %v2669, %v2604
      %v2781 = vadd.f32 %v2672, %v2607
      %v2782 = vadd.f32 %v2675, %v2610
      %v2783 = vadd.f32 %v2678, %v2613
      %v2784 = vadd.f32 %v2681, %v2616
      %v2785 = vadd.f32 %v2684, %v2619
      %v2786 = vadd.f32 %v2687, %v2622
      %v2787 = vadd.f32 %v2690, %v2625
      %v2788 = vadd.f32 %v2693, %v2628
      %v2789 = vadd.f32 %v2696, %v2631
      %v2790 = vadd.f32 %v2699, %v2634
      %v2791 = vadd.f32 %v2702, %v2637
      %v2792 = vadd.f32 %v2705, %v2640
      %v2793 = vadd.f32 %v2708, %v2643
      %v2794 = vadd.f32 %v2711, %v2646
      %v2795 = vadd.f32 %v2714, %v2649
      %2796 = vmatpush.msra.mxu0 %v2779
      %2797 = vmatpush.msra.mxu0 %v2778
      %2798 = vmatpush.msra.mxu0 %v2777
      %2799 = vmatpush.msra.mxu0 %v2776
      %2800 = vmatpush.msra.mxu0 %v2775
      %2801 = vmatpush.msra.mxu0 %v2774
      %2802 = vmatpush.msra.mxu0 %v2773
      %2803 = vmatpush.msra.mxu0 %v2772
      %2804 = vmatpush.msra.mxu0 %v2771
      %2805 = vmatpush.msra.mxu0 %v2770
      %2806 = vmatpush.msra.mxu0 %v2769
      %2807 = vmatpush.msra.mxu0 %v2768
      %2808 = vmatpush.msra.mxu0 %v2767
      %2809 = vmatpush.msra.mxu0 %v2766
      %2810 = vmatpush.msra.mxu0 %v2765
      %2811 = vmatpush.msra.mxu0 %v2764
      %2812 = vmatmul.f32.gmra.mxu0 %v2231
      %v2813 = vpop.f32.mrf.mxu0
      %v2814 = vadd.f32 0.0, %v2813
      %2815 = vmatmul.f32.gmra.mxu0 %v2232
      %v2816 = vpop.f32.mrf.mxu0
      %v2817 = vadd.f32 0.0, %v2816
      %2818 = vmatmul.f32.gmra.mxu0 %v2233
      %v2819 = vpop.f32.mrf.mxu0
      %v2820 = vadd.f32 0.0, %v2819
      %2821 = vmatmul.f32.gmra.mxu0 %v2234
      %v2822 = vpop.f32.mrf.mxu0
      %v2823 = vadd.f32 0.0, %v2822
      %2824 = vmatmul.f32.gmra.mxu0 %v2235
      %v2825 = vpop.f32.mrf.mxu0
      %v2826 = vadd.f32 0.0, %v2825
      %2827 = vmatmul.f32.gmra.mxu0 %v2236
      %v2828 = vpop.f32.mrf.mxu0
      %v2829 = vadd.f32 0.0, %v2828
      %2830 = vmatmul.f32.gmra.mxu0 %v2237
      %v2831 = vpop.f32.mrf.mxu0
      %v2832 = vadd.f32 0.0, %v2831
      %2833 = vmatmul.f32.gmra.mxu0 %v2238
      %v2834 = vpop.f32.mrf.mxu0
      %v2835 = vadd.f32 0.0, %v2834
      %2836 = vmatmul.f32.gmra.mxu0 %v2239
      %v2837 = vpop.f32.mrf.mxu0
      %v2838 = vadd.f32 0.0, %v2837
      %2839 = vmatmul.f32.gmra.mxu0 %v2240
      %v2840 = vpop.f32.mrf.mxu0
      %v2841 = vadd.f32 0.0, %v2840
      %2842 = vmatmul.f32.gmra.mxu0 %v2241
      %v2843 = vpop.f32.mrf.mxu0
      %v2844 = vadd.f32 0.0, %v2843
      %2845 = vmatmul.f32.gmra.mxu0 %v2242
      %v2846 = vpop.f32.mrf.mxu0
      %v2847 = vadd.f32 0.0, %v2846
      %2848 = vmatmul.f32.gmra.mxu0 %v2243
      %v2849 = vpop.f32.mrf.mxu0
      %v2850 = vadd.f32 0.0, %v2849
      %2851 = vmatmul.f32.gmra.mxu0 %v2244
      %v2852 = vpop.f32.mrf.mxu0
      %v2853 = vadd.f32 0.0, %v2852
      %2854 = vmatmul.f32.gmra.mxu0 %v2245
      %v2855 = vpop.f32.mrf.mxu0
      %v2856 = vadd.f32 0.0, %v2855
      %2857 = vmatmul.f32.gmra.mxu0 %v2246
      %v2858 = vpop.f32.mrf.mxu0
      %v2859 = vadd.f32 0.0, %v2858
      %2860 = vdwg.mxu0
      %2861 = vmatpush.msra.mxu0 %v2795
      %2862 = vmatpush.msra.mxu0 %v2794
      %2863 = vmatpush.msra.mxu0 %v2793
      %2864 = vmatpush.msra.mxu0 %v2792
      %2865 = vmatpush.msra.mxu0 %v2791
      %2866 = vmatpush.msra.mxu0 %v2790
      %2867 = vmatpush.msra.mxu0 %v2789
      %2868 = vmatpush.msra.mxu0 %v2788
      %2869 = vmatpush.msra.mxu0 %v2787
      %2870 = vmatpush.msra.mxu0 %v2786
      %2871 = vmatpush.msra.mxu0 %v2785
      %2872 = vmatpush.msra.mxu0 %v2784
      %2873 = vmatpush.msra.mxu0 %v2783
      %2874 = vmatpush.msra.mxu0 %v2782
      %2875 = vmatpush.msra.mxu0 %v2781
      %2876 = vmatpush.msra.mxu0 %v2780
      %2877 = vmatmul.f32.gmra.mxu0 %v2231
      %v2878 = vpop.f32.mrf.mxu0
      %v2879 = vadd.f32 0.0, %v2878
      %2880 = vmatmul.f32.gmra.mxu0 %v2232
      %v2881 = vpop.f32.mrf.mxu0
      %v2882 = vadd.f32 0.0, %v2881
      %2883 = vmatmul.f32.gmra.mxu0 %v2233
      %v2884 = vpop.f32.mrf.mxu0
      %v2885 = vadd.f32 0.0, %v2884
      %2886 = vmatmul.f32.gmra.mxu0 %v2234
      %v2887 = vpop.f32.mrf.mxu0
      %v2888 = vadd.f32 0.0, %v2887
      %2889 = vmatmul.f32.gmra.mxu0 %v2235
      %v2890 = vpop.f32.mrf.mxu0
      %v2891 = vadd.f32 0.0, %v2890
      %2892 = vmatmul.f32.gmra.mxu0 %v2236
      %v2893 = vpop.f32.mrf.mxu0
      %v2894 = vadd.f32 0.0, %v2893
      %2895 = vmatmul.f32.gmra.mxu0 %v2237
      %v2896 = vpop.f32.mrf.mxu0
      %v2897 = vadd.f32 0.0, %v2896
      %2898 = vmatmul.f32.gmra.mxu0 %v2238
      %v2899 = vpop.f32.mrf.mxu0
      %v2900 = vadd.f32 0.0, %v2899
      %2901 = vmatmul.f32.gmra.mxu0 %v2239
      %v2902 = vpop.f32.mrf.mxu0
      %v2903 = vadd.f32 0.0, %v2902
      %2904 = vmatmul.f32.gmra.mxu0 %v2240
      %v2905 = vpop.f32.mrf.mxu0
      %v2906 = vadd.f32 0.0, %v2905
      %2907 = vmatmul.f32.gmra.mxu0 %v2241
      %v2908 = vpop.f32.mrf.mxu0
      %v2909 = vadd.f32 0.0, %v2908
      %2910 = vmatmul.f32.gmra.mxu0 %v2242
      %v2911 = vpop.f32.mrf.mxu0
      %v2912 = vadd.f32 0.0, %v2911
      %2913 = vmatmul.f32.gmra.mxu0 %v2243
      %v2914 = vpop.f32.mrf.mxu0
      %v2915 = vadd.f32 0.0, %v2914
      %2916 = vmatmul.f32.gmra.mxu0 %v2244
      %v2917 = vpop.f32.mrf.mxu0
      %v2918 = vadd.f32 0.0, %v2917
      %2919 = vmatmul.f32.gmra.mxu0 %v2245
      %v2920 = vpop.f32.mrf.mxu0
      %v2921 = vadd.f32 0.0, %v2920
      %2922 = vmatmul.f32.gmra.mxu0 %v2246
      %v2923 = vpop.f32.mrf.mxu0
      %v2924 = vadd.f32 0.0, %v2923
      %2925 = vdwg.mxu0
      %2926 = vrot.lane.b32.xlu0 %v2814, 64
      %v2927 = vpop.permute.xlu0 %2926
      %2928 = vrot.lane.b32.xlu0 %v2817, 64
      %v2929 = vpop.permute.xlu0 %2928
      %2930 = vrot.lane.b32.xlu0 %v2820, 64
      %v2931 = vpop.permute.xlu0 %2930
      %2932 = vrot.lane.b32.xlu0 %v2823, 64
      %v2933 = vpop.permute.xlu0 %2932
      %2934 = vrot.lane.b32.xlu0 %v2826, 64
      %v2935 = vpop.permute.xlu0 %2934
      %2936 = vrot.lane.b32.xlu0 %v2829, 64
      %v2937 = vpop.permute.xlu0 %2936
      %2938 = vrot.lane.b32.xlu0 %v2832, 64
      %v2939 = vpop.permute.xlu0 %2938
      %2940 = vrot.lane.b32.xlu0 %v2835, 64
      %v2941 = vpop.permute.xlu0 %2940
      %2942 = vrot.lane.b32.xlu0 %v2838, 64
      %v2943 = vpop.permute.xlu0 %2942
      %2944 = vrot.lane.b32.xlu0 %v2841, 64
      %v2945 = vpop.permute.xlu0 %2944
      %2946 = vrot.lane.b32.xlu0 %v2844, 64
      %v2947 = vpop.permute.xlu0 %2946
      %2948 = vrot.lane.b32.xlu0 %v2847, 64
      %v2949 = vpop.permute.xlu0 %2948
      %2950 = vrot.lane.b32.xlu0 %v2850, 64
      %v2951 = vpop.permute.xlu0 %2950
      %2952 = vrot.lane.b32.xlu0 %v2853, 64
      %v2953 = vpop.permute.xlu0 %2952
      %2954 = vrot.lane.b32.xlu0 %v2856, 64
      %v2955 = vpop.permute.xlu0 %2954
      %2956 = vrot.lane.b32.xlu0 %v2859, 64
      %v2957 = vpop.permute.xlu0 %2956
      %v2958 = vsel %vm222, %v2927, %v2814
      %v2959 = vsel %vm223, %v2929, %v2817
      %v2960 = vsel %vm224, %v2931, %v2820
      %v2961 = vsel %vm225, %v2933, %v2823
      %v2962 = vsel %vm226, %v2935, %v2826
      %v2963 = vsel %vm227, %v2937, %v2829
      %v2964 = vsel %vm228, %v2939, %v2832
      %v2965 = vsel %vm229, %v2941, %v2835
      %v2966 = vsel %vm230, %v2943, %v2838
      %v2967 = vsel %vm231, %v2945, %v2841
      %v2968 = vsel %vm232, %v2947, %v2844
      %v2969 = vsel %vm233, %v2949, %v2847
      %v2970 = vsel %vm234, %v2951, %v2850
      %v2971 = vsel %vm235, %v2953, %v2853
      %v2972 = vsel %vm236, %v2955, %v2856
      %v2973 = vsel %vm237, %v2957, %v2859
      %2974 = vrot.lane.b32.xlu0 %v2879, 64
      %v2975 = vpop.permute.xlu0 %2974
      %2976 = vrot.lane.b32.xlu0 %v2882, 64
      %v2977 = vpop.permute.xlu0 %2976
      %2978 = vrot.lane.b32.xlu0 %v2885, 64
      %v2979 = vpop.permute.xlu0 %2978
      %2980 = vrot.lane.b32.xlu0 %v2888, 64
      %v2981 = vpop.permute.xlu0 %2980
      %2982 = vrot.lane.b32.xlu0 %v2891, 64
      %v2983 = vpop.permute.xlu0 %2982
      %2984 = vrot.lane.b32.xlu0 %v2894, 64
      %v2985 = vpop.permute.xlu0 %2984
      %2986 = vrot.lane.b32.xlu0 %v2897, 64
      %v2987 = vpop.permute.xlu0 %2986
      %2988 = vrot.lane.b32.xlu0 %v2900, 64
      %v2989 = vpop.permute.xlu0 %2988
      %2990 = vrot.lane.b32.xlu0 %v2903, 64
      %v2991 = vpop.permute.xlu0 %2990
      %2992 = vrot.lane.b32.xlu0 %v2906, 64
      %v2993 = vpop.permute.xlu0 %2992
      %2994 = vrot.lane.b32.xlu0 %v2909, 64
      %v2995 = vpop.permute.xlu0 %2994
      %2996 = vrot.lane.b32.xlu0 %v2912, 64
      %v2997 = vpop.permute.xlu0 %2996
      %2998 = vrot.lane.b32.xlu0 %v2915, 64
      %v2999 = vpop.permute.xlu0 %2998
      %3000 = vrot.lane.b32.xlu0 %v2918, 64
      %v3001 = vpop.permute.xlu0 %3000
      %3002 = vrot.lane.b32.xlu0 %v2921, 64
      %v3003 = vpop.permute.xlu0 %3002
      %3004 = vrot.lane.b32.xlu0 %v2924, 64
      %v3005 = vpop.permute.xlu0 %3004
      %v3006 = vsel %vm222, %v2975, %v2879
      %v3007 = vsel %vm223, %v2977, %v2882
      %v3008 = vsel %vm224, %v2979, %v2885
      %v3009 = vsel %vm225, %v2981, %v2888
      %v3010 = vsel %vm226, %v2983, %v2891
      %v3011 = vsel %vm227, %v2985, %v2894
      %v3012 = vsel %vm228, %v2987, %v2897
      %v3013 = vsel %vm229, %v2989, %v2900
      %v3014 = vsel %vm230, %v2991, %v2903
      %v3015 = vsel %vm231, %v2993, %v2906
      %v3016 = vsel %vm232, %v2995, %v2909
      %v3017 = vsel %vm233, %v2997, %v2912
      %v3018 = vsel %vm234, %v2999, %v2915
      %v3019 = vsel %vm235, %v3001, %v2918
      %v3020 = vsel %vm236, %v3003, %v2921
      %v3021 = vsel %vm237, %v3005, %v2924
      %3022 = vmatpush.msra.mxu0 %v2279
      %3023 = vmatpush.msra.mxu0 %v2278
      %3024 = vmatpush.msra.mxu0 %v2277
      %3025 = vmatpush.msra.mxu0 %v2276
      %3026 = vmatpush.msra.mxu0 %v2275
      %3027 = vmatpush.msra.mxu0 %v2274
      %3028 = vmatpush.msra.mxu0 %v2273
      %3029 = vmatpush.msra.mxu0 %v2272
      %3030 = vmatpush.msra.mxu0 %v2271
      %3031 = vmatpush.msra.mxu0 %v2270
      %3032 = vmatpush.msra.mxu0 %v2269
      %3033 = vmatpush.msra.mxu0 %v2268
      %3034 = vmatpush.msra.mxu0 %v2267
      %3035 = vmatpush.msra.mxu0 %v2266
      %3036 = vmatpush.msra.mxu0 %v2265
      %3037 = vmatpush.msra.mxu0 %v2264
      %3038 = vmatmul.f32.gmra.mxu0 %v2958
      %v3039 = vpop.f32.mrf.mxu0
      %v3040 = vadd.f32 0.0, %v3039
      %3041 = vmatmul.f32.gmra.mxu0 %v2959
      %v3042 = vpop.f32.mrf.mxu0
      %v3043 = vadd.f32 0.0, %v3042
      %3044 = vmatmul.f32.gmra.mxu0 %v2960
      %v3045 = vpop.f32.mrf.mxu0
      %v3046 = vadd.f32 0.0, %v3045
      %3047 = vmatmul.f32.gmra.mxu0 %v2961
      %v3048 = vpop.f32.mrf.mxu0
      %v3049 = vadd.f32 0.0, %v3048
      %3050 = vmatmul.f32.gmra.mxu0 %v2962
      %v3051 = vpop.f32.mrf.mxu0
      %v3052 = vadd.f32 0.0, %v3051
      %3053 = vmatmul.f32.gmra.mxu0 %v2963
      %v3054 = vpop.f32.mrf.mxu0
      %v3055 = vadd.f32 0.0, %v3054
      %3056 = vmatmul.f32.gmra.mxu0 %v2964
      %v3057 = vpop.f32.mrf.mxu0
      %v3058 = vadd.f32 0.0, %v3057
      %3059 = vmatmul.f32.gmra.mxu0 %v2965
      %v3060 = vpop.f32.mrf.mxu0
      %v3061 = vadd.f32 0.0, %v3060
      %3062 = vmatmul.f32.gmra.mxu0 %v2966
      %v3063 = vpop.f32.mrf.mxu0
      %v3064 = vadd.f32 0.0, %v3063
      %3065 = vmatmul.f32.gmra.mxu0 %v2967
      %v3066 = vpop.f32.mrf.mxu0
      %v3067 = vadd.f32 0.0, %v3066
      %3068 = vmatmul.f32.gmra.mxu0 %v2968
      %v3069 = vpop.f32.mrf.mxu0
      %v3070 = vadd.f32 0.0, %v3069
      %3071 = vmatmul.f32.gmra.mxu0 %v2969
      %v3072 = vpop.f32.mrf.mxu0
      %v3073 = vadd.f32 0.0, %v3072
      %3074 = vmatmul.f32.gmra.mxu0 %v2970
      %v3075 = vpop.f32.mrf.mxu0
      %v3076 = vadd.f32 0.0, %v3075
      %3077 = vmatmul.f32.gmra.mxu0 %v2971
      %v3078 = vpop.f32.mrf.mxu0
      %v3079 = vadd.f32 0.0, %v3078
      %3080 = vmatmul.f32.gmra.mxu0 %v2972
      %v3081 = vpop.f32.mrf.mxu0
      %v3082 = vadd.f32 0.0, %v3081
      %3083 = vmatmul.f32.gmra.mxu0 %v2973
      %v3084 = vpop.f32.mrf.mxu0
      %v3085 = vadd.f32 0.0, %v3084
      %3086 = vmatmul.f32.gmra.mxu0 %v3006
      %v3087 = vpop.f32.mrf.mxu0
      %v3088 = vadd.f32 0.0, %v3087
      %3089 = vmatmul.f32.gmra.mxu0 %v3007
      %v3090 = vpop.f32.mrf.mxu0
      %v3091 = vadd.f32 0.0, %v3090
      %3092 = vmatmul.f32.gmra.mxu0 %v3008
      %v3093 = vpop.f32.mrf.mxu0
      %v3094 = vadd.f32 0.0, %v3093
      %3095 = vmatmul.f32.gmra.mxu0 %v3009
      %v3096 = vpop.f32.mrf.mxu0
      %v3097 = vadd.f32 0.0, %v3096
      %3098 = vmatmul.f32.gmra.mxu0 %v3010
      %v3099 = vpop.f32.mrf.mxu0
      %v3100 = vadd.f32 0.0, %v3099
      %3101 = vmatmul.f32.gmra.mxu0 %v3011
      %v3102 = vpop.f32.mrf.mxu0
      %v3103 = vadd.f32 0.0, %v3102
      %3104 = vmatmul.f32.gmra.mxu0 %v3012
      %v3105 = vpop.f32.mrf.mxu0
      %v3106 = vadd.f32 0.0, %v3105
      %3107 = vmatmul.f32.gmra.mxu0 %v3013
      %v3108 = vpop.f32.mrf.mxu0
      %v3109 = vadd.f32 0.0, %v3108
      %3110 = vmatmul.f32.gmra.mxu0 %v3014
      %v3111 = vpop.f32.mrf.mxu0
      %v3112 = vadd.f32 0.0, %v3111
      %3113 = vmatmul.f32.gmra.mxu0 %v3015
      %v3114 = vpop.f32.mrf.mxu0
      %v3115 = vadd.f32 0.0, %v3114
      %3116 = vmatmul.f32.gmra.mxu0 %v3016
      %v3117 = vpop.f32.mrf.mxu0
      %v3118 = vadd.f32 0.0, %v3117
      %3119 = vmatmul.f32.gmra.mxu0 %v3017
      %v3120 = vpop.f32.mrf.mxu0
      %v3121 = vadd.f32 0.0, %v3120
      %3122 = vmatmul.f32.gmra.mxu0 %v3018
      %v3123 = vpop.f32.mrf.mxu0
      %v3124 = vadd.f32 0.0, %v3123
      %3125 = vmatmul.f32.gmra.mxu0 %v3019
      %v3126 = vpop.f32.mrf.mxu0
      %v3127 = vadd.f32 0.0, %v3126
      %3128 = vmatmul.f32.gmra.mxu0 %v3020
      %v3129 = vpop.f32.mrf.mxu0
      %v3130 = vadd.f32 0.0, %v3129
      %3131 = vmatmul.f32.gmra.mxu0 %v3021
      %v3132 = vpop.f32.mrf.mxu0
      %v3133 = vadd.f32 0.0, %v3132
      %3134 = vdwg.mxu0
      %v3135 = vsel %vm238, %v3064, %v3040
      %v3136 = vsel %vm238, %v3067, %v3043
      %v3137 = vsel %vm238, %v3070, %v3046
      %v3138 = vsel %vm238, %v3073, %v3049
      %v3139 = vsel %vm238, %v3076, %v3052
      %v3140 = vsel %vm238, %v3079, %v3055
      %v3141 = vsel %vm238, %v3082, %v3058
      %v3142 = vsel %vm238, %v3085, %v3061
      %v3143 = vsel %vm238, %v3040, %v3064
      %v3144 = vsel %vm238, %v3043, %v3067
      %v3145 = vsel %vm238, %v3046, %v3070
      %v3146 = vsel %vm238, %v3049, %v3073
      %v3147 = vsel %vm238, %v3052, %v3076
      %v3148 = vsel %vm238, %v3055, %v3079
      %v3149 = vsel %vm238, %v3058, %v3082
      %v3150 = vsel %vm238, %v3061, %v3085
      %v3151 = vsel %vm238, %v3112, %v3088
      %v3152 = vsel %vm238, %v3115, %v3091
      %v3153 = vsel %vm238, %v3118, %v3094
      %v3154 = vsel %vm238, %v3121, %v3097
      %v3155 = vsel %vm238, %v3124, %v3100
      %v3156 = vsel %vm238, %v3127, %v3103
      %v3157 = vsel %vm238, %v3130, %v3106
      %v3158 = vsel %vm238, %v3133, %v3109
      %v3159 = vsel %vm238, %v3088, %v3112
      %v3160 = vsel %vm238, %v3091, %v3115
      %v3161 = vsel %vm238, %v3094, %v3118
      %v3162 = vsel %vm238, %v3097, %v3121
      %v3163 = vsel %vm238, %v3100, %v3124
      %v3164 = vsel %vm238, %v3103, %v3127
      %v3165 = vsel %vm238, %v3106, %v3130
      %v3166 = vsel %vm238, %v3109, %v3133
      %3167 = vmatpush.msra.mxu0 %v3150
      %3168 = vmatpush.msra.mxu0 %v3149
      %3169 = vmatpush.msra.mxu0 %v3148
      %3170 = vmatpush.msra.mxu0 %v3147
      %3171 = vmatpush.msra.mxu0 %v3146
      %3172 = vmatpush.msra.mxu0 %v3145
      %3173 = vmatpush.msra.mxu0 %v3144
      %3174 = vmatpush.msra.mxu0 %v3143
      %3175 = vmatpush.msra.mxu0 %v3142
      %3176 = vmatpush.msra.mxu0 %v3141
      %3177 = vmatpush.msra.mxu0 %v3140
      %3178 = vmatpush.msra.mxu0 %v3139
      %3179 = vmatpush.msra.mxu0 %v3138
      %3180 = vmatpush.msra.mxu0 %v3137
      %3181 = vmatpush.msra.mxu0 %v3136
      %3182 = vmatpush.msra.mxu0 %v3135
      %3183 = vmatmul.f32.gmra.mxu0 %v530
      %v3184 = vpop.f32.mrf.mxu0
      %v3185 = vadd.f32 0.0, %v3184
      %3186 = vmatmul.f32.gmra.mxu0 %v531
      %v3187 = vpop.f32.mrf.mxu0
      %v3188 = vadd.f32 0.0, %v3187
      %3189 = vmatmul.f32.gmra.mxu0 %v532
      %v3190 = vpop.f32.mrf.mxu0
      %v3191 = vadd.f32 0.0, %v3190
      %3192 = vmatmul.f32.gmra.mxu0 %v533
      %v3193 = vpop.f32.mrf.mxu0
      %v3194 = vadd.f32 0.0, %v3193
      %3195 = vmatmul.f32.gmra.mxu0 %v534
      %v3196 = vpop.f32.mrf.mxu0
      %v3197 = vadd.f32 0.0, %v3196
      %3198 = vmatmul.f32.gmra.mxu0 %v535
      %v3199 = vpop.f32.mrf.mxu0
      %v3200 = vadd.f32 0.0, %v3199
      %3201 = vmatmul.f32.gmra.mxu0 %v536
      %v3202 = vpop.f32.mrf.mxu0
      %v3203 = vadd.f32 0.0, %v3202
      %3204 = vmatmul.f32.gmra.mxu0 %v537
      %v3205 = vpop.f32.mrf.mxu0
      %v3206 = vadd.f32 0.0, %v3205
      %3207 = vmatmul.f32.gmra.mxu0 %v538
      %v3208 = vpop.f32.mrf.mxu0
      %v3209 = vadd.f32 0.0, %v3208
      %3210 = vmatmul.f32.gmra.mxu0 %v539
      %v3211 = vpop.f32.mrf.mxu0
      %v3212 = vadd.f32 0.0, %v3211
      %3213 = vmatmul.f32.gmra.mxu0 %v540
      %v3214 = vpop.f32.mrf.mxu0
      %v3215 = vadd.f32 0.0, %v3214
      %3216 = vmatmul.f32.gmra.mxu0 %v541
      %v3217 = vpop.f32.mrf.mxu0
      %v3218 = vadd.f32 0.0, %v3217
      %3219 = vmatmul.f32.gmra.mxu0 %v542
      %v3220 = vpop.f32.mrf.mxu0
      %v3221 = vadd.f32 0.0, %v3220
      %3222 = vmatmul.f32.gmra.mxu0 %v543
      %v3223 = vpop.f32.mrf.mxu0
      %v3224 = vadd.f32 0.0, %v3223
      %3225 = vmatmul.f32.gmra.mxu0 %v544
      %v3226 = vpop.f32.mrf.mxu0
      %v3227 = vadd.f32 0.0, %v3226
      %3228 = vmatmul.f32.gmra.mxu0 %v545
      %v3229 = vpop.f32.mrf.mxu0
      %v3230 = vadd.f32 0.0, %v3229
      %3231 = vmatmul.f32.gmra.mxu0 %v546
      %v3232 = vpop.f32.mrf.mxu0
      %v3233 = vadd.f32 0.0, %v3232
      %3234 = vmatmul.f32.gmra.mxu0 %v547
      %v3235 = vpop.f32.mrf.mxu0
      %v3236 = vadd.f32 0.0, %v3235
      %3237 = vmatmul.f32.gmra.mxu0 %v548
      %v3238 = vpop.f32.mrf.mxu0
      %v3239 = vadd.f32 0.0, %v3238
      %3240 = vmatmul.f32.gmra.mxu0 %v549
      %v3241 = vpop.f32.mrf.mxu0
      %v3242 = vadd.f32 0.0, %v3241
      %3243 = vmatmul.f32.gmra.mxu0 %v550
      %v3244 = vpop.f32.mrf.mxu0
      %v3245 = vadd.f32 0.0, %v3244
      %3246 = vmatmul.f32.gmra.mxu0 %v551
      %v3247 = vpop.f32.mrf.mxu0
      %v3248 = vadd.f32 0.0, %v3247
      %3249 = vmatmul.f32.gmra.mxu0 %v552
      %v3250 = vpop.f32.mrf.mxu0
      %v3251 = vadd.f32 0.0, %v3250
      %3252 = vmatmul.f32.gmra.mxu0 %v553
      %v3253 = vpop.f32.mrf.mxu0
      %v3254 = vadd.f32 0.0, %v3253
      %3255 = vmatmul.f32.gmra.mxu0 %v554
      %v3256 = vpop.f32.mrf.mxu0
      %v3257 = vadd.f32 0.0, %v3256
      %3258 = vmatmul.f32.gmra.mxu0 %v555
      %v3259 = vpop.f32.mrf.mxu0
      %v3260 = vadd.f32 0.0, %v3259
      %3261 = vmatmul.f32.gmra.mxu0 %v556
      %v3262 = vpop.f32.mrf.mxu0
      %v3263 = vadd.f32 0.0, %v3262
      %3264 = vmatmul.f32.gmra.mxu0 %v557
      %v3265 = vpop.f32.mrf.mxu0
      %v3266 = vadd.f32 0.0, %v3265
      %3267 = vmatmul.f32.gmra.mxu0 %v558
      %v3268 = vpop.f32.mrf.mxu0
      %v3269 = vadd.f32 0.0, %v3268
      %3270 = vmatmul.f32.gmra.mxu0 %v559
      %v3271 = vpop.f32.mrf.mxu0
      %v3272 = vadd.f32 0.0, %v3271
      %3273 = vmatmul.f32.gmra.mxu0 %v560
      %v3274 = vpop.f32.mrf.mxu0
      %v3275 = vadd.f32 0.0, %v3274
      %3276 = vmatmul.f32.gmra.mxu0 %v561
      %v3277 = vpop.f32.mrf.mxu0
      %v3278 = vadd.f32 0.0, %v3277
      %3279 = vdwg.mxu0
      %3280 = vmatpush.msra.mxu0 %v3166
      %3281 = vmatpush.msra.mxu0 %v3165
      %3282 = vmatpush.msra.mxu0 %v3164
      %3283 = vmatpush.msra.mxu0 %v3163
      %3284 = vmatpush.msra.mxu0 %v3162
      %3285 = vmatpush.msra.mxu0 %v3161
      %3286 = vmatpush.msra.mxu0 %v3160
      %3287 = vmatpush.msra.mxu0 %v3159
      %3288 = vmatpush.msra.mxu0 %v3158
      %3289 = vmatpush.msra.mxu0 %v3157
      %3290 = vmatpush.msra.mxu0 %v3156
      %3291 = vmatpush.msra.mxu0 %v3155
      %3292 = vmatpush.msra.mxu0 %v3154
      %3293 = vmatpush.msra.mxu0 %v3153
      %3294 = vmatpush.msra.mxu0 %v3152
      %3295 = vmatpush.msra.mxu0 %v3151
      %3296 = vmatmul.f32.gmra.mxu0 %v530
      %v3297 = vpop.f32.mrf.mxu0
      %v3298 = vadd.f32 0.0, %v3297
      %3299 = vmatmul.f32.gmra.mxu0 %v531
      %v3300 = vpop.f32.mrf.mxu0
      %v3301 = vadd.f32 0.0, %v3300
      %3302 = vmatmul.f32.gmra.mxu0 %v532
      %v3303 = vpop.f32.mrf.mxu0
      %v3304 = vadd.f32 0.0, %v3303
      %3305 = vmatmul.f32.gmra.mxu0 %v533
      %v3306 = vpop.f32.mrf.mxu0
      %v3307 = vadd.f32 0.0, %v3306
      %3308 = vmatmul.f32.gmra.mxu0 %v534
      %v3309 = vpop.f32.mrf.mxu0
      %v3310 = vadd.f32 0.0, %v3309
      %3311 = vmatmul.f32.gmra.mxu0 %v535
      %v3312 = vpop.f32.mrf.mxu0
      %v3313 = vadd.f32 0.0, %v3312
      %3314 = vmatmul.f32.gmra.mxu0 %v536
      %v3315 = vpop.f32.mrf.mxu0
      %v3316 = vadd.f32 0.0, %v3315
      %3317 = vmatmul.f32.gmra.mxu0 %v537
      %v3318 = vpop.f32.mrf.mxu0
      %v3319 = vadd.f32 0.0, %v3318
      %3320 = vmatmul.f32.gmra.mxu0 %v538
      %v3321 = vpop.f32.mrf.mxu0
      %v3322 = vadd.f32 0.0, %v3321
      %3323 = vmatmul.f32.gmra.mxu0 %v539
      %v3324 = vpop.f32.mrf.mxu0
      %v3325 = vadd.f32 0.0, %v3324
      %3326 = vmatmul.f32.gmra.mxu0 %v540
      %v3327 = vpop.f32.mrf.mxu0
      %v3328 = vadd.f32 0.0, %v3327
      %3329 = vmatmul.f32.gmra.mxu0 %v541
      %v3330 = vpop.f32.mrf.mxu0
      %v3331 = vadd.f32 0.0, %v3330
      %3332 = vmatmul.f32.gmra.mxu0 %v542
      %v3333 = vpop.f32.mrf.mxu0
      %v3334 = vadd.f32 0.0, %v3333
      %3335 = vmatmul.f32.gmra.mxu0 %v543
      %v3336 = vpop.f32.mrf.mxu0
      %v3337 = vadd.f32 0.0, %v3336
      %3338 = vmatmul.f32.gmra.mxu0 %v544
      %v3339 = vpop.f32.mrf.mxu0
      %v3340 = vadd.f32 0.0, %v3339
      %3341 = vmatmul.f32.gmra.mxu0 %v545
      %v3342 = vpop.f32.mrf.mxu0
      %v3343 = vadd.f32 0.0, %v3342
      %3344 = vmatmul.f32.gmra.mxu0 %v546
      %v3345 = vpop.f32.mrf.mxu0
      %v3346 = vadd.f32 0.0, %v3345
      %3347 = vmatmul.f32.gmra.mxu0 %v547
      %v3348 = vpop.f32.mrf.mxu0
      %v3349 = vadd.f32 0.0, %v3348
      %3350 = vmatmul.f32.gmra.mxu0 %v548
      %v3351 = vpop.f32.mrf.mxu0
      %v3352 = vadd.f32 0.0, %v3351
      %3353 = vmatmul.f32.gmra.mxu0 %v549
      %v3354 = vpop.f32.mrf.mxu0
      %v3355 = vadd.f32 0.0, %v3354
      %3356 = vmatmul.f32.gmra.mxu0 %v550
      %v3357 = vpop.f32.mrf.mxu0
      %v3358 = vadd.f32 0.0, %v3357
      %3359 = vmatmul.f32.gmra.mxu0 %v551
      %v3360 = vpop.f32.mrf.mxu0
      %v3361 = vadd.f32 0.0, %v3360
      %3362 = vmatmul.f32.gmra.mxu0 %v552
      %v3363 = vpop.f32.mrf.mxu0
      %v3364 = vadd.f32 0.0, %v3363
      %3365 = vmatmul.f32.gmra.mxu0 %v553
      %v3366 = vpop.f32.mrf.mxu0
      %v3367 = vadd.f32 0.0, %v3366
      %3368 = vmatmul.f32.gmra.mxu0 %v554
      %v3369 = vpop.f32.mrf.mxu0
      %v3370 = vadd.f32 0.0, %v3369
      %3371 = vmatmul.f32.gmra.mxu0 %v555
      %v3372 = vpop.f32.mrf.mxu0
      %v3373 = vadd.f32 0.0, %v3372
      %3374 = vmatmul.f32.gmra.mxu0 %v556
      %v3375 = vpop.f32.mrf.mxu0
      %v3376 = vadd.f32 0.0, %v3375
      %3377 = vmatmul.f32.gmra.mxu0 %v557
      %v3378 = vpop.f32.mrf.mxu0
      %v3379 = vadd.f32 0.0, %v3378
      %3380 = vmatmul.f32.gmra.mxu0 %v558
      %v3381 = vpop.f32.mrf.mxu0
      %v3382 = vadd.f32 0.0, %v3381
      %3383 = vmatmul.f32.gmra.mxu0 %v559
      %v3384 = vpop.f32.mrf.mxu0
      %v3385 = vadd.f32 0.0, %v3384
      %3386 = vmatmul.f32.gmra.mxu0 %v560
      %v3387 = vpop.f32.mrf.mxu0
      %v3388 = vadd.f32 0.0, %v3387
      %3389 = vmatmul.f32.gmra.mxu0 %v561
      %v3390 = vpop.f32.mrf.mxu0
      %v3391 = vadd.f32 0.0, %v3390
      %3392 = vdwg.mxu0
      %v3393 = vsub.f32 %v3185, %v3346
      %v3394 = vsub.f32 %v3188, %v3349
      %v3395 = vsub.f32 %v3191, %v3352
      %v3396 = vsub.f32 %v3194, %v3355
      %v3397 = vsub.f32 %v3197, %v3358
      %v3398 = vsub.f32 %v3200, %v3361
      %v3399 = vsub.f32 %v3203, %v3364
      %v3400 = vsub.f32 %v3206, %v3367
      %v3401 = vsub.f32 %v3209, %v3370
      %v3402 = vsub.f32 %v3212, %v3373
      %v3403 = vsub.f32 %v3215, %v3376
      %v3404 = vsub.f32 %v3218, %v3379
      %v3405 = vsub.f32 %v3221, %v3382
      %v3406 = vsub.f32 %v3224, %v3385
      %v3407 = vsub.f32 %v3227, %v3388
      %v3408 = vsub.f32 %v3230, %v3391
      %v3409 = vadd.f32 %v3298, %v3233
      %v3410 = vadd.f32 %v3301, %v3236
      %v3411 = vadd.f32 %v3304, %v3239
      %v3412 = vadd.f32 %v3307, %v3242
      %v3413 = vadd.f32 %v3310, %v3245
      %v3414 = vadd.f32 %v3313, %v3248
      %v3415 = vadd.f32 %v3316, %v3251
      %v3416 = vadd.f32 %v3319, %v3254
      %v3417 = vadd.f32 %v3322, %v3257
      %v3418 = vadd.f32 %v3325, %v3260
      %v3419 = vadd.f32 %v3328, %v3263
      %v3420 = vadd.f32 %v3331, %v3266
      %v3421 = vadd.f32 %v3334, %v3269
      %v3422 = vadd.f32 %v3337, %v3272
      %v3423 = vadd.f32 %v3340, %v3275
      %v3424 = vadd.f32 %v3343, %v3278
      %3425 = vmatpush.msra.mxu0 %v1532
      %3426 = vmatpush.msra.mxu0 %v1530
      %3427 = vmatpush.msra.mxu0 %v1528
      %3428 = vmatpush.msra.mxu0 %v1526
      %3429 = vmatpush.msra.mxu0 %v1524
      %3430 = vmatpush.msra.mxu0 %v1522
      %3431 = vmatpush.msra.mxu0 %v1520
      %3432 = vmatpush.msra.mxu0 %v1518
      %3433 = vmatpush.msra.mxu0 %v1516
      %3434 = vmatpush.msra.mxu0 %v1514
      %3435 = vmatpush.msra.mxu0 %v1512
      %3436 = vmatpush.msra.mxu0 %v1510
      %3437 = vmatpush.msra.mxu0 %v1508
      %3438 = vmatpush.msra.mxu0 %v1506
      %3439 = vmatpush.msra.mxu0 %v1504
      %3440 = vmatpush.msra.mxu0 %v1502
      %3441 = vmatmul.f32.gmra.mxu0 %v3393
      %v3442 = vpop.f32.mrf.mxu0
      %v3443 = vadd.f32 0.0, %v3442
      %3444 = vmatmul.f32.gmra.mxu0 %v3394
      %v3445 = vpop.f32.mrf.mxu0
      %v3446 = vadd.f32 0.0, %v3445
      %3447 = vmatmul.f32.gmra.mxu0 %v3395
      %v3448 = vpop.f32.mrf.mxu0
      %v3449 = vadd.f32 0.0, %v3448
      %3450 = vmatmul.f32.gmra.mxu0 %v3396
      %v3451 = vpop.f32.mrf.mxu0
      %v3452 = vadd.f32 0.0, %v3451
      %3453 = vmatmul.f32.gmra.mxu0 %v3397
      %v3454 = vpop.f32.mrf.mxu0
      %v3455 = vadd.f32 0.0, %v3454
      %3456 = vmatmul.f32.gmra.mxu0 %v3398
      %v3457 = vpop.f32.mrf.mxu0
      %v3458 = vadd.f32 0.0, %v3457
      %3459 = vmatmul.f32.gmra.mxu0 %v3399
      %v3460 = vpop.f32.mrf.mxu0
      %v3461 = vadd.f32 0.0, %v3460
      %3462 = vmatmul.f32.gmra.mxu0 %v3400
      %v3463 = vpop.f32.mrf.mxu0
      %v3464 = vadd.f32 0.0, %v3463
      %3465 = vmatmul.f32.gmra.mxu0 %v3401
      %v3466 = vpop.f32.mrf.mxu0
      %v3467 = vadd.f32 0.0, %v3466
      %3468 = vmatmul.f32.gmra.mxu0 %v3402
      %v3469 = vpop.f32.mrf.mxu0
      %v3470 = vadd.f32 0.0, %v3469
      %3471 = vmatmul.f32.gmra.mxu0 %v3403
      %v3472 = vpop.f32.mrf.mxu0
      %v3473 = vadd.f32 0.0, %v3472
      %3474 = vmatmul.f32.gmra.mxu0 %v3404
      %v3475 = vpop.f32.mrf.mxu0
      %v3476 = vadd.f32 0.0, %v3475
      %3477 = vmatmul.f32.gmra.mxu0 %v3405
      %v3478 = vpop.f32.mrf.mxu0
      %v3479 = vadd.f32 0.0, %v3478
      %3480 = vmatmul.f32.gmra.mxu0 %v3406
      %v3481 = vpop.f32.mrf.mxu0
      %v3482 = vadd.f32 0.0, %v3481
      %3483 = vmatmul.f32.gmra.mxu0 %v3407
      %v3484 = vpop.f32.mrf.mxu0
      %v3485 = vadd.f32 0.0, %v3484
      %3486 = vmatmul.f32.gmra.mxu0 %v3408
      %v3487 = vpop.f32.mrf.mxu0
      %v3488 = vadd.f32 0.0, %v3487
      %3489 = vmatmul.f32.gmra.mxu0 %v3409
      %v3490 = vpop.f32.mrf.mxu0
      %v3491 = vadd.f32 0.0, %v3490
      %3492 = vmatmul.f32.gmra.mxu0 %v3410
      %v3493 = vpop.f32.mrf.mxu0
      %v3494 = vadd.f32 0.0, %v3493
      %3495 = vmatmul.f32.gmra.mxu0 %v3411
      %v3496 = vpop.f32.mrf.mxu0
      %v3497 = vadd.f32 0.0, %v3496
      %3498 = vmatmul.f32.gmra.mxu0 %v3412
      %v3499 = vpop.f32.mrf.mxu0
      %v3500 = vadd.f32 0.0, %v3499
      %3501 = vmatmul.f32.gmra.mxu0 %v3413
      %v3502 = vpop.f32.mrf.mxu0
      %v3503 = vadd.f32 0.0, %v3502
      %3504 = vmatmul.f32.gmra.mxu0 %v3414
      %v3505 = vpop.f32.mrf.mxu0
      %v3506 = vadd.f32 0.0, %v3505
      %3507 = vmatmul.f32.gmra.mxu0 %v3415
      %v3508 = vpop.f32.mrf.mxu0
      %v3509 = vadd.f32 0.0, %v3508
      %3510 = vmatmul.f32.gmra.mxu0 %v3416
      %v3511 = vpop.f32.mrf.mxu0
      %v3512 = vadd.f32 0.0, %v3511
      %3513 = vmatmul.f32.gmra.mxu0 %v3417
      %v3514 = vpop.f32.mrf.mxu0
      %v3515 = vadd.f32 0.0, %v3514
      %3516 = vmatmul.f32.gmra.mxu0 %v3418
      %v3517 = vpop.f32.mrf.mxu0
      %v3518 = vadd.f32 0.0, %v3517
      %3519 = vmatmul.f32.gmra.mxu0 %v3419
      %v3520 = vpop.f32.mrf.mxu0
      %v3521 = vadd.f32 0.0, %v3520
      %3522 = vmatmul.f32.gmra.mxu0 %v3420
      %v3523 = vpop.f32.mrf.mxu0
      %v3524 = vadd.f32 0.0, %v3523
      %3525 = vmatmul.f32.gmra.mxu0 %v3421
      %v3526 = vpop.f32.mrf.mxu0
      %v3527 = vadd.f32 0.0, %v3526
      %3528 = vmatmul.f32.gmra.mxu0 %v3422
      %v3529 = vpop.f32.mrf.mxu0
      %v3530 = vadd.f32 0.0, %v3529
      %3531 = vmatmul.f32.gmra.mxu0 %v3423
      %v3532 = vpop.f32.mrf.mxu0
      %v3533 = vadd.f32 0.0, %v3532
      %3534 = vmatmul.f32.gmra.mxu0 %v3424
      %v3535 = vpop.f32.mrf.mxu0
      %v3536 = vadd.f32 0.0, %v3535
      %3537 = vdwg.mxu0
      %3538 = vmatpush.msra.mxu0 %v1533
      %3539 = vmatpush.msra.mxu0 %v1531
      %3540 = vmatpush.msra.mxu0 %v1529
      %3541 = vmatpush.msra.mxu0 %v1527
      %3542 = vmatpush.msra.mxu0 %v1525
      %3543 = vmatpush.msra.mxu0 %v1523
      %3544 = vmatpush.msra.mxu0 %v1521
      %3545 = vmatpush.msra.mxu0 %v1519
      %3546 = vmatpush.msra.mxu0 %v1517
      %3547 = vmatpush.msra.mxu0 %v1515
      %3548 = vmatpush.msra.mxu0 %v1513
      %3549 = vmatpush.msra.mxu0 %v1511
      %3550 = vmatpush.msra.mxu0 %v1509
      %3551 = vmatpush.msra.mxu0 %v1507
      %3552 = vmatpush.msra.mxu0 %v1505
      %3553 = vmatpush.msra.mxu0 %v1503
      %3554 = vmatmul.f32.gmra.mxu0 %v3393
      %v3555 = vpop.f32.mrf.mxu0
      %v3556 = vadd.f32 0.0, %v3555
      %3557 = vmatmul.f32.gmra.mxu0 %v3394
      %v3558 = vpop.f32.mrf.mxu0
      %v3559 = vadd.f32 0.0, %v3558
      %3560 = vmatmul.f32.gmra.mxu0 %v3395
      %v3561 = vpop.f32.mrf.mxu0
      %v3562 = vadd.f32 0.0, %v3561
      %3563 = vmatmul.f32.gmra.mxu0 %v3396
      %v3564 = vpop.f32.mrf.mxu0
      %v3565 = vadd.f32 0.0, %v3564
      %3566 = vmatmul.f32.gmra.mxu0 %v3397
      %v3567 = vpop.f32.mrf.mxu0
      %v3568 = vadd.f32 0.0, %v3567
      %3569 = vmatmul.f32.gmra.mxu0 %v3398
      %v3570 = vpop.f32.mrf.mxu0
      %v3571 = vadd.f32 0.0, %v3570
      %3572 = vmatmul.f32.gmra.mxu0 %v3399
      %v3573 = vpop.f32.mrf.mxu0
      %v3574 = vadd.f32 0.0, %v3573
      %3575 = vmatmul.f32.gmra.mxu0 %v3400
      %v3576 = vpop.f32.mrf.mxu0
      %v3577 = vadd.f32 0.0, %v3576
      %3578 = vmatmul.f32.gmra.mxu0 %v3401
      %v3579 = vpop.f32.mrf.mxu0
      %v3580 = vadd.f32 0.0, %v3579
      %3581 = vmatmul.f32.gmra.mxu0 %v3402
      %v3582 = vpop.f32.mrf.mxu0
      %v3583 = vadd.f32 0.0, %v3582
      %3584 = vmatmul.f32.gmra.mxu0 %v3403
      %v3585 = vpop.f32.mrf.mxu0
      %v3586 = vadd.f32 0.0, %v3585
      %3587 = vmatmul.f32.gmra.mxu0 %v3404
      %v3588 = vpop.f32.mrf.mxu0
      %v3589 = vadd.f32 0.0, %v3588
      %3590 = vmatmul.f32.gmra.mxu0 %v3405
      %v3591 = vpop.f32.mrf.mxu0
      %v3592 = vadd.f32 0.0, %v3591
      %3593 = vmatmul.f32.gmra.mxu0 %v3406
      %v3594 = vpop.f32.mrf.mxu0
      %v3595 = vadd.f32 0.0, %v3594
      %3596 = vmatmul.f32.gmra.mxu0 %v3407
      %v3597 = vpop.f32.mrf.mxu0
      %v3598 = vadd.f32 0.0, %v3597
      %3599 = vmatmul.f32.gmra.mxu0 %v3408
      %v3600 = vpop.f32.mrf.mxu0
      %v3601 = vadd.f32 0.0, %v3600
      %3602 = vmatmul.f32.gmra.mxu0 %v3409
      %v3603 = vpop.f32.mrf.mxu0
      %v3604 = vadd.f32 0.0, %v3603
      %3605 = vmatmul.f32.gmra.mxu0 %v3410
      %v3606 = vpop.f32.mrf.mxu0
      %v3607 = vadd.f32 0.0, %v3606
      %3608 = vmatmul.f32.gmra.mxu0 %v3411
      %v3609 = vpop.f32.mrf.mxu0
      %v3610 = vadd.f32 0.0, %v3609
      %3611 = vmatmul.f32.gmra.mxu0 %v3412
      %v3612 = vpop.f32.mrf.mxu0
      %v3613 = vadd.f32 0.0, %v3612
      %3614 = vmatmul.f32.gmra.mxu0 %v3413
      %v3615 = vpop.f32.mrf.mxu0
      %v3616 = vadd.f32 0.0, %v3615
      %3617 = vmatmul.f32.gmra.mxu0 %v3414
      %v3618 = vpop.f32.mrf.mxu0
      %v3619 = vadd.f32 0.0, %v3618
      %3620 = vmatmul.f32.gmra.mxu0 %v3415
      %v3621 = vpop.f32.mrf.mxu0
      %v3622 = vadd.f32 0.0, %v3621
      %3623 = vmatmul.f32.gmra.mxu0 %v3416
      %v3624 = vpop.f32.mrf.mxu0
      %v3625 = vadd.f32 0.0, %v3624
      %3626 = vmatmul.f32.gmra.mxu0 %v3417
      %v3627 = vpop.f32.mrf.mxu0
      %v3628 = vadd.f32 0.0, %v3627
      %3629 = vmatmul.f32.gmra.mxu0 %v3418
      %v3630 = vpop.f32.mrf.mxu0
      %v3631 = vadd.f32 0.0, %v3630
      %3632 = vmatmul.f32.gmra.mxu0 %v3419
      %v3633 = vpop.f32.mrf.mxu0
      %v3634 = vadd.f32 0.0, %v3633
      %3635 = vmatmul.f32.gmra.mxu0 %v3420
      %v3636 = vpop.f32.mrf.mxu0
      %v3637 = vadd.f32 0.0, %v3636
      %3638 = vmatmul.f32.gmra.mxu0 %v3421
      %v3639 = vpop.f32.mrf.mxu0
      %v3640 = vadd.f32 0.0, %v3639
      %3641 = vmatmul.f32.gmra.mxu0 %v3422
      %v3642 = vpop.f32.mrf.mxu0
      %v3643 = vadd.f32 0.0, %v3642
      %3644 = vmatmul.f32.gmra.mxu0 %v3423
      %v3645 = vpop.f32.mrf.mxu0
      %v3646 = vadd.f32 0.0, %v3645
      %3647 = vmatmul.f32.gmra.mxu0 %v3424
      %v3648 = vpop.f32.mrf.mxu0
      %v3649 = vadd.f32 0.0, %v3648
      %3650 = vdwg.mxu0
      %v3651 = vsub.f32 %v3443, %v3604
      %v3652 = vsub.f32 %v3446, %v3607
      %v3653 = vsub.f32 %v3449, %v3610
      %v3654 = vsub.f32 %v3452, %v3613
      %v3655 = vsub.f32 %v3455, %v3616
      %v3656 = vsub.f32 %v3458, %v3619
      %v3657 = vsub.f32 %v3461, %v3622
      %v3658 = vsub.f32 %v3464, %v3625
      %v3659 = vsub.f32 %v3467, %v3628
      %v3660 = vsub.f32 %v3470, %v3631
      %v3661 = vsub.f32 %v3473, %v3634
      %v3662 = vsub.f32 %v3476, %v3637
      %v3663 = vsub.f32 %v3479, %v3640
      %v3664 = vsub.f32 %v3482, %v3643
      %v3665 = vsub.f32 %v3485, %v3646
      %v3666 = vsub.f32 %v3488, %v3649
      %v3667 = vadd.f32 %v3556, %v3491
      %v3668 = vadd.f32 %v3559, %v3494
      %v3669 = vadd.f32 %v3562, %v3497
      %v3670 = vadd.f32 %v3565, %v3500
      %v3671 = vadd.f32 %v3568, %v3503
      %v3672 = vadd.f32 %v3571, %v3506
      %v3673 = vadd.f32 %v3574, %v3509
      %v3674 = vadd.f32 %v3577, %v3512
      %v3675 = vadd.f32 %v3580, %v3515
      %v3676 = vadd.f32 %v3583, %v3518
      %v3677 = vadd.f32 %v3586, %v3521
      %v3678 = vadd.f32 %v3589, %v3524
      %v3679 = vadd.f32 %v3592, %v3527
      %v3680 = vadd.f32 %v3595, %v3530
      %v3681 = vadd.f32 %v3598, %v3533
      %v3682 = vadd.f32 %v3601, %v3536
      %3683 = vmatpush.msra.mxu0 %v3666
      %3684 = vmatpush.msra.mxu0 %v3665
      %3685 = vmatpush.msra.mxu0 %v3664
      %3686 = vmatpush.msra.mxu0 %v3663
      %3687 = vmatpush.msra.mxu0 %v3662
      %3688 = vmatpush.msra.mxu0 %v3661
      %3689 = vmatpush.msra.mxu0 %v3660
      %3690 = vmatpush.msra.mxu0 %v3659
      %3691 = vmatpush.msra.mxu0 %v3658
      %3692 = vmatpush.msra.mxu0 %v3657
      %3693 = vmatpush.msra.mxu0 %v3656
      %3694 = vmatpush.msra.mxu0 %v3655
      %3695 = vmatpush.msra.mxu0 %v3654
      %3696 = vmatpush.msra.mxu0 %v3653
      %3697 = vmatpush.msra.mxu0 %v3652
      %3698 = vmatpush.msra.mxu0 %v3651
      %3699 = vmatmul.f32.gmra.mxu0 %v2231
      %v3700 = vpop.f32.mrf.mxu0
      %v3701 = vadd.f32 0.0, %v3700
      %3702 = vmatmul.f32.gmra.mxu0 %v2232
      %v3703 = vpop.f32.mrf.mxu0
      %v3704 = vadd.f32 0.0, %v3703
      %3705 = vmatmul.f32.gmra.mxu0 %v2233
      %v3706 = vpop.f32.mrf.mxu0
      %v3707 = vadd.f32 0.0, %v3706
      %3708 = vmatmul.f32.gmra.mxu0 %v2234
      %v3709 = vpop.f32.mrf.mxu0
      %v3710 = vadd.f32 0.0, %v3709
      %3711 = vmatmul.f32.gmra.mxu0 %v2235
      %v3712 = vpop.f32.mrf.mxu0
      %v3713 = vadd.f32 0.0, %v3712
      %3714 = vmatmul.f32.gmra.mxu0 %v2236
      %v3715 = vpop.f32.mrf.mxu0
      %v3716 = vadd.f32 0.0, %v3715
      %3717 = vmatmul.f32.gmra.mxu0 %v2237
      %v3718 = vpop.f32.mrf.mxu0
      %v3719 = vadd.f32 0.0, %v3718
      %3720 = vmatmul.f32.gmra.mxu0 %v2238
      %v3721 = vpop.f32.mrf.mxu0
      %v3722 = vadd.f32 0.0, %v3721
      %3723 = vmatmul.f32.gmra.mxu0 %v2239
      %v3724 = vpop.f32.mrf.mxu0
      %v3725 = vadd.f32 0.0, %v3724
      %3726 = vmatmul.f32.gmra.mxu0 %v2240
      %v3727 = vpop.f32.mrf.mxu0
      %v3728 = vadd.f32 0.0, %v3727
      %3729 = vmatmul.f32.gmra.mxu0 %v2241
      %v3730 = vpop.f32.mrf.mxu0
      %v3731 = vadd.f32 0.0, %v3730
      %3732 = vmatmul.f32.gmra.mxu0 %v2242
      %v3733 = vpop.f32.mrf.mxu0
      %v3734 = vadd.f32 0.0, %v3733
      %3735 = vmatmul.f32.gmra.mxu0 %v2243
      %v3736 = vpop.f32.mrf.mxu0
      %v3737 = vadd.f32 0.0, %v3736
      %3738 = vmatmul.f32.gmra.mxu0 %v2244
      %v3739 = vpop.f32.mrf.mxu0
      %v3740 = vadd.f32 0.0, %v3739
      %3741 = vmatmul.f32.gmra.mxu0 %v2245
      %v3742 = vpop.f32.mrf.mxu0
      %v3743 = vadd.f32 0.0, %v3742
      %3744 = vmatmul.f32.gmra.mxu0 %v2246
      %v3745 = vpop.f32.mrf.mxu0
      %v3746 = vadd.f32 0.0, %v3745
      %3747 = vdwg.mxu0
      %3748 = vmatpush.msra.mxu0 %v3682
      %3749 = vmatpush.msra.mxu0 %v3681
      %3750 = vmatpush.msra.mxu0 %v3680
      %3751 = vmatpush.msra.mxu0 %v3679
      %3752 = vmatpush.msra.mxu0 %v3678
      %3753 = vmatpush.msra.mxu0 %v3677
      %3754 = vmatpush.msra.mxu0 %v3676
      %3755 = vmatpush.msra.mxu0 %v3675
      %3756 = vmatpush.msra.mxu0 %v3674
      %3757 = vmatpush.msra.mxu0 %v3673
      %3758 = vmatpush.msra.mxu0 %v3672
      %3759 = vmatpush.msra.mxu0 %v3671
      %3760 = vmatpush.msra.mxu0 %v3670
      %3761 = vmatpush.msra.mxu0 %v3669
      %3762 = vmatpush.msra.mxu0 %v3668
      %3763 = vmatpush.msra.mxu0 %v3667
      %3764 = vmatmul.f32.gmra.mxu0 %v2231
      %v3765 = vpop.f32.mrf.mxu0
      %v3766 = vadd.f32 0.0, %v3765
      %3767 = vmatmul.f32.gmra.mxu0 %v2232
      %v3768 = vpop.f32.mrf.mxu0
      %v3769 = vadd.f32 0.0, %v3768
      %3770 = vmatmul.f32.gmra.mxu0 %v2233
      %v3771 = vpop.f32.mrf.mxu0
      %v3772 = vadd.f32 0.0, %v3771
      %3773 = vmatmul.f32.gmra.mxu0 %v2234
      %v3774 = vpop.f32.mrf.mxu0
      %v3775 = vadd.f32 0.0, %v3774
      %3776 = vmatmul.f32.gmra.mxu0 %v2235
      %v3777 = vpop.f32.mrf.mxu0
      %v3778 = vadd.f32 0.0, %v3777
      %3779 = vmatmul.f32.gmra.mxu0 %v2236
      %v3780 = vpop.f32.mrf.mxu0
      %v3781 = vadd.f32 0.0, %v3780
      %3782 = vmatmul.f32.gmra.mxu0 %v2237
      %v3783 = vpop.f32.mrf.mxu0
      %v3784 = vadd.f32 0.0, %v3783
      %3785 = vmatmul.f32.gmra.mxu0 %v2238
      %v3786 = vpop.f32.mrf.mxu0
      %v3787 = vadd.f32 0.0, %v3786
      %3788 = vmatmul.f32.gmra.mxu0 %v2239
      %v3789 = vpop.f32.mrf.mxu0
      %v3790 = vadd.f32 0.0, %v3789
      %3791 = vmatmul.f32.gmra.mxu0 %v2240
      %v3792 = vpop.f32.mrf.mxu0
      %v3793 = vadd.f32 0.0, %v3792
      %3794 = vmatmul.f32.gmra.mxu0 %v2241
      %v3795 = vpop.f32.mrf.mxu0
      %v3796 = vadd.f32 0.0, %v3795
      %3797 = vmatmul.f32.gmra.mxu0 %v2242
      %v3798 = vpop.f32.mrf.mxu0
      %v3799 = vadd.f32 0.0, %v3798
      %3800 = vmatmul.f32.gmra.mxu0 %v2243
      %v3801 = vpop.f32.mrf.mxu0
      %v3802 = vadd.f32 0.0, %v3801
      %3803 = vmatmul.f32.gmra.mxu0 %v2244
      %v3804 = vpop.f32.mrf.mxu0
      %v3805 = vadd.f32 0.0, %v3804
      %3806 = vmatmul.f32.gmra.mxu0 %v2245
      %v3807 = vpop.f32.mrf.mxu0
      %v3808 = vadd.f32 0.0, %v3807
      %3809 = vmatmul.f32.gmra.mxu0 %v2246
      %v3810 = vpop.f32.mrf.mxu0
      %v3811 = vadd.f32 0.0, %v3810
      %3812 = vdwg.mxu0
      %3813 = vrot.lane.b32.xlu0 %v3701, 64
      %v3814 = vpop.permute.xlu0 %3813
      %3815 = vrot.lane.b32.xlu0 %v3704, 64
      %v3816 = vpop.permute.xlu0 %3815
      %3817 = vrot.lane.b32.xlu0 %v3707, 64
      %v3818 = vpop.permute.xlu0 %3817
      %3819 = vrot.lane.b32.xlu0 %v3710, 64
      %v3820 = vpop.permute.xlu0 %3819
      %3821 = vrot.lane.b32.xlu0 %v3713, 64
      %v3822 = vpop.permute.xlu0 %3821
      %3823 = vrot.lane.b32.xlu0 %v3716, 64
      %v3824 = vpop.permute.xlu0 %3823
      %3825 = vrot.lane.b32.xlu0 %v3719, 64
      %v3826 = vpop.permute.xlu0 %3825
      %3827 = vrot.lane.b32.xlu0 %v3722, 64
      %v3828 = vpop.permute.xlu0 %3827
      %3829 = vrot.lane.b32.xlu0 %v3725, 64
      %v3830 = vpop.permute.xlu0 %3829
      %3831 = vrot.lane.b32.xlu0 %v3728, 64
      %v3832 = vpop.permute.xlu0 %3831
      %3833 = vrot.lane.b32.xlu0 %v3731, 64
      %v3834 = vpop.permute.xlu0 %3833
      %3835 = vrot.lane.b32.xlu0 %v3734, 64
      %v3836 = vpop.permute.xlu0 %3835
      %3837 = vrot.lane.b32.xlu0 %v3737, 64
      %v3838 = vpop.permute.xlu0 %3837
      %3839 = vrot.lane.b32.xlu0 %v3740, 64
      %v3840 = vpop.permute.xlu0 %3839
      %3841 = vrot.lane.b32.xlu0 %v3743, 64
      %v3842 = vpop.permute.xlu0 %3841
      %3843 = vrot.lane.b32.xlu0 %v3746, 64
      %v3844 = vpop.permute.xlu0 %3843
      %v3845 = vsel %vm222, %v3814, %v3701
      %v3846 = vsel %vm223, %v3816, %v3704
      %v3847 = vsel %vm224, %v3818, %v3707
      %v3848 = vsel %vm225, %v3820, %v3710
      %v3849 = vsel %vm226, %v3822, %v3713
      %v3850 = vsel %vm227, %v3824, %v3716
      %v3851 = vsel %vm228, %v3826, %v3719
      %v3852 = vsel %vm229, %v3828, %v3722
      %v3853 = vsel %vm230, %v3830, %v3725
      %v3854 = vsel %vm231, %v3832, %v3728
      %v3855 = vsel %vm232, %v3834, %v3731
      %v3856 = vsel %vm233, %v3836, %v3734
      %v3857 = vsel %vm234, %v3838, %v3737
      %v3858 = vsel %vm235, %v3840, %v3740
      %v3859 = vsel %vm236, %v3842, %v3743
      %v3860 = vsel %vm237, %v3844, %v3746
      %3861 = vrot.lane.b32.xlu0 %v3766, 64
      %v3862 = vpop.permute.xlu0 %3861
      %3863 = vrot.lane.b32.xlu0 %v3769, 64
      %v3864 = vpop.permute.xlu0 %3863
      %3865 = vrot.lane.b32.xlu0 %v3772, 64
      %v3866 = vpop.permute.xlu0 %3865
      %3867 = vrot.lane.b32.xlu0 %v3775, 64
      %v3868 = vpop.permute.xlu0 %3867
      %3869 = vrot.lane.b32.xlu0 %v3778, 64
      %v3870 = vpop.permute.xlu0 %3869
      %3871 = vrot.lane.b32.xlu0 %v3781, 64
      %v3872 = vpop.permute.xlu0 %3871
      %3873 = vrot.lane.b32.xlu0 %v3784, 64
      %v3874 = vpop.permute.xlu0 %3873
      %3875 = vrot.lane.b32.xlu0 %v3787, 64
      %v3876 = vpop.permute.xlu0 %3875
      %3877 = vrot.lane.b32.xlu0 %v3790, 64
      %v3878 = vpop.permute.xlu0 %3877
      %3879 = vrot.lane.b32.xlu0 %v3793, 64
      %v3880 = vpop.permute.xlu0 %3879
      %3881 = vrot.lane.b32.xlu0 %v3796, 64
      %v3882 = vpop.permute.xlu0 %3881
      %3883 = vrot.lane.b32.xlu0 %v3799, 64
      %v3884 = vpop.permute.xlu0 %3883
      %3885 = vrot.lane.b32.xlu0 %v3802, 64
      %v3886 = vpop.permute.xlu0 %3885
      %3887 = vrot.lane.b32.xlu0 %v3805, 64
      %v3888 = vpop.permute.xlu0 %3887
      %3889 = vrot.lane.b32.xlu0 %v3808, 64
      %v3890 = vpop.permute.xlu0 %3889
      %3891 = vrot.lane.b32.xlu0 %v3811, 64
      %v3892 = vpop.permute.xlu0 %3891
      %v3893 = vsel %vm222, %v3862, %v3766
      %v3894 = vsel %vm223, %v3864, %v3769
      %v3895 = vsel %vm224, %v3866, %v3772
      %v3896 = vsel %vm225, %v3868, %v3775
      %v3897 = vsel %vm226, %v3870, %v3778
      %v3898 = vsel %vm227, %v3872, %v3781
      %v3899 = vsel %vm228, %v3874, %v3784
      %v3900 = vsel %vm229, %v3876, %v3787
      %v3901 = vsel %vm230, %v3878, %v3790
      %v3902 = vsel %vm231, %v3880, %v3793
      %v3903 = vsel %vm232, %v3882, %v3796
      %v3904 = vsel %vm233, %v3884, %v3799
      %v3905 = vsel %vm234, %v3886, %v3802
      %v3906 = vsel %vm235, %v3888, %v3805
      %v3907 = vsel %vm236, %v3890, %v3808
      %v3908 = vsel %vm237, %v3892, %v3811
      %3909 = vmatpush.msra.mxu0 %v2279
      %3910 = vmatpush.msra.mxu0 %v2278
      %3911 = vmatpush.msra.mxu0 %v2277
      %3912 = vmatpush.msra.mxu0 %v2276
      %3913 = vmatpush.msra.mxu0 %v2275
      %3914 = vmatpush.msra.mxu0 %v2274
      %3915 = vmatpush.msra.mxu0 %v2273
      %3916 = vmatpush.msra.mxu0 %v2272
      %3917 = vmatpush.msra.mxu0 %v2271
      %3918 = vmatpush.msra.mxu0 %v2270
      %3919 = vmatpush.msra.mxu0 %v2269
      %3920 = vmatpush.msra.mxu0 %v2268
      %3921 = vmatpush.msra.mxu0 %v2267
      %3922 = vmatpush.msra.mxu0 %v2266
      %3923 = vmatpush.msra.mxu0 %v2265
      %3924 = vmatpush.msra.mxu0 %v2264
      %3925 = vmatmul.f32.gmra.mxu0 %v3845
      %v3926 = vpop.f32.mrf.mxu0
      %v3927 = vadd.f32 0.0, %v3926
      %3928 = vmatmul.f32.gmra.mxu0 %v3846
      %v3929 = vpop.f32.mrf.mxu0
      %v3930 = vadd.f32 0.0, %v3929
      %3931 = vmatmul.f32.gmra.mxu0 %v3847
      %v3932 = vpop.f32.mrf.mxu0
      %v3933 = vadd.f32 0.0, %v3932
      %3934 = vmatmul.f32.gmra.mxu0 %v3848
      %v3935 = vpop.f32.mrf.mxu0
      %v3936 = vadd.f32 0.0, %v3935
      %3937 = vmatmul.f32.gmra.mxu0 %v3849
      %v3938 = vpop.f32.mrf.mxu0
      %v3939 = vadd.f32 0.0, %v3938
      %3940 = vmatmul.f32.gmra.mxu0 %v3850
      %v3941 = vpop.f32.mrf.mxu0
      %v3942 = vadd.f32 0.0, %v3941
      %3943 = vmatmul.f32.gmra.mxu0 %v3851
      %v3944 = vpop.f32.mrf.mxu0
      %v3945 = vadd.f32 0.0, %v3944
      %3946 = vmatmul.f32.gmra.mxu0 %v3852
      %v3947 = vpop.f32.mrf.mxu0
      %v3948 = vadd.f32 0.0, %v3947
      %3949 = vmatmul.f32.gmra.mxu0 %v3853
      %v3950 = vpop.f32.mrf.mxu0
      %v3951 = vadd.f32 0.0, %v3950
      %3952 = vmatmul.f32.gmra.mxu0 %v3854
      %v3953 = vpop.f32.mrf.mxu0
      %v3954 = vadd.f32 0.0, %v3953
      %3955 = vmatmul.f32.gmra.mxu0 %v3855
      %v3956 = vpop.f32.mrf.mxu0
      %v3957 = vadd.f32 0.0, %v3956
      %3958 = vmatmul.f32.gmra.mxu0 %v3856
      %v3959 = vpop.f32.mrf.mxu0
      %v3960 = vadd.f32 0.0, %v3959
      %3961 = vmatmul.f32.gmra.mxu0 %v3857
      %v3962 = vpop.f32.mrf.mxu0
      %v3963 = vadd.f32 0.0, %v3962
      %3964 = vmatmul.f32.gmra.mxu0 %v3858
      %v3965 = vpop.f32.mrf.mxu0
      %v3966 = vadd.f32 0.0, %v3965
      %3967 = vmatmul.f32.gmra.mxu0 %v3859
      %v3968 = vpop.f32.mrf.mxu0
      %v3969 = vadd.f32 0.0, %v3968
      %3970 = vmatmul.f32.gmra.mxu0 %v3860
      %v3971 = vpop.f32.mrf.mxu0
      %v3972 = vadd.f32 0.0, %v3971
      %3973 = vmatmul.f32.gmra.mxu0 %v3893
      %v3974 = vpop.f32.mrf.mxu0
      %v3975 = vadd.f32 0.0, %v3974
      %3976 = vmatmul.f32.gmra.mxu0 %v3894
      %v3977 = vpop.f32.mrf.mxu0
      %v3978 = vadd.f32 0.0, %v3977
      %3979 = vmatmul.f32.gmra.mxu0 %v3895
      %v3980 = vpop.f32.mrf.mxu0
      %v3981 = vadd.f32 0.0, %v3980
      %3982 = vmatmul.f32.gmra.mxu0 %v3896
      %v3983 = vpop.f32.mrf.mxu0
      %v3984 = vadd.f32 0.0, %v3983
      %3985 = vmatmul.f32.gmra.mxu0 %v3897
      %v3986 = vpop.f32.mrf.mxu0
      %v3987 = vadd.f32 0.0, %v3986
      %3988 = vmatmul.f32.gmra.mxu0 %v3898
      %v3989 = vpop.f32.mrf.mxu0
      %v3990 = vadd.f32 0.0, %v3989
      %3991 = vmatmul.f32.gmra.mxu0 %v3899
      %v3992 = vpop.f32.mrf.mxu0
      %v3993 = vadd.f32 0.0, %v3992
      %3994 = vmatmul.f32.gmra.mxu0 %v3900
      %v3995 = vpop.f32.mrf.mxu0
      %v3996 = vadd.f32 0.0, %v3995
      %3997 = vmatmul.f32.gmra.mxu0 %v3901
      %v3998 = vpop.f32.mrf.mxu0
      %v3999 = vadd.f32 0.0, %v3998
      %4000 = vmatmul.f32.gmra.mxu0 %v3902
      %v4001 = vpop.f32.mrf.mxu0
      %v4002 = vadd.f32 0.0, %v4001
      %4003 = vmatmul.f32.gmra.mxu0 %v3903
      %v4004 = vpop.f32.mrf.mxu0
      %v4005 = vadd.f32 0.0, %v4004
      %4006 = vmatmul.f32.gmra.mxu0 %v3904
      %v4007 = vpop.f32.mrf.mxu0
      %v4008 = vadd.f32 0.0, %v4007
      %4009 = vmatmul.f32.gmra.mxu0 %v3905
      %v4010 = vpop.f32.mrf.mxu0
      %v4011 = vadd.f32 0.0, %v4010
      %4012 = vmatmul.f32.gmra.mxu0 %v3906
      %v4013 = vpop.f32.mrf.mxu0
      %v4014 = vadd.f32 0.0, %v4013
      %4015 = vmatmul.f32.gmra.mxu0 %v3907
      %v4016 = vpop.f32.mrf.mxu0
      %v4017 = vadd.f32 0.0, %v4016
      %4018 = vmatmul.f32.gmra.mxu0 %v3908
      %v4019 = vpop.f32.mrf.mxu0
      %v4020 = vadd.f32 0.0, %v4019
      %4021 = vdwg.mxu0
      %v4022 = vsel %vm238, %v3951, %v3927
      %v4023 = vsel %vm238, %v3954, %v3930
      %v4024 = vsel %vm238, %v3957, %v3933
      %v4025 = vsel %vm238, %v3960, %v3936
      %v4026 = vsel %vm238, %v3963, %v3939
      %v4027 = vsel %vm238, %v3966, %v3942
      %v4028 = vsel %vm238, %v3969, %v3945
      %v4029 = vsel %vm238, %v3972, %v3948
      %v4030 = vsel %vm238, %v3927, %v3951
      %v4031 = vsel %vm238, %v3930, %v3954
      %v4032 = vsel %vm238, %v3933, %v3957
      %v4033 = vsel %vm238, %v3936, %v3960
      %v4034 = vsel %vm238, %v3939, %v3963
      %v4035 = vsel %vm238, %v3942, %v3966
      %v4036 = vsel %vm238, %v3945, %v3969
      %v4037 = vsel %vm238, %v3948, %v3972
      %v4038 = vsel %vm238, %v3999, %v3975
      %v4039 = vsel %vm238, %v4002, %v3978
      %v4040 = vsel %vm238, %v4005, %v3981
      %v4041 = vsel %vm238, %v4008, %v3984
      %v4042 = vsel %vm238, %v4011, %v3987
      %v4043 = vsel %vm238, %v4014, %v3990
      %v4044 = vsel %vm238, %v4017, %v3993
      %v4045 = vsel %vm238, %v4020, %v3996
      %v4046 = vsel %vm238, %v3975, %v3999
      %v4047 = vsel %vm238, %v3978, %v4002
      %v4048 = vsel %vm238, %v3981, %v4005
      %v4049 = vsel %vm238, %v3984, %v4008
      %v4050 = vsel %vm238, %v3987, %v4011
      %v4051 = vsel %vm238, %v3990, %v4014
      %v4052 = vsel %vm238, %v3993, %v4017
      %v4053 = vsel %vm238, %v3996, %v4020
      %4054 = vmatpush.msra.mxu0 %v4037
      %4055 = vmatpush.msra.mxu0 %v4036
      %4056 = vmatpush.msra.mxu0 %v4035
      %4057 = vmatpush.msra.mxu0 %v4034
      %4058 = vmatpush.msra.mxu0 %v4033
      %4059 = vmatpush.msra.mxu0 %v4032
      %4060 = vmatpush.msra.mxu0 %v4031
      %4061 = vmatpush.msra.mxu0 %v4030
      %4062 = vmatpush.msra.mxu0 %v4029
      %4063 = vmatpush.msra.mxu0 %v4028
      %4064 = vmatpush.msra.mxu0 %v4027
      %4065 = vmatpush.msra.mxu0 %v4026
      %4066 = vmatpush.msra.mxu0 %v4025
      %4067 = vmatpush.msra.mxu0 %v4024
      %4068 = vmatpush.msra.mxu0 %v4023
      %4069 = vmatpush.msra.mxu0 %v4022
      %4070 = vmatmul.f32.gmra.mxu0 %v692
      %v4071 = vpop.f32.mrf.mxu0
      %v4072 = vadd.f32 0.0, %v4071
      %4073 = vmatmul.f32.gmra.mxu0 %v693
      %v4074 = vpop.f32.mrf.mxu0
      %v4075 = vadd.f32 0.0, %v4074
      %4076 = vmatmul.f32.gmra.mxu0 %v694
      %v4077 = vpop.f32.mrf.mxu0
      %v4078 = vadd.f32 0.0, %v4077
      %4079 = vmatmul.f32.gmra.mxu0 %v695
      %v4080 = vpop.f32.mrf.mxu0
      %v4081 = vadd.f32 0.0, %v4080
      %4082 = vmatmul.f32.gmra.mxu0 %v696
      %v4083 = vpop.f32.mrf.mxu0
      %v4084 = vadd.f32 0.0, %v4083
      %4085 = vmatmul.f32.gmra.mxu0 %v697
      %v4086 = vpop.f32.mrf.mxu0
      %v4087 = vadd.f32 0.0, %v4086
      %4088 = vmatmul.f32.gmra.mxu0 %v698
      %v4089 = vpop.f32.mrf.mxu0
      %v4090 = vadd.f32 0.0, %v4089
      %4091 = vmatmul.f32.gmra.mxu0 %v699
      %v4092 = vpop.f32.mrf.mxu0
      %v4093 = vadd.f32 0.0, %v4092
      %4094 = vmatmul.f32.gmra.mxu0 %v700
      %v4095 = vpop.f32.mrf.mxu0
      %v4096 = vadd.f32 0.0, %v4095
      %4097 = vmatmul.f32.gmra.mxu0 %v701
      %v4098 = vpop.f32.mrf.mxu0
      %v4099 = vadd.f32 0.0, %v4098
      %4100 = vmatmul.f32.gmra.mxu0 %v702
      %v4101 = vpop.f32.mrf.mxu0
      %v4102 = vadd.f32 0.0, %v4101
      %4103 = vmatmul.f32.gmra.mxu0 %v703
      %v4104 = vpop.f32.mrf.mxu0
      %v4105 = vadd.f32 0.0, %v4104
      %4106 = vmatmul.f32.gmra.mxu0 %v704
      %v4107 = vpop.f32.mrf.mxu0
      %v4108 = vadd.f32 0.0, %v4107
      %4109 = vmatmul.f32.gmra.mxu0 %v705
      %v4110 = vpop.f32.mrf.mxu0
      %v4111 = vadd.f32 0.0, %v4110
      %4112 = vmatmul.f32.gmra.mxu0 %v706
      %v4113 = vpop.f32.mrf.mxu0
      %v4114 = vadd.f32 0.0, %v4113
      %4115 = vmatmul.f32.gmra.mxu0 %v707
      %v4116 = vpop.f32.mrf.mxu0
      %v4117 = vadd.f32 0.0, %v4116
      %4118 = vmatmul.f32.gmra.mxu0 %v708
      %v4119 = vpop.f32.mrf.mxu0
      %v4120 = vadd.f32 0.0, %v4119
      %4121 = vmatmul.f32.gmra.mxu0 %v709
      %v4122 = vpop.f32.mrf.mxu0
      %v4123 = vadd.f32 0.0, %v4122
      %4124 = vmatmul.f32.gmra.mxu0 %v710
      %v4125 = vpop.f32.mrf.mxu0
      %v4126 = vadd.f32 0.0, %v4125
      %4127 = vmatmul.f32.gmra.mxu0 %v711
      %v4128 = vpop.f32.mrf.mxu0
      %v4129 = vadd.f32 0.0, %v4128
      %4130 = vmatmul.f32.gmra.mxu0 %v712
      %v4131 = vpop.f32.mrf.mxu0
      %v4132 = vadd.f32 0.0, %v4131
      %4133 = vmatmul.f32.gmra.mxu0 %v713
      %v4134 = vpop.f32.mrf.mxu0
      %v4135 = vadd.f32 0.0, %v4134
      %4136 = vmatmul.f32.gmra.mxu0 %v714
      %v4137 = vpop.f32.mrf.mxu0
      %v4138 = vadd.f32 0.0, %v4137
      %4139 = vmatmul.f32.gmra.mxu0 %v715
      %v4140 = vpop.f32.mrf.mxu0
      %v4141 = vadd.f32 0.0, %v4140
      %4142 = vmatmul.f32.gmra.mxu0 %v716
      %v4143 = vpop.f32.mrf.mxu0
      %v4144 = vadd.f32 0.0, %v4143
      %4145 = vmatmul.f32.gmra.mxu0 %v717
      %v4146 = vpop.f32.mrf.mxu0
      %v4147 = vadd.f32 0.0, %v4146
      %4148 = vmatmul.f32.gmra.mxu0 %v718
      %v4149 = vpop.f32.mrf.mxu0
      %v4150 = vadd.f32 0.0, %v4149
      %4151 = vmatmul.f32.gmra.mxu0 %v719
      %v4152 = vpop.f32.mrf.mxu0
      %v4153 = vadd.f32 0.0, %v4152
      %4154 = vmatmul.f32.gmra.mxu0 %v720
      %v4155 = vpop.f32.mrf.mxu0
      %v4156 = vadd.f32 0.0, %v4155
      %4157 = vmatmul.f32.gmra.mxu0 %v721
      %v4158 = vpop.f32.mrf.mxu0
      %v4159 = vadd.f32 0.0, %v4158
      %4160 = vmatmul.f32.gmra.mxu0 %v722
      %v4161 = vpop.f32.mrf.mxu0
      %v4162 = vadd.f32 0.0, %v4161
      %4163 = vmatmul.f32.gmra.mxu0 %v723
      %v4164 = vpop.f32.mrf.mxu0
      %v4165 = vadd.f32 0.0, %v4164
      %4166 = vdwg.mxu0
      %4167 = vmatpush.msra.mxu0 %v4053
      %4168 = vmatpush.msra.mxu0 %v4052
      %4169 = vmatpush.msra.mxu0 %v4051
      %4170 = vmatpush.msra.mxu0 %v4050
      %4171 = vmatpush.msra.mxu0 %v4049
      %4172 = vmatpush.msra.mxu0 %v4048
      %4173 = vmatpush.msra.mxu0 %v4047
      %4174 = vmatpush.msra.mxu0 %v4046
      %4175 = vmatpush.msra.mxu0 %v4045
      %4176 = vmatpush.msra.mxu0 %v4044
      %4177 = vmatpush.msra.mxu0 %v4043
      %4178 = vmatpush.msra.mxu0 %v4042
      %4179 = vmatpush.msra.mxu0 %v4041
      %4180 = vmatpush.msra.mxu0 %v4040
      %4181 = vmatpush.msra.mxu0 %v4039
      %4182 = vmatpush.msra.mxu0 %v4038
      %4183 = vmatmul.f32.gmra.mxu0 %v692
      %v4184 = vpop.f32.mrf.mxu0
      %v4185 = vadd.f32 0.0, %v4184
      %4186 = vmatmul.f32.gmra.mxu0 %v693
      %v4187 = vpop.f32.mrf.mxu0
      %v4188 = vadd.f32 0.0, %v4187
      %4189 = vmatmul.f32.gmra.mxu0 %v694
      %v4190 = vpop.f32.mrf.mxu0
      %v4191 = vadd.f32 0.0, %v4190
      %4192 = vmatmul.f32.gmra.mxu0 %v695
      %v4193 = vpop.f32.mrf.mxu0
      %v4194 = vadd.f32 0.0, %v4193
      %4195 = vmatmul.f32.gmra.mxu0 %v696
      %v4196 = vpop.f32.mrf.mxu0
      %v4197 = vadd.f32 0.0, %v4196
      %4198 = vmatmul.f32.gmra.mxu0 %v697
      %v4199 = vpop.f32.mrf.mxu0
      %v4200 = vadd.f32 0.0, %v4199
      %4201 = vmatmul.f32.gmra.mxu0 %v698
      %v4202 = vpop.f32.mrf.mxu0
      %v4203 = vadd.f32 0.0, %v4202
      %4204 = vmatmul.f32.gmra.mxu0 %v699
      %v4205 = vpop.f32.mrf.mxu0
      %v4206 = vadd.f32 0.0, %v4205
      %4207 = vmatmul.f32.gmra.mxu0 %v700
      %v4208 = vpop.f32.mrf.mxu0
      %v4209 = vadd.f32 0.0, %v4208
      %4210 = vmatmul.f32.gmra.mxu0 %v701
      %v4211 = vpop.f32.mrf.mxu0
      %v4212 = vadd.f32 0.0, %v4211
      %4213 = vmatmul.f32.gmra.mxu0 %v702
      %v4214 = vpop.f32.mrf.mxu0
      %v4215 = vadd.f32 0.0, %v4214
      %4216 = vmatmul.f32.gmra.mxu0 %v703
      %v4217 = vpop.f32.mrf.mxu0
      %v4218 = vadd.f32 0.0, %v4217
      %4219 = vmatmul.f32.gmra.mxu0 %v704
      %v4220 = vpop.f32.mrf.mxu0
      %v4221 = vadd.f32 0.0, %v4220
      %4222 = vmatmul.f32.gmra.mxu0 %v705
      %v4223 = vpop.f32.mrf.mxu0
      %v4224 = vadd.f32 0.0, %v4223
      %4225 = vmatmul.f32.gmra.mxu0 %v706
      %v4226 = vpop.f32.mrf.mxu0
      %v4227 = vadd.f32 0.0, %v4226
      %4228 = vmatmul.f32.gmra.mxu0 %v707
      %v4229 = vpop.f32.mrf.mxu0
      %v4230 = vadd.f32 0.0, %v4229
      %4231 = vmatmul.f32.gmra.mxu0 %v708
      %v4232 = vpop.f32.mrf.mxu0
      %v4233 = vadd.f32 0.0, %v4232
      %4234 = vmatmul.f32.gmra.mxu0 %v709
      %v4235 = vpop.f32.mrf.mxu0
      %v4236 = vadd.f32 0.0, %v4235
      %4237 = vmatmul.f32.gmra.mxu0 %v710
      %v4238 = vpop.f32.mrf.mxu0
      %v4239 = vadd.f32 0.0, %v4238
      %4240 = vmatmul.f32.gmra.mxu0 %v711
      %v4241 = vpop.f32.mrf.mxu0
      %v4242 = vadd.f32 0.0, %v4241
      %4243 = vmatmul.f32.gmra.mxu0 %v712
      %v4244 = vpop.f32.mrf.mxu0
      %v4245 = vadd.f32 0.0, %v4244
      %4246 = vmatmul.f32.gmra.mxu0 %v713
      %v4247 = vpop.f32.mrf.mxu0
      %v4248 = vadd.f32 0.0, %v4247
      %4249 = vmatmul.f32.gmra.mxu0 %v714
      %v4250 = vpop.f32.mrf.mxu0
      %v4251 = vadd.f32 0.0, %v4250
      %4252 = vmatmul.f32.gmra.mxu0 %v715
      %v4253 = vpop.f32.mrf.mxu0
      %v4254 = vadd.f32 0.0, %v4253
      %4255 = vmatmul.f32.gmra.mxu0 %v716
      %v4256 = vpop.f32.mrf.mxu0
      %v4257 = vadd.f32 0.0, %v4256
      %4258 = vmatmul.f32.gmra.mxu0 %v717
      %v4259 = vpop.f32.mrf.mxu0
      %v4260 = vadd.f32 0.0, %v4259
      %4261 = vmatmul.f32.gmra.mxu0 %v718
      %v4262 = vpop.f32.mrf.mxu0
      %v4263 = vadd.f32 0.0, %v4262
      %4264 = vmatmul.f32.gmra.mxu0 %v719
      %v4265 = vpop.f32.mrf.mxu0
      %v4266 = vadd.f32 0.0, %v4265
      %4267 = vmatmul.f32.gmra.mxu0 %v720
      %v4268 = vpop.f32.mrf.mxu0
      %v4269 = vadd.f32 0.0, %v4268
      %4270 = vmatmul.f32.gmra.mxu0 %v721
      %v4271 = vpop.f32.mrf.mxu0
      %v4272 = vadd.f32 0.0, %v4271
      %4273 = vmatmul.f32.gmra.mxu0 %v722
      %v4274 = vpop.f32.mrf.mxu0
      %v4275 = vadd.f32 0.0, %v4274
      %4276 = vmatmul.f32.gmra.mxu0 %v723
      %v4277 = vpop.f32.mrf.mxu0
      %v4278 = vadd.f32 0.0, %v4277
      %4279 = vdwg.mxu0
      %v4280 = vsub.f32 %v4072, %v4233
      %v4281 = vsub.f32 %v4075, %v4236
      %v4282 = vsub.f32 %v4078, %v4239
      %v4283 = vsub.f32 %v4081, %v4242
      %v4284 = vsub.f32 %v4084, %v4245
      %v4285 = vsub.f32 %v4087, %v4248
      %v4286 = vsub.f32 %v4090, %v4251
      %v4287 = vsub.f32 %v4093, %v4254
      %v4288 = vsub.f32 %v4096, %v4257
      %v4289 = vsub.f32 %v4099, %v4260
      %v4290 = vsub.f32 %v4102, %v4263
      %v4291 = vsub.f32 %v4105, %v4266
      %v4292 = vsub.f32 %v4108, %v4269
      %v4293 = vsub.f32 %v4111, %v4272
      %v4294 = vsub.f32 %v4114, %v4275
      %v4295 = vsub.f32 %v4117, %v4278
      %v4296 = vadd.f32 %v4185, %v4120
      %v4297 = vadd.f32 %v4188, %v4123
      %v4298 = vadd.f32 %v4191, %v4126
      %v4299 = vadd.f32 %v4194, %v4129
      %v4300 = vadd.f32 %v4197, %v4132
      %v4301 = vadd.f32 %v4200, %v4135
      %v4302 = vadd.f32 %v4203, %v4138
      %v4303 = vadd.f32 %v4206, %v4141
      %v4304 = vadd.f32 %v4209, %v4144
      %v4305 = vadd.f32 %v4212, %v4147
      %v4306 = vadd.f32 %v4215, %v4150
      %v4307 = vadd.f32 %v4218, %v4153
      %v4308 = vadd.f32 %v4221, %v4156
      %v4309 = vadd.f32 %v4224, %v4159
      %v4310 = vadd.f32 %v4227, %v4162
      %v4311 = vadd.f32 %v4230, %v4165
      %4312 = vmatpush.msra.mxu0 %v1694
      %4313 = vmatpush.msra.mxu0 %v1692
      %4314 = vmatpush.msra.mxu0 %v1690
      %4315 = vmatpush.msra.mxu0 %v1688
      %4316 = vmatpush.msra.mxu0 %v1686
      %4317 = vmatpush.msra.mxu0 %v1684
      %4318 = vmatpush.msra.mxu0 %v1682
      %4319 = vmatpush.msra.mxu0 %v1680
      %4320 = vmatpush.msra.mxu0 %v1678
      %4321 = vmatpush.msra.mxu0 %v1676
      %4322 = vmatpush.msra.mxu0 %v1674
      %4323 = vmatpush.msra.mxu0 %v1672
      %4324 = vmatpush.msra.mxu0 %v1670
      %4325 = vmatpush.msra.mxu0 %v1668
      %4326 = vmatpush.msra.mxu0 %v1666
      %4327 = vmatpush.msra.mxu0 %v1664
      %4328 = vmatmul.f32.gmra.mxu0 %v4280
      %v4329 = vpop.f32.mrf.mxu0
      %v4330 = vadd.f32 0.0, %v4329
      %4331 = vmatmul.f32.gmra.mxu0 %v4281
      %v4332 = vpop.f32.mrf.mxu0
      %v4333 = vadd.f32 0.0, %v4332
      %4334 = vmatmul.f32.gmra.mxu0 %v4282
      %v4335 = vpop.f32.mrf.mxu0
      %v4336 = vadd.f32 0.0, %v4335
      %4337 = vmatmul.f32.gmra.mxu0 %v4283
      %v4338 = vpop.f32.mrf.mxu0
      %v4339 = vadd.f32 0.0, %v4338
      %4340 = vmatmul.f32.gmra.mxu0 %v4284
      %v4341 = vpop.f32.mrf.mxu0
      %v4342 = vadd.f32 0.0, %v4341
      %4343 = vmatmul.f32.gmra.mxu0 %v4285
      %v4344 = vpop.f32.mrf.mxu0
      %v4345 = vadd.f32 0.0, %v4344
      %4346 = vmatmul.f32.gmra.mxu0 %v4286
      %v4347 = vpop.f32.mrf.mxu0
      %v4348 = vadd.f32 0.0, %v4347
      %4349 = vmatmul.f32.gmra.mxu0 %v4287
      %v4350 = vpop.f32.mrf.mxu0
      %v4351 = vadd.f32 0.0, %v4350
      %4352 = vmatmul.f32.gmra.mxu0 %v4288
      %v4353 = vpop.f32.mrf.mxu0
      %v4354 = vadd.f32 0.0, %v4353
      %4355 = vmatmul.f32.gmra.mxu0 %v4289
      %v4356 = vpop.f32.mrf.mxu0
      %v4357 = vadd.f32 0.0, %v4356
      %4358 = vmatmul.f32.gmra.mxu0 %v4290
      %v4359 = vpop.f32.mrf.mxu0
      %v4360 = vadd.f32 0.0, %v4359
      %4361 = vmatmul.f32.gmra.mxu0 %v4291
      %v4362 = vpop.f32.mrf.mxu0
      %v4363 = vadd.f32 0.0, %v4362
      %4364 = vmatmul.f32.gmra.mxu0 %v4292
      %v4365 = vpop.f32.mrf.mxu0
      %v4366 = vadd.f32 0.0, %v4365
      %4367 = vmatmul.f32.gmra.mxu0 %v4293
      %v4368 = vpop.f32.mrf.mxu0
      %v4369 = vadd.f32 0.0, %v4368
      %4370 = vmatmul.f32.gmra.mxu0 %v4294
      %v4371 = vpop.f32.mrf.mxu0
      %v4372 = vadd.f32 0.0, %v4371
      %4373 = vmatmul.f32.gmra.mxu0 %v4295
      %v4374 = vpop.f32.mrf.mxu0
      %v4375 = vadd.f32 0.0, %v4374
      %4376 = vmatmul.f32.gmra.mxu0 %v4296
      %v4377 = vpop.f32.mrf.mxu0
      %v4378 = vadd.f32 0.0, %v4377
      %4379 = vmatmul.f32.gmra.mxu0 %v4297
      %v4380 = vpop.f32.mrf.mxu0
      %v4381 = vadd.f32 0.0, %v4380
      %4382 = vmatmul.f32.gmra.mxu0 %v4298
      %v4383 = vpop.f32.mrf.mxu0
      %v4384 = vadd.f32 0.0, %v4383
      %4385 = vmatmul.f32.gmra.mxu0 %v4299
      %v4386 = vpop.f32.mrf.mxu0
      %v4387 = vadd.f32 0.0, %v4386
      %4388 = vmatmul.f32.gmra.mxu0 %v4300
      %v4389 = vpop.f32.mrf.mxu0
      %v4390 = vadd.f32 0.0, %v4389
      %4391 = vmatmul.f32.gmra.mxu0 %v4301
      %v4392 = vpop.f32.mrf.mxu0
      %v4393 = vadd.f32 0.0, %v4392
      %4394 = vmatmul.f32.gmra.mxu0 %v4302
      %v4395 = vpop.f32.mrf.mxu0
      %v4396 = vadd.f32 0.0, %v4395
      %4397 = vmatmul.f32.gmra.mxu0 %v4303
      %v4398 = vpop.f32.mrf.mxu0
      %v4399 = vadd.f32 0.0, %v4398
      %4400 = vmatmul.f32.gmra.mxu0 %v4304
      %v4401 = vpop.f32.mrf.mxu0
      %v4402 = vadd.f32 0.0, %v4401
      %4403 = vmatmul.f32.gmra.mxu0 %v4305
      %v4404 = vpop.f32.mrf.mxu0
      %v4405 = vadd.f32 0.0, %v4404
      %4406 = vmatmul.f32.gmra.mxu0 %v4306
      %v4407 = vpop.f32.mrf.mxu0
      %v4408 = vadd.f32 0.0, %v4407
      %4409 = vmatmul.f32.gmra.mxu0 %v4307
      %v4410 = vpop.f32.mrf.mxu0
      %v4411 = vadd.f32 0.0, %v4410
      %4412 = vmatmul.f32.gmra.mxu0 %v4308
      %v4413 = vpop.f32.mrf.mxu0
      %v4414 = vadd.f32 0.0, %v4413
      %4415 = vmatmul.f32.gmra.mxu0 %v4309
      %v4416 = vpop.f32.mrf.mxu0
      %v4417 = vadd.f32 0.0, %v4416
      %4418 = vmatmul.f32.gmra.mxu0 %v4310
      %v4419 = vpop.f32.mrf.mxu0
      %v4420 = vadd.f32 0.0, %v4419
      %4421 = vmatmul.f32.gmra.mxu0 %v4311
      %v4422 = vpop.f32.mrf.mxu0
      %v4423 = vadd.f32 0.0, %v4422
      %4424 = vdwg.mxu0
      %4425 = vmatpush.msra.mxu0 %v1695
      %4426 = vmatpush.msra.mxu0 %v1693
      %4427 = vmatpush.msra.mxu0 %v1691
      %4428 = vmatpush.msra.mxu0 %v1689
      %4429 = vmatpush.msra.mxu0 %v1687
      %4430 = vmatpush.msra.mxu0 %v1685
      %4431 = vmatpush.msra.mxu0 %v1683
      %4432 = vmatpush.msra.mxu0 %v1681
      %4433 = vmatpush.msra.mxu0 %v1679
      %4434 = vmatpush.msra.mxu0 %v1677
      %4435 = vmatpush.msra.mxu0 %v1675
      %4436 = vmatpush.msra.mxu0 %v1673
      %4437 = vmatpush.msra.mxu0 %v1671
      %4438 = vmatpush.msra.mxu0 %v1669
      %4439 = vmatpush.msra.mxu0 %v1667
      %4440 = vmatpush.msra.mxu0 %v1665
      %4441 = vmatmul.f32.gmra.mxu0 %v4280
      %v4442 = vpop.f32.mrf.mxu0
      %v4443 = vadd.f32 0.0, %v4442
      %4444 = vmatmul.f32.gmra.mxu0 %v4281
      %v4445 = vpop.f32.mrf.mxu0
      %v4446 = vadd.f32 0.0, %v4445
      %4447 = vmatmul.f32.gmra.mxu0 %v4282
      %v4448 = vpop.f32.mrf.mxu0
      %v4449 = vadd.f32 0.0, %v4448
      %4450 = vmatmul.f32.gmra.mxu0 %v4283
      %v4451 = vpop.f32.mrf.mxu0
      %v4452 = vadd.f32 0.0, %v4451
      %4453 = vmatmul.f32.gmra.mxu0 %v4284
      %v4454 = vpop.f32.mrf.mxu0
      %v4455 = vadd.f32 0.0, %v4454
      %4456 = vmatmul.f32.gmra.mxu0 %v4285
      %v4457 = vpop.f32.mrf.mxu0
      %v4458 = vadd.f32 0.0, %v4457
      %4459 = vmatmul.f32.gmra.mxu0 %v4286
      %v4460 = vpop.f32.mrf.mxu0
      %v4461 = vadd.f32 0.0, %v4460
      %4462 = vmatmul.f32.gmra.mxu0 %v4287
      %v4463 = vpop.f32.mrf.mxu0
      %v4464 = vadd.f32 0.0, %v4463
      %4465 = vmatmul.f32.gmra.mxu0 %v4288
      %v4466 = vpop.f32.mrf.mxu0
      %v4467 = vadd.f32 0.0, %v4466
      %4468 = vmatmul.f32.gmra.mxu0 %v4289
      %v4469 = vpop.f32.mrf.mxu0
      %v4470 = vadd.f32 0.0, %v4469
      %4471 = vmatmul.f32.gmra.mxu0 %v4290
      %v4472 = vpop.f32.mrf.mxu0
      %v4473 = vadd.f32 0.0, %v4472
      %4474 = vmatmul.f32.gmra.mxu0 %v4291
      %v4475 = vpop.f32.mrf.mxu0
      %v4476 = vadd.f32 0.0, %v4475
      %4477 = vmatmul.f32.gmra.mxu0 %v4292
      %v4478 = vpop.f32.mrf.mxu0
      %v4479 = vadd.f32 0.0, %v4478
      %4480 = vmatmul.f32.gmra.mxu0 %v4293
      %v4481 = vpop.f32.mrf.mxu0
      %v4482 = vadd.f32 0.0, %v4481
      %4483 = vmatmul.f32.gmra.mxu0 %v4294
      %v4484 = vpop.f32.mrf.mxu0
      %v4485 = vadd.f32 0.0, %v4484
      %4486 = vmatmul.f32.gmra.mxu0 %v4295
      %v4487 = vpop.f32.mrf.mxu0
      %v4488 = vadd.f32 0.0, %v4487
      %4489 = vmatmul.f32.gmra.mxu0 %v4296
      %v4490 = vpop.f32.mrf.mxu0
      %v4491 = vadd.f32 0.0, %v4490
      %4492 = vmatmul.f32.gmra.mxu0 %v4297
      %v4493 = vpop.f32.mrf.mxu0
      %v4494 = vadd.f32 0.0, %v4493
      %4495 = vmatmul.f32.gmra.mxu0 %v4298
      %v4496 = vpop.f32.mrf.mxu0
      %v4497 = vadd.f32 0.0, %v4496
      %4498 = vmatmul.f32.gmra.mxu0 %v4299
      %v4499 = vpop.f32.mrf.mxu0
      %v4500 = vadd.f32 0.0, %v4499
      %4501 = vmatmul.f32.gmra.mxu0 %v4300
      %v4502 = vpop.f32.mrf.mxu0
      %v4503 = vadd.f32 0.0, %v4502
      %4504 = vmatmul.f32.gmra.mxu0 %v4301
      %v4505 = vpop.f32.mrf.mxu0
      %v4506 = vadd.f32 0.0, %v4505
      %4507 = vmatmul.f32.gmra.mxu0 %v4302
      %v4508 = vpop.f32.mrf.mxu0
      %v4509 = vadd.f32 0.0, %v4508
      %4510 = vmatmul.f32.gmra.mxu0 %v4303
      %v4511 = vpop.f32.mrf.mxu0
      %v4512 = vadd.f32 0.0, %v4511
      %4513 = vmatmul.f32.gmra.mxu0 %v4304
      %v4514 = vpop.f32.mrf.mxu0
      %v4515 = vadd.f32 0.0, %v4514
      %4516 = vmatmul.f32.gmra.mxu0 %v4305
      %v4517 = vpop.f32.mrf.mxu0
      %v4518 = vadd.f32 0.0, %v4517
      %4519 = vmatmul.f32.gmra.mxu0 %v4306
      %v4520 = vpop.f32.mrf.mxu0
      %v4521 = vadd.f32 0.0, %v4520
      %4522 = vmatmul.f32.gmra.mxu0 %v4307
      %v4523 = vpop.f32.mrf.mxu0
      %v4524 = vadd.f32 0.0, %v4523
      %4525 = vmatmul.f32.gmra.mxu0 %v4308
      %v4526 = vpop.f32.mrf.mxu0
      %v4527 = vadd.f32 0.0, %v4526
      %4528 = vmatmul.f32.gmra.mxu0 %v4309
      %v4529 = vpop.f32.mrf.mxu0
      %v4530 = vadd.f32 0.0, %v4529
      %4531 = vmatmul.f32.gmra.mxu0 %v4310
      %v4532 = vpop.f32.mrf.mxu0
      %v4533 = vadd.f32 0.0, %v4532
      %4534 = vmatmul.f32.gmra.mxu0 %v4311
      %v4535 = vpop.f32.mrf.mxu0
      %v4536 = vadd.f32 0.0, %v4535
      %4537 = vdwg.mxu0
      %v4538 = vsub.f32 %v4330, %v4491
      %v4539 = vsub.f32 %v4333, %v4494
      %v4540 = vsub.f32 %v4336, %v4497
      %v4541 = vsub.f32 %v4339, %v4500
      %v4542 = vsub.f32 %v4342, %v4503
      %v4543 = vsub.f32 %v4345, %v4506
      %v4544 = vsub.f32 %v4348, %v4509
      %v4545 = vsub.f32 %v4351, %v4512
      %v4546 = vsub.f32 %v4354, %v4515
      %v4547 = vsub.f32 %v4357, %v4518
      %v4548 = vsub.f32 %v4360, %v4521
      %v4549 = vsub.f32 %v4363, %v4524
      %v4550 = vsub.f32 %v4366, %v4527
      %v4551 = vsub.f32 %v4369, %v4530
      %v4552 = vsub.f32 %v4372, %v4533
      %v4553 = vsub.f32 %v4375, %v4536
      %v4554 = vadd.f32 %v4443, %v4378
      %v4555 = vadd.f32 %v4446, %v4381
      %v4556 = vadd.f32 %v4449, %v4384
      %v4557 = vadd.f32 %v4452, %v4387
      %v4558 = vadd.f32 %v4455, %v4390
      %v4559 = vadd.f32 %v4458, %v4393
      %v4560 = vadd.f32 %v4461, %v4396
      %v4561 = vadd.f32 %v4464, %v4399
      %v4562 = vadd.f32 %v4467, %v4402
      %v4563 = vadd.f32 %v4470, %v4405
      %v4564 = vadd.f32 %v4473, %v4408
      %v4565 = vadd.f32 %v4476, %v4411
      %v4566 = vadd.f32 %v4479, %v4414
      %v4567 = vadd.f32 %v4482, %v4417
      %v4568 = vadd.f32 %v4485, %v4420
      %v4569 = vadd.f32 %v4488, %v4423
      %4570 = vmatpush.msra.mxu0 %v4553
      %4571 = vmatpush.msra.mxu0 %v4552
      %4572 = vmatpush.msra.mxu0 %v4551
      %4573 = vmatpush.msra.mxu0 %v4550
      %4574 = vmatpush.msra.mxu0 %v4549
      %4575 = vmatpush.msra.mxu0 %v4548
      %4576 = vmatpush.msra.mxu0 %v4547
      %4577 = vmatpush.msra.mxu0 %v4546
      %4578 = vmatpush.msra.mxu0 %v4545
      %4579 = vmatpush.msra.mxu0 %v4544
      %4580 = vmatpush.msra.mxu0 %v4543
      %4581 = vmatpush.msra.mxu0 %v4542
      %4582 = vmatpush.msra.mxu0 %v4541
      %4583 = vmatpush.msra.mxu0 %v4540
      %4584 = vmatpush.msra.mxu0 %v4539
      %4585 = vmatpush.msra.mxu0 %v4538
      %4586 = vmatmul.f32.gmra.mxu0 %v2231
      %v4587 = vpop.f32.mrf.mxu0
      %v4588 = vadd.f32 0.0, %v4587
      %4589 = vmatmul.f32.gmra.mxu0 %v2232
      %v4590 = vpop.f32.mrf.mxu0
      %v4591 = vadd.f32 0.0, %v4590
      %4592 = vmatmul.f32.gmra.mxu0 %v2233
      %v4593 = vpop.f32.mrf.mxu0
      %v4594 = vadd.f32 0.0, %v4593
      %4595 = vmatmul.f32.gmra.mxu0 %v2234
      %v4596 = vpop.f32.mrf.mxu0
      %v4597 = vadd.f32 0.0, %v4596
      %4598 = vmatmul.f32.gmra.mxu0 %v2235
      %v4599 = vpop.f32.mrf.mxu0
      %v4600 = vadd.f32 0.0, %v4599
      %4601 = vmatmul.f32.gmra.mxu0 %v2236
      %v4602 = vpop.f32.mrf.mxu0
      %v4603 = vadd.f32 0.0, %v4602
      %4604 = vmatmul.f32.gmra.mxu0 %v2237
      %v4605 = vpop.f32.mrf.mxu0
      %v4606 = vadd.f32 0.0, %v4605
      %4607 = vmatmul.f32.gmra.mxu0 %v2238
      %v4608 = vpop.f32.mrf.mxu0
      %v4609 = vadd.f32 0.0, %v4608
      %4610 = vmatmul.f32.gmra.mxu0 %v2239
      %v4611 = vpop.f32.mrf.mxu0
      %v4612 = vadd.f32 0.0, %v4611
      %4613 = vmatmul.f32.gmra.mxu0 %v2240
      %v4614 = vpop.f32.mrf.mxu0
      %v4615 = vadd.f32 0.0, %v4614
      %4616 = vmatmul.f32.gmra.mxu0 %v2241
      %v4617 = vpop.f32.mrf.mxu0
      %v4618 = vadd.f32 0.0, %v4617
      %4619 = vmatmul.f32.gmra.mxu0 %v2242
      %v4620 = vpop.f32.mrf.mxu0
      %v4621 = vadd.f32 0.0, %v4620
      %4622 = vmatmul.f32.gmra.mxu0 %v2243
      %v4623 = vpop.f32.mrf.mxu0
      %v4624 = vadd.f32 0.0, %v4623
      %4625 = vmatmul.f32.gmra.mxu0 %v2244
      %v4626 = vpop.f32.mrf.mxu0
      %v4627 = vadd.f32 0.0, %v4626
      %4628 = vmatmul.f32.gmra.mxu0 %v2245
      %v4629 = vpop.f32.mrf.mxu0
      %v4630 = vadd.f32 0.0, %v4629
      %4631 = vmatmul.f32.gmra.mxu0 %v2246
      %v4632 = vpop.f32.mrf.mxu0
      %v4633 = vadd.f32 0.0, %v4632
      %4634 = vdwg.mxu0
      %4635 = vmatpush.msra.mxu0 %v4569
      %4636 = vmatpush.msra.mxu0 %v4568
      %4637 = vmatpush.msra.mxu0 %v4567
      %4638 = vmatpush.msra.mxu0 %v4566
      %4639 = vmatpush.msra.mxu0 %v4565
      %4640 = vmatpush.msra.mxu0 %v4564
      %4641 = vmatpush.msra.mxu0 %v4563
      %4642 = vmatpush.msra.mxu0 %v4562
      %4643 = vmatpush.msra.mxu0 %v4561
      %4644 = vmatpush.msra.mxu0 %v4560
      %4645 = vmatpush.msra.mxu0 %v4559
      %4646 = vmatpush.msra.mxu0 %v4558
      %4647 = vmatpush.msra.mxu0 %v4557
      %4648 = vmatpush.msra.mxu0 %v4556
      %4649 = vmatpush.msra.mxu0 %v4555
      %4650 = vmatpush.msra.mxu0 %v4554
      %4651 = vmatmul.f32.gmra.mxu0 %v2231
      %v4652 = vpop.f32.mrf.mxu0
      %v4653 = vadd.f32 0.0, %v4652
      %4654 = vmatmul.f32.gmra.mxu0 %v2232
      %v4655 = vpop.f32.mrf.mxu0
      %v4656 = vadd.f32 0.0, %v4655
      %4657 = vmatmul.f32.gmra.mxu0 %v2233
      %v4658 = vpop.f32.mrf.mxu0
      %v4659 = vadd.f32 0.0, %v4658
      %4660 = vmatmul.f32.gmra.mxu0 %v2234
      %v4661 = vpop.f32.mrf.mxu0
      %v4662 = vadd.f32 0.0, %v4661
      %4663 = vmatmul.f32.gmra.mxu0 %v2235
      %v4664 = vpop.f32.mrf.mxu0
      %v4665 = vadd.f32 0.0, %v4664
      %4666 = vmatmul.f32.gmra.mxu0 %v2236
      %v4667 = vpop.f32.mrf.mxu0
      %v4668 = vadd.f32 0.0, %v4667
      %4669 = vmatmul.f32.gmra.mxu0 %v2237
      %v4670 = vpop.f32.mrf.mxu0
      %v4671 = vadd.f32 0.0, %v4670
      %4672 = vmatmul.f32.gmra.mxu0 %v2238
      %v4673 = vpop.f32.mrf.mxu0
      %v4674 = vadd.f32 0.0, %v4673
      %4675 = vmatmul.f32.gmra.mxu0 %v2239
      %v4676 = vpop.f32.mrf.mxu0
      %v4677 = vadd.f32 0.0, %v4676
      %4678 = vmatmul.f32.gmra.mxu0 %v2240
      %v4679 = vpop.f32.mrf.mxu0
      %v4680 = vadd.f32 0.0, %v4679
      %4681 = vmatmul.f32.gmra.mxu0 %v2241
      %v4682 = vpop.f32.mrf.mxu0
      %v4683 = vadd.f32 0.0, %v4682
      %4684 = vmatmul.f32.gmra.mxu0 %v2242
      %v4685 = vpop.f32.mrf.mxu0
      %v4686 = vadd.f32 0.0, %v4685
      %4687 = vmatmul.f32.gmra.mxu0 %v2243
      %v4688 = vpop.f32.mrf.mxu0
      %v4689 = vadd.f32 0.0, %v4688
      %4690 = vmatmul.f32.gmra.mxu0 %v2244
      %v4691 = vpop.f32.mrf.mxu0
      %v4692 = vadd.f32 0.0, %v4691
      %4693 = vmatmul.f32.gmra.mxu0 %v2245
      %v4694 = vpop.f32.mrf.mxu0
      %v4695 = vadd.f32 0.0, %v4694
      %4696 = vmatmul.f32.gmra.mxu0 %v2246
      %v4697 = vpop.f32.mrf.mxu0
      %v4698 = vadd.f32 0.0, %v4697
      %4699 = vdwg.mxu0
      %4700 = vrot.lane.b32.xlu0 %v4588, 64
      %v4701 = vpop.permute.xlu0 %4700
      %4702 = vrot.lane.b32.xlu0 %v4591, 64
      %v4703 = vpop.permute.xlu0 %4702
      %4704 = vrot.lane.b32.xlu0 %v4594, 64
      %v4705 = vpop.permute.xlu0 %4704
      %4706 = vrot.lane.b32.xlu0 %v4597, 64
      %v4707 = vpop.permute.xlu0 %4706
      %4708 = vrot.lane.b32.xlu0 %v4600, 64
      %v4709 = vpop.permute.xlu0 %4708
      %4710 = vrot.lane.b32.xlu0 %v4603, 64
      %v4711 = vpop.permute.xlu0 %4710
      %4712 = vrot.lane.b32.xlu0 %v4606, 64
      %v4713 = vpop.permute.xlu0 %4712
      %4714 = vrot.lane.b32.xlu0 %v4609, 64
      %v4715 = vpop.permute.xlu0 %4714
      %4716 = vrot.lane.b32.xlu0 %v4612, 64
      %v4717 = vpop.permute.xlu0 %4716
      %4718 = vrot.lane.b32.xlu0 %v4615, 64
      %v4719 = vpop.permute.xlu0 %4718
      %4720 = vrot.lane.b32.xlu0 %v4618, 64
      %v4721 = vpop.permute.xlu0 %4720
      %4722 = vrot.lane.b32.xlu0 %v4621, 64
      %v4723 = vpop.permute.xlu0 %4722
      %4724 = vrot.lane.b32.xlu0 %v4624, 64
      %v4725 = vpop.permute.xlu0 %4724
      %4726 = vrot.lane.b32.xlu0 %v4627, 64
      %v4727 = vpop.permute.xlu0 %4726
      %4728 = vrot.lane.b32.xlu0 %v4630, 64
      %v4729 = vpop.permute.xlu0 %4728
      %4730 = vrot.lane.b32.xlu0 %v4633, 64
      %v4731 = vpop.permute.xlu0 %4730
      %v4732 = vsel %vm222, %v4701, %v4588
      %v4733 = vsel %vm223, %v4703, %v4591
      %v4734 = vsel %vm224, %v4705, %v4594
      %v4735 = vsel %vm225, %v4707, %v4597
      %v4736 = vsel %vm226, %v4709, %v4600
      %v4737 = vsel %vm227, %v4711, %v4603
      %v4738 = vsel %vm228, %v4713, %v4606
      %v4739 = vsel %vm229, %v4715, %v4609
      %v4740 = vsel %vm230, %v4717, %v4612
      %v4741 = vsel %vm231, %v4719, %v4615
      %v4742 = vsel %vm232, %v4721, %v4618
      %v4743 = vsel %vm233, %v4723, %v4621
      %v4744 = vsel %vm234, %v4725, %v4624
      %v4745 = vsel %vm235, %v4727, %v4627
      %v4746 = vsel %vm236, %v4729, %v4630
      %v4747 = vsel %vm237, %v4731, %v4633
      %4748 = vrot.lane.b32.xlu0 %v4653, 64
      %v4749 = vpop.permute.xlu0 %4748
      %4750 = vrot.lane.b32.xlu0 %v4656, 64
      %v4751 = vpop.permute.xlu0 %4750
      %4752 = vrot.lane.b32.xlu0 %v4659, 64
      %v4753 = vpop.permute.xlu0 %4752
      %4754 = vrot.lane.b32.xlu0 %v4662, 64
      %v4755 = vpop.permute.xlu0 %4754
      %4756 = vrot.lane.b32.xlu0 %v4665, 64
      %v4757 = vpop.permute.xlu0 %4756
      %4758 = vrot.lane.b32.xlu0 %v4668, 64
      %v4759 = vpop.permute.xlu0 %4758
      %4760 = vrot.lane.b32.xlu0 %v4671, 64
      %v4761 = vpop.permute.xlu0 %4760
      %4762 = vrot.lane.b32.xlu0 %v4674, 64
      %v4763 = vpop.permute.xlu0 %4762
      %4764 = vrot.lane.b32.xlu0 %v4677, 64
      %v4765 = vpop.permute.xlu0 %4764
      %4766 = vrot.lane.b32.xlu0 %v4680, 64
      %v4767 = vpop.permute.xlu0 %4766
      %4768 = vrot.lane.b32.xlu0 %v4683, 64
      %v4769 = vpop.permute.xlu0 %4768
      %4770 = vrot.lane.b32.xlu0 %v4686, 64
      %v4771 = vpop.permute.xlu0 %4770
      %4772 = vrot.lane.b32.xlu0 %v4689, 64
      %v4773 = vpop.permute.xlu0 %4772
      %4774 = vrot.lane.b32.xlu0 %v4692, 64
      %v4775 = vpop.permute.xlu0 %4774
      %4776 = vrot.lane.b32.xlu0 %v4695, 64
      %v4777 = vpop.permute.xlu0 %4776
      %4778 = vrot.lane.b32.xlu0 %v4698, 64
      %v4779 = vpop.permute.xlu0 %4778
      %v4780 = vsel %vm222, %v4749, %v4653
      %v4781 = vsel %vm223, %v4751, %v4656
      %v4782 = vsel %vm224, %v4753, %v4659
      %v4783 = vsel %vm225, %v4755, %v4662
      %v4784 = vsel %vm226, %v4757, %v4665
      %v4785 = vsel %vm227, %v4759, %v4668
      %v4786 = vsel %vm228, %v4761, %v4671
      %v4787 = vsel %vm229, %v4763, %v4674
      %v4788 = vsel %vm230, %v4765, %v4677
      %v4789 = vsel %vm231, %v4767, %v4680
      %v4790 = vsel %vm232, %v4769, %v4683
      %v4791 = vsel %vm233, %v4771, %v4686
      %v4792 = vsel %vm234, %v4773, %v4689
      %v4793 = vsel %vm235, %v4775, %v4692
      %v4794 = vsel %vm236, %v4777, %v4695
      %v4795 = vsel %vm237, %v4779, %v4698
      %4796 = vmatpush.msra.mxu0 %v2279
      %4797 = vmatpush.msra.mxu0 %v2278
      %4798 = vmatpush.msra.mxu0 %v2277
      %4799 = vmatpush.msra.mxu0 %v2276
      %4800 = vmatpush.msra.mxu0 %v2275
      %4801 = vmatpush.msra.mxu0 %v2274
      %4802 = vmatpush.msra.mxu0 %v2273
      %4803 = vmatpush.msra.mxu0 %v2272
      %4804 = vmatpush.msra.mxu0 %v2271
      %4805 = vmatpush.msra.mxu0 %v2270
      %4806 = vmatpush.msra.mxu0 %v2269
      %4807 = vmatpush.msra.mxu0 %v2268
      %4808 = vmatpush.msra.mxu0 %v2267
      %4809 = vmatpush.msra.mxu0 %v2266
      %4810 = vmatpush.msra.mxu0 %v2265
      %4811 = vmatpush.msra.mxu0 %v2264
      %4812 = vmatmul.f32.gmra.mxu0 %v4732
      %v4813 = vpop.f32.mrf.mxu0
      %v4814 = vadd.f32 0.0, %v4813
      %4815 = vmatmul.f32.gmra.mxu0 %v4733
      %v4816 = vpop.f32.mrf.mxu0
      %v4817 = vadd.f32 0.0, %v4816
      %4818 = vmatmul.f32.gmra.mxu0 %v4734
      %v4819 = vpop.f32.mrf.mxu0
      %v4820 = vadd.f32 0.0, %v4819
      %4821 = vmatmul.f32.gmra.mxu0 %v4735
      %v4822 = vpop.f32.mrf.mxu0
      %v4823 = vadd.f32 0.0, %v4822
      %4824 = vmatmul.f32.gmra.mxu0 %v4736
      %v4825 = vpop.f32.mrf.mxu0
      %v4826 = vadd.f32 0.0, %v4825
      %4827 = vmatmul.f32.gmra.mxu0 %v4737
      %v4828 = vpop.f32.mrf.mxu0
      %v4829 = vadd.f32 0.0, %v4828
      %4830 = vmatmul.f32.gmra.mxu0 %v4738
      %v4831 = vpop.f32.mrf.mxu0
      %v4832 = vadd.f32 0.0, %v4831
      %4833 = vmatmul.f32.gmra.mxu0 %v4739
      %v4834 = vpop.f32.mrf.mxu0
      %v4835 = vadd.f32 0.0, %v4834
      %4836 = vmatmul.f32.gmra.mxu0 %v4740
      %v4837 = vpop.f32.mrf.mxu0
      %v4838 = vadd.f32 0.0, %v4837
      %4839 = vmatmul.f32.gmra.mxu0 %v4741
      %v4840 = vpop.f32.mrf.mxu0
      %v4841 = vadd.f32 0.0, %v4840
      %4842 = vmatmul.f32.gmra.mxu0 %v4742
      %v4843 = vpop.f32.mrf.mxu0
      %v4844 = vadd.f32 0.0, %v4843
      %4845 = vmatmul.f32.gmra.mxu0 %v4743
      %v4846 = vpop.f32.mrf.mxu0
      %v4847 = vadd.f32 0.0, %v4846
      %4848 = vmatmul.f32.gmra.mxu0 %v4744
      %v4849 = vpop.f32.mrf.mxu0
      %v4850 = vadd.f32 0.0, %v4849
      %4851 = vmatmul.f32.gmra.mxu0 %v4745
      %v4852 = vpop.f32.mrf.mxu0
      %v4853 = vadd.f32 0.0, %v4852
      %4854 = vmatmul.f32.gmra.mxu0 %v4746
      %v4855 = vpop.f32.mrf.mxu0
      %v4856 = vadd.f32 0.0, %v4855
      %4857 = vmatmul.f32.gmra.mxu0 %v4747
      %v4858 = vpop.f32.mrf.mxu0
      %v4859 = vadd.f32 0.0, %v4858
      %4860 = vmatmul.f32.gmra.mxu0 %v4780
      %v4861 = vpop.f32.mrf.mxu0
      %v4862 = vadd.f32 0.0, %v4861
      %4863 = vmatmul.f32.gmra.mxu0 %v4781
      %v4864 = vpop.f32.mrf.mxu0
      %v4865 = vadd.f32 0.0, %v4864
      %4866 = vmatmul.f32.gmra.mxu0 %v4782
      %v4867 = vpop.f32.mrf.mxu0
      %v4868 = vadd.f32 0.0, %v4867
      %4869 = vmatmul.f32.gmra.mxu0 %v4783
      %v4870 = vpop.f32.mrf.mxu0
      %v4871 = vadd.f32 0.0, %v4870
      %4872 = vmatmul.f32.gmra.mxu0 %v4784
      %v4873 = vpop.f32.mrf.mxu0
      %v4874 = vadd.f32 0.0, %v4873
      %4875 = vmatmul.f32.gmra.mxu0 %v4785
      %v4876 = vpop.f32.mrf.mxu0
      %v4877 = vadd.f32 0.0, %v4876
      %4878 = vmatmul.f32.gmra.mxu0 %v4786
      %v4879 = vpop.f32.mrf.mxu0
      %v4880 = vadd.f32 0.0, %v4879
      %4881 = vmatmul.f32.gmra.mxu0 %v4787
      %v4882 = vpop.f32.mrf.mxu0
      %v4883 = vadd.f32 0.0, %v4882
      %4884 = vmatmul.f32.gmra.mxu0 %v4788
      %v4885 = vpop.f32.mrf.mxu0
      %v4886 = vadd.f32 0.0, %v4885
      %4887 = vmatmul.f32.gmra.mxu0 %v4789
      %v4888 = vpop.f32.mrf.mxu0
      %v4889 = vadd.f32 0.0, %v4888
      %4890 = vmatmul.f32.gmra.mxu0 %v4790
      %v4891 = vpop.f32.mrf.mxu0
      %v4892 = vadd.f32 0.0, %v4891
      %4893 = vmatmul.f32.gmra.mxu0 %v4791
      %v4894 = vpop.f32.mrf.mxu0
      %v4895 = vadd.f32 0.0, %v4894
      %4896 = vmatmul.f32.gmra.mxu0 %v4792
      %v4897 = vpop.f32.mrf.mxu0
      %v4898 = vadd.f32 0.0, %v4897
      %4899 = vmatmul.f32.gmra.mxu0 %v4793
      %v4900 = vpop.f32.mrf.mxu0
      %v4901 = vadd.f32 0.0, %v4900
      %4902 = vmatmul.f32.gmra.mxu0 %v4794
      %v4903 = vpop.f32.mrf.mxu0
      %v4904 = vadd.f32 0.0, %v4903
      %4905 = vmatmul.f32.gmra.mxu0 %v4795
      %v4906 = vpop.f32.mrf.mxu0
      %v4907 = vadd.f32 0.0, %v4906
      %4908 = vdwg.mxu0
      %v4909 = vsel %vm238, %v4838, %v4814
      %v4910 = vsel %vm238, %v4841, %v4817
      %v4911 = vsel %vm238, %v4844, %v4820
      %v4912 = vsel %vm238, %v4847, %v4823
      %v4913 = vsel %vm238, %v4850, %v4826
      %v4914 = vsel %vm238, %v4853, %v4829
      %v4915 = vsel %vm238, %v4856, %v4832
      %v4916 = vsel %vm238, %v4859, %v4835
      %v4917 = vsel %vm238, %v4814, %v4838
      %v4918 = vsel %vm238, %v4817, %v4841
      %v4919 = vsel %vm238, %v4820, %v4844
      %v4920 = vsel %vm238, %v4823, %v4847
      %v4921 = vsel %vm238, %v4826, %v4850
      %v4922 = vsel %vm238, %v4829, %v4853
      %v4923 = vsel %vm238, %v4832, %v4856
      %v4924 = vsel %vm238, %v4835, %v4859
      %v4925 = vsel %vm238, %v4886, %v4862
      %v4926 = vsel %vm238, %v4889, %v4865
      %v4927 = vsel %vm238, %v4892, %v4868
      %v4928 = vsel %vm238, %v4895, %v4871
      %v4929 = vsel %vm238, %v4898, %v4874
      %v4930 = vsel %vm238, %v4901, %v4877
      %v4931 = vsel %vm238, %v4904, %v4880
      %v4932 = vsel %vm238, %v4907, %v4883
      %v4933 = vsel %vm238, %v4862, %v4886
      %v4934 = vsel %vm238, %v4865, %v4889
      %v4935 = vsel %vm238, %v4868, %v4892
      %v4936 = vsel %vm238, %v4871, %v4895
      %v4937 = vsel %vm238, %v4874, %v4898
      %v4938 = vsel %vm238, %v4877, %v4901
      %v4939 = vsel %vm238, %v4880, %v4904
      %v4940 = vsel %vm238, %v4883, %v4907
      %4941 = vmatpush.msra.mxu0 %v4924
      %4942 = vmatpush.msra.mxu0 %v4923
      %4943 = vmatpush.msra.mxu0 %v4922
      %4944 = vmatpush.msra.mxu0 %v4921
      %4945 = vmatpush.msra.mxu0 %v4920
      %4946 = vmatpush.msra.mxu0 %v4919
      %4947 = vmatpush.msra.mxu0 %v4918
      %4948 = vmatpush.msra.mxu0 %v4917
      %4949 = vmatpush.msra.mxu0 %v4916
      %4950 = vmatpush.msra.mxu0 %v4915
      %4951 = vmatpush.msra.mxu0 %v4914
      %4952 = vmatpush.msra.mxu0 %v4913
      %4953 = vmatpush.msra.mxu0 %v4912
      %4954 = vmatpush.msra.mxu0 %v4911
      %4955 = vmatpush.msra.mxu0 %v4910
      %4956 = vmatpush.msra.mxu0 %v4909
      %4957 = vmatmul.f32.gmra.mxu0 %v854
      %v4958 = vpop.f32.mrf.mxu0
      %v4959 = vadd.f32 0.0, %v4958
      %4960 = vmatmul.f32.gmra.mxu0 %v855
      %v4961 = vpop.f32.mrf.mxu0
      %v4962 = vadd.f32 0.0, %v4961
      %4963 = vmatmul.f32.gmra.mxu0 %v856
      %v4964 = vpop.f32.mrf.mxu0
      %v4965 = vadd.f32 0.0, %v4964
      %4966 = vmatmul.f32.gmra.mxu0 %v857
      %v4967 = vpop.f32.mrf.mxu0
      %v4968 = vadd.f32 0.0, %v4967
      %4969 = vmatmul.f32.gmra.mxu0 %v858
      %v4970 = vpop.f32.mrf.mxu0
      %v4971 = vadd.f32 0.0, %v4970
      %4972 = vmatmul.f32.gmra.mxu0 %v859
      %v4973 = vpop.f32.mrf.mxu0
      %v4974 = vadd.f32 0.0, %v4973
      %4975 = vmatmul.f32.gmra.mxu0 %v860
      %v4976 = vpop.f32.mrf.mxu0
      %v4977 = vadd.f32 0.0, %v4976
      %4978 = vmatmul.f32.gmra.mxu0 %v861
      %v4979 = vpop.f32.mrf.mxu0
      %v4980 = vadd.f32 0.0, %v4979
      %4981 = vmatmul.f32.gmra.mxu0 %v862
      %v4982 = vpop.f32.mrf.mxu0
      %v4983 = vadd.f32 0.0, %v4982
      %4984 = vmatmul.f32.gmra.mxu0 %v863
      %v4985 = vpop.f32.mrf.mxu0
      %v4986 = vadd.f32 0.0, %v4985
      %4987 = vmatmul.f32.gmra.mxu0 %v864
      %v4988 = vpop.f32.mrf.mxu0
      %v4989 = vadd.f32 0.0, %v4988
      %4990 = vmatmul.f32.gmra.mxu0 %v865
      %v4991 = vpop.f32.mrf.mxu0
      %v4992 = vadd.f32 0.0, %v4991
      %4993 = vmatmul.f32.gmra.mxu0 %v866
      %v4994 = vpop.f32.mrf.mxu0
      %v4995 = vadd.f32 0.0, %v4994
      %4996 = vmatmul.f32.gmra.mxu0 %v867
      %v4997 = vpop.f32.mrf.mxu0
      %v4998 = vadd.f32 0.0, %v4997
      %4999 = vmatmul.f32.gmra.mxu0 %v868
      %v5000 = vpop.f32.mrf.mxu0
      %v5001 = vadd.f32 0.0, %v5000
      %5002 = vmatmul.f32.gmra.mxu0 %v869
      %v5003 = vpop.f32.mrf.mxu0
      %v5004 = vadd.f32 0.0, %v5003
      %5005 = vmatmul.f32.gmra.mxu0 %v870
      %v5006 = vpop.f32.mrf.mxu0
      %v5007 = vadd.f32 0.0, %v5006
      %5008 = vmatmul.f32.gmra.mxu0 %v871
      %v5009 = vpop.f32.mrf.mxu0
      %v5010 = vadd.f32 0.0, %v5009
      %5011 = vmatmul.f32.gmra.mxu0 %v872
      %v5012 = vpop.f32.mrf.mxu0
      %v5013 = vadd.f32 0.0, %v5012
      %5014 = vmatmul.f32.gmra.mxu0 %v873
      %v5015 = vpop.f32.mrf.mxu0
      %v5016 = vadd.f32 0.0, %v5015
      %5017 = vmatmul.f32.gmra.mxu0 %v874
      %v5018 = vpop.f32.mrf.mxu0
      %v5019 = vadd.f32 0.0, %v5018
      %5020 = vmatmul.f32.gmra.mxu0 %v875
      %v5021 = vpop.f32.mrf.mxu0
      %v5022 = vadd.f32 0.0, %v5021
      %5023 = vmatmul.f32.gmra.mxu0 %v876
      %v5024 = vpop.f32.mrf.mxu0
      %v5025 = vadd.f32 0.0, %v5024
      %5026 = vmatmul.f32.gmra.mxu0 %v877
      %v5027 = vpop.f32.mrf.mxu0
      %v5028 = vadd.f32 0.0, %v5027
      %5029 = vmatmul.f32.gmra.mxu0 %v878
      %v5030 = vpop.f32.mrf.mxu0
      %v5031 = vadd.f32 0.0, %v5030
      %5032 = vmatmul.f32.gmra.mxu0 %v879
      %v5033 = vpop.f32.mrf.mxu0
      %v5034 = vadd.f32 0.0, %v5033
      %5035 = vmatmul.f32.gmra.mxu0 %v880
      %v5036 = vpop.f32.mrf.mxu0
      %v5037 = vadd.f32 0.0, %v5036
      %5038 = vmatmul.f32.gmra.mxu0 %v881
      %v5039 = vpop.f32.mrf.mxu0
      %v5040 = vadd.f32 0.0, %v5039
      %5041 = vmatmul.f32.gmra.mxu0 %v882
      %v5042 = vpop.f32.mrf.mxu0
      %v5043 = vadd.f32 0.0, %v5042
      %5044 = vmatmul.f32.gmra.mxu0 %v883
      %v5045 = vpop.f32.mrf.mxu0
      %v5046 = vadd.f32 0.0, %v5045
      %5047 = vmatmul.f32.gmra.mxu0 %v884
      %v5048 = vpop.f32.mrf.mxu0
      %v5049 = vadd.f32 0.0, %v5048
      %5050 = vmatmul.f32.gmra.mxu0 %v885
      %v5051 = vpop.f32.mrf.mxu0
      %v5052 = vadd.f32 0.0, %v5051
      %5053 = vdwg.mxu0
      %5054 = vmatpush.msra.mxu0 %v4940
      %5055 = vmatpush.msra.mxu0 %v4939
      %5056 = vmatpush.msra.mxu0 %v4938
      %5057 = vmatpush.msra.mxu0 %v4937
      %5058 = vmatpush.msra.mxu0 %v4936
      %5059 = vmatpush.msra.mxu0 %v4935
      %5060 = vmatpush.msra.mxu0 %v4934
      %5061 = vmatpush.msra.mxu0 %v4933
      %5062 = vmatpush.msra.mxu0 %v4932
      %5063 = vmatpush.msra.mxu0 %v4931
      %5064 = vmatpush.msra.mxu0 %v4930
      %5065 = vmatpush.msra.mxu0 %v4929
      %5066 = vmatpush.msra.mxu0 %v4928
      %5067 = vmatpush.msra.mxu0 %v4927
      %5068 = vmatpush.msra.mxu0 %v4926
      %5069 = vmatpush.msra.mxu0 %v4925
      %5070 = vmatmul.f32.gmra.mxu0 %v854
      %v5071 = vpop.f32.mrf.mxu0
      %v5072 = vadd.f32 0.0, %v5071
      %5073 = vmatmul.f32.gmra.mxu0 %v855
      %v5074 = vpop.f32.mrf.mxu0
      %v5075 = vadd.f32 0.0, %v5074
      %5076 = vmatmul.f32.gmra.mxu0 %v856
      %v5077 = vpop.f32.mrf.mxu0
      %v5078 = vadd.f32 0.0, %v5077
      %5079 = vmatmul.f32.gmra.mxu0 %v857
      %v5080 = vpop.f32.mrf.mxu0
      %v5081 = vadd.f32 0.0, %v5080
      %5082 = vmatmul.f32.gmra.mxu0 %v858
      %v5083 = vpop.f32.mrf.mxu0
      %v5084 = vadd.f32 0.0, %v5083
      %5085 = vmatmul.f32.gmra.mxu0 %v859
      %v5086 = vpop.f32.mrf.mxu0
      %v5087 = vadd.f32 0.0, %v5086
      %5088 = vmatmul.f32.gmra.mxu0 %v860
      %v5089 = vpop.f32.mrf.mxu0
      %v5090 = vadd.f32 0.0, %v5089
      %5091 = vmatmul.f32.gmra.mxu0 %v861
      %v5092 = vpop.f32.mrf.mxu0
      %v5093 = vadd.f32 0.0, %v5092
      %5094 = vmatmul.f32.gmra.mxu0 %v862
      %v5095 = vpop.f32.mrf.mxu0
      %v5096 = vadd.f32 0.0, %v5095
      %5097 = vmatmul.f32.gmra.mxu0 %v863
      %v5098 = vpop.f32.mrf.mxu0
      %v5099 = vadd.f32 0.0, %v5098
      %5100 = vmatmul.f32.gmra.mxu0 %v864
      %v5101 = vpop.f32.mrf.mxu0
      %v5102 = vadd.f32 0.0, %v5101
      %5103 = vmatmul.f32.gmra.mxu0 %v865
      %v5104 = vpop.f32.mrf.mxu0
      %v5105 = vadd.f32 0.0, %v5104
      %5106 = vmatmul.f32.gmra.mxu0 %v866
      %v5107 = vpop.f32.mrf.mxu0
      %v5108 = vadd.f32 0.0, %v5107
      %5109 = vmatmul.f32.gmra.mxu0 %v867
      %v5110 = vpop.f32.mrf.mxu0
      %v5111 = vadd.f32 0.0, %v5110
      %5112 = vmatmul.f32.gmra.mxu0 %v868
      %v5113 = vpop.f32.mrf.mxu0
      %v5114 = vadd.f32 0.0, %v5113
      %5115 = vmatmul.f32.gmra.mxu0 %v869
      %v5116 = vpop.f32.mrf.mxu0
      %v5117 = vadd.f32 0.0, %v5116
      %5118 = vmatmul.f32.gmra.mxu0 %v870
      %v5119 = vpop.f32.mrf.mxu0
      %v5120 = vadd.f32 0.0, %v5119
      %5121 = vmatmul.f32.gmra.mxu0 %v871
      %v5122 = vpop.f32.mrf.mxu0
      %v5123 = vadd.f32 0.0, %v5122
      %5124 = vmatmul.f32.gmra.mxu0 %v872
      %v5125 = vpop.f32.mrf.mxu0
      %v5126 = vadd.f32 0.0, %v5125
      %5127 = vmatmul.f32.gmra.mxu0 %v873
      %v5128 = vpop.f32.mrf.mxu0
      %v5129 = vadd.f32 0.0, %v5128
      %5130 = vmatmul.f32.gmra.mxu0 %v874
      %v5131 = vpop.f32.mrf.mxu0
      %v5132 = vadd.f32 0.0, %v5131
      %5133 = vmatmul.f32.gmra.mxu0 %v875
      %v5134 = vpop.f32.mrf.mxu0
      %v5135 = vadd.f32 0.0, %v5134
      %5136 = vmatmul.f32.gmra.mxu0 %v876
      %v5137 = vpop.f32.mrf.mxu0
      %v5138 = vadd.f32 0.0, %v5137
      %5139 = vmatmul.f32.gmra.mxu0 %v877
      %v5140 = vpop.f32.mrf.mxu0
      %v5141 = vadd.f32 0.0, %v5140
      %5142 = vmatmul.f32.gmra.mxu0 %v878
      %v5143 = vpop.f32.mrf.mxu0
      %v5144 = vadd.f32 0.0, %v5143
      %5145 = vmatmul.f32.gmra.mxu0 %v879
      %v5146 = vpop.f32.mrf.mxu0
      %v5147 = vadd.f32 0.0, %v5146
      %5148 = vmatmul.f32.gmra.mxu0 %v880
      %v5149 = vpop.f32.mrf.mxu0
      %v5150 = vadd.f32 0.0, %v5149
      %5151 = vmatmul.f32.gmra.mxu0 %v881
      %v5152 = vpop.f32.mrf.mxu0
      %v5153 = vadd.f32 0.0, %v5152
      %5154 = vmatmul.f32.gmra.mxu0 %v882
      %v5155 = vpop.f32.mrf.mxu0
      %v5156 = vadd.f32 0.0, %v5155
      %5157 = vmatmul.f32.gmra.mxu0 %v883
      %v5158 = vpop.f32.mrf.mxu0
      %v5159 = vadd.f32 0.0, %v5158
      %5160 = vmatmul.f32.gmra.mxu0 %v884
      %v5161 = vpop.f32.mrf.mxu0
      %v5162 = vadd.f32 0.0, %v5161
      %5163 = vmatmul.f32.gmra.mxu0 %v885
      %v5164 = vpop.f32.mrf.mxu0
      %v5165 = vadd.f32 0.0, %v5164
      %5166 = vdwg.mxu0
      %v5167 = vsub.f32 %v4959, %v5120
      %v5168 = vsub.f32 %v4962, %v5123
      %v5169 = vsub.f32 %v4965, %v5126
      %v5170 = vsub.f32 %v4968, %v5129
      %v5171 = vsub.f32 %v4971, %v5132
      %v5172 = vsub.f32 %v4974, %v5135
      %v5173 = vsub.f32 %v4977, %v5138
      %v5174 = vsub.f32 %v4980, %v5141
      %v5175 = vsub.f32 %v4983, %v5144
      %v5176 = vsub.f32 %v4986, %v5147
      %v5177 = vsub.f32 %v4989, %v5150
      %v5178 = vsub.f32 %v4992, %v5153
      %v5179 = vsub.f32 %v4995, %v5156
      %v5180 = vsub.f32 %v4998, %v5159
      %v5181 = vsub.f32 %v5001, %v5162
      %v5182 = vsub.f32 %v5004, %v5165
      %v5183 = vadd.f32 %v5072, %v5007
      %v5184 = vadd.f32 %v5075, %v5010
      %v5185 = vadd.f32 %v5078, %v5013
      %v5186 = vadd.f32 %v5081, %v5016
      %v5187 = vadd.f32 %v5084, %v5019
      %v5188 = vadd.f32 %v5087, %v5022
      %v5189 = vadd.f32 %v5090, %v5025
      %v5190 = vadd.f32 %v5093, %v5028
      %v5191 = vadd.f32 %v5096, %v5031
      %v5192 = vadd.f32 %v5099, %v5034
      %v5193 = vadd.f32 %v5102, %v5037
      %v5194 = vadd.f32 %v5105, %v5040
      %v5195 = vadd.f32 %v5108, %v5043
      %v5196 = vadd.f32 %v5111, %v5046
      %v5197 = vadd.f32 %v5114, %v5049
      %v5198 = vadd.f32 %v5117, %v5052
      %5199 = vmatpush.msra.mxu0 %v1856
      %5200 = vmatpush.msra.mxu0 %v1854
      %5201 = vmatpush.msra.mxu0 %v1852
      %5202 = vmatpush.msra.mxu0 %v1850
      %5203 = vmatpush.msra.mxu0 %v1848
      %5204 = vmatpush.msra.mxu0 %v1846
      %5205 = vmatpush.msra.mxu0 %v1844
      %5206 = vmatpush.msra.mxu0 %v1842
      %5207 = vmatpush.msra.mxu0 %v1840
      %5208 = vmatpush.msra.mxu0 %v1838
      %5209 = vmatpush.msra.mxu0 %v1836
      %5210 = vmatpush.msra.mxu0 %v1834
      %5211 = vmatpush.msra.mxu0 %v1832
      %5212 = vmatpush.msra.mxu0 %v1830
      %5213 = vmatpush.msra.mxu0 %v1828
      %5214 = vmatpush.msra.mxu0 %v1826
      %5215 = vmatmul.f32.gmra.mxu0 %v5167
      %v5216 = vpop.f32.mrf.mxu0
      %v5217 = vadd.f32 0.0, %v5216
      %5218 = vmatmul.f32.gmra.mxu0 %v5168
      %v5219 = vpop.f32.mrf.mxu0
      %v5220 = vadd.f32 0.0, %v5219
      %5221 = vmatmul.f32.gmra.mxu0 %v5169
      %v5222 = vpop.f32.mrf.mxu0
      %v5223 = vadd.f32 0.0, %v5222
      %5224 = vmatmul.f32.gmra.mxu0 %v5170
      %v5225 = vpop.f32.mrf.mxu0
      %v5226 = vadd.f32 0.0, %v5225
      %5227 = vmatmul.f32.gmra.mxu0 %v5171
      %v5228 = vpop.f32.mrf.mxu0
      %v5229 = vadd.f32 0.0, %v5228
      %5230 = vmatmul.f32.gmra.mxu0 %v5172
      %v5231 = vpop.f32.mrf.mxu0
      %v5232 = vadd.f32 0.0, %v5231
      %5233 = vmatmul.f32.gmra.mxu0 %v5173
      %v5234 = vpop.f32.mrf.mxu0
      %v5235 = vadd.f32 0.0, %v5234
      %5236 = vmatmul.f32.gmra.mxu0 %v5174
      %v5237 = vpop.f32.mrf.mxu0
      %v5238 = vadd.f32 0.0, %v5237
      %5239 = vmatmul.f32.gmra.mxu0 %v5175
      %v5240 = vpop.f32.mrf.mxu0
      %v5241 = vadd.f32 0.0, %v5240
      %5242 = vmatmul.f32.gmra.mxu0 %v5176
      %v5243 = vpop.f32.mrf.mxu0
      %v5244 = vadd.f32 0.0, %v5243
      %5245 = vmatmul.f32.gmra.mxu0 %v5177
      %v5246 = vpop.f32.mrf.mxu0
      %v5247 = vadd.f32 0.0, %v5246
      %5248 = vmatmul.f32.gmra.mxu0 %v5178
      %v5249 = vpop.f32.mrf.mxu0
      %v5250 = vadd.f32 0.0, %v5249
      %5251 = vmatmul.f32.gmra.mxu0 %v5179
      %v5252 = vpop.f32.mrf.mxu0
      %v5253 = vadd.f32 0.0, %v5252
      %5254 = vmatmul.f32.gmra.mxu0 %v5180
      %v5255 = vpop.f32.mrf.mxu0
      %v5256 = vadd.f32 0.0, %v5255
      %5257 = vmatmul.f32.gmra.mxu0 %v5181
      %v5258 = vpop.f32.mrf.mxu0
      %v5259 = vadd.f32 0.0, %v5258
      %5260 = vmatmul.f32.gmra.mxu0 %v5182
      %v5261 = vpop.f32.mrf.mxu0
      %v5262 = vadd.f32 0.0, %v5261
      %5263 = vmatmul.f32.gmra.mxu0 %v5183
      %v5264 = vpop.f32.mrf.mxu0
      %v5265 = vadd.f32 0.0, %v5264
      %5266 = vmatmul.f32.gmra.mxu0 %v5184
      %v5267 = vpop.f32.mrf.mxu0
      %v5268 = vadd.f32 0.0, %v5267
      %5269 = vmatmul.f32.gmra.mxu0 %v5185
      %v5270 = vpop.f32.mrf.mxu0
      %v5271 = vadd.f32 0.0, %v5270
      %5272 = vmatmul.f32.gmra.mxu0 %v5186
      %v5273 = vpop.f32.mrf.mxu0
      %v5274 = vadd.f32 0.0, %v5273
      %5275 = vmatmul.f32.gmra.mxu0 %v5187
      %v5276 = vpop.f32.mrf.mxu0
      %v5277 = vadd.f32 0.0, %v5276
      %5278 = vmatmul.f32.gmra.mxu0 %v5188
      %v5279 = vpop.f32.mrf.mxu0
      %v5280 = vadd.f32 0.0, %v5279
      %5281 = vmatmul.f32.gmra.mxu0 %v5189
      %v5282 = vpop.f32.mrf.mxu0
      %v5283 = vadd.f32 0.0, %v5282
      %5284 = vmatmul.f32.gmra.mxu0 %v5190
      %v5285 = vpop.f32.mrf.mxu0
      %v5286 = vadd.f32 0.0, %v5285
      %5287 = vmatmul.f32.gmra.mxu0 %v5191
      %v5288 = vpop.f32.mrf.mxu0
      %v5289 = vadd.f32 0.0, %v5288
      %5290 = vmatmul.f32.gmra.mxu0 %v5192
      %v5291 = vpop.f32.mrf.mxu0
      %v5292 = vadd.f32 0.0, %v5291
      %5293 = vmatmul.f32.gmra.mxu0 %v5193
      %v5294 = vpop.f32.mrf.mxu0
      %v5295 = vadd.f32 0.0, %v5294
      %5296 = vmatmul.f32.gmra.mxu0 %v5194
      %v5297 = vpop.f32.mrf.mxu0
      %v5298 = vadd.f32 0.0, %v5297
      %5299 = vmatmul.f32.gmra.mxu0 %v5195
      %v5300 = vpop.f32.mrf.mxu0
      %v5301 = vadd.f32 0.0, %v5300
      %5302 = vmatmul.f32.gmra.mxu0 %v5196
      %v5303 = vpop.f32.mrf.mxu0
      %v5304 = vadd.f32 0.0, %v5303
      %5305 = vmatmul.f32.gmra.mxu0 %v5197
      %v5306 = vpop.f32.mrf.mxu0
      %v5307 = vadd.f32 0.0, %v5306
      %5308 = vmatmul.f32.gmra.mxu0 %v5198
      %v5309 = vpop.f32.mrf.mxu0
      %v5310 = vadd.f32 0.0, %v5309
      %5311 = vdwg.mxu0
      %5312 = vmatpush.msra.mxu0 %v1857
      %5313 = vmatpush.msra.mxu0 %v1855
      %5314 = vmatpush.msra.mxu0 %v1853
      %5315 = vmatpush.msra.mxu0 %v1851
      %5316 = vmatpush.msra.mxu0 %v1849
      %5317 = vmatpush.msra.mxu0 %v1847
      %5318 = vmatpush.msra.mxu0 %v1845
      %5319 = vmatpush.msra.mxu0 %v1843
      %5320 = vmatpush.msra.mxu0 %v1841
      %5321 = vmatpush.msra.mxu0 %v1839
      %5322 = vmatpush.msra.mxu0 %v1837
      %5323 = vmatpush.msra.mxu0 %v1835
      %5324 = vmatpush.msra.mxu0 %v1833
      %5325 = vmatpush.msra.mxu0 %v1831
      %5326 = vmatpush.msra.mxu0 %v1829
      %5327 = vmatpush.msra.mxu0 %v1827
      %5328 = vmatmul.f32.gmra.mxu0 %v5167
      %v5329 = vpop.f32.mrf.mxu0
      %v5330 = vadd.f32 0.0, %v5329
      %5331 = vmatmul.f32.gmra.mxu0 %v5168
      %v5332 = vpop.f32.mrf.mxu0
      %v5333 = vadd.f32 0.0, %v5332
      %5334 = vmatmul.f32.gmra.mxu0 %v5169
      %v5335 = vpop.f32.mrf.mxu0
      %v5336 = vadd.f32 0.0, %v5335
      %5337 = vmatmul.f32.gmra.mxu0 %v5170
      %v5338 = vpop.f32.mrf.mxu0
      %v5339 = vadd.f32 0.0, %v5338
      %5340 = vmatmul.f32.gmra.mxu0 %v5171
      %v5341 = vpop.f32.mrf.mxu0
      %v5342 = vadd.f32 0.0, %v5341
      %5343 = vmatmul.f32.gmra.mxu0 %v5172
      %v5344 = vpop.f32.mrf.mxu0
      %v5345 = vadd.f32 0.0, %v5344
      %5346 = vmatmul.f32.gmra.mxu0 %v5173
      %v5347 = vpop.f32.mrf.mxu0
      %v5348 = vadd.f32 0.0, %v5347
      %5349 = vmatmul.f32.gmra.mxu0 %v5174
      %v5350 = vpop.f32.mrf.mxu0
      %v5351 = vadd.f32 0.0, %v5350
      %5352 = vmatmul.f32.gmra.mxu0 %v5175
      %v5353 = vpop.f32.mrf.mxu0
      %v5354 = vadd.f32 0.0, %v5353
      %5355 = vmatmul.f32.gmra.mxu0 %v5176
      %v5356 = vpop.f32.mrf.mxu0
      %v5357 = vadd.f32 0.0, %v5356
      %5358 = vmatmul.f32.gmra.mxu0 %v5177
      %v5359 = vpop.f32.mrf.mxu0
      %v5360 = vadd.f32 0.0, %v5359
      %5361 = vmatmul.f32.gmra.mxu0 %v5178
      %v5362 = vpop.f32.mrf.mxu0
      %v5363 = vadd.f32 0.0, %v5362
      %5364 = vmatmul.f32.gmra.mxu0 %v5179
      %v5365 = vpop.f32.mrf.mxu0
      %v5366 = vadd.f32 0.0, %v5365
      %5367 = vmatmul.f32.gmra.mxu0 %v5180
      %v5368 = vpop.f32.mrf.mxu0
      %v5369 = vadd.f32 0.0, %v5368
      %5370 = vmatmul.f32.gmra.mxu0 %v5181
      %v5371 = vpop.f32.mrf.mxu0
      %v5372 = vadd.f32 0.0, %v5371
      %5373 = vmatmul.f32.gmra.mxu0 %v5182
      %v5374 = vpop.f32.mrf.mxu0
      %v5375 = vadd.f32 0.0, %v5374
      %5376 = vmatmul.f32.gmra.mxu0 %v5183
      %v5377 = vpop.f32.mrf.mxu0
      %v5378 = vadd.f32 0.0, %v5377
      %5379 = vmatmul.f32.gmra.mxu0 %v5184
      %v5380 = vpop.f32.mrf.mxu0
      %v5381 = vadd.f32 0.0, %v5380
      %5382 = vmatmul.f32.gmra.mxu0 %v5185
      %v5383 = vpop.f32.mrf.mxu0
      %v5384 = vadd.f32 0.0, %v5383
      %5385 = vmatmul.f32.gmra.mxu0 %v5186
      %v5386 = vpop.f32.mrf.mxu0
      %v5387 = vadd.f32 0.0, %v5386
      %5388 = vmatmul.f32.gmra.mxu0 %v5187
      %v5389 = vpop.f32.mrf.mxu0
      %v5390 = vadd.f32 0.0, %v5389
      %5391 = vmatmul.f32.gmra.mxu0 %v5188
      %v5392 = vpop.f32.mrf.mxu0
      %v5393 = vadd.f32 0.0, %v5392
      %5394 = vmatmul.f32.gmra.mxu0 %v5189
      %v5395 = vpop.f32.mrf.mxu0
      %v5396 = vadd.f32 0.0, %v5395
      %5397 = vmatmul.f32.gmra.mxu0 %v5190
      %v5398 = vpop.f32.mrf.mxu0
      %v5399 = vadd.f32 0.0, %v5398
      %5400 = vmatmul.f32.gmra.mxu0 %v5191
      %v5401 = vpop.f32.mrf.mxu0
      %v5402 = vadd.f32 0.0, %v5401
      %5403 = vmatmul.f32.gmra.mxu0 %v5192
      %v5404 = vpop.f32.mrf.mxu0
      %v5405 = vadd.f32 0.0, %v5404
      %5406 = vmatmul.f32.gmra.mxu0 %v5193
      %v5407 = vpop.f32.mrf.mxu0
      %v5408 = vadd.f32 0.0, %v5407
      %5409 = vmatmul.f32.gmra.mxu0 %v5194
      %v5410 = vpop.f32.mrf.mxu0
      %v5411 = vadd.f32 0.0, %v5410
      %5412 = vmatmul.f32.gmra.mxu0 %v5195
      %v5413 = vpop.f32.mrf.mxu0
      %v5414 = vadd.f32 0.0, %v5413
      %5415 = vmatmul.f32.gmra.mxu0 %v5196
      %v5416 = vpop.f32.mrf.mxu0
      %v5417 = vadd.f32 0.0, %v5416
      %5418 = vmatmul.f32.gmra.mxu0 %v5197
      %v5419 = vpop.f32.mrf.mxu0
      %v5420 = vadd.f32 0.0, %v5419
      %5421 = vmatmul.f32.gmra.mxu0 %v5198
      %v5422 = vpop.f32.mrf.mxu0
      %v5423 = vadd.f32 0.0, %v5422
      %5424 = vdwg.mxu0
      %v5425 = vsub.f32 %v5217, %v5378
      %v5426 = vsub.f32 %v5220, %v5381
      %v5427 = vsub.f32 %v5223, %v5384
      %v5428 = vsub.f32 %v5226, %v5387
      %v5429 = vsub.f32 %v5229, %v5390
      %v5430 = vsub.f32 %v5232, %v5393
      %v5431 = vsub.f32 %v5235, %v5396
      %v5432 = vsub.f32 %v5238, %v5399
      %v5433 = vsub.f32 %v5241, %v5402
      %v5434 = vsub.f32 %v5244, %v5405
      %v5435 = vsub.f32 %v5247, %v5408
      %v5436 = vsub.f32 %v5250, %v5411
      %v5437 = vsub.f32 %v5253, %v5414
      %v5438 = vsub.f32 %v5256, %v5417
      %v5439 = vsub.f32 %v5259, %v5420
      %v5440 = vsub.f32 %v5262, %v5423
      %v5441 = vadd.f32 %v5330, %v5265
      %v5442 = vadd.f32 %v5333, %v5268
      %v5443 = vadd.f32 %v5336, %v5271
      %v5444 = vadd.f32 %v5339, %v5274
      %v5445 = vadd.f32 %v5342, %v5277
      %v5446 = vadd.f32 %v5345, %v5280
      %v5447 = vadd.f32 %v5348, %v5283
      %v5448 = vadd.f32 %v5351, %v5286
      %v5449 = vadd.f32 %v5354, %v5289
      %v5450 = vadd.f32 %v5357, %v5292
      %v5451 = vadd.f32 %v5360, %v5295
      %v5452 = vadd.f32 %v5363, %v5298
      %v5453 = vadd.f32 %v5366, %v5301
      %v5454 = vadd.f32 %v5369, %v5304
      %v5455 = vadd.f32 %v5372, %v5307
      %v5456 = vadd.f32 %v5375, %v5310
      %5457 = vmatpush.msra.mxu0 %v5440
      %5458 = vmatpush.msra.mxu0 %v5439
      %5459 = vmatpush.msra.mxu0 %v5438
      %5460 = vmatpush.msra.mxu0 %v5437
      %5461 = vmatpush.msra.mxu0 %v5436
      %5462 = vmatpush.msra.mxu0 %v5435
      %5463 = vmatpush.msra.mxu0 %v5434
      %5464 = vmatpush.msra.mxu0 %v5433
      %5465 = vmatpush.msra.mxu0 %v5432
      %5466 = vmatpush.msra.mxu0 %v5431
      %5467 = vmatpush.msra.mxu0 %v5430
      %5468 = vmatpush.msra.mxu0 %v5429
      %5469 = vmatpush.msra.mxu0 %v5428
      %5470 = vmatpush.msra.mxu0 %v5427
      %5471 = vmatpush.msra.mxu0 %v5426
      %5472 = vmatpush.msra.mxu0 %v5425
      %5473 = vmatmul.f32.gmra.mxu0 %v2231
      %v5474 = vpop.f32.mrf.mxu0
      %v5475 = vadd.f32 0.0, %v5474
      %5476 = vmatmul.f32.gmra.mxu0 %v2232
      %v5477 = vpop.f32.mrf.mxu0
      %v5478 = vadd.f32 0.0, %v5477
      %5479 = vmatmul.f32.gmra.mxu0 %v2233
      %v5480 = vpop.f32.mrf.mxu0
      %v5481 = vadd.f32 0.0, %v5480
      %5482 = vmatmul.f32.gmra.mxu0 %v2234
      %v5483 = vpop.f32.mrf.mxu0
      %v5484 = vadd.f32 0.0, %v5483
      %5485 = vmatmul.f32.gmra.mxu0 %v2235
      %v5486 = vpop.f32.mrf.mxu0
      %v5487 = vadd.f32 0.0, %v5486
      %5488 = vmatmul.f32.gmra.mxu0 %v2236
      %v5489 = vpop.f32.mrf.mxu0
      %v5490 = vadd.f32 0.0, %v5489
      %5491 = vmatmul.f32.gmra.mxu0 %v2237
      %v5492 = vpop.f32.mrf.mxu0
      %v5493 = vadd.f32 0.0, %v5492
      %5494 = vmatmul.f32.gmra.mxu0 %v2238
      %v5495 = vpop.f32.mrf.mxu0
      %v5496 = vadd.f32 0.0, %v5495
      %5497 = vmatmul.f32.gmra.mxu0 %v2239
      %v5498 = vpop.f32.mrf.mxu0
      %v5499 = vadd.f32 0.0, %v5498
      %5500 = vmatmul.f32.gmra.mxu0 %v2240
      %v5501 = vpop.f32.mrf.mxu0
      %v5502 = vadd.f32 0.0, %v5501
      %5503 = vmatmul.f32.gmra.mxu0 %v2241
      %v5504 = vpop.f32.mrf.mxu0
      %v5505 = vadd.f32 0.0, %v5504
      %5506 = vmatmul.f32.gmra.mxu0 %v2242
      %v5507 = vpop.f32.mrf.mxu0
      %v5508 = vadd.f32 0.0, %v5507
      %5509 = vmatmul.f32.gmra.mxu0 %v2243
      %v5510 = vpop.f32.mrf.mxu0
      %v5511 = vadd.f32 0.0, %v5510
      %5512 = vmatmul.f32.gmra.mxu0 %v2244
      %v5513 = vpop.f32.mrf.mxu0
      %v5514 = vadd.f32 0.0, %v5513
      %5515 = vmatmul.f32.gmra.mxu0 %v2245
      %v5516 = vpop.f32.mrf.mxu0
      %v5517 = vadd.f32 0.0, %v5516
      %5518 = vmatmul.f32.gmra.mxu0 %v2246
      %v5519 = vpop.f32.mrf.mxu0
      %v5520 = vadd.f32 0.0, %v5519
      %5521 = vdwg.mxu0
      %5522 = vmatpush.msra.mxu0 %v5456
      %5523 = vmatpush.msra.mxu0 %v5455
      %5524 = vmatpush.msra.mxu0 %v5454
      %5525 = vmatpush.msra.mxu0 %v5453
      %5526 = vmatpush.msra.mxu0 %v5452
      %5527 = vmatpush.msra.mxu0 %v5451
      %5528 = vmatpush.msra.mxu0 %v5450
      %5529 = vmatpush.msra.mxu0 %v5449
      %5530 = vmatpush.msra.mxu0 %v5448
      %5531 = vmatpush.msra.mxu0 %v5447
      %5532 = vmatpush.msra.mxu0 %v5446
      %5533 = vmatpush.msra.mxu0 %v5445
      %5534 = vmatpush.msra.mxu0 %v5444
      %5535 = vmatpush.msra.mxu0 %v5443
      %5536 = vmatpush.msra.mxu0 %v5442
      %5537 = vmatpush.msra.mxu0 %v5441
      %5538 = vmatmul.f32.gmra.mxu0 %v2231
      %v5539 = vpop.f32.mrf.mxu0
      %v5540 = vadd.f32 0.0, %v5539
      %5541 = vmatmul.f32.gmra.mxu0 %v2232
      %v5542 = vpop.f32.mrf.mxu0
      %v5543 = vadd.f32 0.0, %v5542
      %5544 = vmatmul.f32.gmra.mxu0 %v2233
      %v5545 = vpop.f32.mrf.mxu0
      %v5546 = vadd.f32 0.0, %v5545
      %5547 = vmatmul.f32.gmra.mxu0 %v2234
      %v5548 = vpop.f32.mrf.mxu0
      %v5549 = vadd.f32 0.0, %v5548
      %5550 = vmatmul.f32.gmra.mxu0 %v2235
      %v5551 = vpop.f32.mrf.mxu0
      %v5552 = vadd.f32 0.0, %v5551
      %5553 = vmatmul.f32.gmra.mxu0 %v2236
      %v5554 = vpop.f32.mrf.mxu0
      %v5555 = vadd.f32 0.0, %v5554
      %5556 = vmatmul.f32.gmra.mxu0 %v2237
      %v5557 = vpop.f32.mrf.mxu0
      %v5558 = vadd.f32 0.0, %v5557
      %5559 = vmatmul.f32.gmra.mxu0 %v2238
      %v5560 = vpop.f32.mrf.mxu0
      %v5561 = vadd.f32 0.0, %v5560
      %5562 = vmatmul.f32.gmra.mxu0 %v2239
      %v5563 = vpop.f32.mrf.mxu0
      %v5564 = vadd.f32 0.0, %v5563
      %5565 = vmatmul.f32.gmra.mxu0 %v2240
      %v5566 = vpop.f32.mrf.mxu0
      %v5567 = vadd.f32 0.0, %v5566
      %5568 = vmatmul.f32.gmra.mxu0 %v2241
      %v5569 = vpop.f32.mrf.mxu0
      %v5570 = vadd.f32 0.0, %v5569
      %5571 = vmatmul.f32.gmra.mxu0 %v2242
      %v5572 = vpop.f32.mrf.mxu0
      %v5573 = vadd.f32 0.0, %v5572
      %5574 = vmatmul.f32.gmra.mxu0 %v2243
      %v5575 = vpop.f32.mrf.mxu0
      %v5576 = vadd.f32 0.0, %v5575
      %5577 = vmatmul.f32.gmra.mxu0 %v2244
      %v5578 = vpop.f32.mrf.mxu0
      %v5579 = vadd.f32 0.0, %v5578
      %5580 = vmatmul.f32.gmra.mxu0 %v2245
      %v5581 = vpop.f32.mrf.mxu0
      %v5582 = vadd.f32 0.0, %v5581
      %5583 = vmatmul.f32.gmra.mxu0 %v2246
      %v5584 = vpop.f32.mrf.mxu0
      %v5585 = vadd.f32 0.0, %v5584
      %5586 = vdwg.mxu0
      %5587 = vrot.lane.b32.xlu0 %v5475, 64
      %v5588 = vpop.permute.xlu0 %5587
      %5589 = vrot.lane.b32.xlu0 %v5478, 64
      %v5590 = vpop.permute.xlu0 %5589
      %5591 = vrot.lane.b32.xlu0 %v5481, 64
      %v5592 = vpop.permute.xlu0 %5591
      %5593 = vrot.lane.b32.xlu0 %v5484, 64
      %v5594 = vpop.permute.xlu0 %5593
      %5595 = vrot.lane.b32.xlu0 %v5487, 64
      %v5596 = vpop.permute.xlu0 %5595
      %5597 = vrot.lane.b32.xlu0 %v5490, 64
      %v5598 = vpop.permute.xlu0 %5597
      %5599 = vrot.lane.b32.xlu0 %v5493, 64
      %v5600 = vpop.permute.xlu0 %5599
      %5601 = vrot.lane.b32.xlu0 %v5496, 64
      %v5602 = vpop.permute.xlu0 %5601
      %5603 = vrot.lane.b32.xlu0 %v5499, 64
      %v5604 = vpop.permute.xlu0 %5603
      %5605 = vrot.lane.b32.xlu0 %v5502, 64
      %v5606 = vpop.permute.xlu0 %5605
      %5607 = vrot.lane.b32.xlu0 %v5505, 64
      %v5608 = vpop.permute.xlu0 %5607
      %5609 = vrot.lane.b32.xlu0 %v5508, 64
      %v5610 = vpop.permute.xlu0 %5609
      %5611 = vrot.lane.b32.xlu0 %v5511, 64
      %v5612 = vpop.permute.xlu0 %5611
      %5613 = vrot.lane.b32.xlu0 %v5514, 64
      %v5614 = vpop.permute.xlu0 %5613
      %5615 = vrot.lane.b32.xlu0 %v5517, 64
      %v5616 = vpop.permute.xlu0 %5615
      %5617 = vrot.lane.b32.xlu0 %v5520, 64
      %v5618 = vpop.permute.xlu0 %5617
      %v5619 = vsel %vm222, %v5588, %v5475
      %v5620 = vsel %vm223, %v5590, %v5478
      %v5621 = vsel %vm224, %v5592, %v5481
      %v5622 = vsel %vm225, %v5594, %v5484
      %v5623 = vsel %vm226, %v5596, %v5487
      %v5624 = vsel %vm227, %v5598, %v5490
      %v5625 = vsel %vm228, %v5600, %v5493
      %v5626 = vsel %vm229, %v5602, %v5496
      %v5627 = vsel %vm230, %v5604, %v5499
      %v5628 = vsel %vm231, %v5606, %v5502
      %v5629 = vsel %vm232, %v5608, %v5505
      %v5630 = vsel %vm233, %v5610, %v5508
      %v5631 = vsel %vm234, %v5612, %v5511
      %v5632 = vsel %vm235, %v5614, %v5514
      %v5633 = vsel %vm236, %v5616, %v5517
      %v5634 = vsel %vm237, %v5618, %v5520
      %5635 = vrot.lane.b32.xlu0 %v5540, 64
      %v5636 = vpop.permute.xlu0 %5635
      %5637 = vrot.lane.b32.xlu0 %v5543, 64
      %v5638 = vpop.permute.xlu0 %5637
      %5639 = vrot.lane.b32.xlu0 %v5546, 64
      %v5640 = vpop.permute.xlu0 %5639
      %5641 = vrot.lane.b32.xlu0 %v5549, 64
      %v5642 = vpop.permute.xlu0 %5641
      %5643 = vrot.lane.b32.xlu0 %v5552, 64
      %v5644 = vpop.permute.xlu0 %5643
      %5645 = vrot.lane.b32.xlu0 %v5555, 64
      %v5646 = vpop.permute.xlu0 %5645
      %5647 = vrot.lane.b32.xlu0 %v5558, 64
      %v5648 = vpop.permute.xlu0 %5647
      %5649 = vrot.lane.b32.xlu0 %v5561, 64
      %v5650 = vpop.permute.xlu0 %5649
      %5651 = vrot.lane.b32.xlu0 %v5564, 64
      %v5652 = vpop.permute.xlu0 %5651
      %5653 = vrot.lane.b32.xlu0 %v5567, 64
      %v5654 = vpop.permute.xlu0 %5653
      %5655 = vrot.lane.b32.xlu0 %v5570, 64
      %v5656 = vpop.permute.xlu0 %5655
      %5657 = vrot.lane.b32.xlu0 %v5573, 64
      %v5658 = vpop.permute.xlu0 %5657
      %5659 = vrot.lane.b32.xlu0 %v5576, 64
      %v5660 = vpop.permute.xlu0 %5659
      %5661 = vrot.lane.b32.xlu0 %v5579, 64
      %v5662 = vpop.permute.xlu0 %5661
      %5663 = vrot.lane.b32.xlu0 %v5582, 64
      %v5664 = vpop.permute.xlu0 %5663
      %5665 = vrot.lane.b32.xlu0 %v5585, 64
      %v5666 = vpop.permute.xlu0 %5665
      %v5667 = vsel %vm222, %v5636, %v5540
      %v5668 = vsel %vm223, %v5638, %v5543
      %v5669 = vsel %vm224, %v5640, %v5546
      %v5670 = vsel %vm225, %v5642, %v5549
      %v5671 = vsel %vm226, %v5644, %v5552
      %v5672 = vsel %vm227, %v5646, %v5555
      %v5673 = vsel %vm228, %v5648, %v5558
      %v5674 = vsel %vm229, %v5650, %v5561
      %v5675 = vsel %vm230, %v5652, %v5564
      %v5676 = vsel %vm231, %v5654, %v5567
      %v5677 = vsel %vm232, %v5656, %v5570
      %v5678 = vsel %vm233, %v5658, %v5573
      %v5679 = vsel %vm234, %v5660, %v5576
      %v5680 = vsel %vm235, %v5662, %v5579
      %v5681 = vsel %vm236, %v5664, %v5582
      %v5682 = vsel %vm237, %v5666, %v5585
      %5683 = vmatpush.msra.mxu0 %v2279
      %5684 = vmatpush.msra.mxu0 %v2278
      %5685 = vmatpush.msra.mxu0 %v2277
      %5686 = vmatpush.msra.mxu0 %v2276
      %5687 = vmatpush.msra.mxu0 %v2275
      %5688 = vmatpush.msra.mxu0 %v2274
      %5689 = vmatpush.msra.mxu0 %v2273
      %5690 = vmatpush.msra.mxu0 %v2272
      %5691 = vmatpush.msra.mxu0 %v2271
      %5692 = vmatpush.msra.mxu0 %v2270
      %5693 = vmatpush.msra.mxu0 %v2269
      %5694 = vmatpush.msra.mxu0 %v2268
      %5695 = vmatpush.msra.mxu0 %v2267
      %5696 = vmatpush.msra.mxu0 %v2266
      %5697 = vmatpush.msra.mxu0 %v2265
      %5698 = vmatpush.msra.mxu0 %v2264
      %5699 = vmatmul.f32.gmra.mxu0 %v5619
      %v5700 = vpop.f32.mrf.mxu0
      %v5701 = vadd.f32 0.0, %v5700
      %5702 = vmatmul.f32.gmra.mxu0 %v5620
      %v5703 = vpop.f32.mrf.mxu0
      %v5704 = vadd.f32 0.0, %v5703
      %5705 = vmatmul.f32.gmra.mxu0 %v5621
      %v5706 = vpop.f32.mrf.mxu0
      %v5707 = vadd.f32 0.0, %v5706
      %5708 = vmatmul.f32.gmra.mxu0 %v5622
      %v5709 = vpop.f32.mrf.mxu0
      %v5710 = vadd.f32 0.0, %v5709
      %5711 = vmatmul.f32.gmra.mxu0 %v5623
      %v5712 = vpop.f32.mrf.mxu0
      %v5713 = vadd.f32 0.0, %v5712
      %5714 = vmatmul.f32.gmra.mxu0 %v5624
      %v5715 = vpop.f32.mrf.mxu0
      %v5716 = vadd.f32 0.0, %v5715
      %5717 = vmatmul.f32.gmra.mxu0 %v5625
      %v5718 = vpop.f32.mrf.mxu0
      %v5719 = vadd.f32 0.0, %v5718
      %5720 = vmatmul.f32.gmra.mxu0 %v5626
      %v5721 = vpop.f32.mrf.mxu0
      %v5722 = vadd.f32 0.0, %v5721
      %5723 = vmatmul.f32.gmra.mxu0 %v5627
      %v5724 = vpop.f32.mrf.mxu0
      %v5725 = vadd.f32 0.0, %v5724
      %5726 = vmatmul.f32.gmra.mxu0 %v5628
      %v5727 = vpop.f32.mrf.mxu0
      %v5728 = vadd.f32 0.0, %v5727
      %5729 = vmatmul.f32.gmra.mxu0 %v5629
      %v5730 = vpop.f32.mrf.mxu0
      %v5731 = vadd.f32 0.0, %v5730
      %5732 = vmatmul.f32.gmra.mxu0 %v5630
      %v5733 = vpop.f32.mrf.mxu0
      %v5734 = vadd.f32 0.0, %v5733
      %5735 = vmatmul.f32.gmra.mxu0 %v5631
      %v5736 = vpop.f32.mrf.mxu0
      %v5737 = vadd.f32 0.0, %v5736
      %5738 = vmatmul.f32.gmra.mxu0 %v5632
      %v5739 = vpop.f32.mrf.mxu0
      %v5740 = vadd.f32 0.0, %v5739
      %5741 = vmatmul.f32.gmra.mxu0 %v5633
      %v5742 = vpop.f32.mrf.mxu0
      %v5743 = vadd.f32 0.0, %v5742
      %5744 = vmatmul.f32.gmra.mxu0 %v5634
      %v5745 = vpop.f32.mrf.mxu0
      %v5746 = vadd.f32 0.0, %v5745
      %5747 = vmatmul.f32.gmra.mxu0 %v5667
      %v5748 = vpop.f32.mrf.mxu0
      %v5749 = vadd.f32 0.0, %v5748
      %5750 = vmatmul.f32.gmra.mxu0 %v5668
      %v5751 = vpop.f32.mrf.mxu0
      %v5752 = vadd.f32 0.0, %v5751
      %5753 = vmatmul.f32.gmra.mxu0 %v5669
      %v5754 = vpop.f32.mrf.mxu0
      %v5755 = vadd.f32 0.0, %v5754
      %5756 = vmatmul.f32.gmra.mxu0 %v5670
      %v5757 = vpop.f32.mrf.mxu0
      %v5758 = vadd.f32 0.0, %v5757
      %5759 = vmatmul.f32.gmra.mxu0 %v5671
      %v5760 = vpop.f32.mrf.mxu0
      %v5761 = vadd.f32 0.0, %v5760
      %5762 = vmatmul.f32.gmra.mxu0 %v5672
      %v5763 = vpop.f32.mrf.mxu0
      %v5764 = vadd.f32 0.0, %v5763
      %5765 = vmatmul.f32.gmra.mxu0 %v5673
      %v5766 = vpop.f32.mrf.mxu0
      %v5767 = vadd.f32 0.0, %v5766
      %5768 = vmatmul.f32.gmra.mxu0 %v5674
      %v5769 = vpop.f32.mrf.mxu0
      %v5770 = vadd.f32 0.0, %v5769
      %5771 = vmatmul.f32.gmra.mxu0 %v5675
      %v5772 = vpop.f32.mrf.mxu0
      %v5773 = vadd.f32 0.0, %v5772
      %5774 = vmatmul.f32.gmra.mxu0 %v5676
      %v5775 = vpop.f32.mrf.mxu0
      %v5776 = vadd.f32 0.0, %v5775
      %5777 = vmatmul.f32.gmra.mxu0 %v5677
      %v5778 = vpop.f32.mrf.mxu0
      %v5779 = vadd.f32 0.0, %v5778
      %5780 = vmatmul.f32.gmra.mxu0 %v5678
      %v5781 = vpop.f32.mrf.mxu0
      %v5782 = vadd.f32 0.0, %v5781
      %5783 = vmatmul.f32.gmra.mxu0 %v5679
      %v5784 = vpop.f32.mrf.mxu0
      %v5785 = vadd.f32 0.0, %v5784
      %5786 = vmatmul.f32.gmra.mxu0 %v5680
      %v5787 = vpop.f32.mrf.mxu0
      %v5788 = vadd.f32 0.0, %v5787
      %5789 = vmatmul.f32.gmra.mxu0 %v5681
      %v5790 = vpop.f32.mrf.mxu0
      %v5791 = vadd.f32 0.0, %v5790
      %5792 = vmatmul.f32.gmra.mxu0 %v5682
      %v5793 = vpop.f32.mrf.mxu0
      %v5794 = vadd.f32 0.0, %v5793
      %5795 = vdwg.mxu0
      %v5796 = vsel %vm238, %v5725, %v5701
      %v5797 = vsel %vm238, %v5728, %v5704
      %v5798 = vsel %vm238, %v5731, %v5707
      %v5799 = vsel %vm238, %v5734, %v5710
      %v5800 = vsel %vm238, %v5737, %v5713
      %v5801 = vsel %vm238, %v5740, %v5716
      %v5802 = vsel %vm238, %v5743, %v5719
      %v5803 = vsel %vm238, %v5746, %v5722
      %v5804 = vsel %vm238, %v5701, %v5725
      %v5805 = vsel %vm238, %v5704, %v5728
      %v5806 = vsel %vm238, %v5707, %v5731
      %v5807 = vsel %vm238, %v5710, %v5734
      %v5808 = vsel %vm238, %v5713, %v5737
      %v5809 = vsel %vm238, %v5716, %v5740
      %v5810 = vsel %vm238, %v5719, %v5743
      %v5811 = vsel %vm238, %v5722, %v5746
      %v5812 = vsel %vm238, %v5773, %v5749
      %v5813 = vsel %vm238, %v5776, %v5752
      %v5814 = vsel %vm238, %v5779, %v5755
      %v5815 = vsel %vm238, %v5782, %v5758
      %v5816 = vsel %vm238, %v5785, %v5761
      %v5817 = vsel %vm238, %v5788, %v5764
      %v5818 = vsel %vm238, %v5791, %v5767
      %v5819 = vsel %vm238, %v5794, %v5770
      %v5820 = vsel %vm238, %v5749, %v5773
      %v5821 = vsel %vm238, %v5752, %v5776
      %v5822 = vsel %vm238, %v5755, %v5779
      %v5823 = vsel %vm238, %v5758, %v5782
      %v5824 = vsel %vm238, %v5761, %v5785
      %v5825 = vsel %vm238, %v5764, %v5788
      %v5826 = vsel %vm238, %v5767, %v5791
      %v5827 = vsel %vm238, %v5770, %v5794
      %5828 = vmatpush.msra.mxu0 %v5811
      %5829 = vmatpush.msra.mxu0 %v5810
      %5830 = vmatpush.msra.mxu0 %v5809
      %5831 = vmatpush.msra.mxu0 %v5808
      %5832 = vmatpush.msra.mxu0 %v5807
      %5833 = vmatpush.msra.mxu0 %v5806
      %5834 = vmatpush.msra.mxu0 %v5805
      %5835 = vmatpush.msra.mxu0 %v5804
      %5836 = vmatpush.msra.mxu0 %v5803
      %5837 = vmatpush.msra.mxu0 %v5802
      %5838 = vmatpush.msra.mxu0 %v5801
      %5839 = vmatpush.msra.mxu0 %v5800
      %5840 = vmatpush.msra.mxu0 %v5799
      %5841 = vmatpush.msra.mxu0 %v5798
      %5842 = vmatpush.msra.mxu0 %v5797
      %5843 = vmatpush.msra.mxu0 %v5796
      %5844 = vmatmul.f32.gmra.mxu0 %v1016
      %v5845 = vpop.f32.mrf.mxu0
      %v5846 = vadd.f32 0.0, %v5845
      %5847 = vmatmul.f32.gmra.mxu0 %v1017
      %v5848 = vpop.f32.mrf.mxu0
      %v5849 = vadd.f32 0.0, %v5848
      %5850 = vmatmul.f32.gmra.mxu0 %v1018
      %v5851 = vpop.f32.mrf.mxu0
      %v5852 = vadd.f32 0.0, %v5851
      %5853 = vmatmul.f32.gmra.mxu0 %v1019
      %v5854 = vpop.f32.mrf.mxu0
      %v5855 = vadd.f32 0.0, %v5854
      %5856 = vmatmul.f32.gmra.mxu0 %v1020
      %v5857 = vpop.f32.mrf.mxu0
      %v5858 = vadd.f32 0.0, %v5857
      %5859 = vmatmul.f32.gmra.mxu0 %v1021
      %v5860 = vpop.f32.mrf.mxu0
      %v5861 = vadd.f32 0.0, %v5860
      %5862 = vmatmul.f32.gmra.mxu0 %v1022
      %v5863 = vpop.f32.mrf.mxu0
      %v5864 = vadd.f32 0.0, %v5863
      %5865 = vmatmul.f32.gmra.mxu0 %v1023
      %v5866 = vpop.f32.mrf.mxu0
      %v5867 = vadd.f32 0.0, %v5866
      %5868 = vmatmul.f32.gmra.mxu0 %v1024
      %v5869 = vpop.f32.mrf.mxu0
      %v5870 = vadd.f32 0.0, %v5869
      %5871 = vmatmul.f32.gmra.mxu0 %v1025
      %v5872 = vpop.f32.mrf.mxu0
      %v5873 = vadd.f32 0.0, %v5872
      %5874 = vmatmul.f32.gmra.mxu0 %v1026
      %v5875 = vpop.f32.mrf.mxu0
      %v5876 = vadd.f32 0.0, %v5875
      %5877 = vmatmul.f32.gmra.mxu0 %v1027
      %v5878 = vpop.f32.mrf.mxu0
      %v5879 = vadd.f32 0.0, %v5878
      %5880 = vmatmul.f32.gmra.mxu0 %v1028
      %v5881 = vpop.f32.mrf.mxu0
      %v5882 = vadd.f32 0.0, %v5881
      %5883 = vmatmul.f32.gmra.mxu0 %v1029
      %v5884 = vpop.f32.mrf.mxu0
      %v5885 = vadd.f32 0.0, %v5884
      %5886 = vmatmul.f32.gmra.mxu0 %v1030
      %v5887 = vpop.f32.mrf.mxu0
      %v5888 = vadd.f32 0.0, %v5887
      %5889 = vmatmul.f32.gmra.mxu0 %v1031
      %v5890 = vpop.f32.mrf.mxu0
      %v5891 = vadd.f32 0.0, %v5890
      %5892 = vmatmul.f32.gmra.mxu0 %v1032
      %v5893 = vpop.f32.mrf.mxu0
      %v5894 = vadd.f32 0.0, %v5893
      %5895 = vmatmul.f32.gmra.mxu0 %v1033
      %v5896 = vpop.f32.mrf.mxu0
      %v5897 = vadd.f32 0.0, %v5896
      %5898 = vmatmul.f32.gmra.mxu0 %v1034
      %v5899 = vpop.f32.mrf.mxu0
      %v5900 = vadd.f32 0.0, %v5899
      %5901 = vmatmul.f32.gmra.mxu0 %v1035
      %v5902 = vpop.f32.mrf.mxu0
      %v5903 = vadd.f32 0.0, %v5902
      %5904 = vmatmul.f32.gmra.mxu0 %v1036
      %v5905 = vpop.f32.mrf.mxu0
      %v5906 = vadd.f32 0.0, %v5905
      %5907 = vmatmul.f32.gmra.mxu0 %v1037
      %v5908 = vpop.f32.mrf.mxu0
      %v5909 = vadd.f32 0.0, %v5908
      %5910 = vmatmul.f32.gmra.mxu0 %v1038
      %v5911 = vpop.f32.mrf.mxu0
      %v5912 = vadd.f32 0.0, %v5911
      %5913 = vmatmul.f32.gmra.mxu0 %v1039
      %v5914 = vpop.f32.mrf.mxu0
      %v5915 = vadd.f32 0.0, %v5914
      %5916 = vmatmul.f32.gmra.mxu0 %v1040
      %v5917 = vpop.f32.mrf.mxu0
      %v5918 = vadd.f32 0.0, %v5917
      %5919 = vmatmul.f32.gmra.mxu0 %v1041
      %v5920 = vpop.f32.mrf.mxu0
      %v5921 = vadd.f32 0.0, %v5920
      %5922 = vmatmul.f32.gmra.mxu0 %v1042
      %v5923 = vpop.f32.mrf.mxu0
      %v5924 = vadd.f32 0.0, %v5923
      %5925 = vmatmul.f32.gmra.mxu0 %v1043
      %v5926 = vpop.f32.mrf.mxu0
      %v5927 = vadd.f32 0.0, %v5926
      %5928 = vmatmul.f32.gmra.mxu0 %v1044
      %v5929 = vpop.f32.mrf.mxu0
      %v5930 = vadd.f32 0.0, %v5929
      %5931 = vmatmul.f32.gmra.mxu0 %v1045
      %v5932 = vpop.f32.mrf.mxu0
      %v5933 = vadd.f32 0.0, %v5932
      %5934 = vmatmul.f32.gmra.mxu0 %v1046
      %v5935 = vpop.f32.mrf.mxu0
      %v5936 = vadd.f32 0.0, %v5935
      %5937 = vmatmul.f32.gmra.mxu0 %v1047
      %v5938 = vpop.f32.mrf.mxu0
      %v5939 = vadd.f32 0.0, %v5938
      %5940 = vdwg.mxu0
      %5941 = vmatpush.msra.mxu0 %v5827
      %5942 = vmatpush.msra.mxu0 %v5826
      %5943 = vmatpush.msra.mxu0 %v5825
      %5944 = vmatpush.msra.mxu0 %v5824
      %5945 = vmatpush.msra.mxu0 %v5823
      %5946 = vmatpush.msra.mxu0 %v5822
      %5947 = vmatpush.msra.mxu0 %v5821
      %5948 = vmatpush.msra.mxu0 %v5820
      %5949 = vmatpush.msra.mxu0 %v5819
      %5950 = vmatpush.msra.mxu0 %v5818
      %5951 = vmatpush.msra.mxu0 %v5817
      %5952 = vmatpush.msra.mxu0 %v5816
      %5953 = vmatpush.msra.mxu0 %v5815
      %5954 = vmatpush.msra.mxu0 %v5814
      %5955 = vmatpush.msra.mxu0 %v5813
      %5956 = vmatpush.msra.mxu0 %v5812
      %5957 = vmatmul.f32.gmra.mxu0 %v1016
      %v5958 = vpop.f32.mrf.mxu0
      %v5959 = vadd.f32 0.0, %v5958
      %5960 = vmatmul.f32.gmra.mxu0 %v1017
      %v5961 = vpop.f32.mrf.mxu0
      %v5962 = vadd.f32 0.0, %v5961
      %5963 = vmatmul.f32.gmra.mxu0 %v1018
      %v5964 = vpop.f32.mrf.mxu0
      %v5965 = vadd.f32 0.0, %v5964
      %5966 = vmatmul.f32.gmra.mxu0 %v1019
      %v5967 = vpop.f32.mrf.mxu0
      %v5968 = vadd.f32 0.0, %v5967
      %5969 = vmatmul.f32.gmra.mxu0 %v1020
      %v5970 = vpop.f32.mrf.mxu0
      %v5971 = vadd.f32 0.0, %v5970
      %5972 = vmatmul.f32.gmra.mxu0 %v1021
      %v5973 = vpop.f32.mrf.mxu0
      %v5974 = vadd.f32 0.0, %v5973
      %5975 = vmatmul.f32.gmra.mxu0 %v1022
      %v5976 = vpop.f32.mrf.mxu0
      %v5977 = vadd.f32 0.0, %v5976
      %5978 = vmatmul.f32.gmra.mxu0 %v1023
      %v5979 = vpop.f32.mrf.mxu0
      %v5980 = vadd.f32 0.0, %v5979
      %5981 = vmatmul.f32.gmra.mxu0 %v1024
      %v5982 = vpop.f32.mrf.mxu0
      %v5983 = vadd.f32 0.0, %v5982
      %5984 = vmatmul.f32.gmra.mxu0 %v1025
      %v5985 = vpop.f32.mrf.mxu0
      %v5986 = vadd.f32 0.0, %v5985
      %5987 = vmatmul.f32.gmra.mxu0 %v1026
      %v5988 = vpop.f32.mrf.mxu0
      %v5989 = vadd.f32 0.0, %v5988
      %5990 = vmatmul.f32.gmra.mxu0 %v1027
      %v5991 = vpop.f32.mrf.mxu0
      %v5992 = vadd.f32 0.0, %v5991
      %5993 = vmatmul.f32.gmra.mxu0 %v1028
      %v5994 = vpop.f32.mrf.mxu0
      %v5995 = vadd.f32 0.0, %v5994
      %5996 = vmatmul.f32.gmra.mxu0 %v1029
      %v5997 = vpop.f32.mrf.mxu0
      %v5998 = vadd.f32 0.0, %v5997
      %5999 = vmatmul.f32.gmra.mxu0 %v1030
      %v6000 = vpop.f32.mrf.mxu0
      %v6001 = vadd.f32 0.0, %v6000
      %6002 = vmatmul.f32.gmra.mxu0 %v1031
      %v6003 = vpop.f32.mrf.mxu0
      %v6004 = vadd.f32 0.0, %v6003
      %6005 = vmatmul.f32.gmra.mxu0 %v1032
      %v6006 = vpop.f32.mrf.mxu0
      %v6007 = vadd.f32 0.0, %v6006
      %6008 = vmatmul.f32.gmra.mxu0 %v1033
      %v6009 = vpop.f32.mrf.mxu0
      %v6010 = vadd.f32 0.0, %v6009
      %6011 = vmatmul.f32.gmra.mxu0 %v1034
      %v6012 = vpop.f32.mrf.mxu0
      %v6013 = vadd.f32 0.0, %v6012
      %6014 = vmatmul.f32.gmra.mxu0 %v1035
      %v6015 = vpop.f32.mrf.mxu0
      %v6016 = vadd.f32 0.0, %v6015
      %6017 = vmatmul.f32.gmra.mxu0 %v1036
      %v6018 = vpop.f32.mrf.mxu0
      %v6019 = vadd.f32 0.0, %v6018
      %6020 = vmatmul.f32.gmra.mxu0 %v1037
      %v6021 = vpop.f32.mrf.mxu0
      %v6022 = vadd.f32 0.0, %v6021
      %6023 = vmatmul.f32.gmra.mxu0 %v1038
      %v6024 = vpop.f32.mrf.mxu0
      %v6025 = vadd.f32 0.0, %v6024
      %6026 = vmatmul.f32.gmra.mxu0 %v1039
      %v6027 = vpop.f32.mrf.mxu0
      %v6028 = vadd.f32 0.0, %v6027
      %6029 = vmatmul.f32.gmra.mxu0 %v1040
      %v6030 = vpop.f32.mrf.mxu0
      %v6031 = vadd.f32 0.0, %v6030
      %6032 = vmatmul.f32.gmra.mxu0 %v1041
      %v6033 = vpop.f32.mrf.mxu0
      %v6034 = vadd.f32 0.0, %v6033
      %6035 = vmatmul.f32.gmra.mxu0 %v1042
      %v6036 = vpop.f32.mrf.mxu0
      %v6037 = vadd.f32 0.0, %v6036
      %6038 = vmatmul.f32.gmra.mxu0 %v1043
      %v6039 = vpop.f32.mrf.mxu0
      %v6040 = vadd.f32 0.0, %v6039
      %6041 = vmatmul.f32.gmra.mxu0 %v1044
      %v6042 = vpop.f32.mrf.mxu0
      %v6043 = vadd.f32 0.0, %v6042
      %6044 = vmatmul.f32.gmra.mxu0 %v1045
      %v6045 = vpop.f32.mrf.mxu0
      %v6046 = vadd.f32 0.0, %v6045
      %6047 = vmatmul.f32.gmra.mxu0 %v1046
      %v6048 = vpop.f32.mrf.mxu0
      %v6049 = vadd.f32 0.0, %v6048
      %6050 = vmatmul.f32.gmra.mxu0 %v1047
      %v6051 = vpop.f32.mrf.mxu0
      %v6052 = vadd.f32 0.0, %v6051
      %6053 = vdwg.mxu0
      %v6054 = vsub.f32 %v5846, %v6007
      %v6055 = vsub.f32 %v5849, %v6010
      %v6056 = vsub.f32 %v5852, %v6013
      %v6057 = vsub.f32 %v5855, %v6016
      %v6058 = vsub.f32 %v5858, %v6019
      %v6059 = vsub.f32 %v5861, %v6022
      %v6060 = vsub.f32 %v5864, %v6025
      %v6061 = vsub.f32 %v5867, %v6028
      %v6062 = vsub.f32 %v5870, %v6031
      %v6063 = vsub.f32 %v5873, %v6034
      %v6064 = vsub.f32 %v5876, %v6037
      %v6065 = vsub.f32 %v5879, %v6040
      %v6066 = vsub.f32 %v5882, %v6043
      %v6067 = vsub.f32 %v5885, %v6046
      %v6068 = vsub.f32 %v5888, %v6049
      %v6069 = vsub.f32 %v5891, %v6052
      %v6070 = vadd.f32 %v5959, %v5894
      %v6071 = vadd.f32 %v5962, %v5897
      %v6072 = vadd.f32 %v5965, %v5900
      %v6073 = vadd.f32 %v5968, %v5903
      %v6074 = vadd.f32 %v5971, %v5906
      %v6075 = vadd.f32 %v5974, %v5909
      %v6076 = vadd.f32 %v5977, %v5912
      %v6077 = vadd.f32 %v5980, %v5915
      %v6078 = vadd.f32 %v5983, %v5918
      %v6079 = vadd.f32 %v5986, %v5921
      %v6080 = vadd.f32 %v5989, %v5924
      %v6081 = vadd.f32 %v5992, %v5927
      %v6082 = vadd.f32 %v5995, %v5930
      %v6083 = vadd.f32 %v5998, %v5933
      %v6084 = vadd.f32 %v6001, %v5936
      %v6085 = vadd.f32 %v6004, %v5939
      %6086 = vmatpush.msra.mxu0 %v2018
      %6087 = vmatpush.msra.mxu0 %v2016
      %6088 = vmatpush.msra.mxu0 %v2014
      %6089 = vmatpush.msra.mxu0 %v2012
      %6090 = vmatpush.msra.mxu0 %v2010
      %6091 = vmatpush.msra.mxu0 %v2008
      %6092 = vmatpush.msra.mxu0 %v2006
      %6093 = vmatpush.msra.mxu0 %v2004
      %6094 = vmatpush.msra.mxu0 %v2002
      %6095 = vmatpush.msra.mxu0 %v2000
      %6096 = vmatpush.msra.mxu0 %v1998
      %6097 = vmatpush.msra.mxu0 %v1996
      %6098 = vmatpush.msra.mxu0 %v1994
      %6099 = vmatpush.msra.mxu0 %v1992
      %6100 = vmatpush.msra.mxu0 %v1990
      %6101 = vmatpush.msra.mxu0 %v1988
      %6102 = vmatmul.f32.gmra.mxu0 %v6054
      %v6103 = vpop.f32.mrf.mxu0
      %v6104 = vadd.f32 0.0, %v6103
      %6105 = vmatmul.f32.gmra.mxu0 %v6055
      %v6106 = vpop.f32.mrf.mxu0
      %v6107 = vadd.f32 0.0, %v6106
      %6108 = vmatmul.f32.gmra.mxu0 %v6056
      %v6109 = vpop.f32.mrf.mxu0
      %v6110 = vadd.f32 0.0, %v6109
      %6111 = vmatmul.f32.gmra.mxu0 %v6057
      %v6112 = vpop.f32.mrf.mxu0
      %v6113 = vadd.f32 0.0, %v6112
      %6114 = vmatmul.f32.gmra.mxu0 %v6058
      %v6115 = vpop.f32.mrf.mxu0
      %v6116 = vadd.f32 0.0, %v6115
      %6117 = vmatmul.f32.gmra.mxu0 %v6059
      %v6118 = vpop.f32.mrf.mxu0
      %v6119 = vadd.f32 0.0, %v6118
      %6120 = vmatmul.f32.gmra.mxu0 %v6060
      %v6121 = vpop.f32.mrf.mxu0
      %v6122 = vadd.f32 0.0, %v6121
      %6123 = vmatmul.f32.gmra.mxu0 %v6061
      %v6124 = vpop.f32.mrf.mxu0
      %v6125 = vadd.f32 0.0, %v6124
      %6126 = vmatmul.f32.gmra.mxu0 %v6062
      %v6127 = vpop.f32.mrf.mxu0
      %v6128 = vadd.f32 0.0, %v6127
      %6129 = vmatmul.f32.gmra.mxu0 %v6063
      %v6130 = vpop.f32.mrf.mxu0
      %v6131 = vadd.f32 0.0, %v6130
      %6132 = vmatmul.f32.gmra.mxu0 %v6064
      %v6133 = vpop.f32.mrf.mxu0
      %v6134 = vadd.f32 0.0, %v6133
      %6135 = vmatmul.f32.gmra.mxu0 %v6065
      %v6136 = vpop.f32.mrf.mxu0
      %v6137 = vadd.f32 0.0, %v6136
      %6138 = vmatmul.f32.gmra.mxu0 %v6066
      %v6139 = vpop.f32.mrf.mxu0
      %v6140 = vadd.f32 0.0, %v6139
      %6141 = vmatmul.f32.gmra.mxu0 %v6067
      %v6142 = vpop.f32.mrf.mxu0
      %v6143 = vadd.f32 0.0, %v6142
      %6144 = vmatmul.f32.gmra.mxu0 %v6068
      %v6145 = vpop.f32.mrf.mxu0
      %v6146 = vadd.f32 0.0, %v6145
      %6147 = vmatmul.f32.gmra.mxu0 %v6069
      %v6148 = vpop.f32.mrf.mxu0
      %v6149 = vadd.f32 0.0, %v6148
      %6150 = vmatmul.f32.gmra.mxu0 %v6070
      %v6151 = vpop.f32.mrf.mxu0
      %v6152 = vadd.f32 0.0, %v6151
      %6153 = vmatmul.f32.gmra.mxu0 %v6071
      %v6154 = vpop.f32.mrf.mxu0
      %v6155 = vadd.f32 0.0, %v6154
      %6156 = vmatmul.f32.gmra.mxu0 %v6072
      %v6157 = vpop.f32.mrf.mxu0
      %v6158 = vadd.f32 0.0, %v6157
      %6159 = vmatmul.f32.gmra.mxu0 %v6073
      %v6160 = vpop.f32.mrf.mxu0
      %v6161 = vadd.f32 0.0, %v6160
      %6162 = vmatmul.f32.gmra.mxu0 %v6074
      %v6163 = vpop.f32.mrf.mxu0
      %v6164 = vadd.f32 0.0, %v6163
      %6165 = vmatmul.f32.gmra.mxu0 %v6075
      %v6166 = vpop.f32.mrf.mxu0
      %v6167 = vadd.f32 0.0, %v6166
      %6168 = vmatmul.f32.gmra.mxu0 %v6076
      %v6169 = vpop.f32.mrf.mxu0
      %v6170 = vadd.f32 0.0, %v6169
      %6171 = vmatmul.f32.gmra.mxu0 %v6077
      %v6172 = vpop.f32.mrf.mxu0
      %v6173 = vadd.f32 0.0, %v6172
      %6174 = vmatmul.f32.gmra.mxu0 %v6078
      %v6175 = vpop.f32.mrf.mxu0
      %v6176 = vadd.f32 0.0, %v6175
      %6177 = vmatmul.f32.gmra.mxu0 %v6079
      %v6178 = vpop.f32.mrf.mxu0
      %v6179 = vadd.f32 0.0, %v6178
      %6180 = vmatmul.f32.gmra.mxu0 %v6080
      %v6181 = vpop.f32.mrf.mxu0
      %v6182 = vadd.f32 0.0, %v6181
      %6183 = vmatmul.f32.gmra.mxu0 %v6081
      %v6184 = vpop.f32.mrf.mxu0
      %v6185 = vadd.f32 0.0, %v6184
      %6186 = vmatmul.f32.gmra.mxu0 %v6082
      %v6187 = vpop.f32.mrf.mxu0
      %v6188 = vadd.f32 0.0, %v6187
      %6189 = vmatmul.f32.gmra.mxu0 %v6083
      %v6190 = vpop.f32.mrf.mxu0
      %v6191 = vadd.f32 0.0, %v6190
      %6192 = vmatmul.f32.gmra.mxu0 %v6084
      %v6193 = vpop.f32.mrf.mxu0
      %v6194 = vadd.f32 0.0, %v6193
      %6195 = vmatmul.f32.gmra.mxu0 %v6085
      %v6196 = vpop.f32.mrf.mxu0
      %v6197 = vadd.f32 0.0, %v6196
      %6198 = vdwg.mxu0
      %6199 = vmatpush.msra.mxu0 %v2019
      %6200 = vmatpush.msra.mxu0 %v2017
      %6201 = vmatpush.msra.mxu0 %v2015
      %6202 = vmatpush.msra.mxu0 %v2013
      %6203 = vmatpush.msra.mxu0 %v2011
      %6204 = vmatpush.msra.mxu0 %v2009
      %6205 = vmatpush.msra.mxu0 %v2007
      %6206 = vmatpush.msra.mxu0 %v2005
      %6207 = vmatpush.msra.mxu0 %v2003
      %6208 = vmatpush.msra.mxu0 %v2001
      %6209 = vmatpush.msra.mxu0 %v1999
      %6210 = vmatpush.msra.mxu0 %v1997
      %6211 = vmatpush.msra.mxu0 %v1995
      %6212 = vmatpush.msra.mxu0 %v1993
      %6213 = vmatpush.msra.mxu0 %v1991
      %6214 = vmatpush.msra.mxu0 %v1989
      %6215 = vmatmul.f32.gmra.mxu0 %v6054
      %v6216 = vpop.f32.mrf.mxu0
      %v6217 = vadd.f32 0.0, %v6216
      %6218 = vmatmul.f32.gmra.mxu0 %v6055
      %v6219 = vpop.f32.mrf.mxu0
      %v6220 = vadd.f32 0.0, %v6219
      %6221 = vmatmul.f32.gmra.mxu0 %v6056
      %v6222 = vpop.f32.mrf.mxu0
      %v6223 = vadd.f32 0.0, %v6222
      %6224 = vmatmul.f32.gmra.mxu0 %v6057
      %v6225 = vpop.f32.mrf.mxu0
      %v6226 = vadd.f32 0.0, %v6225
      %6227 = vmatmul.f32.gmra.mxu0 %v6058
      %v6228 = vpop.f32.mrf.mxu0
      %v6229 = vadd.f32 0.0, %v6228
      %6230 = vmatmul.f32.gmra.mxu0 %v6059
      %v6231 = vpop.f32.mrf.mxu0
      %v6232 = vadd.f32 0.0, %v6231
      %6233 = vmatmul.f32.gmra.mxu0 %v6060
      %v6234 = vpop.f32.mrf.mxu0
      %v6235 = vadd.f32 0.0, %v6234
      %6236 = vmatmul.f32.gmra.mxu0 %v6061
      %v6237 = vpop.f32.mrf.mxu0
      %v6238 = vadd.f32 0.0, %v6237
      %6239 = vmatmul.f32.gmra.mxu0 %v6062
      %v6240 = vpop.f32.mrf.mxu0
      %v6241 = vadd.f32 0.0, %v6240
      %6242 = vmatmul.f32.gmra.mxu0 %v6063
      %v6243 = vpop.f32.mrf.mxu0
      %v6244 = vadd.f32 0.0, %v6243
      %6245 = vmatmul.f32.gmra.mxu0 %v6064
      %v6246 = vpop.f32.mrf.mxu0
      %v6247 = vadd.f32 0.0, %v6246
      %6248 = vmatmul.f32.gmra.mxu0 %v6065
      %v6249 = vpop.f32.mrf.mxu0
      %v6250 = vadd.f32 0.0, %v6249
      %6251 = vmatmul.f32.gmra.mxu0 %v6066
      %v6252 = vpop.f32.mrf.mxu0
      %v6253 = vadd.f32 0.0, %v6252
      %6254 = vmatmul.f32.gmra.mxu0 %v6067
      %v6255 = vpop.f32.mrf.mxu0
      %v6256 = vadd.f32 0.0, %v6255
      %6257 = vmatmul.f32.gmra.mxu0 %v6068
      %v6258 = vpop.f32.mrf.mxu0
      %v6259 = vadd.f32 0.0, %v6258
      %6260 = vmatmul.f32.gmra.mxu0 %v6069
      %v6261 = vpop.f32.mrf.mxu0
      %v6262 = vadd.f32 0.0, %v6261
      %6263 = vmatmul.f32.gmra.mxu0 %v6070
      %v6264 = vpop.f32.mrf.mxu0
      %v6265 = vadd.f32 0.0, %v6264
      %6266 = vmatmul.f32.gmra.mxu0 %v6071
      %v6267 = vpop.f32.mrf.mxu0
      %v6268 = vadd.f32 0.0, %v6267
      %6269 = vmatmul.f32.gmra.mxu0 %v6072
      %v6270 = vpop.f32.mrf.mxu0
      %v6271 = vadd.f32 0.0, %v6270
      %6272 = vmatmul.f32.gmra.mxu0 %v6073
      %v6273 = vpop.f32.mrf.mxu0
      %v6274 = vadd.f32 0.0, %v6273
      %6275 = vmatmul.f32.gmra.mxu0 %v6074
      %v6276 = vpop.f32.mrf.mxu0
      %v6277 = vadd.f32 0.0, %v6276
      %6278 = vmatmul.f32.gmra.mxu0 %v6075
      %v6279 = vpop.f32.mrf.mxu0
      %v6280 = vadd.f32 0.0, %v6279
      %6281 = vmatmul.f32.gmra.mxu0 %v6076
      %v6282 = vpop.f32.mrf.mxu0
      %v6283 = vadd.f32 0.0, %v6282
      %6284 = vmatmul.f32.gmra.mxu0 %v6077
      %v6285 = vpop.f32.mrf.mxu0
      %v6286 = vadd.f32 0.0, %v6285
      %6287 = vmatmul.f32.gmra.mxu0 %v6078
      %v6288 = vpop.f32.mrf.mxu0
      %v6289 = vadd.f32 0.0, %v6288
      %6290 = vmatmul.f32.gmra.mxu0 %v6079
      %v6291 = vpop.f32.mrf.mxu0
      %v6292 = vadd.f32 0.0, %v6291
      %6293 = vmatmul.f32.gmra.mxu0 %v6080
      %v6294 = vpop.f32.mrf.mxu0
      %v6295 = vadd.f32 0.0, %v6294
      %6296 = vmatmul.f32.gmra.mxu0 %v6081
      %v6297 = vpop.f32.mrf.mxu0
      %v6298 = vadd.f32 0.0, %v6297
      %6299 = vmatmul.f32.gmra.mxu0 %v6082
      %v6300 = vpop.f32.mrf.mxu0
      %v6301 = vadd.f32 0.0, %v6300
      %6302 = vmatmul.f32.gmra.mxu0 %v6083
      %v6303 = vpop.f32.mrf.mxu0
      %v6304 = vadd.f32 0.0, %v6303
      %6305 = vmatmul.f32.gmra.mxu0 %v6084
      %v6306 = vpop.f32.mrf.mxu0
      %v6307 = vadd.f32 0.0, %v6306
      %6308 = vmatmul.f32.gmra.mxu0 %v6085
      %v6309 = vpop.f32.mrf.mxu0
      %v6310 = vadd.f32 0.0, %v6309
      %6311 = vdwg.mxu0
      %v6312 = vsub.f32 %v6104, %v6265
      %v6313 = vsub.f32 %v6107, %v6268
      %v6314 = vsub.f32 %v6110, %v6271
      %v6315 = vsub.f32 %v6113, %v6274
      %v6316 = vsub.f32 %v6116, %v6277
      %v6317 = vsub.f32 %v6119, %v6280
      %v6318 = vsub.f32 %v6122, %v6283
      %v6319 = vsub.f32 %v6125, %v6286
      %v6320 = vsub.f32 %v6128, %v6289
      %v6321 = vsub.f32 %v6131, %v6292
      %v6322 = vsub.f32 %v6134, %v6295
      %v6323 = vsub.f32 %v6137, %v6298
      %v6324 = vsub.f32 %v6140, %v6301
      %v6325 = vsub.f32 %v6143, %v6304
      %v6326 = vsub.f32 %v6146, %v6307
      %v6327 = vsub.f32 %v6149, %v6310
      %v6328 = vadd.f32 %v6217, %v6152
      %v6329 = vadd.f32 %v6220, %v6155
      %v6330 = vadd.f32 %v6223, %v6158
      %v6331 = vadd.f32 %v6226, %v6161
      %v6332 = vadd.f32 %v6229, %v6164
      %v6333 = vadd.f32 %v6232, %v6167
      %v6334 = vadd.f32 %v6235, %v6170
      %v6335 = vadd.f32 %v6238, %v6173
      %v6336 = vadd.f32 %v6241, %v6176
      %v6337 = vadd.f32 %v6244, %v6179
      %v6338 = vadd.f32 %v6247, %v6182
      %v6339 = vadd.f32 %v6250, %v6185
      %v6340 = vadd.f32 %v6253, %v6188
      %v6341 = vadd.f32 %v6256, %v6191
      %v6342 = vadd.f32 %v6259, %v6194
      %v6343 = vadd.f32 %v6262, %v6197
      %6344 = vmatpush.msra.mxu0 %v6327
      %6345 = vmatpush.msra.mxu0 %v6326
      %6346 = vmatpush.msra.mxu0 %v6325
      %6347 = vmatpush.msra.mxu0 %v6324
      %6348 = vmatpush.msra.mxu0 %v6323
      %6349 = vmatpush.msra.mxu0 %v6322
      %6350 = vmatpush.msra.mxu0 %v6321
      %6351 = vmatpush.msra.mxu0 %v6320
      %6352 = vmatpush.msra.mxu0 %v6319
      %6353 = vmatpush.msra.mxu0 %v6318
      %6354 = vmatpush.msra.mxu0 %v6317
      %6355 = vmatpush.msra.mxu0 %v6316
      %6356 = vmatpush.msra.mxu0 %v6315
      %6357 = vmatpush.msra.mxu0 %v6314
      %6358 = vmatpush.msra.mxu0 %v6313
      %6359 = vmatpush.msra.mxu0 %v6312
      %6360 = vmatmul.f32.gmra.mxu0 %v2231
      %v6361 = vpop.f32.mrf.mxu0
      %v6362 = vadd.f32 0.0, %v6361
      %6363 = vmatmul.f32.gmra.mxu0 %v2232
      %v6364 = vpop.f32.mrf.mxu0
      %v6365 = vadd.f32 0.0, %v6364
      %6366 = vmatmul.f32.gmra.mxu0 %v2233
      %v6367 = vpop.f32.mrf.mxu0
      %v6368 = vadd.f32 0.0, %v6367
      %6369 = vmatmul.f32.gmra.mxu0 %v2234
      %v6370 = vpop.f32.mrf.mxu0
      %v6371 = vadd.f32 0.0, %v6370
      %6372 = vmatmul.f32.gmra.mxu0 %v2235
      %v6373 = vpop.f32.mrf.mxu0
      %v6374 = vadd.f32 0.0, %v6373
      %6375 = vmatmul.f32.gmra.mxu0 %v2236
      %v6376 = vpop.f32.mrf.mxu0
      %v6377 = vadd.f32 0.0, %v6376
      %6378 = vmatmul.f32.gmra.mxu0 %v2237
      %v6379 = vpop.f32.mrf.mxu0
      %v6380 = vadd.f32 0.0, %v6379
      %6381 = vmatmul.f32.gmra.mxu0 %v2238
      %v6382 = vpop.f32.mrf.mxu0
      %v6383 = vadd.f32 0.0, %v6382
      %6384 = vmatmul.f32.gmra.mxu0 %v2239
      %v6385 = vpop.f32.mrf.mxu0
      %v6386 = vadd.f32 0.0, %v6385
      %6387 = vmatmul.f32.gmra.mxu0 %v2240
      %v6388 = vpop.f32.mrf.mxu0
      %v6389 = vadd.f32 0.0, %v6388
      %6390 = vmatmul.f32.gmra.mxu0 %v2241
      %v6391 = vpop.f32.mrf.mxu0
      %v6392 = vadd.f32 0.0, %v6391
      %6393 = vmatmul.f32.gmra.mxu0 %v2242
      %v6394 = vpop.f32.mrf.mxu0
      %v6395 = vadd.f32 0.0, %v6394
      %6396 = vmatmul.f32.gmra.mxu0 %v2243
      %v6397 = vpop.f32.mrf.mxu0
      %v6398 = vadd.f32 0.0, %v6397
      %6399 = vmatmul.f32.gmra.mxu0 %v2244
      %v6400 = vpop.f32.mrf.mxu0
      %v6401 = vadd.f32 0.0, %v6400
      %6402 = vmatmul.f32.gmra.mxu0 %v2245
      %v6403 = vpop.f32.mrf.mxu0
      %v6404 = vadd.f32 0.0, %v6403
      %6405 = vmatmul.f32.gmra.mxu0 %v2246
      %v6406 = vpop.f32.mrf.mxu0
      %v6407 = vadd.f32 0.0, %v6406
      %6408 = vdwg.mxu0
      %6409 = vmatpush.msra.mxu0 %v6343
      %6410 = vmatpush.msra.mxu0 %v6342
      %6411 = vmatpush.msra.mxu0 %v6341
      %6412 = vmatpush.msra.mxu0 %v6340
      %6413 = vmatpush.msra.mxu0 %v6339
      %6414 = vmatpush.msra.mxu0 %v6338
      %6415 = vmatpush.msra.mxu0 %v6337
      %6416 = vmatpush.msra.mxu0 %v6336
      %6417 = vmatpush.msra.mxu0 %v6335
      %6418 = vmatpush.msra.mxu0 %v6334
      %6419 = vmatpush.msra.mxu0 %v6333
      %6420 = vmatpush.msra.mxu0 %v6332
      %6421 = vmatpush.msra.mxu0 %v6331
      %6422 = vmatpush.msra.mxu0 %v6330
      %6423 = vmatpush.msra.mxu0 %v6329
      %6424 = vmatpush.msra.mxu0 %v6328
      %6425 = vmatmul.f32.gmra.mxu0 %v2231
      %v6426 = vpop.f32.mrf.mxu0
      %v6427 = vadd.f32 0.0, %v6426
      %6428 = vmatmul.f32.gmra.mxu0 %v2232
      %v6429 = vpop.f32.mrf.mxu0
      %v6430 = vadd.f32 0.0, %v6429
      %6431 = vmatmul.f32.gmra.mxu0 %v2233
      %v6432 = vpop.f32.mrf.mxu0
      %v6433 = vadd.f32 0.0, %v6432
      %6434 = vmatmul.f32.gmra.mxu0 %v2234
      %v6435 = vpop.f32.mrf.mxu0
      %v6436 = vadd.f32 0.0, %v6435
      %6437 = vmatmul.f32.gmra.mxu0 %v2235
      %v6438 = vpop.f32.mrf.mxu0
      %v6439 = vadd.f32 0.0, %v6438
      %6440 = vmatmul.f32.gmra.mxu0 %v2236
      %v6441 = vpop.f32.mrf.mxu0
      %v6442 = vadd.f32 0.0, %v6441
      %6443 = vmatmul.f32.gmra.mxu0 %v2237
      %v6444 = vpop.f32.mrf.mxu0
      %v6445 = vadd.f32 0.0, %v6444
      %6446 = vmatmul.f32.gmra.mxu0 %v2238
      %v6447 = vpop.f32.mrf.mxu0
      %v6448 = vadd.f32 0.0, %v6447
      %6449 = vmatmul.f32.gmra.mxu0 %v2239
      %v6450 = vpop.f32.mrf.mxu0
      %v6451 = vadd.f32 0.0, %v6450
      %6452 = vmatmul.f32.gmra.mxu0 %v2240
      %v6453 = vpop.f32.mrf.mxu0
      %v6454 = vadd.f32 0.0, %v6453
      %6455 = vmatmul.f32.gmra.mxu0 %v2241
      %v6456 = vpop.f32.mrf.mxu0
      %v6457 = vadd.f32 0.0, %v6456
      %6458 = vmatmul.f32.gmra.mxu0 %v2242
      %v6459 = vpop.f32.mrf.mxu0
      %v6460 = vadd.f32 0.0, %v6459
      %6461 = vmatmul.f32.gmra.mxu0 %v2243
      %v6462 = vpop.f32.mrf.mxu0
      %v6463 = vadd.f32 0.0, %v6462
      %6464 = vmatmul.f32.gmra.mxu0 %v2244
      %v6465 = vpop.f32.mrf.mxu0
      %v6466 = vadd.f32 0.0, %v6465
      %6467 = vmatmul.f32.gmra.mxu0 %v2245
      %v6468 = vpop.f32.mrf.mxu0
      %v6469 = vadd.f32 0.0, %v6468
      %6470 = vmatmul.f32.gmra.mxu0 %v2246
      %v6471 = vpop.f32.mrf.mxu0
      %v6472 = vadd.f32 0.0, %v6471
      %6473 = vdwg.mxu0
      %6474 = vrot.lane.b32.xlu0 %v6362, 64
      %v6475 = vpop.permute.xlu0 %6474
      %6476 = vrot.lane.b32.xlu0 %v6365, 64
      %v6477 = vpop.permute.xlu0 %6476
      %6478 = vrot.lane.b32.xlu0 %v6368, 64
      %v6479 = vpop.permute.xlu0 %6478
      %6480 = vrot.lane.b32.xlu0 %v6371, 64
      %v6481 = vpop.permute.xlu0 %6480
      %6482 = vrot.lane.b32.xlu0 %v6374, 64
      %v6483 = vpop.permute.xlu0 %6482
      %6484 = vrot.lane.b32.xlu0 %v6377, 64
      %v6485 = vpop.permute.xlu0 %6484
      %6486 = vrot.lane.b32.xlu0 %v6380, 64
      %v6487 = vpop.permute.xlu0 %6486
      %6488 = vrot.lane.b32.xlu0 %v6383, 64
      %v6489 = vpop.permute.xlu0 %6488
      %6490 = vrot.lane.b32.xlu0 %v6386, 64
      %v6491 = vpop.permute.xlu0 %6490
      %6492 = vrot.lane.b32.xlu0 %v6389, 64
      %v6493 = vpop.permute.xlu0 %6492
      %6494 = vrot.lane.b32.xlu0 %v6392, 64
      %v6495 = vpop.permute.xlu0 %6494
      %6496 = vrot.lane.b32.xlu0 %v6395, 64
      %v6497 = vpop.permute.xlu0 %6496
      %6498 = vrot.lane.b32.xlu0 %v6398, 64
      %v6499 = vpop.permute.xlu0 %6498
      %6500 = vrot.lane.b32.xlu0 %v6401, 64
      %v6501 = vpop.permute.xlu0 %6500
      %6502 = vrot.lane.b32.xlu0 %v6404, 64
      %v6503 = vpop.permute.xlu0 %6502
      %6504 = vrot.lane.b32.xlu0 %v6407, 64
      %v6505 = vpop.permute.xlu0 %6504
      %v6506 = vsel %vm222, %v6475, %v6362
      %v6507 = vsel %vm223, %v6477, %v6365
      %v6508 = vsel %vm224, %v6479, %v6368
      %v6509 = vsel %vm225, %v6481, %v6371
      %v6510 = vsel %vm226, %v6483, %v6374
      %v6511 = vsel %vm227, %v6485, %v6377
      %v6512 = vsel %vm228, %v6487, %v6380
      %v6513 = vsel %vm229, %v6489, %v6383
      %v6514 = vsel %vm230, %v6491, %v6386
      %v6515 = vsel %vm231, %v6493, %v6389
      %v6516 = vsel %vm232, %v6495, %v6392
      %v6517 = vsel %vm233, %v6497, %v6395
      %v6518 = vsel %vm234, %v6499, %v6398
      %v6519 = vsel %vm235, %v6501, %v6401
      %v6520 = vsel %vm236, %v6503, %v6404
      %v6521 = vsel %vm237, %v6505, %v6407
      %6522 = vrot.lane.b32.xlu0 %v6427, 64
      %v6523 = vpop.permute.xlu0 %6522
      %6524 = vrot.lane.b32.xlu0 %v6430, 64
      %v6525 = vpop.permute.xlu0 %6524
      %6526 = vrot.lane.b32.xlu0 %v6433, 64
      %v6527 = vpop.permute.xlu0 %6526
      %6528 = vrot.lane.b32.xlu0 %v6436, 64
      %v6529 = vpop.permute.xlu0 %6528
      %6530 = vrot.lane.b32.xlu0 %v6439, 64
      %v6531 = vpop.permute.xlu0 %6530
      %6532 = vrot.lane.b32.xlu0 %v6442, 64
      %v6533 = vpop.permute.xlu0 %6532
      %6534 = vrot.lane.b32.xlu0 %v6445, 64
      %v6535 = vpop.permute.xlu0 %6534
      %6536 = vrot.lane.b32.xlu0 %v6448, 64
      %v6537 = vpop.permute.xlu0 %6536
      %6538 = vrot.lane.b32.xlu0 %v6451, 64
      %v6539 = vpop.permute.xlu0 %6538
      %6540 = vrot.lane.b32.xlu0 %v6454, 64
      %v6541 = vpop.permute.xlu0 %6540
      %6542 = vrot.lane.b32.xlu0 %v6457, 64
      %v6543 = vpop.permute.xlu0 %6542
      %6544 = vrot.lane.b32.xlu0 %v6460, 64
      %v6545 = vpop.permute.xlu0 %6544
      %6546 = vrot.lane.b32.xlu0 %v6463, 64
      %v6547 = vpop.permute.xlu0 %6546
      %6548 = vrot.lane.b32.xlu0 %v6466, 64
      %v6549 = vpop.permute.xlu0 %6548
      %6550 = vrot.lane.b32.xlu0 %v6469, 64
      %v6551 = vpop.permute.xlu0 %6550
      %6552 = vrot.lane.b32.xlu0 %v6472, 64
      %v6553 = vpop.permute.xlu0 %6552
      %v6554 = vsel %vm222, %v6523, %v6427
      %v6555 = vsel %vm223, %v6525, %v6430
      %v6556 = vsel %vm224, %v6527, %v6433
      %v6557 = vsel %vm225, %v6529, %v6436
      %v6558 = vsel %vm226, %v6531, %v6439
      %v6559 = vsel %vm227, %v6533, %v6442
      %v6560 = vsel %vm228, %v6535, %v6445
      %v6561 = vsel %vm229, %v6537, %v6448
      %v6562 = vsel %vm230, %v6539, %v6451
      %v6563 = vsel %vm231, %v6541, %v6454
      %v6564 = vsel %vm232, %v6543, %v6457
      %v6565 = vsel %vm233, %v6545, %v6460
      %v6566 = vsel %vm234, %v6547, %v6463
      %v6567 = vsel %vm235, %v6549, %v6466
      %v6568 = vsel %vm236, %v6551, %v6469
      %v6569 = vsel %vm237, %v6553, %v6472
      %6570 = vmatpush.msra.mxu0 %v2279
      %6571 = vmatpush.msra.mxu0 %v2278
      %6572 = vmatpush.msra.mxu0 %v2277
      %6573 = vmatpush.msra.mxu0 %v2276
      %6574 = vmatpush.msra.mxu0 %v2275
      %6575 = vmatpush.msra.mxu0 %v2274
      %6576 = vmatpush.msra.mxu0 %v2273
      %6577 = vmatpush.msra.mxu0 %v2272
      %6578 = vmatpush.msra.mxu0 %v2271
      %6579 = vmatpush.msra.mxu0 %v2270
      %6580 = vmatpush.msra.mxu0 %v2269
      %6581 = vmatpush.msra.mxu0 %v2268
      %6582 = vmatpush.msra.mxu0 %v2267
      %6583 = vmatpush.msra.mxu0 %v2266
      %6584 = vmatpush.msra.mxu0 %v2265
      %6585 = vmatpush.msra.mxu0 %v2264
      %6586 = vmatmul.f32.gmra.mxu0 %v6506
      %v6587 = vpop.f32.mrf.mxu0
      %v6588 = vadd.f32 0.0, %v6587
      %6589 = vmatmul.f32.gmra.mxu0 %v6507
      %v6590 = vpop.f32.mrf.mxu0
      %v6591 = vadd.f32 0.0, %v6590
      %6592 = vmatmul.f32.gmra.mxu0 %v6508
      %v6593 = vpop.f32.mrf.mxu0
      %v6594 = vadd.f32 0.0, %v6593
      %6595 = vmatmul.f32.gmra.mxu0 %v6509
      %v6596 = vpop.f32.mrf.mxu0
      %v6597 = vadd.f32 0.0, %v6596
      %6598 = vmatmul.f32.gmra.mxu0 %v6510
      %v6599 = vpop.f32.mrf.mxu0
      %v6600 = vadd.f32 0.0, %v6599
      %6601 = vmatmul.f32.gmra.mxu0 %v6511
      %v6602 = vpop.f32.mrf.mxu0
      %v6603 = vadd.f32 0.0, %v6602
      %6604 = vmatmul.f32.gmra.mxu0 %v6512
      %v6605 = vpop.f32.mrf.mxu0
      %v6606 = vadd.f32 0.0, %v6605
      %6607 = vmatmul.f32.gmra.mxu0 %v6513
      %v6608 = vpop.f32.mrf.mxu0
      %v6609 = vadd.f32 0.0, %v6608
      %6610 = vmatmul.f32.gmra.mxu0 %v6514
      %v6611 = vpop.f32.mrf.mxu0
      %v6612 = vadd.f32 0.0, %v6611
      %6613 = vmatmul.f32.gmra.mxu0 %v6515
      %v6614 = vpop.f32.mrf.mxu0
      %v6615 = vadd.f32 0.0, %v6614
      %6616 = vmatmul.f32.gmra.mxu0 %v6516
      %v6617 = vpop.f32.mrf.mxu0
      %v6618 = vadd.f32 0.0, %v6617
      %6619 = vmatmul.f32.gmra.mxu0 %v6517
      %v6620 = vpop.f32.mrf.mxu0
      %v6621 = vadd.f32 0.0, %v6620
      %6622 = vmatmul.f32.gmra.mxu0 %v6518
      %v6623 = vpop.f32.mrf.mxu0
      %v6624 = vadd.f32 0.0, %v6623
      %6625 = vmatmul.f32.gmra.mxu0 %v6519
      %v6626 = vpop.f32.mrf.mxu0
      %v6627 = vadd.f32 0.0, %v6626
      %6628 = vmatmul.f32.gmra.mxu0 %v6520
      %v6629 = vpop.f32.mrf.mxu0
      %v6630 = vadd.f32 0.0, %v6629
      %6631 = vmatmul.f32.gmra.mxu0 %v6521
      %v6632 = vpop.f32.mrf.mxu0
      %v6633 = vadd.f32 0.0, %v6632
      %6634 = vmatmul.f32.gmra.mxu0 %v6554
      %v6635 = vpop.f32.mrf.mxu0
      %v6636 = vadd.f32 0.0, %v6635
      %6637 = vmatmul.f32.gmra.mxu0 %v6555
      %v6638 = vpop.f32.mrf.mxu0
      %v6639 = vadd.f32 0.0, %v6638
      %6640 = vmatmul.f32.gmra.mxu0 %v6556
      %v6641 = vpop.f32.mrf.mxu0
      %v6642 = vadd.f32 0.0, %v6641
      %6643 = vmatmul.f32.gmra.mxu0 %v6557
      %v6644 = vpop.f32.mrf.mxu0
      %v6645 = vadd.f32 0.0, %v6644
      %6646 = vmatmul.f32.gmra.mxu0 %v6558
      %v6647 = vpop.f32.mrf.mxu0
      %v6648 = vadd.f32 0.0, %v6647
      %6649 = vmatmul.f32.gmra.mxu0 %v6559
      %v6650 = vpop.f32.mrf.mxu0
      %v6651 = vadd.f32 0.0, %v6650
      %6652 = vmatmul.f32.gmra.mxu0 %v6560
      %v6653 = vpop.f32.mrf.mxu0
      %v6654 = vadd.f32 0.0, %v6653
      %6655 = vmatmul.f32.gmra.mxu0 %v6561
      %v6656 = vpop.f32.mrf.mxu0
      %v6657 = vadd.f32 0.0, %v6656
      %6658 = vmatmul.f32.gmra.mxu0 %v6562
      %v6659 = vpop.f32.mrf.mxu0
      %v6660 = vadd.f32 0.0, %v6659
      %6661 = vmatmul.f32.gmra.mxu0 %v6563
      %v6662 = vpop.f32.mrf.mxu0
      %v6663 = vadd.f32 0.0, %v6662
      %6664 = vmatmul.f32.gmra.mxu0 %v6564
      %v6665 = vpop.f32.mrf.mxu0
      %v6666 = vadd.f32 0.0, %v6665
      %6667 = vmatmul.f32.gmra.mxu0 %v6565
      %v6668 = vpop.f32.mrf.mxu0
      %v6669 = vadd.f32 0.0, %v6668
      %6670 = vmatmul.f32.gmra.mxu0 %v6566
      %v6671 = vpop.f32.mrf.mxu0
      %v6672 = vadd.f32 0.0, %v6671
      %6673 = vmatmul.f32.gmra.mxu0 %v6567
      %v6674 = vpop.f32.mrf.mxu0
      %v6675 = vadd.f32 0.0, %v6674
      %6676 = vmatmul.f32.gmra.mxu0 %v6568
      %v6677 = vpop.f32.mrf.mxu0
      %v6678 = vadd.f32 0.0, %v6677
      %6679 = vmatmul.f32.gmra.mxu0 %v6569
      %v6680 = vpop.f32.mrf.mxu0
      %v6681 = vadd.f32 0.0, %v6680
      %6682 = vdwg.mxu0
      %v6683 = vsel %vm238, %v6612, %v6588
      %v6684 = vsel %vm238, %v6615, %v6591
      %v6685 = vsel %vm238, %v6618, %v6594
      %v6686 = vsel %vm238, %v6621, %v6597
      %v6687 = vsel %vm238, %v6624, %v6600
      %v6688 = vsel %vm238, %v6627, %v6603
      %v6689 = vsel %vm238, %v6630, %v6606
      %v6690 = vsel %vm238, %v6633, %v6609
      %v6691 = vsel %vm238, %v6588, %v6612
      %v6692 = vsel %vm238, %v6591, %v6615
      %v6693 = vsel %vm238, %v6594, %v6618
      %v6694 = vsel %vm238, %v6597, %v6621
      %v6695 = vsel %vm238, %v6600, %v6624
      %v6696 = vsel %vm238, %v6603, %v6627
      %v6697 = vsel %vm238, %v6606, %v6630
      %v6698 = vsel %vm238, %v6609, %v6633
      %v6699 = vsel %vm238, %v6660, %v6636
      %v6700 = vsel %vm238, %v6663, %v6639
      %v6701 = vsel %vm238, %v6666, %v6642
      %v6702 = vsel %vm238, %v6669, %v6645
      %v6703 = vsel %vm238, %v6672, %v6648
      %v6704 = vsel %vm238, %v6675, %v6651
      %v6705 = vsel %vm238, %v6678, %v6654
      %v6706 = vsel %vm238, %v6681, %v6657
      %v6707 = vsel %vm238, %v6636, %v6660
      %v6708 = vsel %vm238, %v6639, %v6663
      %v6709 = vsel %vm238, %v6642, %v6666
      %v6710 = vsel %vm238, %v6645, %v6669
      %v6711 = vsel %vm238, %v6648, %v6672
      %v6712 = vsel %vm238, %v6651, %v6675
      %v6713 = vsel %vm238, %v6654, %v6678
      %v6714 = vsel %vm238, %v6657, %v6681
      %6715 = vmatpush.msra.mxu0 %v6698
      %6716 = vmatpush.msra.mxu0 %v6697
      %6717 = vmatpush.msra.mxu0 %v6696
      %6718 = vmatpush.msra.mxu0 %v6695
      %6719 = vmatpush.msra.mxu0 %v6694
      %6720 = vmatpush.msra.mxu0 %v6693
      %6721 = vmatpush.msra.mxu0 %v6692
      %6722 = vmatpush.msra.mxu0 %v6691
      %6723 = vmatpush.msra.mxu0 %v6690
      %6724 = vmatpush.msra.mxu0 %v6689
      %6725 = vmatpush.msra.mxu0 %v6688
      %6726 = vmatpush.msra.mxu0 %v6687
      %6727 = vmatpush.msra.mxu0 %v6686
      %6728 = vmatpush.msra.mxu0 %v6685
      %6729 = vmatpush.msra.mxu0 %v6684
      %6730 = vmatpush.msra.mxu0 %v6683
      %6731 = vmatmul.f32.gmra.mxu0 %v1178
      %v6732 = vpop.f32.mrf.mxu0
      %v6733 = vadd.f32 0.0, %v6732
      %6734 = vmatmul.f32.gmra.mxu0 %v1179
      %v6735 = vpop.f32.mrf.mxu0
      %v6736 = vadd.f32 0.0, %v6735
      %6737 = vmatmul.f32.gmra.mxu0 %v1180
      %v6738 = vpop.f32.mrf.mxu0
      %v6739 = vadd.f32 0.0, %v6738
      %6740 = vmatmul.f32.gmra.mxu0 %v1181
      %v6741 = vpop.f32.mrf.mxu0
      %v6742 = vadd.f32 0.0, %v6741
      %6743 = vmatmul.f32.gmra.mxu0 %v1182
      %v6744 = vpop.f32.mrf.mxu0
      %v6745 = vadd.f32 0.0, %v6744
      %6746 = vmatmul.f32.gmra.mxu0 %v1183
      %v6747 = vpop.f32.mrf.mxu0
      %v6748 = vadd.f32 0.0, %v6747
      %6749 = vmatmul.f32.gmra.mxu0 %v1184
      %v6750 = vpop.f32.mrf.mxu0
      %v6751 = vadd.f32 0.0, %v6750
      %6752 = vmatmul.f32.gmra.mxu0 %v1185
      %v6753 = vpop.f32.mrf.mxu0
      %v6754 = vadd.f32 0.0, %v6753
      %6755 = vmatmul.f32.gmra.mxu0 %v1186
      %v6756 = vpop.f32.mrf.mxu0
      %v6757 = vadd.f32 0.0, %v6756
      %6758 = vmatmul.f32.gmra.mxu0 %v1187
      %v6759 = vpop.f32.mrf.mxu0
      %v6760 = vadd.f32 0.0, %v6759
      %6761 = vmatmul.f32.gmra.mxu0 %v1188
      %v6762 = vpop.f32.mrf.mxu0
      %v6763 = vadd.f32 0.0, %v6762
      %6764 = vmatmul.f32.gmra.mxu0 %v1189
      %v6765 = vpop.f32.mrf.mxu0
      %v6766 = vadd.f32 0.0, %v6765
      %6767 = vmatmul.f32.gmra.mxu0 %v1190
      %v6768 = vpop.f32.mrf.mxu0
      %v6769 = vadd.f32 0.0, %v6768
      %6770 = vmatmul.f32.gmra.mxu0 %v1191
      %v6771 = vpop.f32.mrf.mxu0
      %v6772 = vadd.f32 0.0, %v6771
      %6773 = vmatmul.f32.gmra.mxu0 %v1192
      %v6774 = vpop.f32.mrf.mxu0
      %v6775 = vadd.f32 0.0, %v6774
      %6776 = vmatmul.f32.gmra.mxu0 %v1193
      %v6777 = vpop.f32.mrf.mxu0
      %v6778 = vadd.f32 0.0, %v6777
      %6779 = vmatmul.f32.gmra.mxu0 %v1194
      %v6780 = vpop.f32.mrf.mxu0
      %v6781 = vadd.f32 0.0, %v6780
      %6782 = vmatmul.f32.gmra.mxu0 %v1195
      %v6783 = vpop.f32.mrf.mxu0
      %v6784 = vadd.f32 0.0, %v6783
      %6785 = vmatmul.f32.gmra.mxu0 %v1196
      %v6786 = vpop.f32.mrf.mxu0
      %v6787 = vadd.f32 0.0, %v6786
      %6788 = vmatmul.f32.gmra.mxu0 %v1197
      %v6789 = vpop.f32.mrf.mxu0
      %v6790 = vadd.f32 0.0, %v6789
      %6791 = vmatmul.f32.gmra.mxu0 %v1198
      %v6792 = vpop.f32.mrf.mxu0
      %v6793 = vadd.f32 0.0, %v6792
      %6794 = vmatmul.f32.gmra.mxu0 %v1199
      %v6795 = vpop.f32.mrf.mxu0
      %v6796 = vadd.f32 0.0, %v6795
      %6797 = vmatmul.f32.gmra.mxu0 %v1200
      %v6798 = vpop.f32.mrf.mxu0
      %v6799 = vadd.f32 0.0, %v6798
      %6800 = vmatmul.f32.gmra.mxu0 %v1201
      %v6801 = vpop.f32.mrf.mxu0
      %v6802 = vadd.f32 0.0, %v6801
      %6803 = vmatmul.f32.gmra.mxu0 %v1202
      %v6804 = vpop.f32.mrf.mxu0
      %v6805 = vadd.f32 0.0, %v6804
      %6806 = vmatmul.f32.gmra.mxu0 %v1203
      %v6807 = vpop.f32.mrf.mxu0
      %v6808 = vadd.f32 0.0, %v6807
      %6809 = vmatmul.f32.gmra.mxu0 %v1204
      %v6810 = vpop.f32.mrf.mxu0
      %v6811 = vadd.f32 0.0, %v6810
      %6812 = vmatmul.f32.gmra.mxu0 %v1205
      %v6813 = vpop.f32.mrf.mxu0
      %v6814 = vadd.f32 0.0, %v6813
      %6815 = vmatmul.f32.gmra.mxu0 %v1206
      %v6816 = vpop.f32.mrf.mxu0
      %v6817 = vadd.f32 0.0, %v6816
      %6818 = vmatmul.f32.gmra.mxu0 %v1207
      %v6819 = vpop.f32.mrf.mxu0
      %v6820 = vadd.f32 0.0, %v6819
      %6821 = vmatmul.f32.gmra.mxu0 %v1208
      %v6822 = vpop.f32.mrf.mxu0
      %v6823 = vadd.f32 0.0, %v6822
      %6824 = vmatmul.f32.gmra.mxu0 %v1209
      %v6825 = vpop.f32.mrf.mxu0
      %v6826 = vadd.f32 0.0, %v6825
      %6827 = vdwg.mxu0
      %6828 = vmatpush.msra.mxu0 %v6714
      %6829 = vmatpush.msra.mxu0 %v6713
      %6830 = vmatpush.msra.mxu0 %v6712
      %6831 = vmatpush.msra.mxu0 %v6711
      %6832 = vmatpush.msra.mxu0 %v6710
      %6833 = vmatpush.msra.mxu0 %v6709
      %6834 = vmatpush.msra.mxu0 %v6708
      %6835 = vmatpush.msra.mxu0 %v6707
      %6836 = vmatpush.msra.mxu0 %v6706
      %6837 = vmatpush.msra.mxu0 %v6705
      %6838 = vmatpush.msra.mxu0 %v6704
      %6839 = vmatpush.msra.mxu0 %v6703
      %6840 = vmatpush.msra.mxu0 %v6702
      %6841 = vmatpush.msra.mxu0 %v6701
      %6842 = vmatpush.msra.mxu0 %v6700
      %6843 = vmatpush.msra.mxu0 %v6699
      %6844 = vmatmul.f32.gmra.mxu0 %v1178
      %v6845 = vpop.f32.mrf.mxu0
      %v6846 = vadd.f32 0.0, %v6845
      %6847 = vmatmul.f32.gmra.mxu0 %v1179
      %v6848 = vpop.f32.mrf.mxu0
      %v6849 = vadd.f32 0.0, %v6848
      %6850 = vmatmul.f32.gmra.mxu0 %v1180
      %v6851 = vpop.f32.mrf.mxu0
      %v6852 = vadd.f32 0.0, %v6851
      %6853 = vmatmul.f32.gmra.mxu0 %v1181
      %v6854 = vpop.f32.mrf.mxu0
      %v6855 = vadd.f32 0.0, %v6854
      %6856 = vmatmul.f32.gmra.mxu0 %v1182
      %v6857 = vpop.f32.mrf.mxu0
      %v6858 = vadd.f32 0.0, %v6857
      %6859 = vmatmul.f32.gmra.mxu0 %v1183
      %v6860 = vpop.f32.mrf.mxu0
      %v6861 = vadd.f32 0.0, %v6860
      %6862 = vmatmul.f32.gmra.mxu0 %v1184
      %v6863 = vpop.f32.mrf.mxu0
      %v6864 = vadd.f32 0.0, %v6863
      %6865 = vmatmul.f32.gmra.mxu0 %v1185
      %v6866 = vpop.f32.mrf.mxu0
      %v6867 = vadd.f32 0.0, %v6866
      %6868 = vmatmul.f32.gmra.mxu0 %v1186
      %v6869 = vpop.f32.mrf.mxu0
      %v6870 = vadd.f32 0.0, %v6869
      %6871 = vmatmul.f32.gmra.mxu0 %v1187
      %v6872 = vpop.f32.mrf.mxu0
      %v6873 = vadd.f32 0.0, %v6872
      %6874 = vmatmul.f32.gmra.mxu0 %v1188
      %v6875 = vpop.f32.mrf.mxu0
      %v6876 = vadd.f32 0.0, %v6875
      %6877 = vmatmul.f32.gmra.mxu0 %v1189
      %v6878 = vpop.f32.mrf.mxu0
      %v6879 = vadd.f32 0.0, %v6878
      %6880 = vmatmul.f32.gmra.mxu0 %v1190
      %v6881 = vpop.f32.mrf.mxu0
      %v6882 = vadd.f32 0.0, %v6881
      %6883 = vmatmul.f32.gmra.mxu0 %v1191
      %v6884 = vpop.f32.mrf.mxu0
      %v6885 = vadd.f32 0.0, %v6884
      %6886 = vmatmul.f32.gmra.mxu0 %v1192
      %v6887 = vpop.f32.mrf.mxu0
      %v6888 = vadd.f32 0.0, %v6887
      %6889 = vmatmul.f32.gmra.mxu0 %v1193
      %v6890 = vpop.f32.mrf.mxu0
      %v6891 = vadd.f32 0.0, %v6890
      %6892 = vmatmul.f32.gmra.mxu0 %v1194
      %v6893 = vpop.f32.mrf.mxu0
      %v6894 = vadd.f32 0.0, %v6893
      %6895 = vmatmul.f32.gmra.mxu0 %v1195
      %v6896 = vpop.f32.mrf.mxu0
      %v6897 = vadd.f32 0.0, %v6896
      %6898 = vmatmul.f32.gmra.mxu0 %v1196
      %v6899 = vpop.f32.mrf.mxu0
      %v6900 = vadd.f32 0.0, %v6899
      %6901 = vmatmul.f32.gmra.mxu0 %v1197
      %v6902 = vpop.f32.mrf.mxu0
      %v6903 = vadd.f32 0.0, %v6902
      %6904 = vmatmul.f32.gmra.mxu0 %v1198
      %v6905 = vpop.f32.mrf.mxu0
      %v6906 = vadd.f32 0.0, %v6905
      %6907 = vmatmul.f32.gmra.mxu0 %v1199
      %v6908 = vpop.f32.mrf.mxu0
      %v6909 = vadd.f32 0.0, %v6908
      %6910 = vmatmul.f32.gmra.mxu0 %v1200
      %v6911 = vpop.f32.mrf.mxu0
      %v6912 = vadd.f32 0.0, %v6911
      %6913 = vmatmul.f32.gmra.mxu0 %v1201
      %v6914 = vpop.f32.mrf.mxu0
      %v6915 = vadd.f32 0.0, %v6914
      %6916 = vmatmul.f32.gmra.mxu0 %v1202
      %v6917 = vpop.f32.mrf.mxu0
      %v6918 = vadd.f32 0.0, %v6917
      %6919 = vmatmul.f32.gmra.mxu0 %v1203
      %v6920 = vpop.f32.mrf.mxu0
      %v6921 = vadd.f32 0.0, %v6920
      %6922 = vmatmul.f32.gmra.mxu0 %v1204
      %v6923 = vpop.f32.mrf.mxu0
      %v6924 = vadd.f32 0.0, %v6923
      %6925 = vmatmul.f32.gmra.mxu0 %v1205
      %v6926 = vpop.f32.mrf.mxu0
      %v6927 = vadd.f32 0.0, %v6926
      %6928 = vmatmul.f32.gmra.mxu0 %v1206
      %v6929 = vpop.f32.mrf.mxu0
      %v6930 = vadd.f32 0.0, %v6929
      %6931 = vmatmul.f32.gmra.mxu0 %v1207
      %v6932 = vpop.f32.mrf.mxu0
      %v6933 = vadd.f32 0.0, %v6932
      %6934 = vmatmul.f32.gmra.mxu0 %v1208
      %v6935 = vpop.f32.mrf.mxu0
      %v6936 = vadd.f32 0.0, %v6935
      %6937 = vmatmul.f32.gmra.mxu0 %v1209
      %v6938 = vpop.f32.mrf.mxu0
      %v6939 = vadd.f32 0.0, %v6938
      %6940 = vdwg.mxu0
      %v6941 = vsub.f32 %v6733, %v6894
      %v6942 = vsub.f32 %v6736, %v6897
      %v6943 = vsub.f32 %v6739, %v6900
      %v6944 = vsub.f32 %v6742, %v6903
      %v6945 = vsub.f32 %v6745, %v6906
      %v6946 = vsub.f32 %v6748, %v6909
      %v6947 = vsub.f32 %v6751, %v6912
      %v6948 = vsub.f32 %v6754, %v6915
      %v6949 = vsub.f32 %v6757, %v6918
      %v6950 = vsub.f32 %v6760, %v6921
      %v6951 = vsub.f32 %v6763, %v6924
      %v6952 = vsub.f32 %v6766, %v6927
      %v6953 = vsub.f32 %v6769, %v6930
      %v6954 = vsub.f32 %v6772, %v6933
      %v6955 = vsub.f32 %v6775, %v6936
      %v6956 = vsub.f32 %v6778, %v6939
      %v6957 = vadd.f32 %v6846, %v6781
      %v6958 = vadd.f32 %v6849, %v6784
      %v6959 = vadd.f32 %v6852, %v6787
      %v6960 = vadd.f32 %v6855, %v6790
      %v6961 = vadd.f32 %v6858, %v6793
      %v6962 = vadd.f32 %v6861, %v6796
      %v6963 = vadd.f32 %v6864, %v6799
      %v6964 = vadd.f32 %v6867, %v6802
      %v6965 = vadd.f32 %v6870, %v6805
      %v6966 = vadd.f32 %v6873, %v6808
      %v6967 = vadd.f32 %v6876, %v6811
      %v6968 = vadd.f32 %v6879, %v6814
      %v6969 = vadd.f32 %v6882, %v6817
      %v6970 = vadd.f32 %v6885, %v6820
      %v6971 = vadd.f32 %v6888, %v6823
      %v6972 = vadd.f32 %v6891, %v6826
      %6973 = vmatpush.msra.mxu0 %v2180
      %6974 = vmatpush.msra.mxu0 %v2178
      %6975 = vmatpush.msra.mxu0 %v2176
      %6976 = vmatpush.msra.mxu0 %v2174
      %6977 = vmatpush.msra.mxu0 %v2172
      %6978 = vmatpush.msra.mxu0 %v2170
      %6979 = vmatpush.msra.mxu0 %v2168
      %6980 = vmatpush.msra.mxu0 %v2166
      %6981 = vmatpush.msra.mxu0 %v2164
      %6982 = vmatpush.msra.mxu0 %v2162
      %6983 = vmatpush.msra.mxu0 %v2160
      %6984 = vmatpush.msra.mxu0 %v2158
      %6985 = vmatpush.msra.mxu0 %v2156
      %6986 = vmatpush.msra.mxu0 %v2154
      %6987 = vmatpush.msra.mxu0 %v2152
      %6988 = vmatpush.msra.mxu0 %v2150
      %6989 = vmatmul.f32.gmra.mxu0 %v6941
      %v6990 = vpop.f32.mrf.mxu0
      %v6991 = vadd.f32 0.0, %v6990
      %6992 = vmatmul.f32.gmra.mxu0 %v6942
      %v6993 = vpop.f32.mrf.mxu0
      %v6994 = vadd.f32 0.0, %v6993
      %6995 = vmatmul.f32.gmra.mxu0 %v6943
      %v6996 = vpop.f32.mrf.mxu0
      %v6997 = vadd.f32 0.0, %v6996
      %6998 = vmatmul.f32.gmra.mxu0 %v6944
      %v6999 = vpop.f32.mrf.mxu0
      %v7000 = vadd.f32 0.0, %v6999
      %7001 = vmatmul.f32.gmra.mxu0 %v6945
      %v7002 = vpop.f32.mrf.mxu0
      %v7003 = vadd.f32 0.0, %v7002
      %7004 = vmatmul.f32.gmra.mxu0 %v6946
      %v7005 = vpop.f32.mrf.mxu0
      %v7006 = vadd.f32 0.0, %v7005
      %7007 = vmatmul.f32.gmra.mxu0 %v6947
      %v7008 = vpop.f32.mrf.mxu0
      %v7009 = vadd.f32 0.0, %v7008
      %7010 = vmatmul.f32.gmra.mxu0 %v6948
      %v7011 = vpop.f32.mrf.mxu0
      %v7012 = vadd.f32 0.0, %v7011
      %7013 = vmatmul.f32.gmra.mxu0 %v6949
      %v7014 = vpop.f32.mrf.mxu0
      %v7015 = vadd.f32 0.0, %v7014
      %7016 = vmatmul.f32.gmra.mxu0 %v6950
      %v7017 = vpop.f32.mrf.mxu0
      %v7018 = vadd.f32 0.0, %v7017
      %7019 = vmatmul.f32.gmra.mxu0 %v6951
      %v7020 = vpop.f32.mrf.mxu0
      %v7021 = vadd.f32 0.0, %v7020
      %7022 = vmatmul.f32.gmra.mxu0 %v6952
      %v7023 = vpop.f32.mrf.mxu0
      %v7024 = vadd.f32 0.0, %v7023
      %7025 = vmatmul.f32.gmra.mxu0 %v6953
      %v7026 = vpop.f32.mrf.mxu0
      %v7027 = vadd.f32 0.0, %v7026
      %7028 = vmatmul.f32.gmra.mxu0 %v6954
      %v7029 = vpop.f32.mrf.mxu0
      %v7030 = vadd.f32 0.0, %v7029
      %7031 = vmatmul.f32.gmra.mxu0 %v6955
      %v7032 = vpop.f32.mrf.mxu0
      %v7033 = vadd.f32 0.0, %v7032
      %7034 = vmatmul.f32.gmra.mxu0 %v6956
      %v7035 = vpop.f32.mrf.mxu0
      %v7036 = vadd.f32 0.0, %v7035
      %7037 = vmatmul.f32.gmra.mxu0 %v6957
      %v7038 = vpop.f32.mrf.mxu0
      %v7039 = vadd.f32 0.0, %v7038
      %7040 = vmatmul.f32.gmra.mxu0 %v6958
      %v7041 = vpop.f32.mrf.mxu0
      %v7042 = vadd.f32 0.0, %v7041
      %7043 = vmatmul.f32.gmra.mxu0 %v6959
      %v7044 = vpop.f32.mrf.mxu0
      %v7045 = vadd.f32 0.0, %v7044
      %7046 = vmatmul.f32.gmra.mxu0 %v6960
      %v7047 = vpop.f32.mrf.mxu0
      %v7048 = vadd.f32 0.0, %v7047
      %7049 = vmatmul.f32.gmra.mxu0 %v6961
      %v7050 = vpop.f32.mrf.mxu0
      %v7051 = vadd.f32 0.0, %v7050
      %7052 = vmatmul.f32.gmra.mxu0 %v6962
      %v7053 = vpop.f32.mrf.mxu0
      %v7054 = vadd.f32 0.0, %v7053
      %7055 = vmatmul.f32.gmra.mxu0 %v6963
      %v7056 = vpop.f32.mrf.mxu0
      %v7057 = vadd.f32 0.0, %v7056
      %7058 = vmatmul.f32.gmra.mxu0 %v6964
      %v7059 = vpop.f32.mrf.mxu0
      %v7060 = vadd.f32 0.0, %v7059
      %7061 = vmatmul.f32.gmra.mxu0 %v6965
      %v7062 = vpop.f32.mrf.mxu0
      %v7063 = vadd.f32 0.0, %v7062
      %7064 = vmatmul.f32.gmra.mxu0 %v6966
      %v7065 = vpop.f32.mrf.mxu0
      %v7066 = vadd.f32 0.0, %v7065
      %7067 = vmatmul.f32.gmra.mxu0 %v6967
      %v7068 = vpop.f32.mrf.mxu0
      %v7069 = vadd.f32 0.0, %v7068
      %7070 = vmatmul.f32.gmra.mxu0 %v6968
      %v7071 = vpop.f32.mrf.mxu0
      %v7072 = vadd.f32 0.0, %v7071
      %7073 = vmatmul.f32.gmra.mxu0 %v6969
      %v7074 = vpop.f32.mrf.mxu0
      %v7075 = vadd.f32 0.0, %v7074
      %7076 = vmatmul.f32.gmra.mxu0 %v6970
      %v7077 = vpop.f32.mrf.mxu0
      %v7078 = vadd.f32 0.0, %v7077
      %7079 = vmatmul.f32.gmra.mxu0 %v6971
      %v7080 = vpop.f32.mrf.mxu0
      %v7081 = vadd.f32 0.0, %v7080
      %7082 = vmatmul.f32.gmra.mxu0 %v6972
      %v7083 = vpop.f32.mrf.mxu0
      %v7084 = vadd.f32 0.0, %v7083
      %7085 = vdwg.mxu0
      %7086 = vmatpush.msra.mxu0 %v2181
      %7087 = vmatpush.msra.mxu0 %v2179
      %7088 = vmatpush.msra.mxu0 %v2177
      %7089 = vmatpush.msra.mxu0 %v2175
      %7090 = vmatpush.msra.mxu0 %v2173
      %7091 = vmatpush.msra.mxu0 %v2171
      %7092 = vmatpush.msra.mxu0 %v2169
      %7093 = vmatpush.msra.mxu0 %v2167
      %7094 = vmatpush.msra.mxu0 %v2165
      %7095 = vmatpush.msra.mxu0 %v2163
      %7096 = vmatpush.msra.mxu0 %v2161
      %7097 = vmatpush.msra.mxu0 %v2159
      %7098 = vmatpush.msra.mxu0 %v2157
      %7099 = vmatpush.msra.mxu0 %v2155
      %7100 = vmatpush.msra.mxu0 %v2153
      %7101 = vmatpush.msra.mxu0 %v2151
      %7102 = vmatmul.f32.gmra.mxu0 %v6941
      %v7103 = vpop.f32.mrf.mxu0
      %v7104 = vadd.f32 0.0, %v7103
      %7105 = vmatmul.f32.gmra.mxu0 %v6942
      %v7106 = vpop.f32.mrf.mxu0
      %v7107 = vadd.f32 0.0, %v7106
      %7108 = vmatmul.f32.gmra.mxu0 %v6943
      %v7109 = vpop.f32.mrf.mxu0
      %v7110 = vadd.f32 0.0, %v7109
      %7111 = vmatmul.f32.gmra.mxu0 %v6944
      %v7112 = vpop.f32.mrf.mxu0
      %v7113 = vadd.f32 0.0, %v7112
      %7114 = vmatmul.f32.gmra.mxu0 %v6945
      %v7115 = vpop.f32.mrf.mxu0
      %v7116 = vadd.f32 0.0, %v7115
      %7117 = vmatmul.f32.gmra.mxu0 %v6946
      %v7118 = vpop.f32.mrf.mxu0
      %v7119 = vadd.f32 0.0, %v7118
      %7120 = vmatmul.f32.gmra.mxu0 %v6947
      %v7121 = vpop.f32.mrf.mxu0
      %v7122 = vadd.f32 0.0, %v7121
      %7123 = vmatmul.f32.gmra.mxu0 %v6948
      %v7124 = vpop.f32.mrf.mxu0
      %v7125 = vadd.f32 0.0, %v7124
      %7126 = vmatmul.f32.gmra.mxu0 %v6949
      %v7127 = vpop.f32.mrf.mxu0
      %v7128 = vadd.f32 0.0, %v7127
      %7129 = vmatmul.f32.gmra.mxu0 %v6950
      %v7130 = vpop.f32.mrf.mxu0
      %v7131 = vadd.f32 0.0, %v7130
      %7132 = vmatmul.f32.gmra.mxu0 %v6951
      %v7133 = vpop.f32.mrf.mxu0
      %v7134 = vadd.f32 0.0, %v7133
      %7135 = vmatmul.f32.gmra.mxu0 %v6952
      %v7136 = vpop.f32.mrf.mxu0
      %v7137 = vadd.f32 0.0, %v7136
      %7138 = vmatmul.f32.gmra.mxu0 %v6953
      %v7139 = vpop.f32.mrf.mxu0
      %v7140 = vadd.f32 0.0, %v7139
      %7141 = vmatmul.f32.gmra.mxu0 %v6954
      %v7142 = vpop.f32.mrf.mxu0
      %v7143 = vadd.f32 0.0, %v7142
      %7144 = vmatmul.f32.gmra.mxu0 %v6955
      %v7145 = vpop.f32.mrf.mxu0
      %v7146 = vadd.f32 0.0, %v7145
      %7147 = vmatmul.f32.gmra.mxu0 %v6956
      %v7148 = vpop.f32.mrf.mxu0
      %v7149 = vadd.f32 0.0, %v7148
      %7150 = vmatmul.f32.gmra.mxu0 %v6957
      %v7151 = vpop.f32.mrf.mxu0
      %v7152 = vadd.f32 0.0, %v7151
      %7153 = vmatmul.f32.gmra.mxu0 %v6958
      %v7154 = vpop.f32.mrf.mxu0
      %v7155 = vadd.f32 0.0, %v7154
      %7156 = vmatmul.f32.gmra.mxu0 %v6959
      %v7157 = vpop.f32.mrf.mxu0
      %v7158 = vadd.f32 0.0, %v7157
      %7159 = vmatmul.f32.gmra.mxu0 %v6960
      %v7160 = vpop.f32.mrf.mxu0
      %v7161 = vadd.f32 0.0, %v7160
      %7162 = vmatmul.f32.gmra.mxu0 %v6961
      %v7163 = vpop.f32.mrf.mxu0
      %v7164 = vadd.f32 0.0, %v7163
      %7165 = vmatmul.f32.gmra.mxu0 %v6962
      %v7166 = vpop.f32.mrf.mxu0
      %v7167 = vadd.f32 0.0, %v7166
      %7168 = vmatmul.f32.gmra.mxu0 %v6963
      %v7169 = vpop.f32.mrf.mxu0
      %v7170 = vadd.f32 0.0, %v7169
      %7171 = vmatmul.f32.gmra.mxu0 %v6964
      %v7172 = vpop.f32.mrf.mxu0
      %v7173 = vadd.f32 0.0, %v7172
      %7174 = vmatmul.f32.gmra.mxu0 %v6965
      %v7175 = vpop.f32.mrf.mxu0
      %v7176 = vadd.f32 0.0, %v7175
      %7177 = vmatmul.f32.gmra.mxu0 %v6966
      %v7178 = vpop.f32.mrf.mxu0
      %v7179 = vadd.f32 0.0, %v7178
      %7180 = vmatmul.f32.gmra.mxu0 %v6967
      %v7181 = vpop.f32.mrf.mxu0
      %v7182 = vadd.f32 0.0, %v7181
      %7183 = vmatmul.f32.gmra.mxu0 %v6968
      %v7184 = vpop.f32.mrf.mxu0
      %v7185 = vadd.f32 0.0, %v7184
      %7186 = vmatmul.f32.gmra.mxu0 %v6969
      %v7187 = vpop.f32.mrf.mxu0
      %v7188 = vadd.f32 0.0, %v7187
      %7189 = vmatmul.f32.gmra.mxu0 %v6970
      %v7190 = vpop.f32.mrf.mxu0
      %v7191 = vadd.f32 0.0, %v7190
      %7192 = vmatmul.f32.gmra.mxu0 %v6971
      %v7193 = vpop.f32.mrf.mxu0
      %v7194 = vadd.f32 0.0, %v7193
      %7195 = vmatmul.f32.gmra.mxu0 %v6972
      %v7196 = vpop.f32.mrf.mxu0
      %v7197 = vadd.f32 0.0, %v7196
      %7198 = vdwg.mxu0
      %v7199 = vsub.f32 %v6991, %v7152
      %v7200 = vsub.f32 %v6994, %v7155
      %v7201 = vsub.f32 %v6997, %v7158
      %v7202 = vsub.f32 %v7000, %v7161
      %v7203 = vsub.f32 %v7003, %v7164
      %v7204 = vsub.f32 %v7006, %v7167
      %v7205 = vsub.f32 %v7009, %v7170
      %v7206 = vsub.f32 %v7012, %v7173
      %v7207 = vsub.f32 %v7015, %v7176
      %v7208 = vsub.f32 %v7018, %v7179
      %v7209 = vsub.f32 %v7021, %v7182
      %v7210 = vsub.f32 %v7024, %v7185
      %v7211 = vsub.f32 %v7027, %v7188
      %v7212 = vsub.f32 %v7030, %v7191
      %v7213 = vsub.f32 %v7033, %v7194
      %v7214 = vsub.f32 %v7036, %v7197
      %v7215 = vadd.f32 %v7104, %v7039
      %v7216 = vadd.f32 %v7107, %v7042
      %v7217 = vadd.f32 %v7110, %v7045
      %v7218 = vadd.f32 %v7113, %v7048
      %v7219 = vadd.f32 %v7116, %v7051
      %v7220 = vadd.f32 %v7119, %v7054
      %v7221 = vadd.f32 %v7122, %v7057
      %v7222 = vadd.f32 %v7125, %v7060
      %v7223 = vadd.f32 %v7128, %v7063
      %v7224 = vadd.f32 %v7131, %v7066
      %v7225 = vadd.f32 %v7134, %v7069
      %v7226 = vadd.f32 %v7137, %v7072
      %v7227 = vadd.f32 %v7140, %v7075
      %v7228 = vadd.f32 %v7143, %v7078
      %v7229 = vadd.f32 %v7146, %v7081
      %v7230 = vadd.f32 %v7149, %v7084
      %7231 = vmatpush.msra.mxu0 %v7214
      %7232 = vmatpush.msra.mxu0 %v7213
      %7233 = vmatpush.msra.mxu0 %v7212
      %7234 = vmatpush.msra.mxu0 %v7211
      %7235 = vmatpush.msra.mxu0 %v7210
      %7236 = vmatpush.msra.mxu0 %v7209
      %7237 = vmatpush.msra.mxu0 %v7208
      %7238 = vmatpush.msra.mxu0 %v7207
      %7239 = vmatpush.msra.mxu0 %v7206
      %7240 = vmatpush.msra.mxu0 %v7205
      %7241 = vmatpush.msra.mxu0 %v7204
      %7242 = vmatpush.msra.mxu0 %v7203
      %7243 = vmatpush.msra.mxu0 %v7202
      %7244 = vmatpush.msra.mxu0 %v7201
      %7245 = vmatpush.msra.mxu0 %v7200
      %7246 = vmatpush.msra.mxu0 %v7199
      %7247 = vmatmul.f32.gmra.mxu0 %v2231
      %v7248 = vpop.f32.mrf.mxu0
      %v7249 = vadd.f32 0.0, %v7248
      %7250 = vmatmul.f32.gmra.mxu0 %v2232
      %v7251 = vpop.f32.mrf.mxu0
      %v7252 = vadd.f32 0.0, %v7251
      %7253 = vmatmul.f32.gmra.mxu0 %v2233
      %v7254 = vpop.f32.mrf.mxu0
      %v7255 = vadd.f32 0.0, %v7254
      %7256 = vmatmul.f32.gmra.mxu0 %v2234
      %v7257 = vpop.f32.mrf.mxu0
      %v7258 = vadd.f32 0.0, %v7257
      %7259 = vmatmul.f32.gmra.mxu0 %v2235
      %v7260 = vpop.f32.mrf.mxu0
      %v7261 = vadd.f32 0.0, %v7260
      %7262 = vmatmul.f32.gmra.mxu0 %v2236
      %v7263 = vpop.f32.mrf.mxu0
      %v7264 = vadd.f32 0.0, %v7263
      %7265 = vmatmul.f32.gmra.mxu0 %v2237
      %v7266 = vpop.f32.mrf.mxu0
      %v7267 = vadd.f32 0.0, %v7266
      %7268 = vmatmul.f32.gmra.mxu0 %v2238
      %v7269 = vpop.f32.mrf.mxu0
      %v7270 = vadd.f32 0.0, %v7269
      %7271 = vmatmul.f32.gmra.mxu0 %v2239
      %v7272 = vpop.f32.mrf.mxu0
      %v7273 = vadd.f32 0.0, %v7272
      %7274 = vmatmul.f32.gmra.mxu0 %v2240
      %v7275 = vpop.f32.mrf.mxu0
      %v7276 = vadd.f32 0.0, %v7275
      %7277 = vmatmul.f32.gmra.mxu0 %v2241
      %v7278 = vpop.f32.mrf.mxu0
      %v7279 = vadd.f32 0.0, %v7278
      %7280 = vmatmul.f32.gmra.mxu0 %v2242
      %v7281 = vpop.f32.mrf.mxu0
      %v7282 = vadd.f32 0.0, %v7281
      %7283 = vmatmul.f32.gmra.mxu0 %v2243
      %v7284 = vpop.f32.mrf.mxu0
      %v7285 = vadd.f32 0.0, %v7284
      %7286 = vmatmul.f32.gmra.mxu0 %v2244
      %v7287 = vpop.f32.mrf.mxu0
      %v7288 = vadd.f32 0.0, %v7287
      %7289 = vmatmul.f32.gmra.mxu0 %v2245
      %v7290 = vpop.f32.mrf.mxu0
      %v7291 = vadd.f32 0.0, %v7290
      %7292 = vmatmul.f32.gmra.mxu0 %v2246
      %v7293 = vpop.f32.mrf.mxu0
      %v7294 = vadd.f32 0.0, %v7293
      %7295 = vdwg.mxu0
      %7296 = vmatpush.msra.mxu0 %v7230
      %7297 = vmatpush.msra.mxu0 %v7229
      %7298 = vmatpush.msra.mxu0 %v7228
      %7299 = vmatpush.msra.mxu0 %v7227
      %7300 = vmatpush.msra.mxu0 %v7226
      %7301 = vmatpush.msra.mxu0 %v7225
      %7302 = vmatpush.msra.mxu0 %v7224
      %7303 = vmatpush.msra.mxu0 %v7223
      %7304 = vmatpush.msra.mxu0 %v7222
      %7305 = vmatpush.msra.mxu0 %v7221
      %7306 = vmatpush.msra.mxu0 %v7220
      %7307 = vmatpush.msra.mxu0 %v7219
      %7308 = vmatpush.msra.mxu0 %v7218
      %7309 = vmatpush.msra.mxu0 %v7217
      %7310 = vmatpush.msra.mxu0 %v7216
      %7311 = vmatpush.msra.mxu0 %v7215
      %7312 = vmatmul.f32.gmra.mxu0 %v2231
      %v7313 = vpop.f32.mrf.mxu0
      %v7314 = vadd.f32 0.0, %v7313
      %7315 = vmatmul.f32.gmra.mxu0 %v2232
      %v7316 = vpop.f32.mrf.mxu0
      %v7317 = vadd.f32 0.0, %v7316
      %7318 = vmatmul.f32.gmra.mxu0 %v2233
      %v7319 = vpop.f32.mrf.mxu0
      %v7320 = vadd.f32 0.0, %v7319
      %7321 = vmatmul.f32.gmra.mxu0 %v2234
      %v7322 = vpop.f32.mrf.mxu0
      %v7323 = vadd.f32 0.0, %v7322
      %7324 = vmatmul.f32.gmra.mxu0 %v2235
      %v7325 = vpop.f32.mrf.mxu0
      %v7326 = vadd.f32 0.0, %v7325
      %7327 = vmatmul.f32.gmra.mxu0 %v2236
      %v7328 = vpop.f32.mrf.mxu0
      %v7329 = vadd.f32 0.0, %v7328
      %7330 = vmatmul.f32.gmra.mxu0 %v2237
      %v7331 = vpop.f32.mrf.mxu0
      %v7332 = vadd.f32 0.0, %v7331
      %7333 = vmatmul.f32.gmra.mxu0 %v2238
      %v7334 = vpop.f32.mrf.mxu0
      %v7335 = vadd.f32 0.0, %v7334
      %7336 = vmatmul.f32.gmra.mxu0 %v2239
      %v7337 = vpop.f32.mrf.mxu0
      %v7338 = vadd.f32 0.0, %v7337
      %7339 = vmatmul.f32.gmra.mxu0 %v2240
      %v7340 = vpop.f32.mrf.mxu0
      %v7341 = vadd.f32 0.0, %v7340
      %7342 = vmatmul.f32.gmra.mxu0 %v2241
      %v7343 = vpop.f32.mrf.mxu0
      %v7344 = vadd.f32 0.0, %v7343
      %7345 = vmatmul.f32.gmra.mxu0 %v2242
      %v7346 = vpop.f32.mrf.mxu0
      %v7347 = vadd.f32 0.0, %v7346
      %7348 = vmatmul.f32.gmra.mxu0 %v2243
      %v7349 = vpop.f32.mrf.mxu0
      %v7350 = vadd.f32 0.0, %v7349
      %7351 = vmatmul.f32.gmra.mxu0 %v2244
      %v7352 = vpop.f32.mrf.mxu0
      %v7353 = vadd.f32 0.0, %v7352
      %7354 = vmatmul.f32.gmra.mxu0 %v2245
      %v7355 = vpop.f32.mrf.mxu0
      %v7356 = vadd.f32 0.0, %v7355
      %7357 = vmatmul.f32.gmra.mxu0 %v2246
      %v7358 = vpop.f32.mrf.mxu0
      %v7359 = vadd.f32 0.0, %v7358
      %7360 = vdwg.mxu0
      %7361 = vrot.lane.b32.xlu0 %v7249, 64
      %v7362 = vpop.permute.xlu0 %7361
      %7363 = vrot.lane.b32.xlu0 %v7252, 64
      %v7364 = vpop.permute.xlu0 %7363
      %7365 = vrot.lane.b32.xlu0 %v7255, 64
      %v7366 = vpop.permute.xlu0 %7365
      %7367 = vrot.lane.b32.xlu0 %v7258, 64
      %v7368 = vpop.permute.xlu0 %7367
      %7369 = vrot.lane.b32.xlu0 %v7261, 64
      %v7370 = vpop.permute.xlu0 %7369
      %7371 = vrot.lane.b32.xlu0 %v7264, 64
      %v7372 = vpop.permute.xlu0 %7371
      %7373 = vrot.lane.b32.xlu0 %v7267, 64
      %v7374 = vpop.permute.xlu0 %7373
      %7375 = vrot.lane.b32.xlu0 %v7270, 64
      %v7376 = vpop.permute.xlu0 %7375
      %7377 = vrot.lane.b32.xlu0 %v7273, 64
      %v7378 = vpop.permute.xlu0 %7377
      %7379 = vrot.lane.b32.xlu0 %v7276, 64
      %v7380 = vpop.permute.xlu0 %7379
      %7381 = vrot.lane.b32.xlu0 %v7279, 64
      %v7382 = vpop.permute.xlu0 %7381
      %7383 = vrot.lane.b32.xlu0 %v7282, 64
      %v7384 = vpop.permute.xlu0 %7383
      %7385 = vrot.lane.b32.xlu0 %v7285, 64
      %v7386 = vpop.permute.xlu0 %7385
      %7387 = vrot.lane.b32.xlu0 %v7288, 64
      %v7388 = vpop.permute.xlu0 %7387
      %7389 = vrot.lane.b32.xlu0 %v7291, 64
      %v7390 = vpop.permute.xlu0 %7389
      %7391 = vrot.lane.b32.xlu0 %v7294, 64
      %v7392 = vpop.permute.xlu0 %7391
      %v7393 = vsel %vm222, %v7362, %v7249
      %v7394 = vsel %vm223, %v7364, %v7252
      %v7395 = vsel %vm224, %v7366, %v7255
      %v7396 = vsel %vm225, %v7368, %v7258
      %v7397 = vsel %vm226, %v7370, %v7261
      %v7398 = vsel %vm227, %v7372, %v7264
      %v7399 = vsel %vm228, %v7374, %v7267
      %v7400 = vsel %vm229, %v7376, %v7270
      %v7401 = vsel %vm230, %v7378, %v7273
      %v7402 = vsel %vm231, %v7380, %v7276
      %v7403 = vsel %vm232, %v7382, %v7279
      %v7404 = vsel %vm233, %v7384, %v7282
      %v7405 = vsel %vm234, %v7386, %v7285
      %v7406 = vsel %vm235, %v7388, %v7288
      %v7407 = vsel %vm236, %v7390, %v7291
      %v7408 = vsel %vm237, %v7392, %v7294
      %7409 = vrot.lane.b32.xlu0 %v7314, 64
      %v7410 = vpop.permute.xlu0 %7409
      %7411 = vrot.lane.b32.xlu0 %v7317, 64
      %v7412 = vpop.permute.xlu0 %7411
      %7413 = vrot.lane.b32.xlu0 %v7320, 64
      %v7414 = vpop.permute.xlu0 %7413
      %7415 = vrot.lane.b32.xlu0 %v7323, 64
      %v7416 = vpop.permute.xlu0 %7415
      %7417 = vrot.lane.b32.xlu0 %v7326, 64
      %v7418 = vpop.permute.xlu0 %7417
      %7419 = vrot.lane.b32.xlu0 %v7329, 64
      %v7420 = vpop.permute.xlu0 %7419
      %7421 = vrot.lane.b32.xlu0 %v7332, 64
      %v7422 = vpop.permute.xlu0 %7421
      %7423 = vrot.lane.b32.xlu0 %v7335, 64
      %v7424 = vpop.permute.xlu0 %7423
      %7425 = vrot.lane.b32.xlu0 %v7338, 64
      %v7426 = vpop.permute.xlu0 %7425
      %7427 = vrot.lane.b32.xlu0 %v7341, 64
      %v7428 = vpop.permute.xlu0 %7427
      %7429 = vrot.lane.b32.xlu0 %v7344, 64
      %v7430 = vpop.permute.xlu0 %7429
      %7431 = vrot.lane.b32.xlu0 %v7347, 64
      %v7432 = vpop.permute.xlu0 %7431
      %7433 = vrot.lane.b32.xlu0 %v7350, 64
      %v7434 = vpop.permute.xlu0 %7433
      %7435 = vrot.lane.b32.xlu0 %v7353, 64
      %v7436 = vpop.permute.xlu0 %7435
      %7437 = vrot.lane.b32.xlu0 %v7356, 64
      %v7438 = vpop.permute.xlu0 %7437
      %7439 = vrot.lane.b32.xlu0 %v7359, 64
      %v7440 = vpop.permute.xlu0 %7439
      %v7441 = vsel %vm222, %v7410, %v7314
      %v7442 = vsel %vm223, %v7412, %v7317
      %v7443 = vsel %vm224, %v7414, %v7320
      %v7444 = vsel %vm225, %v7416, %v7323
      %v7445 = vsel %vm226, %v7418, %v7326
      %v7446 = vsel %vm227, %v7420, %v7329
      %v7447 = vsel %vm228, %v7422, %v7332
      %v7448 = vsel %vm229, %v7424, %v7335
      %v7449 = vsel %vm230, %v7426, %v7338
      %v7450 = vsel %vm231, %v7428, %v7341
      %v7451 = vsel %vm232, %v7430, %v7344
      %v7452 = vsel %vm233, %v7432, %v7347
      %v7453 = vsel %vm234, %v7434, %v7350
      %v7454 = vsel %vm235, %v7436, %v7353
      %v7455 = vsel %vm236, %v7438, %v7356
      %v7456 = vsel %vm237, %v7440, %v7359
      %7457 = vmatpush.msra.mxu0 %v2279
      %7458 = vmatpush.msra.mxu0 %v2278
      %7459 = vmatpush.msra.mxu0 %v2277
      %7460 = vmatpush.msra.mxu0 %v2276
      %7461 = vmatpush.msra.mxu0 %v2275
      %7462 = vmatpush.msra.mxu0 %v2274
      %7463 = vmatpush.msra.mxu0 %v2273
      %7464 = vmatpush.msra.mxu0 %v2272
      %7465 = vmatpush.msra.mxu0 %v2271
      %7466 = vmatpush.msra.mxu0 %v2270
      %7467 = vmatpush.msra.mxu0 %v2269
      %7468 = vmatpush.msra.mxu0 %v2268
      %7469 = vmatpush.msra.mxu0 %v2267
      %7470 = vmatpush.msra.mxu0 %v2266
      %7471 = vmatpush.msra.mxu0 %v2265
      %7472 = vmatpush.msra.mxu0 %v2264
      %7473 = vmatmul.f32.gmra.mxu0 %v7393
      %v7474 = vpop.f32.mrf.mxu0
      %v7475 = vadd.f32 0.0, %v7474
      %7476 = vmatmul.f32.gmra.mxu0 %v7394
      %v7477 = vpop.f32.mrf.mxu0
      %v7478 = vadd.f32 0.0, %v7477
      %7479 = vmatmul.f32.gmra.mxu0 %v7395
      %v7480 = vpop.f32.mrf.mxu0
      %v7481 = vadd.f32 0.0, %v7480
      %7482 = vmatmul.f32.gmra.mxu0 %v7396
      %v7483 = vpop.f32.mrf.mxu0
      %v7484 = vadd.f32 0.0, %v7483
      %7485 = vmatmul.f32.gmra.mxu0 %v7397
      %v7486 = vpop.f32.mrf.mxu0
      %v7487 = vadd.f32 0.0, %v7486
      %7488 = vmatmul.f32.gmra.mxu0 %v7398
      %v7489 = vpop.f32.mrf.mxu0
      %v7490 = vadd.f32 0.0, %v7489
      %7491 = vmatmul.f32.gmra.mxu0 %v7399
      %v7492 = vpop.f32.mrf.mxu0
      %v7493 = vadd.f32 0.0, %v7492
      %7494 = vmatmul.f32.gmra.mxu0 %v7400
      %v7495 = vpop.f32.mrf.mxu0
      %v7496 = vadd.f32 0.0, %v7495
      %7497 = vmatmul.f32.gmra.mxu0 %v7401
      %v7498 = vpop.f32.mrf.mxu0
      %v7499 = vadd.f32 0.0, %v7498
      %7500 = vmatmul.f32.gmra.mxu0 %v7402
      %v7501 = vpop.f32.mrf.mxu0
      %v7502 = vadd.f32 0.0, %v7501
      %7503 = vmatmul.f32.gmra.mxu0 %v7403
      %v7504 = vpop.f32.mrf.mxu0
      %v7505 = vadd.f32 0.0, %v7504
      %7506 = vmatmul.f32.gmra.mxu0 %v7404
      %v7507 = vpop.f32.mrf.mxu0
      %v7508 = vadd.f32 0.0, %v7507
      %7509 = vmatmul.f32.gmra.mxu0 %v7405
      %v7510 = vpop.f32.mrf.mxu0
      %v7511 = vadd.f32 0.0, %v7510
      %7512 = vmatmul.f32.gmra.mxu0 %v7406
      %v7513 = vpop.f32.mrf.mxu0
      %v7514 = vadd.f32 0.0, %v7513
      %7515 = vmatmul.f32.gmra.mxu0 %v7407
      %v7516 = vpop.f32.mrf.mxu0
      %v7517 = vadd.f32 0.0, %v7516
      %7518 = vmatmul.f32.gmra.mxu0 %v7408
      %v7519 = vpop.f32.mrf.mxu0
      %v7520 = vadd.f32 0.0, %v7519
      %7521 = vmatmul.f32.gmra.mxu0 %v7441
      %v7522 = vpop.f32.mrf.mxu0
      %v7523 = vadd.f32 0.0, %v7522
      %7524 = vmatmul.f32.gmra.mxu0 %v7442
      %v7525 = vpop.f32.mrf.mxu0
      %v7526 = vadd.f32 0.0, %v7525
      %7527 = vmatmul.f32.gmra.mxu0 %v7443
      %v7528 = vpop.f32.mrf.mxu0
      %v7529 = vadd.f32 0.0, %v7528
      %7530 = vmatmul.f32.gmra.mxu0 %v7444
      %v7531 = vpop.f32.mrf.mxu0
      %v7532 = vadd.f32 0.0, %v7531
      %7533 = vmatmul.f32.gmra.mxu0 %v7445
      %v7534 = vpop.f32.mrf.mxu0
      %v7535 = vadd.f32 0.0, %v7534
      %7536 = vmatmul.f32.gmra.mxu0 %v7446
      %v7537 = vpop.f32.mrf.mxu0
      %v7538 = vadd.f32 0.0, %v7537
      %7539 = vmatmul.f32.gmra.mxu0 %v7447
      %v7540 = vpop.f32.mrf.mxu0
      %v7541 = vadd.f32 0.0, %v7540
      %7542 = vmatmul.f32.gmra.mxu0 %v7448
      %v7543 = vpop.f32.mrf.mxu0
      %v7544 = vadd.f32 0.0, %v7543
      %7545 = vmatmul.f32.gmra.mxu0 %v7449
      %v7546 = vpop.f32.mrf.mxu0
      %v7547 = vadd.f32 0.0, %v7546
      %7548 = vmatmul.f32.gmra.mxu0 %v7450
      %v7549 = vpop.f32.mrf.mxu0
      %v7550 = vadd.f32 0.0, %v7549
      %7551 = vmatmul.f32.gmra.mxu0 %v7451
      %v7552 = vpop.f32.mrf.mxu0
      %v7553 = vadd.f32 0.0, %v7552
      %7554 = vmatmul.f32.gmra.mxu0 %v7452
      %v7555 = vpop.f32.mrf.mxu0
      %v7556 = vadd.f32 0.0, %v7555
      %7557 = vmatmul.f32.gmra.mxu0 %v7453
      %v7558 = vpop.f32.mrf.mxu0
      %v7559 = vadd.f32 0.0, %v7558
      %7560 = vmatmul.f32.gmra.mxu0 %v7454
      %v7561 = vpop.f32.mrf.mxu0
      %v7562 = vadd.f32 0.0, %v7561
      %7563 = vmatmul.f32.gmra.mxu0 %v7455
      %v7564 = vpop.f32.mrf.mxu0
      %v7565 = vadd.f32 0.0, %v7564
      %7566 = vmatmul.f32.gmra.mxu0 %v7456
      %v7567 = vpop.f32.mrf.mxu0
      %v7568 = vadd.f32 0.0, %v7567
      %7569 = vdwg.mxu0
      %v7570 = vsel %vm238, %v7499, %v7475
      %v7571 = vsel %vm238, %v7502, %v7478
      %v7572 = vsel %vm238, %v7505, %v7481
      %v7573 = vsel %vm238, %v7508, %v7484
      %v7574 = vsel %vm238, %v7511, %v7487
      %v7575 = vsel %vm238, %v7514, %v7490
      %v7576 = vsel %vm238, %v7517, %v7493
      %v7577 = vsel %vm238, %v7520, %v7496
      %v7578 = vsel %vm238, %v7475, %v7499
      %v7579 = vsel %vm238, %v7478, %v7502
      %v7580 = vsel %vm238, %v7481, %v7505
      %v7581 = vsel %vm238, %v7484, %v7508
      %v7582 = vsel %vm238, %v7487, %v7511
      %v7583 = vsel %vm238, %v7490, %v7514
      %v7584 = vsel %vm238, %v7493, %v7517
      %v7585 = vsel %vm238, %v7496, %v7520
      %v7586 = vsel %vm238, %v7547, %v7523
      %v7587 = vsel %vm238, %v7550, %v7526
      %v7588 = vsel %vm238, %v7553, %v7529
      %v7589 = vsel %vm238, %v7556, %v7532
      %v7590 = vsel %vm238, %v7559, %v7535
      %v7591 = vsel %vm238, %v7562, %v7538
      %v7592 = vsel %vm238, %v7565, %v7541
      %v7593 = vsel %vm238, %v7568, %v7544
      %v7594 = vsel %vm238, %v7523, %v7547
      %v7595 = vsel %vm238, %v7526, %v7550
      %v7596 = vsel %vm238, %v7529, %v7553
      %v7597 = vsel %vm238, %v7532, %v7556
      %v7598 = vsel %vm238, %v7535, %v7559
      %v7599 = vsel %vm238, %v7538, %v7562
      %v7600 = vsel %vm238, %v7541, %v7565
      %v7601 = vsel %vm238, %v7544, %v7568
      %v7602 = vld [vmem:[%s1] sm:$0xff]
      %v7603 = vld [vmem:[%s1 + $0x8] sm:$0xff]
      %v7604 = vld [vmem:[%s1 + $0x10] sm:$0xff]
      %v7605 = vld [vmem:[%s1 + $0x18] sm:$0xff]
      %v7606 = vld [vmem:[%s1 + $0x20] sm:$0xff]
      %v7607 = vld [vmem:[%s1 + $0x28] sm:$0xff]
      %v7608 = vld [vmem:[%s1 + $0x30] sm:$0xff]
      %v7609 = vld [vmem:[%s1 + $0x38] sm:$0xff]
      %v7610 = vld [vmem:[%s1 + $0x40] sm:$0xff]
      %v7611 = vld [vmem:[%s1 + $0x48] sm:$0xff]
      %v7612 = vld [vmem:[%s1 + $0x50] sm:$0xff]
      %v7613 = vld [vmem:[%s1 + $0x58] sm:$0xff]
      %v7614 = vld [vmem:[%s1 + $0x60] sm:$0xff]
      %v7615 = vld [vmem:[%s1 + $0x68] sm:$0xff]
      %v7616 = vld [vmem:[%s1 + $0x70] sm:$0xff]
      %v7617 = vld [vmem:[%s1 + $0x78] sm:$0xff]
      %s7618 = scalar_lea.vmem %s1, 128
      %v7619 = vld [vmem:[%s7618] sm:$0xff]
      %v7620 = vld [vmem:[%s7618 + $0x8] sm:$0xff]
      %v7621 = vld [vmem:[%s7618 + $0x10] sm:$0xff]
      %v7622 = vld [vmem:[%s7618 + $0x18] sm:$0xff]
      %v7623 = vld [vmem:[%s7618 + $0x20] sm:$0xff]
      %v7624 = vld [vmem:[%s7618 + $0x28] sm:$0xff]
      %v7625 = vld [vmem:[%s7618 + $0x30] sm:$0xff]
      %v7626 = vld [vmem:[%s7618 + $0x38] sm:$0xff]
      %v7627 = vld [vmem:[%s7618 + $0x40] sm:$0xff]
      %v7628 = vld [vmem:[%s7618 + $0x48] sm:$0xff]
      %v7629 = vld [vmem:[%s7618 + $0x50] sm:$0xff]
      %v7630 = vld [vmem:[%s7618 + $0x58] sm:$0xff]
      %v7631 = vld [vmem:[%s7618 + $0x60] sm:$0xff]
      %v7632 = vld [vmem:[%s7618 + $0x68] sm:$0xff]
      %v7633 = vld [vmem:[%s7618 + $0x70] sm:$0xff]
      %v7634 = vld [vmem:[%s7618 + $0x78] sm:$0xff]
      %s7635 = scalar_lea.vmem %s1, 256
      %v7636 = vld [vmem:[%s7635] sm:$0xff]
      %v7637 = vmul.f32 %v7570, %v7570
      %v7638 = vmul.f32 %v7571, %v7571
      %v7639 = vmul.f32 %v7572, %v7572
      %v7640 = vmul.f32 %v7573, %v7573
      %v7641 = vmul.f32 %v7574, %v7574
      %v7642 = vmul.f32 %v7575, %v7575
      %v7643 = vmul.f32 %v7576, %v7576
      %v7644 = vmul.f32 %v7577, %v7577
      %v7645 = vmul.f32 %v7578, %v7578
      %v7646 = vmul.f32 %v7579, %v7579
      %v7647 = vmul.f32 %v7580, %v7580
      %v7648 = vmul.f32 %v7581, %v7581
      %v7649 = vmul.f32 %v7582, %v7582
      %v7650 = vmul.f32 %v7583, %v7583
      %v7651 = vmul.f32 %v7584, %v7584
      %v7652 = vmul.f32 %v7585, %v7585
      %v7653 = vmul.f32 %v7586, %v7586
      %v7654 = vmul.f32 %v7587, %v7587
      %v7655 = vmul.f32 %v7588, %v7588
      %v7656 = vmul.f32 %v7589, %v7589
      %v7657 = vmul.f32 %v7590, %v7590
      %v7658 = vmul.f32 %v7591, %v7591
      %v7659 = vmul.f32 %v7592, %v7592
      %v7660 = vmul.f32 %v7593, %v7593
      %v7661 = vmul.f32 %v7594, %v7594
      %v7662 = vmul.f32 %v7595, %v7595
      %v7663 = vmul.f32 %v7596, %v7596
      %v7664 = vmul.f32 %v7597, %v7597
      %v7665 = vmul.f32 %v7598, %v7598
      %v7666 = vmul.f32 %v7599, %v7599
      %v7667 = vmul.f32 %v7600, %v7600
      %v7668 = vmul.f32 %v7601, %v7601
      %v7669 = vadd.f32 %v7637, %v7653
      %v7670 = vadd.f32 %v7638, %v7654
      %v7671 = vadd.f32 %v7639, %v7655
      %v7672 = vadd.f32 %v7640, %v7656
      %v7673 = vadd.f32 %v7641, %v7657
      %v7674 = vadd.f32 %v7642, %v7658
      %v7675 = vadd.f32 %v7643, %v7659
      %v7676 = vadd.f32 %v7644, %v7660
      %v7677 = vadd.f32 %v7645, %v7661
      %v7678 = vadd.f32 %v7646, %v7662
      %v7679 = vadd.f32 %v7647, %v7663
      %v7680 = vadd.f32 %v7648, %v7664
      %v7681 = vadd.f32 %v7649, %v7665
      %v7682 = vadd.f32 %v7650, %v7666
      %v7683 = vadd.f32 %v7651, %v7667
      %v7684 = vadd.f32 %v7652, %v7668
      %v7685 = vand.u32 %v7617, 4294901760
      %7686 = vmatpush.msra.mxu0 %v7685
      %v7687 = vand.u32 %v7616, 4294901760
      %7688 = vmatpush.msra.mxu0 %v7687
      %v7689 = vand.u32 %v7615, 4294901760
      %7690 = vmatpush.msra.mxu0 %v7689
      %v7691 = vand.u32 %v7614, 4294901760
      %7692 = vmatpush.msra.mxu0 %v7691
      %v7693 = vand.u32 %v7613, 4294901760
      %7694 = vmatpush.msra.mxu0 %v7693
      %v7695 = vand.u32 %v7612, 4294901760
      %7696 = vmatpush.msra.mxu0 %v7695
      %v7697 = vand.u32 %v7611, 4294901760
      %7698 = vmatpush.msra.mxu0 %v7697
      %v7699 = vand.u32 %v7610, 4294901760
      %7700 = vmatpush.msra.mxu0 %v7699
      %v7701 = vand.u32 %v7609, 4294901760
      %7702 = vmatpush.msra.mxu0 %v7701
      %v7703 = vand.u32 %v7608, 4294901760
      %7704 = vmatpush.msra.mxu0 %v7703
      %v7705 = vand.u32 %v7607, 4294901760
      %7706 = vmatpush.msra.mxu0 %v7705
      %v7707 = vand.u32 %v7606, 4294901760
      %7708 = vmatpush.msra.mxu0 %v7707
      %v7709 = vand.u32 %v7605, 4294901760
      %7710 = vmatpush.msra.mxu0 %v7709
      %v7711 = vand.u32 %v7604, 4294901760
      %7712 = vmatpush.msra.mxu0 %v7711
      %v7713 = vand.u32 %v7603, 4294901760
      %7714 = vmatpush.msra.mxu0 %v7713
      %v7715 = vand.u32 %v7602, 4294901760
      %7716 = vmatpush.msra.mxu0 %v7715
      %v7717 = vand.u32 %v7669, 4294901760
      %v7718 = vsub.f32 %v7669, %v7717
      %v7719 = vand.u32 %v7718, 4294901760
      %v7720 = vsub.f32 %v7718, %v7719
      %v7721 = vand.u32 %v7720, 4294901760
      %7722 = vmatmul.f32.gmra.mxu0 %v7721
      %v7723 = vpop.f32.mrf.mxu0
      %v7724 = vadd.f32 0.0, %v7723
      %v7725 = vand.u32 %v7670, 4294901760
      %v7726 = vsub.f32 %v7670, %v7725
      %v7727 = vand.u32 %v7726, 4294901760
      %v7728 = vsub.f32 %v7726, %v7727
      %v7729 = vand.u32 %v7728, 4294901760
      %7730 = vmatmul.f32.gmra.mxu0 %v7729
      %v7731 = vpop.f32.mrf.mxu0
      %v7732 = vadd.f32 0.0, %v7731
      %v7733 = vand.u32 %v7671, 4294901760
      %v7734 = vsub.f32 %v7671, %v7733
      %v7735 = vand.u32 %v7734, 4294901760
      %v7736 = vsub.f32 %v7734, %v7735
      %v7737 = vand.u32 %v7736, 4294901760
      %7738 = vmatmul.f32.gmra.mxu0 %v7737
      %v7739 = vpop.f32.mrf.mxu0
      %v7740 = vadd.f32 0.0, %v7739
      %v7741 = vand.u32 %v7672, 4294901760
      %v7742 = vsub.f32 %v7672, %v7741
      %v7743 = vand.u32 %v7742, 4294901760
      %v7744 = vsub.f32 %v7742, %v7743
      %v7745 = vand.u32 %v7744, 4294901760
      %7746 = vmatmul.f32.gmra.mxu0 %v7745
      %v7747 = vpop.f32.mrf.mxu0
      %v7748 = vadd.f32 0.0, %v7747
      %v7749 = vand.u32 %v7673, 4294901760
      %v7750 = vsub.f32 %v7673, %v7749
      %v7751 = vand.u32 %v7750, 4294901760
      %v7752 = vsub.f32 %v7750, %v7751
      %v7753 = vand.u32 %v7752, 4294901760
      %7754 = vmatmul.f32.gmra.mxu0 %v7753
      %v7755 = vpop.f32.mrf.mxu0
      %v7756 = vadd.f32 0.0, %v7755
      %v7757 = vand.u32 %v7674, 4294901760
      %v7758 = vsub.f32 %v7674, %v7757
      %v7759 = vand.u32 %v7758, 4294901760
      %v7760 = vsub.f32 %v7758, %v7759
      %v7761 = vand.u32 %v7760, 4294901760
      %7762 = vmatmul.f32.gmra.mxu0 %v7761
      %v7763 = vpop.f32.mrf.mxu0
      %v7764 = vadd.f32 0.0, %v7763
      %v7765 = vand.u32 %v7675, 4294901760
      %v7766 = vsub.f32 %v7675, %v7765
      %v7767 = vand.u32 %v7766, 4294901760
      %v7768 = vsub.f32 %v7766, %v7767
      %v7769 = vand.u32 %v7768, 4294901760
      %7770 = vmatmul.f32.gmra.mxu0 %v7769
      %v7771 = vpop.f32.mrf.mxu0
      %v7772 = vadd.f32 0.0, %v7771
      %v7773 = vand.u32 %v7676, 4294901760
      %v7774 = vsub.f32 %v7676, %v7773
      %v7775 = vand.u32 %v7774, 4294901760
      %v7776 = vsub.f32 %v7774, %v7775
      %v7777 = vand.u32 %v7776, 4294901760
      %7778 = vmatmul.f32.gmra.mxu0 %v7777
      %v7779 = vpop.f32.mrf.mxu0
      %v7780 = vadd.f32 0.0, %v7779
      %v7781 = vand.u32 %v7677, 4294901760
      %v7782 = vsub.f32 %v7677, %v7781
      %v7783 = vand.u32 %v7782, 4294901760
      %v7784 = vsub.f32 %v7782, %v7783
      %v7785 = vand.u32 %v7784, 4294901760
      %7786 = vmatmul.f32.gmra.mxu0 %v7785
      %v7787 = vpop.f32.mrf.mxu0
      %v7788 = vadd.f32 0.0, %v7787
      %v7789 = vand.u32 %v7678, 4294901760
      %v7790 = vsub.f32 %v7678, %v7789
      %v7791 = vand.u32 %v7790, 4294901760
      %v7792 = vsub.f32 %v7790, %v7791
      %v7793 = vand.u32 %v7792, 4294901760
      %7794 = vmatmul.f32.gmra.mxu0 %v7793
      %v7795 = vpop.f32.mrf.mxu0
      %v7796 = vadd.f32 0.0, %v7795
      %v7797 = vand.u32 %v7679, 4294901760
      %v7798 = vsub.f32 %v7679, %v7797
      %v7799 = vand.u32 %v7798, 4294901760
      %v7800 = vsub.f32 %v7798, %v7799
      %v7801 = vand.u32 %v7800, 4294901760
      %7802 = vmatmul.f32.gmra.mxu0 %v7801
      %v7803 = vpop.f32.mrf.mxu0
      %v7804 = vadd.f32 0.0, %v7803
      %v7805 = vand.u32 %v7680, 4294901760
      %v7806 = vsub.f32 %v7680, %v7805
      %v7807 = vand.u32 %v7806, 4294901760
      %v7808 = vsub.f32 %v7806, %v7807
      %v7809 = vand.u32 %v7808, 4294901760
      %7810 = vmatmul.f32.gmra.mxu0 %v7809
      %v7811 = vpop.f32.mrf.mxu0
      %v7812 = vadd.f32 0.0, %v7811
      %v7813 = vand.u32 %v7681, 4294901760
      %v7814 = vsub.f32 %v7681, %v7813
      %v7815 = vand.u32 %v7814, 4294901760
      %v7816 = vsub.f32 %v7814, %v7815
      %v7817 = vand.u32 %v7816, 4294901760
      %7818 = vmatmul.f32.gmra.mxu0 %v7817
      %v7819 = vpop.f32.mrf.mxu0
      %v7820 = vadd.f32 0.0, %v7819
      %v7821 = vand.u32 %v7682, 4294901760
      %v7822 = vsub.f32 %v7682, %v7821
      %v7823 = vand.u32 %v7822, 4294901760
      %v7824 = vsub.f32 %v7822, %v7823
      %v7825 = vand.u32 %v7824, 4294901760
      %7826 = vmatmul.f32.gmra.mxu0 %v7825
      %v7827 = vpop.f32.mrf.mxu0
      %v7828 = vadd.f32 0.0, %v7827
      %v7829 = vand.u32 %v7683, 4294901760
      %v7830 = vsub.f32 %v7683, %v7829
      %v7831 = vand.u32 %v7830, 4294901760
      %v7832 = vsub.f32 %v7830, %v7831
      %v7833 = vand.u32 %v7832, 4294901760
      %7834 = vmatmul.f32.gmra.mxu0 %v7833
      %v7835 = vpop.f32.mrf.mxu0
      %v7836 = vadd.f32 0.0, %v7835
      %v7837 = vand.u32 %v7684, 4294901760
      %v7838 = vsub.f32 %v7684, %v7837
      %v7839 = vand.u32 %v7838, 4294901760
      %v7840 = vsub.f32 %v7838, %v7839
      %v7841 = vand.u32 %v7840, 4294901760
      %7842 = vmatmul.f32.gmra.mxu0 %v7841
      %v7843 = vpop.f32.mrf.mxu0
      %v7844 = vadd.f32 0.0, %v7843
      %7845 = vdwg.mxu0
      %v7846 = vand.u32 %v7617, 4294901760
      %v7847 = vsub.f32 %v7617, %v7846
      %v7848 = vand.u32 %v7847, 4294901760
      %v7849 = vsub.f32 %v7847, %v7848
      %v7850 = vand.u32 %v7849, 4294901760
      %7851 = vmatpush.msra.mxu0 %v7850
      %v7852 = vand.u32 %v7616, 4294901760
      %v7853 = vsub.f32 %v7616, %v7852
      %v7854 = vand.u32 %v7853, 4294901760
      %v7855 = vsub.f32 %v7853, %v7854
      %v7856 = vand.u32 %v7855, 4294901760
      %7857 = vmatpush.msra.mxu0 %v7856
      %v7858 = vand.u32 %v7615, 4294901760
      %v7859 = vsub.f32 %v7615, %v7858
      %v7860 = vand.u32 %v7859, 4294901760
      %v7861 = vsub.f32 %v7859, %v7860
      %v7862 = vand.u32 %v7861, 4294901760
      %7863 = vmatpush.msra.mxu0 %v7862
      %v7864 = vand.u32 %v7614, 4294901760
      %v7865 = vsub.f32 %v7614, %v7864
      %v7866 = vand.u32 %v7865, 4294901760
      %v7867 = vsub.f32 %v7865, %v7866
      %v7868 = vand.u32 %v7867, 4294901760
      %7869 = vmatpush.msra.mxu0 %v7868
      %v7870 = vand.u32 %v7613, 4294901760
      %v7871 = vsub.f32 %v7613, %v7870
      %v7872 = vand.u32 %v7871, 4294901760
      %v7873 = vsub.f32 %v7871, %v7872
      %v7874 = vand.u32 %v7873, 4294901760
      %7875 = vmatpush.msra.mxu0 %v7874
      %v7876 = vand.u32 %v7612, 4294901760
      %v7877 = vsub.f32 %v7612, %v7876
      %v7878 = vand.u32 %v7877, 4294901760
      %v7879 = vsub.f32 %v7877, %v7878
      %v7880 = vand.u32 %v7879, 4294901760
      %7881 = vmatpush.msra.mxu0 %v7880
      %v7882 = vand.u32 %v7611, 4294901760
      %v7883 = vsub.f32 %v7611, %v7882
      %v7884 = vand.u32 %v7883, 4294901760
      %v7885 = vsub.f32 %v7883, %v7884
      %v7886 = vand.u32 %v7885, 4294901760
      %7887 = vmatpush.msra.mxu0 %v7886
      %v7888 = vand.u32 %v7610, 4294901760
      %v7889 = vsub.f32 %v7610, %v7888
      %v7890 = vand.u32 %v7889, 4294901760
      %v7891 = vsub.f32 %v7889, %v7890
      %v7892 = vand.u32 %v7891, 4294901760
      %7893 = vmatpush.msra.mxu0 %v7892
      %v7894 = vand.u32 %v7609, 4294901760
      %v7895 = vsub.f32 %v7609, %v7894
      %v7896 = vand.u32 %v7895, 4294901760
      %v7897 = vsub.f32 %v7895, %v7896
      %v7898 = vand.u32 %v7897, 4294901760
      %7899 = vmatpush.msra.mxu0 %v7898
      %v7900 = vand.u32 %v7608, 4294901760
      %v7901 = vsub.f32 %v7608, %v7900
      %v7902 = vand.u32 %v7901, 4294901760
      %v7903 = vsub.f32 %v7901, %v7902
      %v7904 = vand.u32 %v7903, 4294901760
      %7905 = vmatpush.msra.mxu0 %v7904
      %v7906 = vand.u32 %v7607, 4294901760
      %v7907 = vsub.f32 %v7607, %v7906
      %v7908 = vand.u32 %v7907, 4294901760
      %v7909 = vsub.f32 %v7907, %v7908
      %v7910 = vand.u32 %v7909, 4294901760
      %7911 = vmatpush.msra.mxu0 %v7910
      %v7912 = vand.u32 %v7606, 4294901760
      %v7913 = vsub.f32 %v7606, %v7912
      %v7914 = vand.u32 %v7913, 4294901760
      %v7915 = vsub.f32 %v7913, %v7914
      %v7916 = vand.u32 %v7915, 4294901760
      %7917 = vmatpush.msra.mxu0 %v7916
      %v7918 = vand.u32 %v7605, 4294901760
      %v7919 = vsub.f32 %v7605, %v7918
      %v7920 = vand.u32 %v7919, 4294901760
      %v7921 = vsub.f32 %v7919, %v7920
      %v7922 = vand.u32 %v7921, 4294901760
      %7923 = vmatpush.msra.mxu0 %v7922
      %v7924 = vand.u32 %v7604, 4294901760
      %v7925 = vsub.f32 %v7604, %v7924
      %v7926 = vand.u32 %v7925, 4294901760
      %v7927 = vsub.f32 %v7925, %v7926
      %v7928 = vand.u32 %v7927, 4294901760
      %7929 = vmatpush.msra.mxu0 %v7928
      %v7930 = vand.u32 %v7603, 4294901760
      %v7931 = vsub.f32 %v7603, %v7930
      %v7932 = vand.u32 %v7931, 4294901760
      %v7933 = vsub.f32 %v7931, %v7932
      %v7934 = vand.u32 %v7933, 4294901760
      %7935 = vmatpush.msra.mxu0 %v7934
      %v7936 = vand.u32 %v7602, 4294901760
      %v7937 = vsub.f32 %v7602, %v7936
      %v7938 = vand.u32 %v7937, 4294901760
      %v7939 = vsub.f32 %v7937, %v7938
      %v7940 = vand.u32 %v7939, 4294901760
      %7941 = vmatpush.msra.mxu0 %v7940
      %v7942 = vand.u32 %v7669, 4294901760
      %7943 = vmatmul.f32.gmra.mxu0 %v7942
      %v7944 = vpop.f32.mrf.mxu0
      %v7945 = vadd.f32 %v7724, %v7944
      %v7946 = vand.u32 %v7670, 4294901760
      %7947 = vmatmul.f32.gmra.mxu0 %v7946
      %v7948 = vpop.f32.mrf.mxu0
      %v7949 = vadd.f32 %v7732, %v7948
      %v7950 = vand.u32 %v7671, 4294901760
      %7951 = vmatmul.f32.gmra.mxu0 %v7950
      %v7952 = vpop.f32.mrf.mxu0
      %v7953 = vadd.f32 %v7740, %v7952
      %v7954 = vand.u32 %v7672, 4294901760
      %7955 = vmatmul.f32.gmra.mxu0 %v7954
      %v7956 = vpop.f32.mrf.mxu0
      %v7957 = vadd.f32 %v7748, %v7956
      %v7958 = vand.u32 %v7673, 4294901760
      %7959 = vmatmul.f32.gmra.mxu0 %v7958
      %v7960 = vpop.f32.mrf.mxu0
      %v7961 = vadd.f32 %v7756, %v7960
      %v7962 = vand.u32 %v7674, 4294901760
      %7963 = vmatmul.f32.gmra.mxu0 %v7962
      %v7964 = vpop.f32.mrf.mxu0
      %v7965 = vadd.f32 %v7764, %v7964
      %v7966 = vand.u32 %v7675, 4294901760
      %7967 = vmatmul.f32.gmra.mxu0 %v7966
      %v7968 = vpop.f32.mrf.mxu0
      %v7969 = vadd.f32 %v7772, %v7968
      %v7970 = vand.u32 %v7676, 4294901760
      %7971 = vmatmul.f32.gmra.mxu0 %v7970
      %v7972 = vpop.f32.mrf.mxu0
      %v7973 = vadd.f32 %v7780, %v7972
      %v7974 = vand.u32 %v7677, 4294901760
      %7975 = vmatmul.f32.gmra.mxu0 %v7974
      %v7976 = vpop.f32.mrf.mxu0
      %v7977 = vadd.f32 %v7788, %v7976
      %v7978 = vand.u32 %v7678, 4294901760
      %7979 = vmatmul.f32.gmra.mxu0 %v7978
      %v7980 = vpop.f32.mrf.mxu0
      %v7981 = vadd.f32 %v7796, %v7980
      %v7982 = vand.u32 %v7679, 4294901760
      %7983 = vmatmul.f32.gmra.mxu0 %v7982
      %v7984 = vpop.f32.mrf.mxu0
      %v7985 = vadd.f32 %v7804, %v7984
      %v7986 = vand.u32 %v7680, 4294901760
      %7987 = vmatmul.f32.gmra.mxu0 %v7986
      %v7988 = vpop.f32.mrf.mxu0
      %v7989 = vadd.f32 %v7812, %v7988
      %v7990 = vand.u32 %v7681, 4294901760
      %7991 = vmatmul.f32.gmra.mxu0 %v7990
      %v7992 = vpop.f32.mrf.mxu0
      %v7993 = vadd.f32 %v7820, %v7992
      %v7994 = vand.u32 %v7682, 4294901760
      %7995 = vmatmul.f32.gmra.mxu0 %v7994
      %v7996 = vpop.f32.mrf.mxu0
      %v7997 = vadd.f32 %v7828, %v7996
      %v7998 = vand.u32 %v7683, 4294901760
      %7999 = vmatmul.f32.gmra.mxu0 %v7998
      %v8000 = vpop.f32.mrf.mxu0
      %v8001 = vadd.f32 %v7836, %v8000
      %v8002 = vand.u32 %v7684, 4294901760
      %8003 = vmatmul.f32.gmra.mxu0 %v8002
      %v8004 = vpop.f32.mrf.mxu0
      %v8005 = vadd.f32 %v7844, %v8004
      %8006 = vdwg.mxu0
      %v8007 = vand.u32 %v7617, 4294901760
      %v8008 = vsub.f32 %v7617, %v8007
      %8009 = vmatpush.msra.mxu0 %v8008
      %v8010 = vand.u32 %v7616, 4294901760
      %v8011 = vsub.f32 %v7616, %v8010
      %8012 = vmatpush.msra.mxu0 %v8011
      %v8013 = vand.u32 %v7615, 4294901760
      %v8014 = vsub.f32 %v7615, %v8013
      %8015 = vmatpush.msra.mxu0 %v8014
      %v8016 = vand.u32 %v7614, 4294901760
      %v8017 = vsub.f32 %v7614, %v8016
      %8018 = vmatpush.msra.mxu0 %v8017
      %v8019 = vand.u32 %v7613, 4294901760
      %v8020 = vsub.f32 %v7613, %v8019
      %8021 = vmatpush.msra.mxu0 %v8020
      %v8022 = vand.u32 %v7612, 4294901760
      %v8023 = vsub.f32 %v7612, %v8022
      %8024 = vmatpush.msra.mxu0 %v8023
      %v8025 = vand.u32 %v7611, 4294901760
      %v8026 = vsub.f32 %v7611, %v8025
      %8027 = vmatpush.msra.mxu0 %v8026
      %v8028 = vand.u32 %v7610, 4294901760
      %v8029 = vsub.f32 %v7610, %v8028
      %8030 = vmatpush.msra.mxu0 %v8029
      %v8031 = vand.u32 %v7609, 4294901760
      %v8032 = vsub.f32 %v7609, %v8031
      %8033 = vmatpush.msra.mxu0 %v8032
      %v8034 = vand.u32 %v7608, 4294901760
      %v8035 = vsub.f32 %v7608, %v8034
      %8036 = vmatpush.msra.mxu0 %v8035
      %v8037 = vand.u32 %v7607, 4294901760
      %v8038 = vsub.f32 %v7607, %v8037
      %8039 = vmatpush.msra.mxu0 %v8038
      %v8040 = vand.u32 %v7606, 4294901760
      %v8041 = vsub.f32 %v7606, %v8040
      %8042 = vmatpush.msra.mxu0 %v8041
      %v8043 = vand.u32 %v7605, 4294901760
      %v8044 = vsub.f32 %v7605, %v8043
      %8045 = vmatpush.msra.mxu0 %v8044
      %v8046 = vand.u32 %v7604, 4294901760
      %v8047 = vsub.f32 %v7604, %v8046
      %8048 = vmatpush.msra.mxu0 %v8047
      %v8049 = vand.u32 %v7603, 4294901760
      %v8050 = vsub.f32 %v7603, %v8049
      %8051 = vmatpush.msra.mxu0 %v8050
      %v8052 = vand.u32 %v7602, 4294901760
      %v8053 = vsub.f32 %v7602, %v8052
      %8054 = vmatpush.msra.mxu0 %v8053
      %v8055 = vand.u32 %v7669, 4294901760
      %v8056 = vsub.f32 %v7669, %v8055
      %8057 = vmatmul.f32.gmra.mxu0 %v8056
      %v8058 = vpop.f32.mrf.mxu0
      %v8059 = vadd.f32 %v7945, %v8058
      %v8060 = vand.u32 %v7670, 4294901760
      %v8061 = vsub.f32 %v7670, %v8060
      %8062 = vmatmul.f32.gmra.mxu0 %v8061
      %v8063 = vpop.f32.mrf.mxu0
      %v8064 = vadd.f32 %v7949, %v8063
      %v8065 = vand.u32 %v7671, 4294901760
      %v8066 = vsub.f32 %v7671, %v8065
      %8067 = vmatmul.f32.gmra.mxu0 %v8066
      %v8068 = vpop.f32.mrf.mxu0
      %v8069 = vadd.f32 %v7953, %v8068
      %v8070 = vand.u32 %v7672, 4294901760
      %v8071 = vsub.f32 %v7672, %v8070
      %8072 = vmatmul.f32.gmra.mxu0 %v8071
      %v8073 = vpop.f32.mrf.mxu0
      %v8074 = vadd.f32 %v7957, %v8073
      %v8075 = vand.u32 %v7673, 4294901760
      %v8076 = vsub.f32 %v7673, %v8075
      %8077 = vmatmul.f32.gmra.mxu0 %v8076
      %v8078 = vpop.f32.mrf.mxu0
      %v8079 = vadd.f32 %v7961, %v8078
      %v8080 = vand.u32 %v7674, 4294901760
      %v8081 = vsub.f32 %v7674, %v8080
      %8082 = vmatmul.f32.gmra.mxu0 %v8081
      %v8083 = vpop.f32.mrf.mxu0
      %v8084 = vadd.f32 %v7965, %v8083
      %v8085 = vand.u32 %v7675, 4294901760
      %v8086 = vsub.f32 %v7675, %v8085
      %8087 = vmatmul.f32.gmra.mxu0 %v8086
      %v8088 = vpop.f32.mrf.mxu0
      %v8089 = vadd.f32 %v7969, %v8088
      %v8090 = vand.u32 %v7676, 4294901760
      %v8091 = vsub.f32 %v7676, %v8090
      %8092 = vmatmul.f32.gmra.mxu0 %v8091
      %v8093 = vpop.f32.mrf.mxu0
      %v8094 = vadd.f32 %v7973, %v8093
      %v8095 = vand.u32 %v7677, 4294901760
      %v8096 = vsub.f32 %v7677, %v8095
      %8097 = vmatmul.f32.gmra.mxu0 %v8096
      %v8098 = vpop.f32.mrf.mxu0
      %v8099 = vadd.f32 %v7977, %v8098
      %v8100 = vand.u32 %v7678, 4294901760
      %v8101 = vsub.f32 %v7678, %v8100
      %8102 = vmatmul.f32.gmra.mxu0 %v8101
      %v8103 = vpop.f32.mrf.mxu0
      %v8104 = vadd.f32 %v7981, %v8103
      %v8105 = vand.u32 %v7679, 4294901760
      %v8106 = vsub.f32 %v7679, %v8105
      %8107 = vmatmul.f32.gmra.mxu0 %v8106
      %v8108 = vpop.f32.mrf.mxu0
      %v8109 = vadd.f32 %v7985, %v8108
      %v8110 = vand.u32 %v7680, 4294901760
      %v8111 = vsub.f32 %v7680, %v8110
      %8112 = vmatmul.f32.gmra.mxu0 %v8111
      %v8113 = vpop.f32.mrf.mxu0
      %v8114 = vadd.f32 %v7989, %v8113
      %v8115 = vand.u32 %v7681, 4294901760
      %v8116 = vsub.f32 %v7681, %v8115
      %8117 = vmatmul.f32.gmra.mxu0 %v8116
      %v8118 = vpop.f32.mrf.mxu0
      %v8119 = vadd.f32 %v7993, %v8118
      %v8120 = vand.u32 %v7682, 4294901760
      %v8121 = vsub.f32 %v7682, %v8120
      %8122 = vmatmul.f32.gmra.mxu0 %v8121
      %v8123 = vpop.f32.mrf.mxu0
      %v8124 = vadd.f32 %v7997, %v8123
      %v8125 = vand.u32 %v7683, 4294901760
      %v8126 = vsub.f32 %v7683, %v8125
      %8127 = vmatmul.f32.gmra.mxu0 %v8126
      %v8128 = vpop.f32.mrf.mxu0
      %v8129 = vadd.f32 %v8001, %v8128
      %v8130 = vand.u32 %v7684, 4294901760
      %v8131 = vsub.f32 %v7684, %v8130
      %8132 = vmatmul.f32.gmra.mxu0 %v8131
      %v8133 = vpop.f32.mrf.mxu0
      %v8134 = vadd.f32 %v8005, %v8133
      %8135 = vdwg.mxu0
      %v8136 = vand.u32 %v7617, 4294901760
      %8137 = vmatpush.msra.mxu0 %v8136
      %v8138 = vand.u32 %v7616, 4294901760
      %8139 = vmatpush.msra.mxu0 %v8138
      %v8140 = vand.u32 %v7615, 4294901760
      %8141 = vmatpush.msra.mxu0 %v8140
      %v8142 = vand.u32 %v7614, 4294901760
      %8143 = vmatpush.msra.mxu0 %v8142
      %v8144 = vand.u32 %v7613, 4294901760
      %8145 = vmatpush.msra.mxu0 %v8144
      %v8146 = vand.u32 %v7612, 4294901760
      %8147 = vmatpush.msra.mxu0 %v8146
      %v8148 = vand.u32 %v7611, 4294901760
      %8149 = vmatpush.msra.mxu0 %v8148
      %v8150 = vand.u32 %v7610, 4294901760
      %8151 = vmatpush.msra.mxu0 %v8150
      %v8152 = vand.u32 %v7609, 4294901760
      %8153 = vmatpush.msra.mxu0 %v8152
      %v8154 = vand.u32 %v7608, 4294901760
      %8155 = vmatpush.msra.mxu0 %v8154
      %v8156 = vand.u32 %v7607, 4294901760
      %8157 = vmatpush.msra.mxu0 %v8156
      %v8158 = vand.u32 %v7606, 4294901760
      %8159 = vmatpush.msra.mxu0 %v8158
      %v8160 = vand.u32 %v7605, 4294901760
      %8161 = vmatpush.msra.mxu0 %v8160
      %v8162 = vand.u32 %v7604, 4294901760
      %8163 = vmatpush.msra.mxu0 %v8162
      %v8164 = vand.u32 %v7603, 4294901760
      %8165 = vmatpush.msra.mxu0 %v8164
      %v8166 = vand.u32 %v7602, 4294901760
      %8167 = vmatpush.msra.mxu0 %v8166
      %v8168 = vand.u32 %v7669, 4294901760
      %v8169 = vsub.f32 %v7669, %v8168
      %v8170 = vand.u32 %v8169, 4294901760
      %8171 = vmatmul.f32.gmra.mxu0 %v8170
      %v8172 = vpop.f32.mrf.mxu0
      %v8173 = vadd.f32 %v8059, %v8172
      %v8174 = vand.u32 %v7670, 4294901760
      %v8175 = vsub.f32 %v7670, %v8174
      %v8176 = vand.u32 %v8175, 4294901760
      %8177 = vmatmul.f32.gmra.mxu0 %v8176
      %v8178 = vpop.f32.mrf.mxu0
      %v8179 = vadd.f32 %v8064, %v8178
      %v8180 = vand.u32 %v7671, 4294901760
      %v8181 = vsub.f32 %v7671, %v8180
      %v8182 = vand.u32 %v8181, 4294901760
      %8183 = vmatmul.f32.gmra.mxu0 %v8182
      %v8184 = vpop.f32.mrf.mxu0
      %v8185 = vadd.f32 %v8069, %v8184
      %v8186 = vand.u32 %v7672, 4294901760
      %v8187 = vsub.f32 %v7672, %v8186
      %v8188 = vand.u32 %v8187, 4294901760
      %8189 = vmatmul.f32.gmra.mxu0 %v8188
      %v8190 = vpop.f32.mrf.mxu0
      %v8191 = vadd.f32 %v8074, %v8190
      %v8192 = vand.u32 %v7673, 4294901760
      %v8193 = vsub.f32 %v7673, %v8192
      %v8194 = vand.u32 %v8193, 4294901760
      %8195 = vmatmul.f32.gmra.mxu0 %v8194
      %v8196 = vpop.f32.mrf.mxu0
      %v8197 = vadd.f32 %v8079, %v8196
      %v8198 = vand.u32 %v7674, 4294901760
      %v8199 = vsub.f32 %v7674, %v8198
      %v8200 = vand.u32 %v8199, 4294901760
      %8201 = vmatmul.f32.gmra.mxu0 %v8200
      %v8202 = vpop.f32.mrf.mxu0
      %v8203 = vadd.f32 %v8084, %v8202
      %v8204 = vand.u32 %v7675, 4294901760
      %v8205 = vsub.f32 %v7675, %v8204
      %v8206 = vand.u32 %v8205, 4294901760
      %8207 = vmatmul.f32.gmra.mxu0 %v8206
      %v8208 = vpop.f32.mrf.mxu0
      %v8209 = vadd.f32 %v8089, %v8208
      %v8210 = vand.u32 %v7676, 4294901760
      %v8211 = vsub.f32 %v7676, %v8210
      %v8212 = vand.u32 %v8211, 4294901760
      %8213 = vmatmul.f32.gmra.mxu0 %v8212
      %v8214 = vpop.f32.mrf.mxu0
      %v8215 = vadd.f32 %v8094, %v8214
      %v8216 = vand.u32 %v7677, 4294901760
      %v8217 = vsub.f32 %v7677, %v8216
      %v8218 = vand.u32 %v8217, 4294901760
      %8219 = vmatmul.f32.gmra.mxu0 %v8218
      %v8220 = vpop.f32.mrf.mxu0
      %v8221 = vadd.f32 %v8099, %v8220
      %v8222 = vand.u32 %v7678, 4294901760
      %v8223 = vsub.f32 %v7678, %v8222
      %v8224 = vand.u32 %v8223, 4294901760
      %8225 = vmatmul.f32.gmra.mxu0 %v8224
      %v8226 = vpop.f32.mrf.mxu0
      %v8227 = vadd.f32 %v8104, %v8226
      %v8228 = vand.u32 %v7679, 4294901760
      %v8229 = vsub.f32 %v7679, %v8228
      %v8230 = vand.u32 %v8229, 4294901760
      %8231 = vmatmul.f32.gmra.mxu0 %v8230
      %v8232 = vpop.f32.mrf.mxu0
      %v8233 = vadd.f32 %v8109, %v8232
      %v8234 = vand.u32 %v7680, 4294901760
      %v8235 = vsub.f32 %v7680, %v8234
      %v8236 = vand.u32 %v8235, 4294901760
      %8237 = vmatmul.f32.gmra.mxu0 %v8236
      %v8238 = vpop.f32.mrf.mxu0
      %v8239 = vadd.f32 %v8114, %v8238
      %v8240 = vand.u32 %v7681, 4294901760
      %v8241 = vsub.f32 %v7681, %v8240
      %v8242 = vand.u32 %v8241, 4294901760
      %8243 = vmatmul.f32.gmra.mxu0 %v8242
      %v8244 = vpop.f32.mrf.mxu0
      %v8245 = vadd.f32 %v8119, %v8244
      %v8246 = vand.u32 %v7682, 4294901760
      %v8247 = vsub.f32 %v7682, %v8246
      %v8248 = vand.u32 %v8247, 4294901760
      %8249 = vmatmul.f32.gmra.mxu0 %v8248
      %v8250 = vpop.f32.mrf.mxu0
      %v8251 = vadd.f32 %v8124, %v8250
      %v8252 = vand.u32 %v7683, 4294901760
      %v8253 = vsub.f32 %v7683, %v8252
      %v8254 = vand.u32 %v8253, 4294901760
      %8255 = vmatmul.f32.gmra.mxu0 %v8254
      %v8256 = vpop.f32.mrf.mxu0
      %v8257 = vadd.f32 %v8129, %v8256
      %v8258 = vand.u32 %v7684, 4294901760
      %v8259 = vsub.f32 %v7684, %v8258
      %v8260 = vand.u32 %v8259, 4294901760
      %8261 = vmatmul.f32.gmra.mxu0 %v8260
      %v8262 = vpop.f32.mrf.mxu0
      %v8263 = vadd.f32 %v8134, %v8262
      %8264 = vdwg.mxu0
      %v8265 = vand.u32 %v7617, 4294901760
      %v8266 = vsub.f32 %v7617, %v8265
      %v8267 = vand.u32 %v8266, 4294901760
      %8268 = vmatpush.msra.mxu0 %v8267
      %v8269 = vand.u32 %v7616, 4294901760
      %v8270 = vsub.f32 %v7616, %v8269
      %v8271 = vand.u32 %v8270, 4294901760
      %8272 = vmatpush.msra.mxu0 %v8271
      %v8273 = vand.u32 %v7615, 4294901760
      %v8274 = vsub.f32 %v7615, %v8273
      %v8275 = vand.u32 %v8274, 4294901760
      %8276 = vmatpush.msra.mxu0 %v8275
      %v8277 = vand.u32 %v7614, 4294901760
      %v8278 = vsub.f32 %v7614, %v8277
      %v8279 = vand.u32 %v8278, 4294901760
      %8280 = vmatpush.msra.mxu0 %v8279
      %v8281 = vand.u32 %v7613, 4294901760
      %v8282 = vsub.f32 %v7613, %v8281
      %v8283 = vand.u32 %v8282, 4294901760
      %8284 = vmatpush.msra.mxu0 %v8283
      %v8285 = vand.u32 %v7612, 4294901760
      %v8286 = vsub.f32 %v7612, %v8285
      %v8287 = vand.u32 %v8286, 4294901760
      %8288 = vmatpush.msra.mxu0 %v8287
      %v8289 = vand.u32 %v7611, 4294901760
      %v8290 = vsub.f32 %v7611, %v8289
      %v8291 = vand.u32 %v8290, 4294901760
      %8292 = vmatpush.msra.mxu0 %v8291
      %v8293 = vand.u32 %v7610, 4294901760
      %v8294 = vsub.f32 %v7610, %v8293
      %v8295 = vand.u32 %v8294, 4294901760
      %8296 = vmatpush.msra.mxu0 %v8295
      %v8297 = vand.u32 %v7609, 4294901760
      %v8298 = vsub.f32 %v7609, %v8297
      %v8299 = vand.u32 %v8298, 4294901760
      %8300 = vmatpush.msra.mxu0 %v8299
      %v8301 = vand.u32 %v7608, 4294901760
      %v8302 = vsub.f32 %v7608, %v8301
      %v8303 = vand.u32 %v8302, 4294901760
      %8304 = vmatpush.msra.mxu0 %v8303
      %v8305 = vand.u32 %v7607, 4294901760
      %v8306 = vsub.f32 %v7607, %v8305
      %v8307 = vand.u32 %v8306, 4294901760
      %8308 = vmatpush.msra.mxu0 %v8307
      %v8309 = vand.u32 %v7606, 4294901760
      %v8310 = vsub.f32 %v7606, %v8309
      %v8311 = vand.u32 %v8310, 4294901760
      %8312 = vmatpush.msra.mxu0 %v8311
      %v8313 = vand.u32 %v7605, 4294901760
      %v8314 = vsub.f32 %v7605, %v8313
      %v8315 = vand.u32 %v8314, 4294901760
      %8316 = vmatpush.msra.mxu0 %v8315
      %v8317 = vand.u32 %v7604, 4294901760
      %v8318 = vsub.f32 %v7604, %v8317
      %v8319 = vand.u32 %v8318, 4294901760
      %8320 = vmatpush.msra.mxu0 %v8319
      %v8321 = vand.u32 %v7603, 4294901760
      %v8322 = vsub.f32 %v7603, %v8321
      %v8323 = vand.u32 %v8322, 4294901760
      %8324 = vmatpush.msra.mxu0 %v8323
      %v8325 = vand.u32 %v7602, 4294901760
      %v8326 = vsub.f32 %v7602, %v8325
      %v8327 = vand.u32 %v8326, 4294901760
      %8328 = vmatpush.msra.mxu0 %v8327
      %v8329 = vand.u32 %v7669, 4294901760
      %8330 = vmatmul.f32.gmra.mxu0 %v8329
      %v8331 = vpop.f32.mrf.mxu0
      %v8332 = vadd.f32 %v8173, %v8331
      %v8333 = vand.u32 %v7670, 4294901760
      %8334 = vmatmul.f32.gmra.mxu0 %v8333
      %v8335 = vpop.f32.mrf.mxu0
      %v8336 = vadd.f32 %v8179, %v8335
      %v8337 = vand.u32 %v7671, 4294901760
      %8338 = vmatmul.f32.gmra.mxu0 %v8337
      %v8339 = vpop.f32.mrf.mxu0
      %v8340 = vadd.f32 %v8185, %v8339
      %v8341 = vand.u32 %v7672, 4294901760
      %8342 = vmatmul.f32.gmra.mxu0 %v8341
      %v8343 = vpop.f32.mrf.mxu0
      %v8344 = vadd.f32 %v8191, %v8343
      %v8345 = vand.u32 %v7673, 4294901760
      %8346 = vmatmul.f32.gmra.mxu0 %v8345
      %v8347 = vpop.f32.mrf.mxu0
      %v8348 = vadd.f32 %v8197, %v8347
      %v8349 = vand.u32 %v7674, 4294901760
      %8350 = vmatmul.f32.gmra.mxu0 %v8349
      %v8351 = vpop.f32.mrf.mxu0
      %v8352 = vadd.f32 %v8203, %v8351
      %v8353 = vand.u32 %v7675, 4294901760
      %8354 = vmatmul.f32.gmra.mxu0 %v8353
      %v8355 = vpop.f32.mrf.mxu0
      %v8356 = vadd.f32 %v8209, %v8355
      %v8357 = vand.u32 %v7676, 4294901760
      %8358 = vmatmul.f32.gmra.mxu0 %v8357
      %v8359 = vpop.f32.mrf.mxu0
      %v8360 = vadd.f32 %v8215, %v8359
      %v8361 = vand.u32 %v7677, 4294901760
      %8362 = vmatmul.f32.gmra.mxu0 %v8361
      %v8363 = vpop.f32.mrf.mxu0
      %v8364 = vadd.f32 %v8221, %v8363
      %v8365 = vand.u32 %v7678, 4294901760
      %8366 = vmatmul.f32.gmra.mxu0 %v8365
      %v8367 = vpop.f32.mrf.mxu0
      %v8368 = vadd.f32 %v8227, %v8367
      %v8369 = vand.u32 %v7679, 4294901760
      %8370 = vmatmul.f32.gmra.mxu0 %v8369
      %v8371 = vpop.f32.mrf.mxu0
      %v8372 = vadd.f32 %v8233, %v8371
      %v8373 = vand.u32 %v7680, 4294901760
      %8374 = vmatmul.f32.gmra.mxu0 %v8373
      %v8375 = vpop.f32.mrf.mxu0
      %v8376 = vadd.f32 %v8239, %v8375
      %v8377 = vand.u32 %v7681, 4294901760
      %8378 = vmatmul.f32.gmra.mxu0 %v8377
      %v8379 = vpop.f32.mrf.mxu0
      %v8380 = vadd.f32 %v8245, %v8379
      %v8381 = vand.u32 %v7682, 4294901760
      %8382 = vmatmul.f32.gmra.mxu0 %v8381
      %v8383 = vpop.f32.mrf.mxu0
      %v8384 = vadd.f32 %v8251, %v8383
      %v8385 = vand.u32 %v7683, 4294901760
      %8386 = vmatmul.f32.gmra.mxu0 %v8385
      %v8387 = vpop.f32.mrf.mxu0
      %v8388 = vadd.f32 %v8257, %v8387
      %v8389 = vand.u32 %v7684, 4294901760
      %8390 = vmatmul.f32.gmra.mxu0 %v8389
      %v8391 = vpop.f32.mrf.mxu0
      %v8392 = vadd.f32 %v8263, %v8391
      %8393 = vdwg.mxu0
      %v8394 = vand.u32 %v7617, 4294901760
      %8395 = vmatpush.msra.mxu0 %v8394
      %v8396 = vand.u32 %v7616, 4294901760
      %8397 = vmatpush.msra.mxu0 %v8396
      %v8398 = vand.u32 %v7615, 4294901760
      %8399 = vmatpush.msra.mxu0 %v8398
      %v8400 = vand.u32 %v7614, 4294901760
      %8401 = vmatpush.msra.mxu0 %v8400
      %v8402 = vand.u32 %v7613, 4294901760
      %8403 = vmatpush.msra.mxu0 %v8402
      %v8404 = vand.u32 %v7612, 4294901760
      %8405 = vmatpush.msra.mxu0 %v8404
      %v8406 = vand.u32 %v7611, 4294901760
      %8407 = vmatpush.msra.mxu0 %v8406
      %v8408 = vand.u32 %v7610, 4294901760
      %8409 = vmatpush.msra.mxu0 %v8408
      %v8410 = vand.u32 %v7609, 4294901760
      %8411 = vmatpush.msra.mxu0 %v8410
      %v8412 = vand.u32 %v7608, 4294901760
      %8413 = vmatpush.msra.mxu0 %v8412
      %v8414 = vand.u32 %v7607, 4294901760
      %8415 = vmatpush.msra.mxu0 %v8414
      %v8416 = vand.u32 %v7606, 4294901760
      %8417 = vmatpush.msra.mxu0 %v8416
      %v8418 = vand.u32 %v7605, 4294901760
      %8419 = vmatpush.msra.mxu0 %v8418
      %v8420 = vand.u32 %v7604, 4294901760
      %8421 = vmatpush.msra.mxu0 %v8420
      %v8422 = vand.u32 %v7603, 4294901760
      %8423 = vmatpush.msra.mxu0 %v8422
      %v8424 = vand.u32 %v7602, 4294901760
      %8425 = vmatpush.msra.mxu0 %v8424
      %v8426 = vand.u32 %v7669, 4294901760
      %8427 = vmatmul.f32.gmra.mxu0 %v8426
      %v8428 = vpop.f32.mrf.mxu0
      %v8429 = vadd.f32 %v8332, %v8428
      %v8430 = vand.u32 %v7670, 4294901760
      %8431 = vmatmul.f32.gmra.mxu0 %v8430
      %v8432 = vpop.f32.mrf.mxu0
      %v8433 = vadd.f32 %v8336, %v8432
      %v8434 = vand.u32 %v7671, 4294901760
      %8435 = vmatmul.f32.gmra.mxu0 %v8434
      %v8436 = vpop.f32.mrf.mxu0
      %v8437 = vadd.f32 %v8340, %v8436
      %v8438 = vand.u32 %v7672, 4294901760
      %8439 = vmatmul.f32.gmra.mxu0 %v8438
      %v8440 = vpop.f32.mrf.mxu0
      %v8441 = vadd.f32 %v8344, %v8440
      %v8442 = vand.u32 %v7673, 4294901760
      %8443 = vmatmul.f32.gmra.mxu0 %v8442
      %v8444 = vpop.f32.mrf.mxu0
      %v8445 = vadd.f32 %v8348, %v8444
      %v8446 = vand.u32 %v7674, 4294901760
      %8447 = vmatmul.f32.gmra.mxu0 %v8446
      %v8448 = vpop.f32.mrf.mxu0
      %v8449 = vadd.f32 %v8352, %v8448
      %v8450 = vand.u32 %v7675, 4294901760
      %8451 = vmatmul.f32.gmra.mxu0 %v8450
      %v8452 = vpop.f32.mrf.mxu0
      %v8453 = vadd.f32 %v8356, %v8452
      %v8454 = vand.u32 %v7676, 4294901760
      %8455 = vmatmul.f32.gmra.mxu0 %v8454
      %v8456 = vpop.f32.mrf.mxu0
      %v8457 = vadd.f32 %v8360, %v8456
      %v8458 = vand.u32 %v7677, 4294901760
      %8459 = vmatmul.f32.gmra.mxu0 %v8458
      %v8460 = vpop.f32.mrf.mxu0
      %v8461 = vadd.f32 %v8364, %v8460
      %v8462 = vand.u32 %v7678, 4294901760
      %8463 = vmatmul.f32.gmra.mxu0 %v8462
      %v8464 = vpop.f32.mrf.mxu0
      %v8465 = vadd.f32 %v8368, %v8464
      %v8466 = vand.u32 %v7679, 4294901760
      %8467 = vmatmul.f32.gmra.mxu0 %v8466
      %v8468 = vpop.f32.mrf.mxu0
      %v8469 = vadd.f32 %v8372, %v8468
      %v8470 = vand.u32 %v7680, 4294901760
      %8471 = vmatmul.f32.gmra.mxu0 %v8470
      %v8472 = vpop.f32.mrf.mxu0
      %v8473 = vadd.f32 %v8376, %v8472
      %v8474 = vand.u32 %v7681, 4294901760
      %8475 = vmatmul.f32.gmra.mxu0 %v8474
      %v8476 = vpop.f32.mrf.mxu0
      %v8477 = vadd.f32 %v8380, %v8476
      %v8478 = vand.u32 %v7682, 4294901760
      %8479 = vmatmul.f32.gmra.mxu0 %v8478
      %v8480 = vpop.f32.mrf.mxu0
      %v8481 = vadd.f32 %v8384, %v8480
      %v8482 = vand.u32 %v7683, 4294901760
      %8483 = vmatmul.f32.gmra.mxu0 %v8482
      %v8484 = vpop.f32.mrf.mxu0
      %v8485 = vadd.f32 %v8388, %v8484
      %v8486 = vand.u32 %v7684, 4294901760
      %8487 = vmatmul.f32.gmra.mxu0 %v8486
      %v8488 = vpop.f32.mrf.mxu0
      %v8489 = vadd.f32 %v8392, %v8488
      %8490 = vdwg.mxu0
      %v8491 = vmul.f32 %v8429, %v7619
      %v8492 = vmul.f32 %v8433, %v7620
      %v8493 = vmul.f32 %v8437, %v7621
      %v8494 = vmul.f32 %v8441, %v7622
      %v8495 = vmul.f32 %v8445, %v7623
      %v8496 = vmul.f32 %v8449, %v7624
      %v8497 = vmul.f32 %v8453, %v7625
      %v8498 = vmul.f32 %v8457, %v7626
      %v8499 = vmul.f32 %v8461, %v7627
      %v8500 = vmul.f32 %v8465, %v7628
      %v8501 = vmul.f32 %v8469, %v7629
      %v8502 = vmul.f32 %v8473, %v7630
      %v8503 = vmul.f32 %v8477, %v7631
      %v8504 = vmul.f32 %v8481, %v7632
      %v8505 = vmul.f32 %v8485, %v7633
      %v8506 = vmul.f32 %v8489, %v7634
      %v8507 = vand.u32 %v8506, 4294901760
      %8508 = vmatpush.msra.mxu0 %v8507
      %v8509 = vand.u32 %v8505, 4294901760
      %8510 = vmatpush.msra.mxu0 %v8509
      %v8511 = vand.u32 %v8504, 4294901760
      %8512 = vmatpush.msra.mxu0 %v8511
      %v8513 = vand.u32 %v8503, 4294901760
      %8514 = vmatpush.msra.mxu0 %v8513
      %v8515 = vand.u32 %v8502, 4294901760
      %8516 = vmatpush.msra.mxu0 %v8515
      %v8517 = vand.u32 %v8501, 4294901760
      %8518 = vmatpush.msra.mxu0 %v8517
      %v8519 = vand.u32 %v8500, 4294901760
      %8520 = vmatpush.msra.mxu0 %v8519
      %v8521 = vand.u32 %v8499, 4294901760
      %8522 = vmatpush.msra.mxu0 %v8521
      %v8523 = vand.u32 %v8498, 4294901760
      %8524 = vmatpush.msra.mxu0 %v8523
      %v8525 = vand.u32 %v8497, 4294901760
      %8526 = vmatpush.msra.mxu0 %v8525
      %v8527 = vand.u32 %v8496, 4294901760
      %8528 = vmatpush.msra.mxu0 %v8527
      %v8529 = vand.u32 %v8495, 4294901760
      %8530 = vmatpush.msra.mxu0 %v8529
      %v8531 = vand.u32 %v8494, 4294901760
      %8532 = vmatpush.msra.mxu0 %v8531
      %v8533 = vand.u32 %v8493, 4294901760
      %8534 = vmatpush.msra.mxu0 %v8533
      %v8535 = vand.u32 %v8492, 4294901760
      %8536 = vmatpush.msra.mxu0 %v8535
      %v8537 = vand.u32 %v8491, 4294901760
      %8538 = vmatpush.msra.mxu0 %v8537
      %v8539 = vand.u32 %v7636, 4294901760
      %v8540 = vsub.f32 %v7636, %v8539
      %v8541 = vand.u32 %v8540, 4294901760
      %v8542 = vsub.f32 %v8540, %v8541
      %v8543 = vand.u32 %v8542, 4294901760
      %8544 = vmatmul.f32.gmra.mxu0 %v8543
      %v8545 = vpop.f32.mrf.mxu0
      %v8546 = vadd.f32 0.0, %v8545
      %8547 = vdwg.mxu0
      %v8548 = vand.u32 %v8506, 4294901760
      %v8549 = vsub.f32 %v8506, %v8548
      %v8550 = vand.u32 %v8549, 4294901760
      %v8551 = vsub.f32 %v8549, %v8550
      %v8552 = vand.u32 %v8551, 4294901760
      %8553 = vmatpush.msra.mxu0 %v8552
      %v8554 = vand.u32 %v8505, 4294901760
      %v8555 = vsub.f32 %v8505, %v8554
      %v8556 = vand.u32 %v8555, 4294901760
      %v8557 = vsub.f32 %v8555, %v8556
      %v8558 = vand.u32 %v8557, 4294901760
      %8559 = vmatpush.msra.mxu0 %v8558
      %v8560 = vand.u32 %v8504, 4294901760
      %v8561 = vsub.f32 %v8504, %v8560
      %v8562 = vand.u32 %v8561, 4294901760
      %v8563 = vsub.f32 %v8561, %v8562
      %v8564 = vand.u32 %v8563, 4294901760
      %8565 = vmatpush.msra.mxu0 %v8564
      %v8566 = vand.u32 %v8503, 4294901760
      %v8567 = vsub.f32 %v8503, %v8566
      %v8568 = vand.u32 %v8567, 4294901760
      %v8569 = vsub.f32 %v8567, %v8568
      %v8570 = vand.u32 %v8569, 4294901760
      %8571 = vmatpush.msra.mxu0 %v8570
      %v8572 = vand.u32 %v8502, 4294901760
      %v8573 = vsub.f32 %v8502, %v8572
      %v8574 = vand.u32 %v8573, 4294901760
      %v8575 = vsub.f32 %v8573, %v8574
      %v8576 = vand.u32 %v8575, 4294901760
      %8577 = vmatpush.msra.mxu0 %v8576
      %v8578 = vand.u32 %v8501, 4294901760
      %v8579 = vsub.f32 %v8501, %v8578
      %v8580 = vand.u32 %v8579, 4294901760
      %v8581 = vsub.f32 %v8579, %v8580
      %v8582 = vand.u32 %v8581, 4294901760
      %8583 = vmatpush.msra.mxu0 %v8582
      %v8584 = vand.u32 %v8500, 4294901760
      %v8585 = vsub.f32 %v8500, %v8584
      %v8586 = vand.u32 %v8585, 4294901760
      %v8587 = vsub.f32 %v8585, %v8586
      %v8588 = vand.u32 %v8587, 4294901760
      %8589 = vmatpush.msra.mxu0 %v8588
      %v8590 = vand.u32 %v8499, 4294901760
      %v8591 = vsub.f32 %v8499, %v8590
      %v8592 = vand.u32 %v8591, 4294901760
      %v8593 = vsub.f32 %v8591, %v8592
      %v8594 = vand.u32 %v8593, 4294901760
      %8595 = vmatpush.msra.mxu0 %v8594
      %v8596 = vand.u32 %v8498, 4294901760
      %v8597 = vsub.f32 %v8498, %v8596
      %v8598 = vand.u32 %v8597, 4294901760
      %v8599 = vsub.f32 %v8597, %v8598
      %v8600 = vand.u32 %v8599, 4294901760
      %8601 = vmatpush.msra.mxu0 %v8600
      %v8602 = vand.u32 %v8497, 4294901760
      %v8603 = vsub.f32 %v8497, %v8602
      %v8604 = vand.u32 %v8603, 4294901760
      %v8605 = vsub.f32 %v8603, %v8604
      %v8606 = vand.u32 %v8605, 4294901760
      %8607 = vmatpush.msra.mxu0 %v8606
      %v8608 = vand.u32 %v8496, 4294901760
      %v8609 = vsub.f32 %v8496, %v8608
      %v8610 = vand.u32 %v8609, 4294901760
      %v8611 = vsub.f32 %v8609, %v8610
      %v8612 = vand.u32 %v8611, 4294901760
      %8613 = vmatpush.msra.mxu0 %v8612
      %v8614 = vand.u32 %v8495, 4294901760
      %v8615 = vsub.f32 %v8495, %v8614
      %v8616 = vand.u32 %v8615, 4294901760
      %v8617 = vsub.f32 %v8615, %v8616
      %v8618 = vand.u32 %v8617, 4294901760
      %8619 = vmatpush.msra.mxu0 %v8618
      %v8620 = vand.u32 %v8494, 4294901760
      %v8621 = vsub.f32 %v8494, %v8620
      %v8622 = vand.u32 %v8621, 4294901760
      %v8623 = vsub.f32 %v8621, %v8622
      %v8624 = vand.u32 %v8623, 4294901760
      %8625 = vmatpush.msra.mxu0 %v8624
      %v8626 = vand.u32 %v8493, 4294901760
      %v8627 = vsub.f32 %v8493, %v8626
      %v8628 = vand.u32 %v8627, 4294901760
      %v8629 = vsub.f32 %v8627, %v8628
      %v8630 = vand.u32 %v8629, 4294901760
      %8631 = vmatpush.msra.mxu0 %v8630
      %v8632 = vand.u32 %v8492, 4294901760
      %v8633 = vsub.f32 %v8492, %v8632
      %v8634 = vand.u32 %v8633, 4294901760
      %v8635 = vsub.f32 %v8633, %v8634
      %v8636 = vand.u32 %v8635, 4294901760
      %8637 = vmatpush.msra.mxu0 %v8636
      %v8638 = vand.u32 %v8491, 4294901760
      %v8639 = vsub.f32 %v8491, %v8638
      %v8640 = vand.u32 %v8639, 4294901760
      %v8641 = vsub.f32 %v8639, %v8640
      %v8642 = vand.u32 %v8641, 4294901760
      %8643 = vmatpush.msra.mxu0 %v8642
      %v8644 = vand.u32 %v7636, 4294901760
      %8645 = vmatmul.f32.gmra.mxu0 %v8644
      %v8646 = vpop.f32.mrf.mxu0
      %v8647 = vadd.f32 %v8546, %v8646
      %8648 = vdwg.mxu0
      %v8649 = vand.u32 %v8506, 4294901760
      %v8650 = vsub.f32 %v8506, %v8649
      %8651 = vmatpush.msra.mxu0 %v8650
      %v8652 = vand.u32 %v8505, 4294901760
      %v8653 = vsub.f32 %v8505, %v8652
      %8654 = vmatpush.msra.mxu0 %v8653
      %v8655 = vand.u32 %v8504, 4294901760
      %v8656 = vsub.f32 %v8504, %v8655
      %8657 = vmatpush.msra.mxu0 %v8656
      %v8658 = vand.u32 %v8503, 4294901760
      %v8659 = vsub.f32 %v8503, %v8658
      %8660 = vmatpush.msra.mxu0 %v8659
      %v8661 = vand.u32 %v8502, 4294901760
      %v8662 = vsub.f32 %v8502, %v8661
      %8663 = vmatpush.msra.mxu0 %v8662
      %v8664 = vand.u32 %v8501, 4294901760
      %v8665 = vsub.f32 %v8501, %v8664
      %8666 = vmatpush.msra.mxu0 %v8665
      %v8667 = vand.u32 %v8500, 4294901760
      %v8668 = vsub.f32 %v8500, %v8667
      %8669 = vmatpush.msra.mxu0 %v8668
      %v8670 = vand.u32 %v8499, 4294901760
      %v8671 = vsub.f32 %v8499, %v8670
      %8672 = vmatpush.msra.mxu0 %v8671
      %v8673 = vand.u32 %v8498, 4294901760
      %v8674 = vsub.f32 %v8498, %v8673
      %8675 = vmatpush.msra.mxu0 %v8674
      %v8676 = vand.u32 %v8497, 4294901760
      %v8677 = vsub.f32 %v8497, %v8676
      %8678 = vmatpush.msra.mxu0 %v8677
      %v8679 = vand.u32 %v8496, 4294901760
      %v8680 = vsub.f32 %v8496, %v8679
      %8681 = vmatpush.msra.mxu0 %v8680
      %v8682 = vand.u32 %v8495, 4294901760
      %v8683 = vsub.f32 %v8495, %v8682
      %8684 = vmatpush.msra.mxu0 %v8683
      %v8685 = vand.u32 %v8494, 4294901760
      %v8686 = vsub.f32 %v8494, %v8685
      %8687 = vmatpush.msra.mxu0 %v8686
      %v8688 = vand.u32 %v8493, 4294901760
      %v8689 = vsub.f32 %v8493, %v8688
      %8690 = vmatpush.msra.mxu0 %v8689
      %v8691 = vand.u32 %v8492, 4294901760
      %v8692 = vsub.f32 %v8492, %v8691
      %8693 = vmatpush.msra.mxu0 %v8692
      %v8694 = vand.u32 %v8491, 4294901760
      %v8695 = vsub.f32 %v8491, %v8694
      %8696 = vmatpush.msra.mxu0 %v8695
      %v8697 = vand.u32 %v7636, 4294901760
      %v8698 = vsub.f32 %v7636, %v8697
      %8699 = vmatmul.f32.gmra.mxu0 %v8698
      %v8700 = vpop.f32.mrf.mxu0
      %v8701 = vadd.f32 %v8647, %v8700
      %8702 = vdwg.mxu0
      %v8703 = vand.u32 %v8506, 4294901760
      %8704 = vmatpush.msra.mxu0 %v8703
      %v8705 = vand.u32 %v8505, 4294901760
      %8706 = vmatpush.msra.mxu0 %v8705
      %v8707 = vand.u32 %v8504, 4294901760
      %8708 = vmatpush.msra.mxu0 %v8707
      %v8709 = vand.u32 %v8503, 4294901760
      %8710 = vmatpush.msra.mxu0 %v8709
      %v8711 = vand.u32 %v8502, 4294901760
      %8712 = vmatpush.msra.mxu0 %v8711
      %v8713 = vand.u32 %v8501, 4294901760
      %8714 = vmatpush.msra.mxu0 %v8713
      %v8715 = vand.u32 %v8500, 4294901760
      %8716 = vmatpush.msra.mxu0 %v8715
      %v8717 = vand.u32 %v8499, 4294901760
      %8718 = vmatpush.msra.mxu0 %v8717
      %v8719 = vand.u32 %v8498, 4294901760
      %8720 = vmatpush.msra.mxu0 %v8719
      %v8721 = vand.u32 %v8497, 4294901760
      %8722 = vmatpush.msra.mxu0 %v8721
      %v8723 = vand.u32 %v8496, 4294901760
      %8724 = vmatpush.msra.mxu0 %v8723
      %v8725 = vand.u32 %v8495, 4294901760
      %8726 = vmatpush.msra.mxu0 %v8725
      %v8727 = vand.u32 %v8494, 4294901760
      %8728 = vmatpush.msra.mxu0 %v8727
      %v8729 = vand.u32 %v8493, 4294901760
      %8730 = vmatpush.msra.mxu0 %v8729
      %v8731 = vand.u32 %v8492, 4294901760
      %8732 = vmatpush.msra.mxu0 %v8731
      %v8733 = vand.u32 %v8491, 4294901760
      %8734 = vmatpush.msra.mxu0 %v8733
      %v8735 = vand.u32 %v7636, 4294901760
      %v8736 = vsub.f32 %v7636, %v8735
      %v8737 = vand.u32 %v8736, 4294901760
      %8738 = vmatmul.f32.gmra.mxu0 %v8737
      %v8739 = vpop.f32.mrf.mxu0
      %v8740 = vadd.f32 %v8701, %v8739
      %8741 = vdwg.mxu0
      %v8742 = vand.u32 %v8506, 4294901760
      %v8743 = vsub.f32 %v8506, %v8742
      %v8744 = vand.u32 %v8743, 4294901760
      %8745 = vmatpush.msra.mxu0 %v8744
      %v8746 = vand.u32 %v8505, 4294901760
      %v8747 = vsub.f32 %v8505, %v8746
      %v8748 = vand.u32 %v8747, 4294901760
      %8749 = vmatpush.msra.mxu0 %v8748
      %v8750 = vand.u32 %v8504, 4294901760
      %v8751 = vsub.f32 %v8504, %v8750
      %v8752 = vand.u32 %v8751, 4294901760
      %8753 = vmatpush.msra.mxu0 %v8752
      %v8754 = vand.u32 %v8503, 4294901760
      %v8755 = vsub.f32 %v8503, %v8754
      %v8756 = vand.u32 %v8755, 4294901760
      %8757 = vmatpush.msra.mxu0 %v8756
      %v8758 = vand.u32 %v8502, 4294901760
      %v8759 = vsub.f32 %v8502, %v8758
      %v8760 = vand.u32 %v8759, 4294901760
      %8761 = vmatpush.msra.mxu0 %v8760
      %v8762 = vand.u32 %v8501, 4294901760
      %v8763 = vsub.f32 %v8501, %v8762
      %v8764 = vand.u32 %v8763, 4294901760
      %8765 = vmatpush.msra.mxu0 %v8764
      %v8766 = vand.u32 %v8500, 4294901760
      %v8767 = vsub.f32 %v8500, %v8766
      %v8768 = vand.u32 %v8767, 4294901760
      %8769 = vmatpush.msra.mxu0 %v8768
      %v8770 = vand.u32 %v8499, 4294901760
      %v8771 = vsub.f32 %v8499, %v8770
      %v8772 = vand.u32 %v8771, 4294901760
      %8773 = vmatpush.msra.mxu0 %v8772
      %v8774 = vand.u32 %v8498, 4294901760
      %v8775 = vsub.f32 %v8498, %v8774
      %v8776 = vand.u32 %v8775, 4294901760
      %8777 = vmatpush.msra.mxu0 %v8776
      %v8778 = vand.u32 %v8497, 4294901760
      %v8779 = vsub.f32 %v8497, %v8778
      %v8780 = vand.u32 %v8779, 4294901760
      %8781 = vmatpush.msra.mxu0 %v8780
      %v8782 = vand.u32 %v8496, 4294901760
      %v8783 = vsub.f32 %v8496, %v8782
      %v8784 = vand.u32 %v8783, 4294901760
      %8785 = vmatpush.msra.mxu0 %v8784
      %v8786 = vand.u32 %v8495, 4294901760
      %v8787 = vsub.f32 %v8495, %v8786
      %v8788 = vand.u32 %v8787, 4294901760
      %8789 = vmatpush.msra.mxu0 %v8788
      %v8790 = vand.u32 %v8494, 4294901760
      %v8791 = vsub.f32 %v8494, %v8790
      %v8792 = vand.u32 %v8791, 4294901760
      %8793 = vmatpush.msra.mxu0 %v8792
      %v8794 = vand.u32 %v8493, 4294901760
      %v8795 = vsub.f32 %v8493, %v8794
      %v8796 = vand.u32 %v8795, 4294901760
      %8797 = vmatpush.msra.mxu0 %v8796
      %v8798 = vand.u32 %v8492, 4294901760
      %v8799 = vsub.f32 %v8492, %v8798
      %v8800 = vand.u32 %v8799, 4294901760
      %8801 = vmatpush.msra.mxu0 %v8800
      %v8802 = vand.u32 %v8491, 4294901760
      %v8803 = vsub.f32 %v8491, %v8802
      %v8804 = vand.u32 %v8803, 4294901760
      %8805 = vmatpush.msra.mxu0 %v8804
      %v8806 = vand.u32 %v7636, 4294901760
      %8807 = vmatmul.f32.gmra.mxu0 %v8806
      %v8808 = vpop.f32.mrf.mxu0
      %v8809 = vadd.f32 %v8740, %v8808
      %8810 = vdwg.mxu0
      %v8811 = vand.u32 %v8506, 4294901760
      %8812 = vmatpush.msra.mxu0 %v8811
      %v8813 = vand.u32 %v8505, 4294901760
      %8814 = vmatpush.msra.mxu0 %v8813
      %v8815 = vand.u32 %v8504, 4294901760
      %8816 = vmatpush.msra.mxu0 %v8815
      %v8817 = vand.u32 %v8503, 4294901760
      %8818 = vmatpush.msra.mxu0 %v8817
      %v8819 = vand.u32 %v8502, 4294901760
      %8820 = vmatpush.msra.mxu0 %v8819
      %v8821 = vand.u32 %v8501, 4294901760
      %8822 = vmatpush.msra.mxu0 %v8821
      %v8823 = vand.u32 %v8500, 4294901760
      %8824 = vmatpush.msra.mxu0 %v8823
      %v8825 = vand.u32 %v8499, 4294901760
      %8826 = vmatpush.msra.mxu0 %v8825
      %v8827 = vand.u32 %v8498, 4294901760
      %8828 = vmatpush.msra.mxu0 %v8827
      %v8829 = vand.u32 %v8497, 4294901760
      %8830 = vmatpush.msra.mxu0 %v8829
      %v8831 = vand.u32 %v8496, 4294901760
      %8832 = vmatpush.msra.mxu0 %v8831
      %v8833 = vand.u32 %v8495, 4294901760
      %8834 = vmatpush.msra.mxu0 %v8833
      %v8835 = vand.u32 %v8494, 4294901760
      %8836 = vmatpush.msra.mxu0 %v8835
      %v8837 = vand.u32 %v8493, 4294901760
      %8838 = vmatpush.msra.mxu0 %v8837
      %v8839 = vand.u32 %v8492, 4294901760
      %8840 = vmatpush.msra.mxu0 %v8839
      %v8841 = vand.u32 %v8491, 4294901760
      %8842 = vmatpush.msra.mxu0 %v8841
      %v8843 = vand.u32 %v7636, 4294901760
      %8844 = vmatmul.f32.gmra.mxu0 %v8843
      %v8845 = vpop.f32.mrf.mxu0
      %v8846 = vadd.f32 %v8809, %v8845
      %8847 = vdwg.mxu0
      %8848 = vmax.xlane.f32.xlu0 %v8846
      %v8849 = vpop.xlane.xlu0 %8848
      %v8850 = vrcp.pop %v8849
      %v8851 = vmul.f32 %v8846, %v8850
      %8852 = vst [vmem:[%s168] sm:$0xff] %v8851
      %p8853 = scmp.lt.s32.totalorder %s14, 1
      %s8854 = scalar_select %p8853, %s14, 1
      %s8855 = smul.addr %s8854, 8
      %s8856 = scalar_lea.vmem %s3, %s8855
      // Predicated region
      $region33: #{patch_quantum_generator_forward.1} parent=31 // pred_check
        %p8857 = pneg %p100
      $region34: #{patch_quantum_generator_forward.1} parent=31 // pred_check_branch
        %8859 = sbr.rel (%p8857) target = $region36
      $region35: #{patch_quantum_generator_forward.1} parent=31 // pred_region
        _
      $region36: #{patch_quantum_generator_forward.1} parent=31 // pred_fallthru
        _
    $region32: #{patch_quantum_generator_forward.1} parent=5 // pred_fallthru
      _
    %p8860 = scmp.le.s32.totalorder 2, %s9
    // Predicated region
    $region37: #{patch_quantum_generator_forward.1} parent=5 // pred_check
      %p8861 = pneg %p8860
    $region38: #{patch_quantum_generator_forward.1} parent=5 // pred_check_branch
      %8863 = sbr.rel (%p8861) target = $region40
    $region39: #{patch_quantum_generator_forward.1} parent=5 // pred_region
      %s8864 = ssub.s32 %s9, 2
      // Predicated region
      $region41: #{patch_quantum_generator_forward.1} parent=39 // pred_check
        %p8865 = pneg %p106
      $region42: #{patch_quantum_generator_forward.1} parent=39 // pred_check_branch
        %8867 = sbr.rel (%p8865) target = $region44
      $region43: #{patch_quantum_generator_forward.1} parent=39 // pred_region
        %p8868 = scmp.lt.s32.totalorder %s15, 1
        %s8869 = scalar_select %p8868, %s15, 1
        %s8870 = smul.addr %s8869, 8
        %s8871 = scalar_lea.vmem %s3, %s8870
      $region44: #{patch_quantum_generator_forward.1} parent=39 // pred_fallthru
        _
    $region40: #{patch_quantum_generator_forward.1} parent=5 // pred_fallthru
      _
  $region6: #{patch_quantum_generator_forward.1} parent=0 // loop_footer
    %s13 = sadd.s32 1, %s9
  $region7: #{patch_quantum_generator_forward.1} parent=0 // loop_footer_branch
    %8 = sbr.rel target = $region3
  $region8: #{patch_quantum_generator_forward.1} parent=0 // loop_exit
    _

</llo_original>
